<compile_context>
chip_gen: v6e
topology: v6e:2x2x1
jax: 0.10.0
libtpu: 0.0.40
codegen_flags: <defaults>
</compile_context>

<pallas_src>
import functools

import jax
import jax.numpy as jnp
import numpy as np
from jax.experimental import pallas as pl
from jax.experimental.pallas import tpu as pltpu

BN_EPS = 1e-5


def _round_up(x, m):
    return ((x + m - 1) // m) * m


# ---------------------------------------------------------------------------
# Kernel 1: conv1 (3x3, stride 1, pad 1) + per-block BN partial statistics.
#   xpad_ref  : (B, H+2, Wp, Cp) bf16   spatially zero-padded images
#   w_ref     : (9, Cp, Cp)      bf16   one (Cin, Cout) matrix per tap
#   y_ref     : (B, H*W, Cp)     bf16   conv output (pre-BN), lane-dense
#   pstats_ref: (1, 2, Cp)       f32    per-grid-block [sum ; sum(x^2)]
# ---------------------------------------------------------------------------
def _conv1_stats_kernel(xpad_ref, w_ref, y_ref, pstats_ref, *, bb, h, w, cpad):
    xp = xpad_ref[...]                                    # (B, Hp, Wp, Cp) bf16
    acc = jnp.zeros((bb * h * w, cpad), jnp.float32)
    for t in range(9):                                    # static tap loop, no im2col concat
        kh, kw = divmod(t, 3)
        tap = xp[:, kh:kh + h, kw:kw + w, :].reshape(bb * h * w, cpad)
        acc += jnp.dot(tap, w_ref[t], preferred_element_type=jnp.float32)
    y_ref[...] = acc.reshape(bb, h * w, cpad).astype(y_ref.dtype)
    ssum = jnp.sum(acc, axis=0, keepdims=True)            # f32 stats BEFORE bf16 cast
    ssq = jnp.sum(acc * acc, axis=0, keepdims=True)
    pstats_ref[...] = jnp.concatenate([ssum, ssq], axis=0).reshape(1, 2, cpad)


# ---------------------------------------------------------------------------
# Kernel 2 (fused): BN1-apply + ReLU + spatial zero-pad + conv2 + BN2 partials.
#   y1_ref    : (B, H*W, Cp) bf16    conv1 output
#   scale_ref : (1, Cp) f32          folded BN1 scale
#   shift_ref : (1, Cp) f32          folded BN1 shift
#   w_ref     : (9, Cp, Cp) bf16
#   y_ref     : (B, H*W, Cp) f32     conv2 output (pre-BN)
#   pstats_ref: (1, 2, Cp)   f32
#   xpad_scr  : (B, H+2, Wp, Cp) bf16 VMEM scratch (padded activation)
# ---------------------------------------------------------------------------
def _conv2_fused_kernel(y1_ref, scale_ref, shift_ref, w_ref, y_ref, pstats_ref,
                        xpad_scr, *, bb, h, w, cpad):
    # Zero the padded scratch every step (keeps the halo correct even when the
    # grid axis is split across TensorCores), then write the activated interior.
    xpad_scr[...] = jnp.zeros_like(xpad_scr)
    a1 = jnp.maximum(
        y1_ref[...].astype(jnp.float32) * scale_ref[...] + shift_ref[...], 0.0)
    xpad_scr[:, 1:1 + h, 1:1 + w, :] = (
        a1.reshape(bb, h, w, cpad).astype(xpad_scr.dtype))

    xp = xpad_scr[...]
    acc = jnp.zeros((bb * h * w, cpad), jnp.float32)
    for t in range(9):
        kh, kw = divmod(t, 3)
        tap = xp[:, kh:kh + h, kw:kw + w, :].reshape(bb * h * w, cpad)
        acc += jnp.dot(tap, w_ref[t], preferred_element_type=jnp.float32)
    y_ref[...] = acc.reshape(bb, h * w, cpad)
    ssum = jnp.sum(acc, axis=0, keepdims=True)
    ssq = jnp.sum(acc * acc, axis=0, keepdims=True)
    pstats_ref[...] = jnp.concatenate([ssum, ssq], axis=0).reshape(1, 2, cpad)


# ---------------------------------------------------------------------------
# Kernel 3: BN2-apply + identity residual + ReLU (final output, f32).
# ---------------------------------------------------------------------------
def _bn2_residual_relu_kernel(y_ref, res_ref, scale_ref, shift_ref, o_ref):
    out = y_ref[...] * scale_ref[...] + shift_ref[...] + res_ref[...]
    o_ref[...] = jnp.maximum(out, 0.0).astype(o_ref.dtype)


def _bn_fold(pstats, gamma, beta, inv_count):
    """Tiny XLA op: combine per-block partials, fold train-mode BN into y*s + t."""
    stats = jnp.sum(pstats, axis=0)                       # (2, Cp)
    mean = stats[0] * inv_count
    var = jnp.maximum(stats[1] * inv_count - mean * mean, 0.0)
    scale = gamma * jax.lax.rsqrt(var + BN_EPS)
    shift = beta - mean * scale
    return scale.reshape(1, -1), shift.reshape(1, -1)


def _vmem_limit_bytes():
    """Per-chip scoped VMEM: ~54 MiB on v7x (64 MiB/TC), ~100 MiB on v5e/v6e."""
    cap = 64 * 1024 * 1024                                # conservative default (v7x)
    try:
        info = pltpu.get_tpu_info()
        cap = int(getattr(info, "vmem_capacity_bytes", cap)) or cap
    except Exception:
        pass
    return min(int(cap * 0.85), 100 * 1024 * 1024)


def _pick_block_batch(n, hp, wp, hw, cpad, vmem_limit):
    """Images per grid step: largest B that divides n, fits the VMEM budget,
    and leaves >= 2 grid steps (so both v7x TensorCores get work)."""
    per_img = (2 * hp * wp * cpad * 2          # bf16 padded input (double-buffered)
               + 2 * hw * cpad * 2             # bf16 y1 block (double-buffered)
               + 2 * hw * cpad * (4 + 4 + 4)   # f32 y2 / residual / out blocks
               + hp * wp * cpad * 2            # conv2 padded-activation scratch
               + hw * cpad * 4)                # f32 accumulator value
    weights = 2 * 9 * cpad * cpad * 2          # double-buffered packed weights
    budget = max(int(vmem_limit * 0.7) - weights, per_img)
    b = max(1, min(n, budget // per_img))
    if n >= 2:
        b = min(b, n // 2)                     # keep at least two grid steps
    b = max(b, 1)
    while n % b:                               # require b | n
        b -= 1
    return b


@jax.jit
def residual_block(x_nchw, w1_oihw, g1, b1, w2_oihw, g2, b2):
    """NCHW in / NCHW out forward pass matching the PyTorch module (train-mode BN)."""
    n, c, h, w = x_nchw.shape
    cout = w1_oihw.shape[0]
    assert cout == c, "stride=1, downsample=None requires in_channels == out_channels"
    cpad = _round_up(c, 128)                   # lane-dense channel pad
    hp = h + 2
    wp = _round_up(w + 2, 8)                   # sublane-friendly padded width
    hw = h * w
    inv_count = 1.0 / float(n * hw)
    vmem_limit = _vmem_limit_bytes()
    bb = _pick_block_batch(n, hp, wp, hw, cpad, vmem_limit)
    nblk = n // bb

    # ---- wrapper glue: layout conversion / zero padding only (no compute) ----
    x_nhwc = jnp.transpose(x_nchw, (0, 2, 3, 1)).astype(jnp.float32)
    x_nhwc = jnp.pad(x_nhwc, ((0, 0), (0, 0), (0, 0), (0, cpad - c)))
    x_res = x_nhwc.reshape(n, hw, cpad)                                   # f32 residual
    xpad1 = jnp.pad(x_nhwc, ((0, 0), (1, 1), (1, wp - w - 1), (0, 0))
                    ).astype(jnp.bfloat16)

    def pack_w(w_oihw):   # OIHW -> (9, Cp_in, Cp_out), tap-major
        wt = jnp.transpose(w_oihw, (2, 3, 1, 0)).astype(jnp.float32)      # (3,3,I,O)
        wt = jnp.pad(wt, ((0, 0), (0, 0), (0, cpad - c), (0, cpad - cout)))
        return wt.reshape(9, cpad, cpad).astype(jnp.bfloat16)

    def pack_p(p):        # (C,) -> (Cp,)
        return jnp.pad(p.astype(jnp.float32), (0, cpad - c))

    w1m, w2m = pack_w(w1_oihw), pack_w(w2_oihw)
    g1p, b1p, g2p, b2p = pack_p(g1), pack_p(b1), pack_p(g2), pack_p(b2)

    cparams = pltpu.CompilerParams(
        dimension_semantics=("parallel",),     # shard the batch axis across v7x's 2 TCs
        vmem_limit_bytes=vmem_limit)

    conv1_call = pl.pallas_call(
        functools.partial(_conv1_stats_kernel, bb=bb, h=h, w=w, cpad=cpad),
        grid=(nblk,),
        in_specs=[
            pl.BlockSpec((bb, hp, wp, cpad), lambda i: (i, 0, 0, 0)),
            pl.BlockSpec((9, cpad, cpad), lambda i: (0, 0, 0)),
        ],
        out_specs=(
            pl.BlockSpec((bb, hw, cpad), lambda i: (i, 0, 0)),
            pl.BlockSpec((1, 2, cpad), lambda i: (i, 0, 0)),
        ),
        out_shape=(
            jax.ShapeDtypeStruct((n, hw, cpad), jnp.bfloat16),
            jax.ShapeDtypeStruct((nblk, 2, cpad), jnp.float32),
        ),
        compiler_params=cparams,
    )

    conv2_call = pl.pallas_call(
        functools.partial(_conv2_fused_kernel, bb=bb, h=h, w=w, cpad=cpad),
        grid=(nblk,),
        in_specs=[
            pl.BlockSpec((bb, hw, cpad), lambda i: (i, 0, 0)),
            pl.BlockSpec((1, cpad), lambda i: (0, 0)),
            pl.BlockSpec((1, cpad), lambda i: (0, 0)),
            pl.BlockSpec((9, cpad, cpad), lambda i: (0, 0, 0)),
        ],
        out_specs=(
            pl.BlockSpec((bb, hw, cpad), lambda i: (i, 0, 0)),
            pl.BlockSpec((1, 2, cpad), lambda i: (i, 0, 0)),
        ),
        out_shape=(
            jax.ShapeDtypeStruct((n, hw, cpad), jnp.float32),
            jax.ShapeDtypeStruct((nblk, 2, cpad), jnp.float32),
        ),
        scratch_shapes=[pltpu.VMEM((bb, hp, wp, cpad), jnp.bfloat16)],
        compiler_params=cparams,
    )

    bn2_call = pl.pallas_call(
        _bn2_residual_relu_kernel,
        grid=(nblk,),
        in_specs=[
            pl.BlockSpec((bb, hw, cpad), lambda i: (i, 0, 0)),
            pl.BlockSpec((bb, hw, cpad), lambda i: (i, 0, 0)),
            pl.BlockSpec((1, cpad), lambda i: (0, 0)),
            pl.BlockSpec((1, cpad), lambda i: (0, 0)),
        ],
        out_specs=pl.BlockSpec((bb, hw, cpad), lambda i: (i, 0, 0)),
        out_shape=jax.ShapeDtypeStruct((n, hw, cpad), jnp.float32),
        compiler_params=cparams,
    )

    # conv1 + stats -> fold BN1 -> fused BN1-apply/ReLU/pad + conv2 + stats
    # -> fold BN2 -> BN2-apply + residual + ReLU.
    y1, pstats1 = conv1_call(xpad1, w1m)
    scale1, shift1 = _bn_fold(pstats1, g1p, b1p, inv_count)
    y2, pstats2 = conv2_call(y1, scale1, shift1, w2m)
    scale2, shift2 = _bn_fold(pstats2, g2p, b2p, inv_count)
    out_flat = bn2_call(y2, x_res, scale2, shift2)

    out = out_flat.reshape(n, h, w, cpad)[..., :c]
    return jnp.transpose(out, (0, 3, 1, 2))


def reference_forward(x, w1, g1, b1, w2, g2, b2, conv_dtype=jnp.float32,
                      quantize_intermediate=False):
    """Pure-JAX (XLA) reference of the PyTorch forward (train-mode BN).

    conv_dtype=bf16 + quantize_intermediate=True mirrors the kernel's MXU
    operand precision and its bf16 inter-stage activation slab."""
    def bn(y, g, b):
        mean = jnp.mean(y, axis=(0, 2, 3), keepdims=True)
        var = jnp.mean((y - mean) ** 2, axis=(0, 2, 3), keepdims=True)
        return ((y - mean) * jax.lax.rsqrt(var + BN_EPS)
                * g.reshape(1, -1, 1, 1) + b.reshape(1, -1, 1, 1))

    prec = (jax.lax.Precision.HIGHEST if conv_dtype == jnp.float32
            else jax.lax.Precision.DEFAULT)

    def conv(inp, wt):
        return jax.lax.conv_general_dilated(
            inp.astype(conv_dtype), wt.astype(conv_dtype),
            window_strides=(1, 1), padding=((1, 1), (1, 1)),
            dimension_numbers=("NCHW", "OIHW", "NCHW"),
            preferred_element_type=jnp.float32, precision=prec)

    y1 = conv(x, w1)
    if quantize_intermediate:                    # mirror the kernel's bf16 y1 slab
        y1 = y1.astype(jnp.bfloat16).astype(jnp.float32)
    out = jnp.maximum(bn(y1, g1, b1), 0.0)
    out = bn(conv(out, w2), g2, b2) + x
    return jnp.maximum(out, 0.0)


if __name__ == "__main__":
    key = jax.random.PRNGKey(0)
    N, C, H, W = 2, 4, 16, 16          # in_channels == out_channels == 4, stride=1
    k1, k2, k3, k4, k5, k6, k7 = jax.random.split(key, 7)

    x = jax.random.normal(k1, (N, C, H, W), jnp.float32)
    fan_in = C * 3 * 3
    w1 = jax.random.normal(k2, (C, C, 3, 3), jnp.float32) / np.sqrt(fan_in)  # conv1.weight
    w2 = jax.random.normal(k3, (C, C, 3, 3), jnp.float32) / np.sqrt(fan_in)  # conv2.weight
    g1 = 1.0 + 0.1 * jax.random.normal(k4, (C,), jnp.float32)                # bn1.weight
    b1 = 0.1 * jax.random.normal(k5, (C,), jnp.float32)                      # bn1.bias
    g2 = 1.0 + 0.1 * jax.random.normal(k6, (C,), jnp.float32)                # bn2.weight
    b2 = 0.1 * jax.random.normal(k7, (C,), jnp.float32)                      # bn2.bias

    out = jax.block_until_ready(residual_block(x, w1, g1, b1, w2, g2, b2))

    # 1) precision-matched reference (bf16 conv operands + bf16 inter-stage slab)
    ref_matched = reference_forward(x, w1, g1, b1, w2, g2, b2,
                                    conv_dtype=jnp.bfloat16,
                                    quantize_intermediate=True)
    np.testing.assert_allclose(np.asarray(out), np.asarray(ref_matched),
                               rtol=1e-2, atol=1e-2)

    # 2) full-f32 reference of the PyTorch module (looser: kernel uses bf16 MXU)
    ref_f32 = reference_forward(x, w1, g1, b1, w2, g2, b2,
                                conv_dtype=jnp.float32)
    np.testing.assert_allclose(np.asarray(out), np.asarray(ref_f32),
                               rtol=5e-2, atol=5e-2)

    print("KERNEL_OK")
</pallas_src>

<mosaic_0001>
module attributes {stable_mosaic.version = 11 : i64} {
  func.func @_bn2_residual_relu_kernel(%arg0: i32, %arg1: memref<1x256x128xf32, #tpu.memory_space<vmem>>, %arg2: memref<1x256x128xf32, #tpu.memory_space<vmem>>, %arg3: memref<1x128xf32, #tpu.memory_space<vmem>>, %arg4: memref<1x128xf32, #tpu.memory_space<vmem>>, %arg5: memref<1x256x128xf32, #tpu.memory_space<vmem>>) attributes {dimension_semantics = [#tpu.dimension_semantics<parallel>], iteration_bounds = array<i64: 2>, scalar_prefetch = 0 : i64, scratch_operands = 0 : i64, tpu.core_type = #tpu.core_type<tc>, window_params = [{transform_indices = @transform_0, window_bounds = array<i64: 1, 256, 128>}, {transform_indices = @transform_1, window_bounds = array<i64: 1, 256, 128>}, {pipeline_mode = #tpu.pipeline_mode<synchronous>, transform_indices = @transform_2, window_bounds = array<i64: 1, 128>}, {pipeline_mode = #tpu.pipeline_mode<synchronous>, transform_indices = @transform_3, window_bounds = array<i64: 1, 128>}, {transform_indices = @transform_4, window_bounds = array<i64: 1, 256, 128>}]} {
    %c0 = arith.constant 0 : index
    %c0_0 = arith.constant 0 : index
    %c0_1 = arith.constant 0 : index
    %0 = vector.load %arg1[%c0, %c0_0, %c0_1] : memref<1x256x128xf32, #tpu.memory_space<vmem>>, vector<1x256x128xf32>
    %c0_2 = arith.constant 0 : index
    %c0_3 = arith.constant 0 : index
    %1 = vector.load %arg3[%c0_2, %c0_3] : memref<1x128xf32, #tpu.memory_space<vmem>>, vector<1x128xf32>
    %2 = vector.shape_cast %1 : vector<1x128xf32> to vector<1x1x128xf32>
    %3 = vector.broadcast %2 : vector<1x1x128xf32> to vector<1x256x128xf32>
    %4 = arith.mulf %0, %3 : vector<1x256x128xf32>
    %c0_4 = arith.constant 0 : index
    %c0_5 = arith.constant 0 : index
    %5 = vector.load %arg4[%c0_4, %c0_5] : memref<1x128xf32, #tpu.memory_space<vmem>>, vector<1x128xf32>
    %6 = vector.shape_cast %5 : vector<1x128xf32> to vector<1x1x128xf32>
    %7 = vector.broadcast %6 : vector<1x1x128xf32> to vector<1x256x128xf32>
    %8 = arith.addf %4, %7 : vector<1x256x128xf32>
    %c0_6 = arith.constant 0 : index
    %c0_7 = arith.constant 0 : index
    %c0_8 = arith.constant 0 : index
    %9 = vector.load %arg2[%c0_6, %c0_7, %c0_8] : memref<1x256x128xf32, #tpu.memory_space<vmem>>, vector<1x256x128xf32>
    %10 = arith.addf %8, %9 : vector<1x256x128xf32>
    %cst = arith.constant 0.000000e+00 : f32
    %11 = vector.broadcast %cst : f32 to vector<1x256x128xf32>
    %12 = arith.maximumf %10, %11 : vector<1x256x128xf32>
    %c0_9 = arith.constant 0 : index
    %c0_10 = arith.constant 0 : index
    %c0_11 = arith.constant 0 : index
    %13 = vector.load %arg5[%c0_9, %c0_10, %c0_11] : memref<1x256x128xf32, #tpu.memory_space<vmem>>, vector<1x256x128xf32>
    tpu.vector_store %arg5[%c0_9, %c0_10, %c0_11], %12 {strides = array<i32>} : memref<1x256x128xf32, #tpu.memory_space<vmem>>, vector<1x256x128xf32>,
    return
  }
  func.func @transform_0(%arg0: i32) -> (i32, i32, i32) {
    %c0_i32 = arith.constant 0 : i32
    %c0_i32_0 = arith.constant 0 : i32
    %c0_i32_1 = arith.constant 0 : i32
    return %arg0, %c0_i32, %c0_i32_0 : i32, i32, i32
  }
  func.func @transform_1(%arg0: i32) -> (i32, i32, i32) {
    %c0_i32 = arith.constant 0 : i32
    %c0_i32_0 = arith.constant 0 : i32
    %c0_i32_1 = arith.constant 0 : i32
    return %arg0, %c0_i32, %c0_i32_0 : i32, i32, i32
  }
  func.func @transform_2(%arg0: i32) -> (i32, i32) {
    %c0_i32 = arith.constant 0 : i32
    %c0_i32_0 = arith.constant 0 : i32
    %c0_i32_1 = arith.constant 0 : i32
    return %c0_i32, %c0_i32_0 : i32, i32
  }
  func.func @transform_3(%arg0: i32) -> (i32, i32) {
    %c0_i32 = arith.constant 0 : i32
    %c0_i32_0 = arith.constant 0 : i32
    %c0_i32_1 = arith.constant 0 : i32
    return %c0_i32, %c0_i32_0 : i32, i32
  }
  func.func @transform_4(%arg0: i32) -> (i32, i32, i32) {
    %c0_i32 = arith.constant 0 : i32
    %c0_i32_0 = arith.constant 0 : i32
    %c0_i32_1 = arith.constant 0 : i32
    return %arg0, %c0_i32, %c0_i32_0 : i32, i32, i32
  }
}

module attributes {stable_mosaic.version = 11 : i64} {
  func.func @_conv1_stats_kernel(%arg0: i32, %arg1: memref<1x18x24x128xbf16, #tpu.memory_space<vmem>>, %arg2: memref<9x128x128xbf16, #tpu.memory_space<vmem>>, %arg3: memref<1x256x128xbf16, #tpu.memory_space<vmem>>, %arg4: memref<1x2x128xf32, #tpu.memory_space<vmem>>) attributes {dimension_semantics = [#tpu.dimension_semantics<parallel>], iteration_bounds = array<i64: 2>, scalar_prefetch = 0 : i64, scratch_operands = 0 : i64, tpu.core_type = #tpu.core_type<tc>, window_params = [{transform_indices = @transform_0, window_bounds = array<i64: 1, 18, 24, 128>}, {pipeline_mode = #tpu.pipeline_mode<synchronous>, transform_indices = @transform_1, window_bounds = array<i64: 9, 128, 128>}, {transform_indices = @transform_2, window_bounds = array<i64: 1, 256, 128>}, {transform_indices = @transform_3, window_bounds = array<i64: 1, 2, 128>}]} {
    %c0 = arith.constant 0 : index
    %c0_0 = arith.constant 0 : index
    %c0_1 = arith.constant 0 : index
    %c0_2 = arith.constant 0 : index
    %0 = vector.load %arg1[%c0, %c0_0, %c0_1, %c0_2] : memref<1x18x24x128xbf16, #tpu.memory_space<vmem>>, vector<1x18x24x128xbf16>
    %cst = arith.constant 0.000000e+00 : f32
    %1 = vector.broadcast %cst : f32 to vector<256x128xf32>
    %2 = vector.extract_strided_slice %0 {offsets = [0, 0, 0, 0], sizes = [1, 16, 16, 128], strides = [1, 1, 1, 1]} : vector<1x18x24x128xbf16> to vector<1x16x16x128xbf16>
    %3 = vector.shape_cast %2 : vector<1x16x16x128xbf16> to vector<256x128xbf16>
    %c0_3 = arith.constant 0 : index
    %c0_4 = arith.constant 0 : index
    %c0_5 = arith.constant 0 : index
    %4 = vector.load %arg2[%c0_3, %c0_4, %c0_5] : memref<9x128x128xbf16, #tpu.memory_space<vmem>>, vector<1x128x128xbf16>
    %5 = vector.shape_cast %4 : vector<1x128x128xbf16> to vector<128x128xbf16>
    %cst_6 = arith.constant dense<0.000000e+00> : vector<256x128xf32>
    %6 = tpu.matmul %3, %5, %cst_6 {dimension_numbers = #tpu.dot_dimension_numbers<[1], [0], [0], [1], [0, 0, 1, 1], [], []>} : vector<256x128xbf16>, vector<128x128xbf16>, vector<256x128xf32> -> vector<256x128xf32>
    %7 = arith.addf %1, %6 : vector<256x128xf32>
    %8 = vector.extract_strided_slice %0 {offsets = [0, 0, 1, 0], sizes = [1, 16, 16, 128], strides = [1, 1, 1, 1]} : vector<1x18x24x128xbf16> to vector<1x16x16x128xbf16>
    %9 = vector.shape_cast %8 : vector<1x16x16x128xbf16> to vector<256x128xbf16>
    %c1 = arith.constant 1 : index
    %c0_7 = arith.constant 0 : index
    %c0_8 = arith.constant 0 : index
    %10 = vector.load %arg2[%c1, %c0_7, %c0_8] : memref<9x128x128xbf16, #tpu.memory_space<vmem>>, vector<1x128x128xbf16>
    %11 = vector.shape_cast %10 : vector<1x128x128xbf16> to vector<128x128xbf16>
    %cst_9 = arith.constant dense<0.000000e+00> : vector<256x128xf32>
    %12 = tpu.matmul %9, %11, %cst_9 {dimension_numbers = #tpu.dot_dimension_numbers<[1], [0], [0], [1], [0, 0, 1, 1], [], []>} : vector<256x128xbf16>, vector<128x128xbf16>, vector<256x128xf32> -> vector<256x128xf32>
    %13 = arith.addf %7, %12 : vector<256x128xf32>
    %14 = vector.extract_strided_slice %0 {offsets = [0, 0, 2, 0], sizes = [1, 16, 16, 128], strides = [1, 1, 1, 1]} : vector<1x18x24x128xbf16> to vector<1x16x16x128xbf16>
    %15 = vector.shape_cast %14 : vector<1x16x16x128xbf16> to vector<256x128xbf16>
    %c2 = arith.constant 2 : index
    %c0_10 = arith.constant 0 : index
    %c0_11 = arith.constant 0 : index
    %16 = vector.load %arg2[%c2, %c0_10, %c0_11] : memref<9x128x128xbf16, #tpu.memory_space<vmem>>, vector<1x128x128xbf16>
    %17 = vector.shape_cast %16 : vector<1x128x128xbf16> to vector<128x128xbf16>
    %cst_12 = arith.constant dense<0.000000e+00> : vector<256x128xf32>
    %18 = tpu.matmul %15, %17, %cst_12 {dimension_numbers = #tpu.dot_dimension_numbers<[1], [0], [0], [1], [0, 0, 1, 1], [], []>} : vector<256x128xbf16>, vector<128x128xbf16>, vector<256x128xf32> -> vector<256x128xf32>
    %19 = arith.addf %13, %18 : vector<256x128xf32>
    %20 = vector.extract_strided_slice %0 {offsets = [0, 1, 0, 0], sizes = [1, 16, 16, 128], strides = [1, 1, 1, 1]} : vector<1x18x24x128xbf16> to vector<1x16x16x128xbf16>
    %21 = vector.shape_cast %20 : vector<1x16x16x128xbf16> to vector<256x128xbf16>
    %c3 = arith.constant 3 : index
    %c0_13 = arith.constant 0 : index
    %c0_14 = arith.constant 0 : index
    %22 = vector.load %arg2[%c3, %c0_13, %c0_14] : memref<9x128x128xbf16, #tpu.memory_space<vmem>>, vector<1x128x128xbf16>
    %23 = vector.shape_cast %22 : vector<1x128x128xbf16> to vector<128x128xbf16>
    %cst_15 = arith.constant dense<0.000000e+00> : vector<256x128xf32>
    %24 = tpu.matmul %21, %23, %cst_15 {dimension_numbers = #tpu.dot_dimension_numbers<[1], [0], [0], [1], [0, 0, 1, 1], [], []>} : vector<256x128xbf16>, vector<128x128xbf16>, vector<256x128xf32> -> vector<256x128xf32>
    %25 = arith.addf %19, %24 : vector<256x128xf32>
    %26 = vector.extract_strided_slice %0 {offsets = [0, 1, 1, 0], sizes = [1, 16, 16, 128], strides = [1, 1, 1, 1]} : vector<1x18x24x128xbf16> to vector<1x16x16x128xbf16>
    %27 = vector.shape_cast %26 : vector<1x16x16x128xbf16> to vector<256x128xbf16>
    %c4 = arith.constant 4 : index
    %c0_16 = arith.constant 0 : index
    %c0_17 = arith.constant 0 : index
    %28 = vector.load %arg2[%c4, %c0_16, %c0_17] : memref<9x128x128xbf16, #tpu.memory_space<vmem>>, vector<1x128x128xbf16>
    %29 = vector.shape_cast %28 : vector<1x128x128xbf16> to vector<128x128xbf16>
    %cst_18 = arith.constant dense<0.000000e+00> : vector<256x128xf32>
    %30 = tpu.matmul %27, %29, %cst_18 {dimension_numbers = #tpu.dot_dimension_numbers<[1], [0], [0], [1], [0, 0, 1, 1], [], []>} : vector<256x128xbf16>, vector<128x128xbf16>, vector<256x128xf32> -> vector<256x128xf32>
    %31 = arith.addf %25, %30 : vector<256x128xf32>
    %32 = vector.extract_strided_slice %0 {offsets = [0, 1, 2, 0], sizes = [1, 16, 16, 128], strides = [1, 1, 1, 1]} : vector<1x18x24x128xbf16> to vector<1x16x16x128xbf16>
    %33 = vector.shape_cast %32 : vector<1x16x16x128xbf16> to vector<256x128xbf16>
    %c5 = arith.constant 5 : index
    %c0_19 = arith.constant 0 : index
    %c0_20 = arith.constant 0 : index
    %34 = vector.load %arg2[%c5, %c0_19, %c0_20] : memref<9x128x128xbf16, #tpu.memory_space<vmem>>, vector<1x128x128xbf16>
    %35 = vector.shape_cast %34 : vector<1x128x128xbf16> to vector<128x128xbf16>
    %cst_21 = arith.constant dense<0.000000e+00> : vector<256x128xf32>
    %36 = tpu.matmul %33, %35, %cst_21 {dimension_numbers = #tpu.dot_dimension_numbers<[1], [0], [0], [1], [0, 0, 1, 1], [], []>} : vector<256x128xbf16>, vector<128x128xbf16>, vector<256x128xf32> -> vector<256x128xf32>
    %37 = arith.addf %31, %36 : vector<256x128xf32>
    %38 = vector.extract_strided_slice %0 {offsets = [0, 2, 0, 0], sizes = [1, 16, 16, 128], strides = [1, 1, 1, 1]} : vector<1x18x24x128xbf16> to vector<1x16x16x128xbf16>
    %39 = vector.shape_cast %38 : vector<1x16x16x128xbf16> to vector<256x128xbf16>
    %c6 = arith.constant 6 : index
    %c0_22 = arith.constant 0 : index
    %c0_23 = arith.constant 0 : index
    %40 = vector.load %arg2[%c6, %c0_22, %c0_23] : memref<9x128x128xbf16, #tpu.memory_space<vmem>>, vector<1x128x128xbf16>
    %41 = vector.shape_cast %40 : vector<1x128x128xbf16> to vector<128x128xbf16>
    %cst_24 = arith.constant dense<0.000000e+00> : vector<256x128xf32>
    %42 = tpu.matmul %39, %41, %cst_24 {dimension_numbers = #tpu.dot_dimension_numbers<[1], [0], [0], [1], [0, 0, 1, 1], [], []>} : vector<256x128xbf16>, vector<128x128xbf16>, vector<256x128xf32> -> vector<256x128xf32>
    %43 = arith.addf %37, %42 : vector<256x128xf32>
    %44 = vector.extract_strided_slice %0 {offsets = [0, 2, 1, 0], sizes = [1, 16, 16, 128], strides = [1, 1, 1, 1]} : vector<1x18x24x128xbf16> to vector<1x16x16x128xbf16>
    %45 = vector.shape_cast %44 : vector<1x16x16x128xbf16> to vector<256x128xbf16>
    %c7 = arith.constant 7 : index
    %c0_25 = arith.constant 0 : index
    %c0_26 = arith.constant 0 : index
    %46 = vector.load %arg2[%c7, %c0_25, %c0_26] : memref<9x128x128xbf16, #tpu.memory_space<vmem>>, vector<1x128x128xbf16>
    %47 = vector.shape_cast %46 : vector<1x128x128xbf16> to vector<128x128xbf16>
    %cst_27 = arith.constant dense<0.000000e+00> : vector<256x128xf32>
    %48 = tpu.matmul %45, %47, %cst_27 {dimension_numbers = #tpu.dot_dimension_numbers<[1], [0], [0], [1], [0, 0, 1, 1], [], []>} : vector<256x128xbf16>, vector<128x128xbf16>, vector<256x128xf32> -> vector<256x128xf32>
    %49 = arith.addf %43, %48 : vector<256x128xf32>
    %50 = vector.extract_strided_slice %0 {offsets = [0, 2, 2, 0], sizes = [1, 16, 16, 128], strides = [1, 1, 1, 1]} : vector<1x18x24x128xbf16> to vector<1x16x16x128xbf16>
    %51 = vector.shape_cast %50 : vector<1x16x16x128xbf16> to vector<256x128xbf16>
    %c8 = arith.constant 8 : index
    %c0_28 = arith.constant 0 : index
    %c0_29 = arith.constant 0 : index
    %52 = vector.load %arg2[%c8, %c0_28, %c0_29] : memref<9x128x128xbf16, #tpu.memory_space<vmem>>, vector<1x128x128xbf16>
    %53 = vector.shape_cast %52 : vector<1x128x128xbf16> to vector<128x128xbf16>
    %cst_30 = arith.constant dense<0.000000e+00> : vector<256x128xf32>
    %54 = tpu.matmul %51, %53, %cst_30 {dimension_numbers = #tpu.dot_dimension_numbers<[1], [0], [0], [1], [0, 0, 1, 1], [], []>} : vector<256x128xbf16>, vector<128x128xbf16>, vector<256x128xf32> -> vector<256x128xf32>
    %55 = arith.addf %49, %54 : vector<256x128xf32>
    %56 = vector.shape_cast %55 : vector<256x128xf32> to vector<1x256x128xf32>
    %57 = arith.truncf %56 : vector<1x256x128xf32> to vector<1x256x128xbf16>
    %c0_31 = arith.constant 0 : index
    %c0_32 = arith.constant 0 : index
    %c0_33 = arith.constant 0 : index
    %58 = vector.load %arg3[%c0_31, %c0_32, %c0_33] : memref<1x256x128xbf16, #tpu.memory_space<vmem>>, vector<1x256x128xbf16>
    tpu.vector_store %arg3[%c0_31, %c0_32, %c0_33], %57 {strides = array<i32>} : memref<1x256x128xbf16, #tpu.memory_space<vmem>>, vector<1x256x128xbf16>,
    %cst_34 = arith.constant dense<0.000000e+00> : vector<128xf32>
    %59 = vector.multi_reduction <add>, %55, %cst_34 [0] : vector<256x128xf32> to vector<128xf32>
    %60 = vector.shape_cast %59 : vector<128xf32> to vector<1x128xf32>
    %61 = arith.mulf %55, %55 : vector<256x128xf32>
    %cst_35 = arith.constant dense<0.000000e+00> : vector<128xf32>
    %62 = vector.multi_reduction <add>, %61, %cst_35 [0] : vector<256x128xf32> to vector<128xf32>
    %63 = vector.shape_cast %62 : vector<128xf32> to vector<1x128xf32>
    %64 = tpu.concatenate %60, %63 in 0 : vector<1x128xf32>, vector<1x128xf32> -> vector<2x128xf32>
    %65 = vector.shape_cast %64 : vector<2x128xf32> to vector<1x2x128xf32>
    %c0_36 = arith.constant 0 : index
    %c0_37 = arith.constant 0 : index
    %c0_38 = arith.constant 0 : index
    %66 = vector.load %arg4[%c0_36, %c0_37, %c0_38] : memref<1x2x128xf32, #tpu.memory_space<vmem>>, vector<1x2x128xf32>
    tpu.vector_store %arg4[%c0_36, %c0_37, %c0_38], %65 {strides = array<i32>} : memref<1x2x128xf32, #tpu.memory_space<vmem>>, vector<1x2x128xf32>,
    return
  }
  func.func @transform_0(%arg0: i32) -> (i32, i32, i32, i32) {
    %c0_i32 = arith.constant 0 : i32
    %c0_i32_0 = arith.constant 0 : i32
    %c0_i32_1 = arith.constant 0 : i32
    %c0_i32_2 = arith.constant 0 : i32
    return %arg0, %c0_i32, %c0_i32_0, %c0_i32_1 : i32, i32, i32, i32
  }
  func.func @transform_1(%arg0: i32) -> (i32, i32, i32) {
    %c0_i32 = arith.constant 0 : i32
    %c0_i32_0 = arith.constant 0 : i32
    %c0_i32_1 = arith.constant 0 : i32
    %c0_i32_2 = arith.constant 0 : i32
    return %c0_i32, %c0_i32_0, %c0_i32_1 : i32, i32, i32
  }
  func.func @transform_2(%arg0: i32) -> (i32, i32, i32) {
    %c0_i32 = arith.constant 0 : i32
    %c0_i32_0 = arith.constant 0 : i32
    %c0_i32_1 = arith.constant 0 : i32
    return %arg0, %c0_i32, %c0_i32_0 : i32, i32, i32
  }
  func.func @transform_3(%arg0: i32) -> (i32, i32, i32) {
    %c0_i32 = arith.constant 0 : i32
    %c0_i32_0 = arith.constant 0 : i32
    %c0_i32_1 = arith.constant 0 : i32
    return %arg0, %c0_i32, %c0_i32_0 : i32, i32, i32
  }
}

module attributes {stable_mosaic.version = 11 : i64} {
  func.func @_conv2_fused_kernel(%arg0: i32, %arg1: memref<1x256x128xbf16, #tpu.memory_space<vmem>>, %arg2: memref<1x128xf32, #tpu.memory_space<vmem>>, %arg3: memref<1x128xf32, #tpu.memory_space<vmem>>, %arg4: memref<9x128x128xbf16, #tpu.memory_space<vmem>>, %arg5: memref<1x256x128xf32, #tpu.memory_space<vmem>>, %arg6: memref<1x2x128xf32, #tpu.memory_space<vmem>>, %arg7: memref<1x18x24x128xbf16, #tpu.memory_space<vmem>>) attributes {dimension_semantics = [#tpu.dimension_semantics<parallel>], iteration_bounds = array<i64: 2>, scalar_prefetch = 0 : i64, scratch_operands = 1 : i64, tpu.core_type = #tpu.core_type<tc>, window_params = [{transform_indices = @transform_0, window_bounds = array<i64: 1, 256, 128>}, {pipeline_mode = #tpu.pipeline_mode<synchronous>, transform_indices = @transform_1, window_bounds = array<i64: 1, 128>}, {pipeline_mode = #tpu.pipeline_mode<synchronous>, transform_indices = @transform_2, window_bounds = array<i64: 1, 128>}, {pipeline_mode = #tpu.pipeline_mode<synchronous>, transform_indices = @transform_3, window_bounds = array<i64: 9, 128, 128>}, {transform_indices = @transform_4, window_bounds = array<i64: 1, 256, 128>}, {transform_indices = @transform_5, window_bounds = array<i64: 1, 2, 128>}]} {
    %cst = arith.constant 0.000000e+00 : bf16
    %0 = vector.broadcast %cst : bf16 to vector<1x18x24x128xbf16>
    %c0 = arith.constant 0 : index
    %c0_0 = arith.constant 0 : index
    %c0_1 = arith.constant 0 : index
    %c0_2 = arith.constant 0 : index
    %1 = vector.load %arg7[%c0, %c0_0, %c0_1, %c0_2] : memref<1x18x24x128xbf16, #tpu.memory_space<vmem>>, vector<1x18x24x128xbf16>
    tpu.vector_store %arg7[%c0, %c0_0, %c0_1, %c0_2], %0 {strides = array<i32>} : memref<1x18x24x128xbf16, #tpu.memory_space<vmem>>, vector<1x18x24x128xbf16>,
    %c0_3 = arith.constant 0 : index
    %c0_4 = arith.constant 0 : index
    %c0_5 = arith.constant 0 : index
    %2 = vector.load %arg1[%c0_3, %c0_4, %c0_5] : memref<1x256x128xbf16, #tpu.memory_space<vmem>>, vector<1x256x128xbf16>
    %3 = arith.extf %2 : vector<1x256x128xbf16> to vector<1x256x128xf32>
    %c0_6 = arith.constant 0 : index
    %c0_7 = arith.constant 0 : index
    %4 = vector.load %arg2[%c0_6, %c0_7] : memref<1x128xf32, #tpu.memory_space<vmem>>, vector<1x128xf32>
    %5 = vector.shape_cast %4 : vector<1x128xf32> to vector<1x1x128xf32>
    %6 = vector.broadcast %5 : vector<1x1x128xf32> to vector<1x256x128xf32>
    %7 = arith.mulf %3, %6 : vector<1x256x128xf32>
    %c0_8 = arith.constant 0 : index
    %c0_9 = arith.constant 0 : index
    %8 = vector.load %arg3[%c0_8, %c0_9] : memref<1x128xf32, #tpu.memory_space<vmem>>, vector<1x128xf32>
    %9 = vector.shape_cast %8 : vector<1x128xf32> to vector<1x1x128xf32>
    %10 = vector.broadcast %9 : vector<1x1x128xf32> to vector<1x256x128xf32>
    %11 = arith.addf %7, %10 : vector<1x256x128xf32>
    %cst_10 = arith.constant 0.000000e+00 : f32
    %12 = vector.broadcast %cst_10 : f32 to vector<1x256x128xf32>
    %13 = arith.maximumf %11, %12 : vector<1x256x128xf32>
    %14 = vector.shape_cast %13 : vector<1x256x128xf32> to vector<1x16x16x128xf32>
    %15 = arith.truncf %14 : vector<1x16x16x128xf32> to vector<1x16x16x128xbf16>
    %c0_11 = arith.constant 0 : index
    %c1 = arith.constant 1 : index
    %c1_12 = arith.constant 1 : index
    %c0_13 = arith.constant 0 : index
    %16 = vector.load %arg7[%c0_11, %c1, %c1_12, %c0_13] : memref<1x18x24x128xbf16, #tpu.memory_space<vmem>>, vector<1x16x16x128xbf16>
    tpu.vector_store %arg7[%c0_11, %c1, %c1_12, %c0_13], %15 {strides = array<i32>} : memref<1x18x24x128xbf16, #tpu.memory_space<vmem>>, vector<1x16x16x128xbf16>,
    %c0_14 = arith.constant 0 : index
    %c0_15 = arith.constant 0 : index
    %c0_16 = arith.constant 0 : index
    %c0_17 = arith.constant 0 : index
    %17 = vector.load %arg7[%c0_14, %c0_15, %c0_16, %c0_17] : memref<1x18x24x128xbf16, #tpu.memory_space<vmem>>, vector<1x18x24x128xbf16>
    %cst_18 = arith.constant 0.000000e+00 : f32
    %18 = vector.broadcast %cst_18 : f32 to vector<256x128xf32>
    %19 = vector.extract_strided_slice %17 {offsets = [0, 0, 0, 0], sizes = [1, 16, 16, 128], strides = [1, 1, 1, 1]} : vector<1x18x24x128xbf16> to vector<1x16x16x128xbf16>
    %20 = vector.shape_cast %19 : vector<1x16x16x128xbf16> to vector<256x128xbf16>
    %c0_19 = arith.constant 0 : index
    %c0_20 = arith.constant 0 : index
    %c0_21 = arith.constant 0 : index
    %21 = vector.load %arg4[%c0_19, %c0_20, %c0_21] : memref<9x128x128xbf16, #tpu.memory_space<vmem>>, vector<1x128x128xbf16>
    %22 = vector.shape_cast %21 : vector<1x128x128xbf16> to vector<128x128xbf16>
    %cst_22 = arith.constant dense<0.000000e+00> : vector<256x128xf32>
    %23 = tpu.matmul %20, %22, %cst_22 {dimension_numbers = #tpu.dot_dimension_numbers<[1], [0], [0], [1], [0, 0, 1, 1], [], []>} : vector<256x128xbf16>, vector<128x128xbf16>, vector<256x128xf32> -> vector<256x128xf32>
    %24 = arith.addf %18, %23 : vector<256x128xf32>
    %25 = vector.extract_strided_slice %17 {offsets = [0, 0, 1, 0], sizes = [1, 16, 16, 128], strides = [1, 1, 1, 1]} : vector<1x18x24x128xbf16> to vector<1x16x16x128xbf16>
    %26 = vector.shape_cast %25 : vector<1x16x16x128xbf16> to vector<256x128xbf16>
    %c1_23 = arith.constant 1 : index
    %c0_24 = arith.constant 0 : index
    %c0_25 = arith.constant 0 : index
    %27 = vector.load %arg4[%c1_23, %c0_24, %c0_25] : memref<9x128x128xbf16, #tpu.memory_space<vmem>>, vector<1x128x128xbf16>
    %28 = vector.shape_cast %27 : vector<1x128x128xbf16> to vector<128x128xbf16>
    %cst_26 = arith.constant dense<0.000000e+00> : vector<256x128xf32>
    %29 = tpu.matmul %26, %28, %cst_26 {dimension_numbers = #tpu.dot_dimension_numbers<[1], [0], [0], [1], [0, 0, 1, 1], [], []>} : vector<256x128xbf16>, vector<128x128xbf16>, vector<256x128xf32> -> vector<256x128xf32>
    %30 = arith.addf %24, %29 : vector<256x128xf32>
    %31 = vector.extract_strided_slice %17 {offsets = [0, 0, 2, 0], sizes = [1, 16, 16, 128], strides = [1, 1, 1, 1]} : vector<1x18x24x128xbf16> to vector<1x16x16x128xbf16>
    %32 = vector.shape_cast %31 : vector<1x16x16x128xbf16> to vector<256x128xbf16>
    %c2 = arith.constant 2 : index
    %c0_27 = arith.constant 0 : index
    %c0_28 = arith.constant 0 : index
    %33 = vector.load %arg4[%c2, %c0_27, %c0_28] : memref<9x128x128xbf16, #tpu.memory_space<vmem>>, vector<1x128x128xbf16>
    %34 = vector.shape_cast %33 : vector<1x128x128xbf16> to vector<128x128xbf16>
    %cst_29 = arith.constant dense<0.000000e+00> : vector<256x128xf32>
    %35 = tpu.matmul %32, %34, %cst_29 {dimension_numbers = #tpu.dot_dimension_numbers<[1], [0], [0], [1], [0, 0, 1, 1], [], []>} : vector<256x128xbf16>, vector<128x128xbf16>, vector<256x128xf32> -> vector<256x128xf32>
    %36 = arith.addf %30, %35 : vector<256x128xf32>
    %37 = vector.extract_strided_slice %17 {offsets = [0, 1, 0, 0], sizes = [1, 16, 16, 128], strides = [1, 1, 1, 1]} : vector<1x18x24x128xbf16> to vector<1x16x16x128xbf16>
    %38 = vector.shape_cast %37 : vector<1x16x16x128xbf16> to vector<256x128xbf16>
    %c3 = arith.constant 3 : index
    %c0_30 = arith.constant 0 : index
    %c0_31 = arith.constant 0 : index
    %39 = vector.load %arg4[%c3, %c0_30, %c0_31] : memref<9x128x128xbf16, #tpu.memory_space<vmem>>, vector<1x128x128xbf16>
    %40 = vector.shape_cast %39 : vector<1x128x128xbf16> to vector<128x128xbf16>
    %cst_32 = arith.constant dense<0.000000e+00> : vector<256x128xf32>
    %41 = tpu.matmul %38, %40, %cst_32 {dimension_numbers = #tpu.dot_dimension_numbers<[1], [0], [0], [1], [0, 0, 1, 1], [], []>} : vector<256x128xbf16>, vector<128x128xbf16>, vector<256x128xf32> -> vector<256x128xf32>
    %42 = arith.addf %36, %41 : vector<256x128xf32>
    %43 = vector.extract_strided_slice %17 {offsets = [0, 1, 1, 0], sizes = [1, 16, 16, 128], strides = [1, 1, 1, 1]} : vector<1x18x24x128xbf16> to vector<1x16x16x128xbf16>
    %44 = vector.shape_cast %43 : vector<1x16x16x128xbf16> to vector<256x128xbf16>
    %c4 = arith.constant 4 : index
    %c0_33 = arith.constant 0 : index
    %c0_34 = arith.constant 0 : index
    %45 = vector.load %arg4[%c4, %c0_33, %c0_34] : memref<9x128x128xbf16, #tpu.memory_space<vmem>>, vector<1x128x128xbf16>
    %46 = vector.shape_cast %45 : vector<1x128x128xbf16> to vector<128x128xbf16>
    %cst_35 = arith.constant dense<0.000000e+00> : vector<256x128xf32>
    %47 = tpu.matmul %44, %46, %cst_35 {dimension_numbers = #tpu.dot_dimension_numbers<[1], [0], [0], [1], [0, 0, 1, 1], [], []>} : vector<256x128xbf16>, vector<128x128xbf16>, vector<256x128xf32> -> vector<256x128xf32>
    %48 = arith.addf %42, %47 : vector<256x128xf32>
    %49 = vector.extract_strided_slice %17 {offsets = [0, 1, 2, 0], sizes = [1, 16, 16, 128], strides = [1, 1, 1, 1]} : vector<1x18x24x128xbf16> to vector<1x16x16x128xbf16>
    %50 = vector.shape_cast %49 : vector<1x16x16x128xbf16> to vector<256x128xbf16>
    %c5 = arith.constant 5 : index
    %c0_36 = arith.constant 0 : index
    %c0_37 = arith.constant 0 : index
    %51 = vector.load %arg4[%c5, %c0_36, %c0_37] : memref<9x128x128xbf16, #tpu.memory_space<vmem>>, vector<1x128x128xbf16>
    %52 = vector.shape_cast %51 : vector<1x128x128xbf16> to vector<128x128xbf16>
    %cst_38 = arith.constant dense<0.000000e+00> : vector<256x128xf32>
    %53 = tpu.matmul %50, %52, %cst_38 {dimension_numbers = #tpu.dot_dimension_numbers<[1], [0], [0], [1], [0, 0, 1, 1], [], []>} : vector<256x128xbf16>, vector<128x128xbf16>, vector<256x128xf32> -> vector<256x128xf32>
    %54 = arith.addf %48, %53 : vector<256x128xf32>
    %55 = vector.extract_strided_slice %17 {offsets = [0, 2, 0, 0], sizes = [1, 16, 16, 128], strides = [1, 1, 1, 1]} : vector<1x18x24x128xbf16> to vector<1x16x16x128xbf16>
    %56 = vector.shape_cast %55 : vector<1x16x16x128xbf16> to vector<256x128xbf16>
    %c6 = arith.constant 6 : index
    %c0_39 = arith.constant 0 : index
    %c0_40 = arith.constant 0 : index
    %57 = vector.load %arg4[%c6, %c0_39, %c0_40] : memref<9x128x128xbf16, #tpu.memory_space<vmem>>, vector<1x128x128xbf16>
    %58 = vector.shape_cast %57 : vector<1x128x128xbf16> to vector<128x128xbf16>
    %cst_41 = arith.constant dense<0.000000e+00> : vector<256x128xf32>
    %59 = tpu.matmul %56, %58, %cst_41 {dimension_numbers = #tpu.dot_dimension_numbers<[1], [0], [0], [1], [0, 0, 1, 1], [], []>} : vector<256x128xbf16>, vector<128x128xbf16>, vector<256x128xf32> -> vector<256x128xf32>
    %60 = arith.addf %54, %59 : vector<256x128xf32>
    %61 = vector.extract_strided_slice %17 {offsets = [0, 2, 1, 0], sizes = [1, 16, 16, 128], strides = [1, 1, 1, 1]} : vector<1x18x24x128xbf16> to vector<1x16x16x128xbf16>
    %62 = vector.shape_cast %61 : vector<1x16x16x128xbf16> to vector<256x128xbf16>
    %c7 = arith.constant 7 : index
    %c0_42 = arith.constant 0 : index
    %c0_43 = arith.constant 0 : index
    %63 = vector.load %arg4[%c7, %c0_42, %c0_43] : memref<9x128x128xbf16, #tpu.memory_space<vmem>>, vector<1x128x128xbf16>
    %64 = vector.shape_cast %63 : vector<1x128x128xbf16> to vector<128x128xbf16>
    %cst_44 = arith.constant dense<0.000000e+00> : vector<256x128xf32>
    %65 = tpu.matmul %62, %64, %cst_44 {dimension_numbers = #tpu.dot_dimension_numbers<[1], [0], [0], [1], [0, 0, 1, 1], [], []>} : vector<256x128xbf16>, vector<128x128xbf16>, vector<256x128xf32> -> vector<256x128xf32>
    %66 = arith.addf %60, %65 : vector<256x128xf32>
    %67 = vector.extract_strided_slice %17 {offsets = [0, 2, 2, 0], sizes = [1, 16, 16, 128], strides = [1, 1, 1, 1]} : vector<1x18x24x128xbf16> to vector<1x16x16x128xbf16>
    %68 = vector.shape_cast %67 : vector<1x16x16x128xbf16> to vector<256x128xbf16>
    %c8 = arith.constant 8 : index
    %c0_45 = arith.constant 0 : index
    %c0_46 = arith.constant 0 : index
    %69 = vector.load %arg4[%c8, %c0_45, %c0_46] : memref<9x128x128xbf16, #tpu.memory_space<vmem>>, vector<1x128x128xbf16>
    %70 = vector.shape_cast %69 : vector<1x128x128xbf16> to vector<128x128xbf16>
    %cst_47 = arith.constant dense<0.000000e+00> : vector<256x128xf32>
    %71 = tpu.matmul %68, %70, %cst_47 {dimension_numbers = #tpu.dot_dimension_numbers<[1], [0], [0], [1], [0, 0, 1, 1], [], []>} : vector<256x128xbf16>, vector<128x128xbf16>, vector<256x128xf32> -> vector<256x128xf32>
    %72 = arith.addf %66, %71 : vector<256x128xf32>
    %73 = vector.shape_cast %72 : vector<256x128xf32> to vector<1x256x128xf32>
    %c0_48 = arith.constant 0 : index
    %c0_49 = arith.constant 0 : index
    %c0_50 = arith.constant 0 : index
    %74 = vector.load %arg5[%c0_48, %c0_49, %c0_50] : memref<1x256x128xf32, #tpu.memory_space<vmem>>, vector<1x256x128xf32>
    tpu.vector_store %arg5[%c0_48, %c0_49, %c0_50], %73 {strides = array<i32>} : memref<1x256x128xf32, #tpu.memory_space<vmem>>, vector<1x256x128xf32>,
    %cst_51 = arith.constant dense<0.000000e+00> : vector<128xf32>
    %75 = vector.multi_reduction <add>, %72, %cst_51 [0] : vector<256x128xf32> to vector<128xf32>
    %76 = vector.shape_cast %75 : vector<128xf32> to vector<1x128xf32>
    %77 = arith.mulf %72, %72 : vector<256x128xf32>
    %cst_52 = arith.constant dense<0.000000e+00> : vector<128xf32>
    %78 = vector.multi_reduction <add>, %77, %cst_52 [0] : vector<256x128xf32> to vector<128xf32>
    %79 = vector.shape_cast %78 : vector<128xf32> to vector<1x128xf32>
    %80 = tpu.concatenate %76, %79 in 0 : vector<1x128xf32>, vector<1x128xf32> -> vector<2x128xf32>
    %81 = vector.shape_cast %80 : vector<2x128xf32> to vector<1x2x128xf32>
    %c0_53 = arith.constant 0 : index
    %c0_54 = arith.constant 0 : index
    %c0_55 = arith.constant 0 : index
    %82 = vector.load %arg6[%c0_53, %c0_54, %c0_55] : memref<1x2x128xf32, #tpu.memory_space<vmem>>, vector<1x2x128xf32>
    tpu.vector_store %arg6[%c0_53, %c0_54, %c0_55], %81 {strides = array<i32>} : memref<1x2x128xf32, #tpu.memory_space<vmem>>, vector<1x2x128xf32>,
    return
  }
  func.func @transform_0(%arg0: i32) -> (i32, i32, i32) {
    %c0_i32 = arith.constant 0 : i32
    %c0_i32_0 = arith.constant 0 : i32
    %c0_i32_1 = arith.constant 0 : i32
    return %arg0, %c0_i32, %c0_i32_0 : i32, i32, i32
  }
  func.func @transform_1(%arg0: i32) -> (i32, i32) {
    %c0_i32 = arith.constant 0 : i32
    %c0_i32_0 = arith.constant 0 : i32
    %c0_i32_1 = arith.constant 0 : i32
    return %c0_i32, %c0_i32_0 : i32, i32
  }
  func.func @transform_2(%arg0: i32) -> (i32, i32) {
    %c0_i32 = arith.constant 0 : i32
    %c0_i32_0 = arith.constant 0 : i32
    %c0_i32_1 = arith.constant 0 : i32
    return %c0_i32, %c0_i32_0 : i32, i32
  }
  func.func @transform_3(%arg0: i32) -> (i32, i32, i32) {
    %c0_i32 = arith.constant 0 : i32
    %c0_i32_0 = arith.constant 0 : i32
    %c0_i32_1 = arith.constant 0 : i32
    %c0_i32_2 = arith.constant 0 : i32
    return %c0_i32, %c0_i32_0, %c0_i32_1 : i32, i32, i32
  }
  func.func @transform_4(%arg0: i32) -> (i32, i32, i32) {
    %c0_i32 = arith.constant 0 : i32
    %c0_i32_0 = arith.constant 0 : i32
    %c0_i32_1 = arith.constant 0 : i32
    return %arg0, %c0_i32, %c0_i32_0 : i32, i32, i32
  }
  func.func @transform_5(%arg0: i32) -> (i32, i32, i32) {
    %c0_i32 = arith.constant 0 : i32
    %c0_i32_0 = arith.constant 0 : i32
    %c0_i32_1 = arith.constant 0 : i32
    return %arg0, %c0_i32, %c0_i32_0 : i32, i32, i32
  }
}

</mosaic_0001>

<llo_original>
// kernel: residual_block.5
$region0: #{residual_block.5}
  #allocation0 [shape = 'u32[]', space=smem, size = 0x4, offset = 0x4, fixed_abs, tag = 'smem constant byte address 0x4 - core index']
  #allocation1 [shape = 'u32[144,128]{1,0:T(1,128)}', space=vmem, size = 0x12000, scoped, tag = 'internal scratch']
  %s0 = inlined_call_operand.vmem [shape: f32[2,256,128], index: 0, kind: input, shape index: {}]
  %s1 = inlined_call_operand.vmem [shape: f32[2,256,128], index: 1, kind: input, shape index: {}]
  %s2 = inlined_call_operand.vmem [shape: f32[1,128], index: 2, kind: input, shape index: {}]
  %s3 = inlined_call_operand.vmem [shape: f32[1,128], index: 3, kind: input, shape index: {}]
  %s4 = inlined_call_operand.vmem [shape: f32[2,256,128], index: 4, kind: output, shape index: {}]
  %s5 = sld [smem:[#allocation0]]
  $region49: #{residual_block.5} parent=0
    _
  %s7 = ssub.s32 1, %s5
  %s8 = scalar_select 0, %s7, %s5
  loop: start=0, step=1, limit=4
  $region2: #{residual_block.5} parent=0 // loop_pre_header
    _
  $region3: #{residual_block.5} parent=0 // loop_header
    %s10 = sphi 0, %s14
    %p11 = scmp.ge.s32.totalorder %s10, 4
    %s20 = sphi 0, %s22
    %s23 = sphi 0, %s20
    %s24 = sphi 0, %s23
    %s40 = sphi 0, %s24
    %s46 = sphi 0, %s48
    %s49 = sphi 0, %s46
    %s50 = sphi 0, %s49
    %s66 = sphi 0, %s50
    %s70 = sphi 0, %s70
    %s72 = sphi 0, %s70
    %s73 = sphi 0, %s72
    %s87 = sphi 0, %s73
    %s91 = sphi 0, %s91
    %s93 = sphi 0, %s91
    %s94 = sphi 0, %s93
    %s108 = sphi 0, %s94
    %s114 = sphi 0, %s116
    %s117 = sphi 0, %s114
    %s118 = sphi 0, %s117
    %s134 = sphi 0, %s118
  $region4: #{residual_block.5} parent=0 // loop_header_branch
    %13 = sbr.rel (%p11) target = $region8
  $region5: #{residual_block.5} parent=0 // loop_body
    %s15 = ssub.s32 %s10, 1
    %s16 = ssub.s32 %s10, 2
    %s17 = sadd.s32 %s10, 1
    %s18 = ssub.s32 %s10, %s17
    %p19 = scmp.eq.s32.totalorder %s18, 0
    %s21 = sadd.s32 %s20, 1
    %s22 = scalar_select %p19, %s20, %s21
    %p25 = pneg %p19
    %p26 = scmp.eq.s32.totalorder %s10, 1
    %p27 = por %p25, %p26
    %p28 = scmp.ne.s32.totalorder %s20, %s23
    %p29 = scmp.eq.s32.totalorder %s10, 0
    %p30 = por %p28, %p29
    %p31 = scmp.ne.s32.totalorder %s20, %s23
    %p32 = scmp.eq.s32.totalorder %s15, 1
    %p33 = por %p31, %p32
    %p34 = scmp.ne.s32.totalorder %s23, %s24
    %p35 = scmp.eq.s32.totalorder %s15, 0
    %p36 = por %p34, %p35
    %p37 = scmp.ne.s32.totalorder %s23, %s24
    %p38 = scmp.eq.s32.totalorder %s16, 1
    %p39 = por %p37, %p38
    %p41 = scmp.ne.s32.totalorder %s24, %s40
    %p42 = scmp.eq.s32.totalorder %s16, 0
    %p43 = por %p41, %p42
    %s44 = ssub.s32 %s10, %s17
    %p45 = scmp.eq.s32.totalorder %s44, 0
    %s47 = sadd.s32 %s46, 1
    %s48 = scalar_select %p45, %s46, %s47
    %p51 = pneg %p45
    %p52 = scmp.eq.s32.totalorder %s10, 1
    %p53 = por %p51, %p52
    %p54 = scmp.ne.s32.totalorder %s46, %s49
    %p55 = scmp.eq.s32.totalorder %s10, 0
    %p56 = por %p54, %p55
    %p57 = scmp.ne.s32.totalorder %s46, %s49
    %p58 = scmp.eq.s32.totalorder %s15, 1
    %p59 = por %p57, %p58
    %p60 = scmp.ne.s32.totalorder %s49, %s50
    %p61 = scmp.eq.s32.totalorder %s15, 0
    %p62 = por %p60, %p61
    %p63 = scmp.ne.s32.totalorder %s49, %s50
    %p64 = scmp.eq.s32.totalorder %s16, 1
    %p65 = por %p63, %p64
    %p67 = scmp.ne.s32.totalorder %s50, %s66
    %p68 = scmp.eq.s32.totalorder %s16, 0
    %p69 = por %p67, %p68
    %s71 = sadd.s32 %s70, 1
    %p74 = scmp.eq.s32.totalorder %s10, 1
    %p75 = scmp.ne.s32.totalorder %s70, %s72
    %p76 = scmp.eq.s32.totalorder %s10, 0
    %p77 = por %p75, %p76
    %p78 = scmp.ne.s32.totalorder %s70, %s72
    %p79 = scmp.eq.s32.totalorder %s15, 1
    %p80 = por %p78, %p79
    %p81 = scmp.ne.s32.totalorder %s72, %s73
    %p82 = scmp.eq.s32.totalorder %s15, 0
    %p83 = por %p81, %p82
    %p84 = scmp.ne.s32.totalorder %s72, %s73
    %p85 = scmp.eq.s32.totalorder %s16, 1
    %p86 = por %p84, %p85
    %p88 = scmp.ne.s32.totalorder %s73, %s87
    %p89 = scmp.eq.s32.totalorder %s16, 0
    %p90 = por %p88, %p89
    %s92 = sadd.s32 %s91, 1
    %p95 = scmp.eq.s32.totalorder %s10, 1
    %p96 = scmp.ne.s32.totalorder %s91, %s93
    %p97 = scmp.eq.s32.totalorder %s10, 0
    %p98 = por %p96, %p97
    %p99 = scmp.ne.s32.totalorder %s91, %s93
    %p100 = scmp.eq.s32.totalorder %s15, 1
    %p101 = por %p99, %p100
    %p102 = scmp.ne.s32.totalorder %s93, %s94
    %p103 = scmp.eq.s32.totalorder %s15, 0
    %p104 = por %p102, %p103
    %p105 = scmp.ne.s32.totalorder %s93, %s94
    %p106 = scmp.eq.s32.totalorder %s16, 1
    %p107 = por %p105, %p106
    %p109 = scmp.ne.s32.totalorder %s94, %s108
    %p110 = scmp.eq.s32.totalorder %s16, 0
    %p111 = por %p109, %p110
    %s112 = ssub.s32 %s10, %s17
    %p113 = scmp.eq.s32.totalorder %s112, 0
    %s115 = sadd.s32 %s114, 1
    %s116 = scalar_select %p113, %s114, %s115
    %p119 = pneg %p113
    %p120 = scmp.eq.s32.totalorder %s10, 1
    %p121 = por %p119, %p120
    %p122 = scmp.ne.s32.totalorder %s114, %s117
    %p123 = scmp.eq.s32.totalorder %s10, 0
    %p124 = por %p122, %p123
    %p125 = scmp.ne.s32.totalorder %s114, %s117
    %p126 = scmp.eq.s32.totalorder %s15, 1
    %p127 = por %p125, %p126
    %p128 = scmp.ne.s32.totalorder %s117, %s118
    %p129 = scmp.eq.s32.totalorder %s15, 0
    %p130 = por %p128, %p129
    %p131 = scmp.ne.s32.totalorder %s117, %s118
    %p132 = scmp.eq.s32.totalorder %s16, 1
    %p133 = por %p131, %p132
    %p135 = scmp.ne.s32.totalorder %s118, %s134
    %p136 = scmp.eq.s32.totalorder %s16, 0
    %p137 = por %p135, %p136
    %p138 = scmp.le.s32.totalorder 1, %s10
    %p139 = scmp.lt.s32.totalorder %s10, 3
    %p140 = pnand %p138, %p139
    %p141 = pneg %p140
    // Predicated region
    $region9: #{residual_block.5} parent=5 // pred_check
      _
    $region10: #{residual_block.5} parent=5 // pred_check_branch
      %143 = sbr.rel (%p140) target = $region12
    $region11: #{residual_block.5} parent=5 // pred_region
      %s144 = ssub.s32 %s10, 1
      // Predicated region
      $region13: #{residual_block.5} parent=11 // pred_check
        %p145 = pneg %p83
      $region14: #{residual_block.5} parent=11 // pred_check_branch
        %147 = sbr.rel (%p145) target = $region16
      $region15: #{residual_block.5} parent=11 // pred_region
        _
      $region16: #{residual_block.5} parent=11 // pred_fallthru
        _
      // Predicated region
      $region17: #{residual_block.5} parent=11 // pred_check
        %p148 = pneg %p104
      $region18: #{residual_block.5} parent=11 // pred_check_branch
        %150 = sbr.rel (%p148) target = $region20
      $region19: #{residual_block.5} parent=11 // pred_region
        _
      $region20: #{residual_block.5} parent=11 // pred_fallthru
        _
    $region12: #{residual_block.5} parent=5 // pred_fallthru
      _
    %p151 = scmp.lt.s32.totalorder %s10, 2
    // Predicated region
    $region21: #{residual_block.5} parent=5 // pred_check
      %p152 = pneg %p151
    $region22: #{residual_block.5} parent=5 // pred_check_branch
      %154 = sbr.rel (%p152) target = $region24
    $region23: #{residual_block.5} parent=5 // pred_region
      // Predicated region
      $region25: #{residual_block.5} parent=23 // pred_check
        %p155 = pneg %p30
      $region26: #{residual_block.5} parent=23 // pred_check_branch
        %157 = sbr.rel (%p155) target = $region28
      $region27: #{residual_block.5} parent=23 // pred_region
        %p158 = scmp.lt.s32.totalorder %s10, 1
        %s159 = scalar_select %p158, %s10, 1
        %s160 = smul.addr %s159, 32
        %s161 = smul.addr %s160, 8
        %s162 = scalar_lea.vmem %s0, %s161
      $region28: #{residual_block.5} parent=23 // pred_fallthru
        _
      // Predicated region
      $region29: #{residual_block.5} parent=23 // pred_check
        %p163 = pneg %p56
      $region30: #{residual_block.5} parent=23 // pred_check_branch
        %165 = sbr.rel (%p163) target = $region32
      $region31: #{residual_block.5} parent=23 // pred_region
        %p166 = scmp.lt.s32.totalorder %s10, 1
        %s167 = scalar_select %p166, %s10, 1
        %s168 = smul.addr %s167, 32
        %s169 = smul.addr %s168, 8
        %s170 = scalar_lea.vmem %s1, %s169
      $region32: #{residual_block.5} parent=23 // pred_fallthru
        _
    $region24: #{residual_block.5} parent=5 // pred_fallthru
      _
    %p171 = scmp.le.s32.totalorder 1, %s10
    %p172 = scmp.lt.s32.totalorder %s10, 3
    %p173 = pnand %p171, %p172
    %p174 = pneg %p173
    // Predicated region
    $region33: #{residual_block.5} parent=5 // pred_check
      _
    $region34: #{residual_block.5} parent=5 // pred_check_branch
      %176 = sbr.rel (%p173) target = $region36
    $region35: #{residual_block.5} parent=5 // pred_region
      %s177 = ssub.s32 %s10, 1
      %p178 = scmp.lt.s32.totalorder %s15, 1
      %s179 = scalar_select %p178, %s15, 1
      %s180 = smul.addr %s179, 32
      %s181 = smul.addr %s180, 8
      %s182 = scalar_lea.vmem %s0, %s181
      %p183 = pneg %p36
      %p184 = pneg %p33
      %p185 = scmp.lt.s32.totalorder %s15, 1
      %s186 = scalar_select %p185, %s15, 1
      %s187 = smul.addr %s186, 32
      %s188 = smul.addr %s187, 8
      %s189 = scalar_lea.vmem %s1, %s188
      %p190 = pneg %p62
      %p191 = pneg %p59
      %p192 = pneg %p83
      %p193 = pneg %p80
      %p194 = pneg %p104
      %p195 = pneg %p101
      %p196 = pneg %p130
      %p197 = pneg %p127
      %p198 = scmp.lt.s32.totalorder %s15, 1
      %s199 = scalar_select %p198, %s15, 1
      %s200 = smul.addr %s199, 32
      %s201 = smul.addr %s200, 8
      %s202 = scalar_lea.vmem %s4, %s201
      %p203 = scmp.lt.s32.totalorder %s15, 1
      %s204 = scalar_select %p203, %s15, 1
      %s205 = smul.addr %s204, 32
      %s206 = smul.addr %s205, 8
      %s207 = scalar_lea.vmem %s0, %s206
      %p208 = scmp.lt.s32.totalorder %s15, 1
      %s209 = scalar_select %p208, %s15, 1
      %s210 = smul.addr %s209, 32
      %s211 = smul.addr %s210, 8
      %s212 = scalar_lea.vmem %s1, %s211
      %p213 = scmp.lt.s32.totalorder %s15, 1
      %s214 = scalar_select %p213, %s15, 1
      %s215 = smul.addr %s214, 32
      %s216 = smul.addr %s215, 8
      %s217 = scalar_lea.vmem %s4, %s216
      %v218 = vld [vmem:[%s207] sm:$0xff]
      %v219 = vld [vmem:[%s207 + $0x8] sm:$0xff]
      %v220 = vld [vmem:[%s207 + $0x10] sm:$0xff]
      %v221 = vld [vmem:[%s207 + $0x18] sm:$0xff]
      %v222 = vld [vmem:[%s207 + $0x20] sm:$0xff]
      %v223 = vld [vmem:[%s207 + $0x28] sm:$0xff]
      %v224 = vld [vmem:[%s207 + $0x30] sm:$0xff]
      %v225 = vld [vmem:[%s207 + $0x38] sm:$0xff]
      %v226 = vld [vmem:[%s207 + $0x40] sm:$0xff]
      %v227 = vld [vmem:[%s207 + $0x48] sm:$0xff]
      %v228 = vld [vmem:[%s207 + $0x50] sm:$0xff]
      %v229 = vld [vmem:[%s207 + $0x58] sm:$0xff]
      %v230 = vld [vmem:[%s207 + $0x60] sm:$0xff]
      %v231 = vld [vmem:[%s207 + $0x68] sm:$0xff]
      %v232 = vld [vmem:[%s207 + $0x70] sm:$0xff]
      %v233 = vld [vmem:[%s207 + $0x78] sm:$0xff]
      %v234 = vld [vmem:[%s207 + $0x80] sm:$0xff]
      %v235 = vld [vmem:[%s207 + $0x88] sm:$0xff]
      %v236 = vld [vmem:[%s207 + $0x90] sm:$0xff]
      %v237 = vld [vmem:[%s207 + $0x98] sm:$0xff]
      %v238 = vld [vmem:[%s207 + $0xa0] sm:$0xff]
      %v239 = vld [vmem:[%s207 + $0xa8] sm:$0xff]
      %v240 = vld [vmem:[%s207 + $0xb0] sm:$0xff]
      %v241 = vld [vmem:[%s207 + $0xb8] sm:$0xff]
      %v242 = vld [vmem:[%s207 + $0xc0] sm:$0xff]
      %v243 = vld [vmem:[%s207 + $0xc8] sm:$0xff]
      %v244 = vld [vmem:[%s207 + $0xd0] sm:$0xff]
      %v245 = vld [vmem:[%s207 + $0xd8] sm:$0xff]
      %v246 = vld [vmem:[%s207 + $0xe0] sm:$0xff]
      %v247 = vld [vmem:[%s207 + $0xe8] sm:$0xff]
      %v248 = vld [vmem:[%s207 + $0xf0] sm:$0xff]
      %v249 = vld [vmem:[%s207 + $0xf8] sm:$0xff]
      %v250 = vld [vmem:[%s2] sm:$0x1]
      %v252 = vlaneseq
      %v253 = vshrl.u32 %v252, 7
      %v254 = vsub.s32 0, %v253
      %v255 = vrot.slane %v250, %v254
      %v257 = vmul.f32 %v218, %v255
      %v258 = vmul.f32 %v219, %v255
      %v259 = vmul.f32 %v220, %v255
      %v260 = vmul.f32 %v221, %v255
      %v261 = vmul.f32 %v222, %v255
      %v262 = vmul.f32 %v223, %v255
      %v263 = vmul.f32 %v224, %v255
      %v264 = vmul.f32 %v225, %v255
      %v265 = vmul.f32 %v226, %v255
      %v266 = vmul.f32 %v227, %v255
      %v267 = vmul.f32 %v228, %v255
      %v268 = vmul.f32 %v229, %v255
      %v269 = vmul.f32 %v230, %v255
      %v270 = vmul.f32 %v231, %v255
      %v271 = vmul.f32 %v232, %v255
      %v272 = vmul.f32 %v233, %v255
      %v273 = vmul.f32 %v234, %v255
      %v274 = vmul.f32 %v235, %v255
      %v275 = vmul.f32 %v236, %v255
      %v276 = vmul.f32 %v237, %v255
      %v277 = vmul.f32 %v238, %v255
      %v278 = vmul.f32 %v239, %v255
      %v279 = vmul.f32 %v240, %v255
      %v280 = vmul.f32 %v241, %v255
      %v281 = vmul.f32 %v242, %v255
      %v282 = vmul.f32 %v243, %v255
      %v283 = vmul.f32 %v244, %v255
      %v284 = vmul.f32 %v245, %v255
      %v285 = vmul.f32 %v246, %v255
      %v286 = vmul.f32 %v247, %v255
      %v287 = vmul.f32 %v248, %v255
      %v288 = vmul.f32 %v249, %v255
      %v289 = vld [vmem:[%s3] sm:$0x1]
      %v291 = vlaneseq
      %v292 = vshrl.u32 %v291, 7
      %v293 = vsub.s32 0, %v292
      %v294 = vrot.slane %v289, %v293
      %v296 = vadd.f32 %v257, %v294
      %v297 = vadd.f32 %v258, %v294
      %v298 = vadd.f32 %v259, %v294
      %v299 = vadd.f32 %v260, %v294
      %v300 = vadd.f32 %v261, %v294
      %v301 = vadd.f32 %v262, %v294
      %v302 = vadd.f32 %v263, %v294
      %v303 = vadd.f32 %v264, %v294
      %v304 = vadd.f32 %v265, %v294
      %v305 = vadd.f32 %v266, %v294
      %v306 = vadd.f32 %v267, %v294
      %v307 = vadd.f32 %v268, %v294
      %v308 = vadd.f32 %v269, %v294
      %v309 = vadd.f32 %v270, %v294
      %v310 = vadd.f32 %v271, %v294
      %v311 = vadd.f32 %v272, %v294
      %v312 = vadd.f32 %v273, %v294
      %v313 = vadd.f32 %v274, %v294
      %v314 = vadd.f32 %v275, %v294
      %v315 = vadd.f32 %v276, %v294
      %v316 = vadd.f32 %v277, %v294
      %v317 = vadd.f32 %v278, %v294
      %v318 = vadd.f32 %v279, %v294
      %v319 = vadd.f32 %v280, %v294
      %v320 = vadd.f32 %v281, %v294
      %v321 = vadd.f32 %v282, %v294
      %v322 = vadd.f32 %v283, %v294
      %v323 = vadd.f32 %v284, %v294
      %v324 = vadd.f32 %v285, %v294
      %v325 = vadd.f32 %v286, %v294
      %v326 = vadd.f32 %v287, %v294
      %v327 = vadd.f32 %v288, %v294
      %v328 = vld [vmem:[%s212] sm:$0xff]
      %v329 = vld [vmem:[%s212 + $0x8] sm:$0xff]
      %v330 = vld [vmem:[%s212 + $0x10] sm:$0xff]
      %v331 = vld [vmem:[%s212 + $0x18] sm:$0xff]
      %v332 = vld [vmem:[%s212 + $0x20] sm:$0xff]
      %v333 = vld [vmem:[%s212 + $0x28] sm:$0xff]
      %v334 = vld [vmem:[%s212 + $0x30] sm:$0xff]
      %v335 = vld [vmem:[%s212 + $0x38] sm:$0xff]
      %v336 = vld [vmem:[%s212 + $0x40] sm:$0xff]
      %v337 = vld [vmem:[%s212 + $0x48] sm:$0xff]
      %v338 = vld [vmem:[%s212 + $0x50] sm:$0xff]
      %v339 = vld [vmem:[%s212 + $0x58] sm:$0xff]
      %v340 = vld [vmem:[%s212 + $0x60] sm:$0xff]
      %v341 = vld [vmem:[%s212 + $0x68] sm:$0xff]
      %v342 = vld [vmem:[%s212 + $0x70] sm:$0xff]
      %v343 = vld [vmem:[%s212 + $0x78] sm:$0xff]
      %v344 = vld [vmem:[%s212 + $0x80] sm:$0xff]
      %v345 = vld [vmem:[%s212 + $0x88] sm:$0xff]
      %v346 = vld [vmem:[%s212 + $0x90] sm:$0xff]
      %v347 = vld [vmem:[%s212 + $0x98] sm:$0xff]
      %v348 = vld [vmem:[%s212 + $0xa0] sm:$0xff]
      %v349 = vld [vmem:[%s212 + $0xa8] sm:$0xff]
      %v350 = vld [vmem:[%s212 + $0xb0] sm:$0xff]
      %v351 = vld [vmem:[%s212 + $0xb8] sm:$0xff]
      %v352 = vld [vmem:[%s212 + $0xc0] sm:$0xff]
      %v353 = vld [vmem:[%s212 + $0xc8] sm:$0xff]
      %v354 = vld [vmem:[%s212 + $0xd0] sm:$0xff]
      %v355 = vld [vmem:[%s212 + $0xd8] sm:$0xff]
      %v356 = vld [vmem:[%s212 + $0xe0] sm:$0xff]
      %v357 = vld [vmem:[%s212 + $0xe8] sm:$0xff]
      %v358 = vld [vmem:[%s212 + $0xf0] sm:$0xff]
      %v359 = vld [vmem:[%s212 + $0xf8] sm:$0xff]
      %v360 = vadd.f32 %v296, %v328
      %v361 = vadd.f32 %v297, %v329
      %v362 = vadd.f32 %v298, %v330
      %v363 = vadd.f32 %v299, %v331
      %v364 = vadd.f32 %v300, %v332
      %v365 = vadd.f32 %v301, %v333
      %v366 = vadd.f32 %v302, %v334
      %v367 = vadd.f32 %v303, %v335
      %v368 = vadd.f32 %v304, %v336
      %v369 = vadd.f32 %v305, %v337
      %v370 = vadd.f32 %v306, %v338
      %v371 = vadd.f32 %v307, %v339
      %v372 = vadd.f32 %v308, %v340
      %v373 = vadd.f32 %v309, %v341
      %v374 = vadd.f32 %v310, %v342
      %v375 = vadd.f32 %v311, %v343
      %v376 = vadd.f32 %v312, %v344
      %v377 = vadd.f32 %v313, %v345
      %v378 = vadd.f32 %v314, %v346
      %v379 = vadd.f32 %v315, %v347
      %v380 = vadd.f32 %v316, %v348
      %v381 = vadd.f32 %v317, %v349
      %v382 = vadd.f32 %v318, %v350
      %v383 = vadd.f32 %v319, %v351
      %v384 = vadd.f32 %v320, %v352
      %v385 = vadd.f32 %v321, %v353
      %v386 = vadd.f32 %v322, %v354
      %v387 = vadd.f32 %v323, %v355
      %v388 = vadd.f32 %v324, %v356
      %v389 = vadd.f32 %v325, %v357
      %v390 = vadd.f32 %v326, %v358
      %v391 = vadd.f32 %v327, %v359
      %v392 = vmax.f32 %v360, 0.0
      %v393 = vmax.f32 %v361, 0.0
      %v394 = vmax.f32 %v362, 0.0
      %v395 = vmax.f32 %v363, 0.0
      %v396 = vmax.f32 %v364, 0.0
      %v397 = vmax.f32 %v365, 0.0
      %v398 = vmax.f32 %v366, 0.0
      %v399 = vmax.f32 %v367, 0.0
      %v400 = vmax.f32 %v368, 0.0
      %v401 = vmax.f32 %v369, 0.0
      %v402 = vmax.f32 %v370, 0.0
      %v403 = vmax.f32 %v371, 0.0
      %v404 = vmax.f32 %v372, 0.0
      %v405 = vmax.f32 %v373, 0.0
      %v406 = vmax.f32 %v374, 0.0
      %v407 = vmax.f32 %v375, 0.0
      %v408 = vmax.f32 %v376, 0.0
      %v409 = vmax.f32 %v377, 0.0
      %v410 = vmax.f32 %v378, 0.0
      %v411 = vmax.f32 %v379, 0.0
      %v412 = vmax.f32 %v380, 0.0
      %v413 = vmax.f32 %v381, 0.0
      %v414 = vmax.f32 %v382, 0.0
      %v415 = vmax.f32 %v383, 0.0
      %v416 = vmax.f32 %v384, 0.0
      %v417 = vmax.f32 %v385, 0.0
      %v418 = vmax.f32 %v386, 0.0
      %v419 = vmax.f32 %v387, 0.0
      %v420 = vmax.f32 %v388, 0.0
      %v421 = vmax.f32 %v389, 0.0
      %v422 = vmax.f32 %v390, 0.0
      %v423 = vmax.f32 %v391, 0.0
      %424 = vst [vmem:[%s217] sm:$0xff] %v392
      %425 = vst [vmem:[%s217 + $0x8] sm:$0xff] %v393
      %426 = vst [vmem:[%s217 + $0x10] sm:$0xff] %v394
      %427 = vst [vmem:[%s217 + $0x18] sm:$0xff] %v395
      %428 = vst [vmem:[%s217 + $0x20] sm:$0xff] %v396
      %429 = vst [vmem:[%s217 + $0x28] sm:$0xff] %v397
      %430 = vst [vmem:[%s217 + $0x30] sm:$0xff] %v398
      %431 = vst [vmem:[%s217 + $0x38] sm:$0xff] %v399
      %432 = vst [vmem:[%s217 + $0x40] sm:$0xff] %v400
      %433 = vst [vmem:[%s217 + $0x48] sm:$0xff] %v401
      %434 = vst [vmem:[%s217 + $0x50] sm:$0xff] %v402
      %435 = vst [vmem:[%s217 + $0x58] sm:$0xff] %v403
      %436 = vst [vmem:[%s217 + $0x60] sm:$0xff] %v404
      %437 = vst [vmem:[%s217 + $0x68] sm:$0xff] %v405
      %438 = vst [vmem:[%s217 + $0x70] sm:$0xff] %v406
      %439 = vst [vmem:[%s217 + $0x78] sm:$0xff] %v407
      %440 = vst [vmem:[%s217 + $0x80] sm:$0xff] %v408
      %441 = vst [vmem:[%s217 + $0x88] sm:$0xff] %v409
      %442 = vst [vmem:[%s217 + $0x90] sm:$0xff] %v410
      %443 = vst [vmem:[%s217 + $0x98] sm:$0xff] %v411
      %444 = vst [vmem:[%s217 + $0xa0] sm:$0xff] %v412
      %445 = vst [vmem:[%s217 + $0xa8] sm:$0xff] %v413
      %446 = vst [vmem:[%s217 + $0xb0] sm:$0xff] %v414
      %447 = vst [vmem:[%s217 + $0xb8] sm:$0xff] %v415
      %448 = vst [vmem:[%s217 + $0xc0] sm:$0xff] %v416
      %449 = vst [vmem:[%s217 + $0xc8] sm:$0xff] %v417
      %450 = vst [vmem:[%s217 + $0xd0] sm:$0xff] %v418
      %451 = vst [vmem:[%s217 + $0xd8] sm:$0xff] %v419
      %452 = vst [vmem:[%s217 + $0xe0] sm:$0xff] %v420
      %453 = vst [vmem:[%s217 + $0xe8] sm:$0xff] %v421
      %454 = vst [vmem:[%s217 + $0xf0] sm:$0xff] %v422
      %455 = vst [vmem:[%s217 + $0xf8] sm:$0xff] %v423
      %p456 = scmp.lt.s32.totalorder %s15, 1
      %s457 = scalar_select %p456, %s15, 1
      %s458 = smul.addr %s457, 32
      %s459 = smul.addr %s458, 8
      %s460 = scalar_lea.vmem %s4, %s459
      // Predicated region
      $region37: #{residual_block.5} parent=35 // pred_check
        %p461 = pneg %p127
      $region38: #{residual_block.5} parent=35 // pred_check_branch
        %463 = sbr.rel (%p461) target = $region40
      $region39: #{residual_block.5} parent=35 // pred_region
        _
      $region40: #{residual_block.5} parent=35 // pred_fallthru
        _
    $region36: #{residual_block.5} parent=5 // pred_fallthru
      _
    %p464 = scmp.le.s32.totalorder 2, %s10
    // Predicated region
    $region41: #{residual_block.5} parent=5 // pred_check
      %p465 = pneg %p464
    $region42: #{residual_block.5} parent=5 // pred_check_branch
      %467 = sbr.rel (%p465) target = $region44
    $region43: #{residual_block.5} parent=5 // pred_region
      %s468 = ssub.s32 %s10, 2
      // Predicated region
      $region45: #{residual_block.5} parent=43 // pred_check
        %p469 = pneg %p133
      $region46: #{residual_block.5} parent=43 // pred_check_branch
        %471 = sbr.rel (%p469) target = $region48
      $region47: #{residual_block.5} parent=43 // pred_region
        %p472 = scmp.lt.s32.totalorder %s16, 1
        %s473 = scalar_select %p472, %s16, 1
        %s474 = smul.addr %s473, 32
        %s475 = smul.addr %s474, 8
        %s476 = scalar_lea.vmem %s4, %s475
      $region48: #{residual_block.5} parent=43 // pred_fallthru
        _
    $region44: #{residual_block.5} parent=5 // pred_fallthru
      _
  $region6: #{residual_block.5} parent=0 // loop_footer
    %s14 = sadd.s32 1, %s10
  $region7: #{residual_block.5} parent=0 // loop_footer_branch
    %9 = sbr.rel target = $region3
  $region8: #{residual_block.5} parent=0 // loop_exit
    _

// kernel: residual_block.4
$region0: #{residual_block.4}
  #allocation0 [shape = 'u32[]', space=smem, size = 0x4, offset = 0x4, fixed_abs, tag = 'smem constant byte address 0x4 - core index']
  #allocation1 [shape = 'u32[144,128]{1,0:T(1,128)}', space=vmem, size = 0x12000, scoped, tag = 'internal scratch']
  #allocation2 [shape = 'bf16[1,18,24,128]{3,2,1,0:T(8,128)(2,1)}', space=vmem, size = 0x1b000, scoped, tag = 'scratch operand']
  %s0 = inlined_call_operand.vmem [shape: bf16[2,256,128], index: 0, kind: input, shape index: {}]
  %s1 = inlined_call_operand.vmem [shape: f32[1,128], index: 1, kind: input, shape index: {}]
  %s2 = inlined_call_operand.vmem [shape: f32[1,128], index: 2, kind: input, shape index: {}]
  %s3 = inlined_call_operand.vmem [shape: bf16[9,128,128], index: 3, kind: input, shape index: {}]
  %s4 = inlined_call_operand.vmem [shape: f32[2,256,128], index: 4, kind: output, shape index: {0}]
  %s5 = inlined_call_operand.vmem [shape: f32[2,2,128], index: 5, kind: output, shape index: {1}]
  %6 = xla_tuple %s4, %s5
  %s7 = sld [smem:[#allocation0]]
  $region57: #{residual_block.4} parent=0
    _
  %s9 = ssub.s32 1, %s7
  %s10 = scalar_select 0, %s9, %s7
  loop: start=0, step=1, limit=4
  $region2: #{residual_block.4} parent=0 // loop_pre_header
    _
  $region3: #{residual_block.4} parent=0 // loop_header
    %s12 = sphi 0, %s16
    %p13 = scmp.ge.s32.totalorder %s12, 4
    %s22 = sphi 0, %s24
    %s25 = sphi 0, %s22
    %s26 = sphi 0, %s25
    %s42 = sphi 0, %s26
    %s46 = sphi 0, %s46
    %s48 = sphi 0, %s46
    %s49 = sphi 0, %s48
    %s63 = sphi 0, %s49
    %s67 = sphi 0, %s67
    %s69 = sphi 0, %s67
    %s70 = sphi 0, %s69
    %s84 = sphi 0, %s70
    %s88 = sphi 0, %s88
    %s90 = sphi 0, %s88
    %s91 = sphi 0, %s90
    %s105 = sphi 0, %s91
    %s111 = sphi 0, %s113
    %s114 = sphi 0, %s111
    %s115 = sphi 0, %s114
    %s131 = sphi 0, %s115
    %s137 = sphi 0, %s139
    %s140 = sphi 0, %s137
    %s141 = sphi 0, %s140
    %s157 = sphi 0, %s141
  $region4: #{residual_block.4} parent=0 // loop_header_branch
    %15 = sbr.rel (%p13) target = $region8
  $region5: #{residual_block.4} parent=0 // loop_body
    %s17 = ssub.s32 %s12, 1
    %s18 = ssub.s32 %s12, 2
    %s19 = sadd.s32 %s12, 1
    %s20 = ssub.s32 %s12, %s19
    %p21 = scmp.eq.s32.totalorder %s20, 0
    %s23 = sadd.s32 %s22, 1
    %s24 = scalar_select %p21, %s22, %s23
    %p27 = pneg %p21
    %p28 = scmp.eq.s32.totalorder %s12, 1
    %p29 = por %p27, %p28
    %p30 = scmp.ne.s32.totalorder %s22, %s25
    %p31 = scmp.eq.s32.totalorder %s12, 0
    %p32 = por %p30, %p31
    %p33 = scmp.ne.s32.totalorder %s22, %s25
    %p34 = scmp.eq.s32.totalorder %s17, 1
    %p35 = por %p33, %p34
    %p36 = scmp.ne.s32.totalorder %s25, %s26
    %p37 = scmp.eq.s32.totalorder %s17, 0
    %p38 = por %p36, %p37
    %p39 = scmp.ne.s32.totalorder %s25, %s26
    %p40 = scmp.eq.s32.totalorder %s18, 1
    %p41 = por %p39, %p40
    %p43 = scmp.ne.s32.totalorder %s26, %s42
    %p44 = scmp.eq.s32.totalorder %s18, 0
    %p45 = por %p43, %p44
    %s47 = sadd.s32 %s46, 1
    %p50 = scmp.eq.s32.totalorder %s12, 1
    %p51 = scmp.ne.s32.totalorder %s46, %s48
    %p52 = scmp.eq.s32.totalorder %s12, 0
    %p53 = por %p51, %p52
    %p54 = scmp.ne.s32.totalorder %s46, %s48
    %p55 = scmp.eq.s32.totalorder %s17, 1
    %p56 = por %p54, %p55
    %p57 = scmp.ne.s32.totalorder %s48, %s49
    %p58 = scmp.eq.s32.totalorder %s17, 0
    %p59 = por %p57, %p58
    %p60 = scmp.ne.s32.totalorder %s48, %s49
    %p61 = scmp.eq.s32.totalorder %s18, 1
    %p62 = por %p60, %p61
    %p64 = scmp.ne.s32.totalorder %s49, %s63
    %p65 = scmp.eq.s32.totalorder %s18, 0
    %p66 = por %p64, %p65
    %s68 = sadd.s32 %s67, 1
    %p71 = scmp.eq.s32.totalorder %s12, 1
    %p72 = scmp.ne.s32.totalorder %s67, %s69
    %p73 = scmp.eq.s32.totalorder %s12, 0
    %p74 = por %p72, %p73
    %p75 = scmp.ne.s32.totalorder %s67, %s69
    %p76 = scmp.eq.s32.totalorder %s17, 1
    %p77 = por %p75, %p76
    %p78 = scmp.ne.s32.totalorder %s69, %s70
    %p79 = scmp.eq.s32.totalorder %s17, 0
    %p80 = por %p78, %p79
    %p81 = scmp.ne.s32.totalorder %s69, %s70
    %p82 = scmp.eq.s32.totalorder %s18, 1
    %p83 = por %p81, %p82
    %p85 = scmp.ne.s32.totalorder %s70, %s84
    %p86 = scmp.eq.s32.totalorder %s18, 0
    %p87 = por %p85, %p86
    %s89 = sadd.s32 %s88, 1
    %p92 = scmp.eq.s32.totalorder %s12, 1
    %p93 = scmp.ne.s32.totalorder %s88, %s90
    %p94 = scmp.eq.s32.totalorder %s12, 0
    %p95 = por %p93, %p94
    %p96 = scmp.ne.s32.totalorder %s88, %s90
    %p97 = scmp.eq.s32.totalorder %s17, 1
    %p98 = por %p96, %p97
    %p99 = scmp.ne.s32.totalorder %s90, %s91
    %p100 = scmp.eq.s32.totalorder %s17, 0
    %p101 = por %p99, %p100
    %p102 = scmp.ne.s32.totalorder %s90, %s91
    %p103 = scmp.eq.s32.totalorder %s18, 1
    %p104 = por %p102, %p103
    %p106 = scmp.ne.s32.totalorder %s91, %s105
    %p107 = scmp.eq.s32.totalorder %s18, 0
    %p108 = por %p106, %p107
    %s109 = ssub.s32 %s12, %s19
    %p110 = scmp.eq.s32.totalorder %s109, 0
    %s112 = sadd.s32 %s111, 1
    %s113 = scalar_select %p110, %s111, %s112
    %p116 = pneg %p110
    %p117 = scmp.eq.s32.totalorder %s12, 1
    %p118 = por %p116, %p117
    %p119 = scmp.ne.s32.totalorder %s111, %s114
    %p120 = scmp.eq.s32.totalorder %s12, 0
    %p121 = por %p119, %p120
    %p122 = scmp.ne.s32.totalorder %s111, %s114
    %p123 = scmp.eq.s32.totalorder %s17, 1
    %p124 = por %p122, %p123
    %p125 = scmp.ne.s32.totalorder %s114, %s115
    %p126 = scmp.eq.s32.totalorder %s17, 0
    %p127 = por %p125, %p126
    %p128 = scmp.ne.s32.totalorder %s114, %s115
    %p129 = scmp.eq.s32.totalorder %s18, 1
    %p130 = por %p128, %p129
    %p132 = scmp.ne.s32.totalorder %s115, %s131
    %p133 = scmp.eq.s32.totalorder %s18, 0
    %p134 = por %p132, %p133
    %s135 = ssub.s32 %s12, %s19
    %p136 = scmp.eq.s32.totalorder %s135, 0
    %s138 = sadd.s32 %s137, 1
    %s139 = scalar_select %p136, %s137, %s138
    %p142 = pneg %p136
    %p143 = scmp.eq.s32.totalorder %s12, 1
    %p144 = por %p142, %p143
    %p145 = scmp.ne.s32.totalorder %s137, %s140
    %p146 = scmp.eq.s32.totalorder %s12, 0
    %p147 = por %p145, %p146
    %p148 = scmp.ne.s32.totalorder %s137, %s140
    %p149 = scmp.eq.s32.totalorder %s17, 1
    %p150 = por %p148, %p149
    %p151 = scmp.ne.s32.totalorder %s140, %s141
    %p152 = scmp.eq.s32.totalorder %s17, 0
    %p153 = por %p151, %p152
    %p154 = scmp.ne.s32.totalorder %s140, %s141
    %p155 = scmp.eq.s32.totalorder %s18, 1
    %p156 = por %p154, %p155
    %p158 = scmp.ne.s32.totalorder %s141, %s157
    %p159 = scmp.eq.s32.totalorder %s18, 0
    %p160 = por %p158, %p159
    %p161 = scmp.le.s32.totalorder 1, %s12
    %p162 = scmp.lt.s32.totalorder %s12, 3
    %p163 = pnand %p161, %p162
    %p164 = pneg %p163
    // Predicated region
    $region9: #{residual_block.4} parent=5 // pred_check
      _
    $region10: #{residual_block.4} parent=5 // pred_check_branch
      %166 = sbr.rel (%p163) target = $region12
    $region11: #{residual_block.4} parent=5 // pred_region
      %s167 = ssub.s32 %s12, 1
      // Predicated region
      $region13: #{residual_block.4} parent=11 // pred_check
        %p168 = pneg %p59
      $region14: #{residual_block.4} parent=11 // pred_check_branch
        %170 = sbr.rel (%p168) target = $region16
      $region15: #{residual_block.4} parent=11 // pred_region
        _
      $region16: #{residual_block.4} parent=11 // pred_fallthru
        _
      // Predicated region
      $region17: #{residual_block.4} parent=11 // pred_check
        %p171 = pneg %p80
      $region18: #{residual_block.4} parent=11 // pred_check_branch
        %173 = sbr.rel (%p171) target = $region20
      $region19: #{residual_block.4} parent=11 // pred_region
        _
      $region20: #{residual_block.4} parent=11 // pred_fallthru
        _
      // Predicated region
      $region21: #{residual_block.4} parent=11 // pred_check
        %p174 = pneg %p101
      $region22: #{residual_block.4} parent=11 // pred_check_branch
        %176 = sbr.rel (%p174) target = $region24
      $region23: #{residual_block.4} parent=11 // pred_region
        _
      $region24: #{residual_block.4} parent=11 // pred_fallthru
        _
    $region12: #{residual_block.4} parent=5 // pred_fallthru
      _
    %p177 = scmp.lt.s32.totalorder %s12, 2
    // Predicated region
    $region25: #{residual_block.4} parent=5 // pred_check
      %p178 = pneg %p177
    $region26: #{residual_block.4} parent=5 // pred_check_branch
      %180 = sbr.rel (%p178) target = $region28
    $region27: #{residual_block.4} parent=5 // pred_region
      // Predicated region
      $region29: #{residual_block.4} parent=27 // pred_check
        %p181 = pneg %p32
      $region30: #{residual_block.4} parent=27 // pred_check_branch
        %183 = sbr.rel (%p181) target = $region32
      $region31: #{residual_block.4} parent=27 // pred_region
        %p184 = scmp.lt.s32.totalorder %s12, 1
        %s185 = scalar_select %p184, %s12, 1
        %s186 = smul.addr %s185, 32
        %s187 = smul.addr %s186, 4
        %s188 = scalar_lea.vmem %s0, %s187
      $region32: #{residual_block.4} parent=27 // pred_fallthru
        _
    $region28: #{residual_block.4} parent=5 // pred_fallthru
      _
    %p189 = scmp.le.s32.totalorder 1, %s12
    %p190 = scmp.lt.s32.totalorder %s12, 3
    %p191 = pnand %p189, %p190
    %p192 = pneg %p191
    // Predicated region
    $region33: #{residual_block.4} parent=5 // pred_check
      _
    $region34: #{residual_block.4} parent=5 // pred_check_branch
      %194 = sbr.rel (%p191) target = $region36
    $region35: #{residual_block.4} parent=5 // pred_region
      %s195 = ssub.s32 %s12, 1
      %p196 = scmp.lt.s32.totalorder %s17, 1
      %s197 = scalar_select %p196, %s17, 1
      %s198 = smul.addr %s197, 32
      %s199 = smul.addr %s198, 4
      %s200 = scalar_lea.vmem %s0, %s199
      %p201 = pneg %p38
      %p202 = pneg %p35
      %p203 = pneg %p59
      %p204 = pneg %p56
      %p205 = pneg %p80
      %p206 = pneg %p77
      %p207 = pneg %p101
      %p208 = pneg %p98
      %p209 = pneg %p127
      %p210 = pneg %p124
      %p211 = scmp.lt.s32.totalorder %s17, 1
      %s212 = scalar_select %p211, %s17, 1
      %s213 = smul.addr %s212, 32
      %s214 = smul.addr %s213, 8
      %s215 = scalar_lea.vmem %s4, %s214
      %p216 = pneg %p153
      %p217 = pneg %p150
      %p218 = scmp.lt.s32.totalorder %s17, 1
      %s219 = scalar_select %p218, %s17, 1
      %s220 = smul.addr %s219, 2
      %s221 = scalar_lea.vmem %s5, %s220
      %p222 = scmp.lt.s32.totalorder %s17, 1
      %s223 = scalar_select %p222, %s17, 1
      %s224 = smul.addr %s223, 32
      %s225 = smul.addr %s224, 4
      %s226 = scalar_lea.vmem %s0, %s225
      %p227 = scmp.lt.s32.totalorder %s17, 1
      %s228 = scalar_select %p227, %s17, 1
      %s229 = smul.addr %s228, 32
      %s230 = smul.addr %s229, 8
      %s231 = scalar_lea.vmem %s4, %s230
      %p232 = scmp.lt.s32.totalorder %s17, 1
      %s233 = scalar_select %p232, %s17, 1
      %s234 = smul.addr %s233, 2
      %s235 = scalar_lea.vmem %s5, %s234
      %237 = vst [vmem:[#allocation2] sm:$0xf] 0
      %238 = vst [vmem:[#allocation2 + $0x4] sm:$0xf] 0
      %239 = vst [vmem:[#allocation2 + $0x8] sm:$0xf] 0
      %240 = vst [vmem:[#allocation2 + $0xc] sm:$0xf] 0
      %241 = vst [vmem:[#allocation2 + $0x10] sm:$0xf] 0
      %242 = vst [vmem:[#allocation2 + $0x14] sm:$0xf] 0
      %243 = vst [vmem:[#allocation2 + $0x18] sm:$0xf] 0
      %244 = vst [vmem:[#allocation2 + $0x1c] sm:$0xf] 0
      %245 = vst [vmem:[#allocation2 + $0x20] sm:$0xf] 0
      %246 = vst [vmem:[#allocation2 + $0x24] sm:$0xf] 0
      %247 = vst [vmem:[#allocation2 + $0x28] sm:$0xf] 0
      %248 = vst [vmem:[#allocation2 + $0x2c] sm:$0xf] 0
      %249 = vst [vmem:[#allocation2 + $0x30] sm:$0xf] 0
      %250 = vst [vmem:[#allocation2 + $0x34] sm:$0xf] 0
      %251 = vst [vmem:[#allocation2 + $0x38] sm:$0xf] 0
      %252 = vst [vmem:[#allocation2 + $0x3c] sm:$0xf] 0
      %253 = vst [vmem:[#allocation2 + $0x40] sm:$0xf] 0
      %254 = vst [vmem:[#allocation2 + $0x44] sm:$0xf] 0
      %255 = vst [vmem:[#allocation2 + $0x48] sm:$0xf] 0
      %256 = vst [vmem:[#allocation2 + $0x4c] sm:$0xf] 0
      %257 = vst [vmem:[#allocation2 + $0x50] sm:$0xf] 0
      %258 = vst [vmem:[#allocation2 + $0x54] sm:$0xf] 0
      %259 = vst [vmem:[#allocation2 + $0x58] sm:$0xf] 0
      %260 = vst [vmem:[#allocation2 + $0x5c] sm:$0xf] 0
      %261 = vst [vmem:[#allocation2 + $0x60] sm:$0xf] 0
      %262 = vst [vmem:[#allocation2 + $0x64] sm:$0xf] 0
      %263 = vst [vmem:[#allocation2 + $0x68] sm:$0xf] 0
      %264 = vst [vmem:[#allocation2 + $0x6c] sm:$0xf] 0
      %265 = vst [vmem:[#allocation2 + $0x70] sm:$0xf] 0
      %266 = vst [vmem:[#allocation2 + $0x74] sm:$0xf] 0
      %267 = vst [vmem:[#allocation2 + $0x78] sm:$0xf] 0
      %268 = vst [vmem:[#allocation2 + $0x7c] sm:$0xf] 0
      %269 = vst [vmem:[#allocation2 + $0x80] sm:$0xf] 0
      %270 = vst [vmem:[#allocation2 + $0x84] sm:$0xf] 0
      %271 = vst [vmem:[#allocation2 + $0x88] sm:$0xf] 0
      %272 = vst [vmem:[#allocation2 + $0x8c] sm:$0xf] 0
      %273 = vst [vmem:[#allocation2 + $0x90] sm:$0xf] 0
      %274 = vst [vmem:[#allocation2 + $0x94] sm:$0xf] 0
      %275 = vst [vmem:[#allocation2 + $0x98] sm:$0xf] 0
      %276 = vst [vmem:[#allocation2 + $0x9c] sm:$0xf] 0
      %277 = vst [vmem:[#allocation2 + $0xa0] sm:$0xf] 0
      %278 = vst [vmem:[#allocation2 + $0xa4] sm:$0xf] 0
      %279 = vst [vmem:[#allocation2 + $0xa8] sm:$0xf] 0
      %280 = vst [vmem:[#allocation2 + $0xac] sm:$0xf] 0
      %281 = vst [vmem:[#allocation2 + $0xb0] sm:$0xf] 0
      %282 = vst [vmem:[#allocation2 + $0xb4] sm:$0xf] 0
      %283 = vst [vmem:[#allocation2 + $0xb8] sm:$0xf] 0
      %284 = vst [vmem:[#allocation2 + $0xbc] sm:$0xf] 0
      %285 = vst [vmem:[#allocation2 + $0xc0] sm:$0xf] 0
      %286 = vst [vmem:[#allocation2 + $0xc4] sm:$0xf] 0
      %287 = vst [vmem:[#allocation2 + $0xc8] sm:$0xf] 0
      %288 = vst [vmem:[#allocation2 + $0xcc] sm:$0xf] 0
      %289 = vst [vmem:[#allocation2 + $0xd0] sm:$0xf] 0
      %290 = vst [vmem:[#allocation2 + $0xd4] sm:$0xf] 0
      %v291 = vld [vmem:[%s226] sm:$0xf]
      %v292 = vld [vmem:[%s226 + $0x4] sm:$0xf]
      %v293 = vld [vmem:[%s226 + $0x8] sm:$0xf]
      %v294 = vld [vmem:[%s226 + $0xc] sm:$0xf]
      %v295 = vld [vmem:[%s226 + $0x10] sm:$0xf]
      %v296 = vld [vmem:[%s226 + $0x14] sm:$0xf]
      %v297 = vld [vmem:[%s226 + $0x18] sm:$0xf]
      %v298 = vld [vmem:[%s226 + $0x1c] sm:$0xf]
      %v299 = vld [vmem:[%s226 + $0x20] sm:$0xf]
      %v300 = vld [vmem:[%s226 + $0x24] sm:$0xf]
      %v301 = vld [vmem:[%s226 + $0x28] sm:$0xf]
      %v302 = vld [vmem:[%s226 + $0x2c] sm:$0xf]
      %v303 = vld [vmem:[%s226 + $0x30] sm:$0xf]
      %v304 = vld [vmem:[%s226 + $0x34] sm:$0xf]
      %v305 = vld [vmem:[%s226 + $0x38] sm:$0xf]
      %v306 = vld [vmem:[%s226 + $0x3c] sm:$0xf]
      %v307 = vld [vmem:[%s226 + $0x40] sm:$0xf]
      %v308 = vld [vmem:[%s226 + $0x44] sm:$0xf]
      %v309 = vld [vmem:[%s226 + $0x48] sm:$0xf]
      %v310 = vld [vmem:[%s226 + $0x4c] sm:$0xf]
      %v311 = vld [vmem:[%s226 + $0x50] sm:$0xf]
      %v312 = vld [vmem:[%s226 + $0x54] sm:$0xf]
      %v313 = vld [vmem:[%s226 + $0x58] sm:$0xf]
      %v314 = vld [vmem:[%s226 + $0x5c] sm:$0xf]
      %v315 = vld [vmem:[%s226 + $0x60] sm:$0xf]
      %v316 = vld [vmem:[%s226 + $0x64] sm:$0xf]
      %v317 = vld [vmem:[%s226 + $0x68] sm:$0xf]
      %v318 = vld [vmem:[%s226 + $0x6c] sm:$0xf]
      %v319 = vld [vmem:[%s226 + $0x70] sm:$0xf]
      %v320 = vld [vmem:[%s226 + $0x74] sm:$0xf]
      %v321 = vld [vmem:[%s226 + $0x78] sm:$0xf]
      %v322 = vld [vmem:[%s226 + $0x7c] sm:$0xf]
      %v323 = vunpack.c.l.bf16 %v291
      %v324 = vunpack.c.l.bf16 %v292
      %v325 = vunpack.c.l.bf16 %v293
      %v326 = vunpack.c.l.bf16 %v294
      %v327 = vunpack.c.l.bf16 %v295
      %v328 = vunpack.c.l.bf16 %v296
      %v329 = vunpack.c.l.bf16 %v297
      %v330 = vunpack.c.l.bf16 %v298
      %v331 = vunpack.c.l.bf16 %v299
      %v332 = vunpack.c.l.bf16 %v300
      %v333 = vunpack.c.l.bf16 %v301
      %v334 = vunpack.c.l.bf16 %v302
      %v335 = vunpack.c.l.bf16 %v303
      %v336 = vunpack.c.l.bf16 %v304
      %v337 = vunpack.c.l.bf16 %v305
      %v338 = vunpack.c.l.bf16 %v306
      %v339 = vunpack.c.l.bf16 %v307
      %v340 = vunpack.c.l.bf16 %v308
      %v341 = vunpack.c.l.bf16 %v309
      %v342 = vunpack.c.l.bf16 %v310
      %v343 = vunpack.c.l.bf16 %v311
      %v344 = vunpack.c.l.bf16 %v312
      %v345 = vunpack.c.l.bf16 %v313
      %v346 = vunpack.c.l.bf16 %v314
      %v347 = vunpack.c.l.bf16 %v315
      %v348 = vunpack.c.l.bf16 %v316
      %v349 = vunpack.c.l.bf16 %v317
      %v350 = vunpack.c.l.bf16 %v318
      %v351 = vunpack.c.l.bf16 %v319
      %v352 = vunpack.c.l.bf16 %v320
      %v353 = vunpack.c.l.bf16 %v321
      %v354 = vunpack.c.l.bf16 %v322
      %v355 = vld [vmem:[%s1] sm:$0x1]
      %v357 = vlaneseq
      %v358 = vshrl.u32 %v357, 7
      %v359 = vsub.s32 0, %v358
      %v360 = vrot.slane %v355, %v359
      %v362 = vmul.f32 %v323, %v360
      %v363 = vmul.f32 %v324, %v360
      %v364 = vmul.f32 %v325, %v360
      %v365 = vmul.f32 %v326, %v360
      %v366 = vmul.f32 %v327, %v360
      %v367 = vmul.f32 %v328, %v360
      %v368 = vmul.f32 %v329, %v360
      %v369 = vmul.f32 %v330, %v360
      %v370 = vmul.f32 %v331, %v360
      %v371 = vmul.f32 %v332, %v360
      %v372 = vmul.f32 %v333, %v360
      %v373 = vmul.f32 %v334, %v360
      %v374 = vmul.f32 %v335, %v360
      %v375 = vmul.f32 %v336, %v360
      %v376 = vmul.f32 %v337, %v360
      %v377 = vmul.f32 %v338, %v360
      %v378 = vmul.f32 %v339, %v360
      %v379 = vmul.f32 %v340, %v360
      %v380 = vmul.f32 %v341, %v360
      %v381 = vmul.f32 %v342, %v360
      %v382 = vmul.f32 %v343, %v360
      %v383 = vmul.f32 %v344, %v360
      %v384 = vmul.f32 %v345, %v360
      %v385 = vmul.f32 %v346, %v360
      %v386 = vmul.f32 %v347, %v360
      %v387 = vmul.f32 %v348, %v360
      %v388 = vmul.f32 %v349, %v360
      %v389 = vmul.f32 %v350, %v360
      %v390 = vmul.f32 %v351, %v360
      %v391 = vmul.f32 %v352, %v360
      %v392 = vmul.f32 %v353, %v360
      %v393 = vmul.f32 %v354, %v360
      %v394 = vld [vmem:[%s2] sm:$0x1]
      %v396 = vlaneseq
      %v397 = vshrl.u32 %v396, 7
      %v398 = vsub.s32 0, %v397
      %v399 = vrot.slane %v394, %v398
      %v401 = vadd.f32 %v362, %v399
      %v402 = vadd.f32 %v363, %v399
      %v403 = vadd.f32 %v364, %v399
      %v404 = vadd.f32 %v365, %v399
      %v405 = vadd.f32 %v366, %v399
      %v406 = vadd.f32 %v367, %v399
      %v407 = vadd.f32 %v368, %v399
      %v408 = vadd.f32 %v369, %v399
      %v409 = vadd.f32 %v370, %v399
      %v410 = vadd.f32 %v371, %v399
      %v411 = vadd.f32 %v372, %v399
      %v412 = vadd.f32 %v373, %v399
      %v413 = vadd.f32 %v374, %v399
      %v414 = vadd.f32 %v375, %v399
      %v415 = vadd.f32 %v376, %v399
      %v416 = vadd.f32 %v377, %v399
      %v417 = vadd.f32 %v378, %v399
      %v418 = vadd.f32 %v379, %v399
      %v419 = vadd.f32 %v380, %v399
      %v420 = vadd.f32 %v381, %v399
      %v421 = vadd.f32 %v382, %v399
      %v422 = vadd.f32 %v383, %v399
      %v423 = vadd.f32 %v384, %v399
      %v424 = vadd.f32 %v385, %v399
      %v425 = vadd.f32 %v386, %v399
      %v426 = vadd.f32 %v387, %v399
      %v427 = vadd.f32 %v388, %v399
      %v428 = vadd.f32 %v389, %v399
      %v429 = vadd.f32 %v390, %v399
      %v430 = vadd.f32 %v391, %v399
      %v431 = vadd.f32 %v392, %v399
      %v432 = vadd.f32 %v393, %v399
      %v433 = vmax.f32 %v401, 0.0
      %v434 = vmax.f32 %v402, 0.0
      %v435 = vmax.f32 %v403, 0.0
      %v436 = vmax.f32 %v404, 0.0
      %v437 = vmax.f32 %v405, 0.0
      %v438 = vmax.f32 %v406, 0.0
      %v439 = vmax.f32 %v407, 0.0
      %v440 = vmax.f32 %v408, 0.0
      %v441 = vmax.f32 %v409, 0.0
      %v442 = vmax.f32 %v410, 0.0
      %v443 = vmax.f32 %v411, 0.0
      %v444 = vmax.f32 %v412, 0.0
      %v445 = vmax.f32 %v413, 0.0
      %v446 = vmax.f32 %v414, 0.0
      %v447 = vmax.f32 %v415, 0.0
      %v448 = vmax.f32 %v416, 0.0
      %v449 = vmax.f32 %v417, 0.0
      %v450 = vmax.f32 %v418, 0.0
      %v451 = vmax.f32 %v419, 0.0
      %v452 = vmax.f32 %v420, 0.0
      %v453 = vmax.f32 %v421, 0.0
      %v454 = vmax.f32 %v422, 0.0
      %v455 = vmax.f32 %v423, 0.0
      %v456 = vmax.f32 %v424, 0.0
      %v457 = vmax.f32 %v425, 0.0
      %v458 = vmax.f32 %v426, 0.0
      %v459 = vmax.f32 %v427, 0.0
      %v460 = vmax.f32 %v428, 0.0
      %v461 = vmax.f32 %v429, 0.0
      %v462 = vmax.f32 %v430, 0.0
      %v463 = vmax.f32 %v431, 0.0
      %v464 = vmax.f32 %v432, 0.0
      %v465 = vpack.c.bf16 %v434, %v433
      %v466 = vpack.c.bf16 %v436, %v435
      %v467 = vpack.c.bf16 %v438, %v437
      %v468 = vpack.c.bf16 %v440, %v439
      %v469 = vpack.c.bf16 %v442, %v441
      %v470 = vpack.c.bf16 %v444, %v443
      %v471 = vpack.c.bf16 %v446, %v445
      %v472 = vpack.c.bf16 %v448, %v447
      %v473 = vpack.c.bf16 %v450, %v449
      %v474 = vpack.c.bf16 %v452, %v451
      %v475 = vpack.c.bf16 %v454, %v453
      %v476 = vpack.c.bf16 %v456, %v455
      %v477 = vpack.c.bf16 %v458, %v457
      %v478 = vpack.c.bf16 %v460, %v459
      %v479 = vpack.c.bf16 %v462, %v461
      %v480 = vpack.c.bf16 %v464, %v463
      %v497 = vunpack.c.l.b16 %v465
      %v498 = vunpack.c.h.b16 %v465
      %v499 = vunpack.c.l.b16 %v466
      %v500 = vunpack.c.h.b16 %v466
      %v501 = vunpack.c.l.b16 %v467
      %v502 = vunpack.c.h.b16 %v467
      %v503 = vunpack.c.l.b16 %v468
      %v504 = vunpack.c.h.b16 %v468
      %v505 = vunpack.c.l.b16 %v469
      %v506 = vunpack.c.h.b16 %v469
      %v507 = vunpack.c.l.b16 %v470
      %v508 = vunpack.c.h.b16 %v470
      %v509 = vunpack.c.l.b16 %v471
      %v510 = vunpack.c.h.b16 %v471
      %v511 = vunpack.c.l.b16 %v472
      %v512 = vunpack.c.h.b16 %v472
      %v513 = vunpack.c.l.b16 %v473
      %v514 = vunpack.c.h.b16 %v473
      %v515 = vunpack.c.l.b16 %v474
      %v516 = vunpack.c.h.b16 %v474
      %v517 = vunpack.c.l.b16 %v475
      %v518 = vunpack.c.h.b16 %v475
      %v519 = vunpack.c.l.b16 %v476
      %v520 = vunpack.c.h.b16 %v476
      %v521 = vunpack.c.l.b16 %v477
      %v522 = vunpack.c.h.b16 %v477
      %v523 = vunpack.c.l.b16 %v478
      %v524 = vunpack.c.h.b16 %v478
      %v525 = vunpack.c.l.b16 %v479
      %v526 = vunpack.c.h.b16 %v479
      %v527 = vunpack.c.l.b16 %v480
      %v528 = vunpack.c.h.b16 %v480
      %v529 = vpack.c.b16 %v497, %v497
      %v530 = vpack.c.b16 %v498, %v498
      %v531 = vpack.c.b16 %v499, %v499
      %v532 = vpack.c.b16 %v500, %v500
      %v533 = vpack.c.b16 %v501, %v501
      %v534 = vpack.c.b16 %v502, %v502
      %v535 = vpack.c.b16 %v503, %v503
      %v536 = vpack.c.b16 %v504, %v504
      %v537 = vpack.c.b16 %v505, %v505
      %v538 = vpack.c.b16 %v506, %v506
      %v539 = vpack.c.b16 %v507, %v507
      %v540 = vpack.c.b16 %v508, %v508
      %v541 = vpack.c.b16 %v509, %v509
      %v542 = vpack.c.b16 %v510, %v510
      %v543 = vpack.c.b16 %v511, %v511
      %v544 = vpack.c.b16 %v512, %v512
      %v545 = vpack.c.b16 %v513, %v513
      %v546 = vpack.c.b16 %v514, %v514
      %v547 = vpack.c.b16 %v515, %v515
      %v548 = vpack.c.b16 %v516, %v516
      %v549 = vpack.c.b16 %v517, %v517
      %v550 = vpack.c.b16 %v518, %v518
      %v551 = vpack.c.b16 %v519, %v519
      %v552 = vpack.c.b16 %v520, %v520
      %v553 = vpack.c.b16 %v521, %v521
      %v554 = vpack.c.b16 %v522, %v522
      %v555 = vpack.c.b16 %v523, %v523
      %v556 = vpack.c.b16 %v524, %v524
      %v557 = vpack.c.b16 %v525, %v525
      %v558 = vpack.c.b16 %v526, %v526
      %v559 = vpack.c.b16 %v527, %v527
      %v560 = vpack.c.b16 %v528, %v528
      %vm561 = vsmask.f32 256
      %vm562 = vsmask.f32 4368
      %vm563 = vmor %vm561, %vm562
      %v565 = vshrl.u32 %v529, 16
      %v567 = vrot.slane %v565, 7
      %v568 = vshll.u32 %v529, 16
      %v570 = vor.u32 %v567, %v568
      %v571 = vrot.slane %v567, 4
      %v573 = vshrl.u32 %v530, 16
      %v575 = vrot.slane %v573, 7
      %v576 = vshll.u32 %v530, 16
      %v578 = vor.u32 %v575, %v576
      %v579 = vsel %vm563, %v571, %v578
      %v580 = vrot.slane %v575, 4
      %v582 = vshrl.u32 %v531, 16
      %v584 = vrot.slane %v582, 7
      %v585 = vshll.u32 %v531, 16
      %v587 = vor.u32 %v584, %v585
      %v588 = vrot.slane %v584, 4
      %v590 = vshrl.u32 %v532, 16
      %v592 = vrot.slane %v590, 7
      %v593 = vshll.u32 %v532, 16
      %v595 = vor.u32 %v592, %v593
      %v596 = vsel %vm563, %v588, %v595
      %v597 = vrot.slane %v592, 4
      %v599 = vshrl.u32 %v533, 16
      %v601 = vrot.slane %v599, 7
      %v602 = vshll.u32 %v533, 16
      %v604 = vor.u32 %v601, %v602
      %v605 = vrot.slane %v601, 4
      %v607 = vshrl.u32 %v534, 16
      %v609 = vrot.slane %v607, 7
      %v610 = vshll.u32 %v534, 16
      %v612 = vor.u32 %v609, %v610
      %v613 = vsel %vm563, %v605, %v612
      %v614 = vrot.slane %v609, 4
      %v616 = vshrl.u32 %v535, 16
      %v618 = vrot.slane %v616, 7
      %v619 = vshll.u32 %v535, 16
      %v621 = vor.u32 %v618, %v619
      %v622 = vrot.slane %v618, 4
      %v624 = vshrl.u32 %v536, 16
      %v626 = vrot.slane %v624, 7
      %v627 = vshll.u32 %v536, 16
      %v629 = vor.u32 %v626, %v627
      %v630 = vsel %vm563, %v622, %v629
      %v631 = vrot.slane %v626, 4
      %v633 = vshrl.u32 %v537, 16
      %v635 = vrot.slane %v633, 7
      %v636 = vshll.u32 %v537, 16
      %v638 = vor.u32 %v635, %v636
      %v639 = vrot.slane %v635, 4
      %v641 = vshrl.u32 %v538, 16
      %v643 = vrot.slane %v641, 7
      %v644 = vshll.u32 %v538, 16
      %v646 = vor.u32 %v643, %v644
      %v647 = vsel %vm563, %v639, %v646
      %v648 = vrot.slane %v643, 4
      %v650 = vshrl.u32 %v539, 16
      %v652 = vrot.slane %v650, 7
      %v653 = vshll.u32 %v539, 16
      %v655 = vor.u32 %v652, %v653
      %v656 = vrot.slane %v652, 4
      %v658 = vshrl.u32 %v540, 16
      %v660 = vrot.slane %v658, 7
      %v661 = vshll.u32 %v540, 16
      %v663 = vor.u32 %v660, %v661
      %v664 = vsel %vm563, %v656, %v663
      %v665 = vrot.slane %v660, 4
      %v667 = vshrl.u32 %v541, 16
      %v669 = vrot.slane %v667, 7
      %v670 = vshll.u32 %v541, 16
      %v672 = vor.u32 %v669, %v670
      %v673 = vrot.slane %v669, 4
      %v675 = vshrl.u32 %v542, 16
      %v677 = vrot.slane %v675, 7
      %v678 = vshll.u32 %v542, 16
      %v680 = vor.u32 %v677, %v678
      %v681 = vsel %vm563, %v673, %v680
      %v682 = vrot.slane %v677, 4
      %v684 = vshrl.u32 %v543, 16
      %v686 = vrot.slane %v684, 7
      %v687 = vshll.u32 %v543, 16
      %v689 = vor.u32 %v686, %v687
      %v690 = vrot.slane %v686, 4
      %v692 = vshrl.u32 %v544, 16
      %v694 = vrot.slane %v692, 7
      %v695 = vshll.u32 %v544, 16
      %v697 = vor.u32 %v694, %v695
      %v698 = vsel %vm563, %v690, %v697
      %v699 = vrot.slane %v694, 4
      %v701 = vshrl.u32 %v545, 16
      %v703 = vrot.slane %v701, 7
      %v704 = vshll.u32 %v545, 16
      %v706 = vor.u32 %v703, %v704
      %v707 = vrot.slane %v703, 4
      %v709 = vshrl.u32 %v546, 16
      %v711 = vrot.slane %v709, 7
      %v712 = vshll.u32 %v546, 16
      %v714 = vor.u32 %v711, %v712
      %v715 = vsel %vm563, %v707, %v714
      %v716 = vrot.slane %v711, 4
      %v718 = vshrl.u32 %v547, 16
      %v720 = vrot.slane %v718, 7
      %v721 = vshll.u32 %v547, 16
      %v723 = vor.u32 %v720, %v721
      %v724 = vrot.slane %v720, 4
      %v726 = vshrl.u32 %v548, 16
      %v728 = vrot.slane %v726, 7
      %v729 = vshll.u32 %v548, 16
      %v731 = vor.u32 %v728, %v729
      %v732 = vsel %vm563, %v724, %v731
      %v733 = vrot.slane %v728, 4
      %v735 = vshrl.u32 %v549, 16
      %v737 = vrot.slane %v735, 7
      %v738 = vshll.u32 %v549, 16
      %v740 = vor.u32 %v737, %v738
      %v741 = vrot.slane %v737, 4
      %v743 = vshrl.u32 %v550, 16
      %v745 = vrot.slane %v743, 7
      %v746 = vshll.u32 %v550, 16
      %v748 = vor.u32 %v745, %v746
      %v749 = vsel %vm563, %v741, %v748
      %v750 = vrot.slane %v745, 4
      %v752 = vshrl.u32 %v551, 16
      %v754 = vrot.slane %v752, 7
      %v755 = vshll.u32 %v551, 16
      %v757 = vor.u32 %v754, %v755
      %v758 = vrot.slane %v754, 4
      %v760 = vshrl.u32 %v552, 16
      %v762 = vrot.slane %v760, 7
      %v763 = vshll.u32 %v552, 16
      %v765 = vor.u32 %v762, %v763
      %v766 = vsel %vm563, %v758, %v765
      %v767 = vrot.slane %v762, 4
      %v769 = vshrl.u32 %v553, 16
      %v771 = vrot.slane %v769, 7
      %v772 = vshll.u32 %v553, 16
      %v774 = vor.u32 %v771, %v772
      %v775 = vrot.slane %v771, 4
      %v777 = vshrl.u32 %v554, 16
      %v779 = vrot.slane %v777, 7
      %v780 = vshll.u32 %v554, 16
      %v782 = vor.u32 %v779, %v780
      %v783 = vsel %vm563, %v775, %v782
      %v784 = vrot.slane %v779, 4
      %v786 = vshrl.u32 %v555, 16
      %v788 = vrot.slane %v786, 7
      %v789 = vshll.u32 %v555, 16
      %v791 = vor.u32 %v788, %v789
      %v792 = vrot.slane %v788, 4
      %v794 = vshrl.u32 %v556, 16
      %v796 = vrot.slane %v794, 7
      %v797 = vshll.u32 %v556, 16
      %v799 = vor.u32 %v796, %v797
      %v800 = vsel %vm563, %v792, %v799
      %v801 = vrot.slane %v796, 4
      %v803 = vshrl.u32 %v557, 16
      %v805 = vrot.slane %v803, 7
      %v806 = vshll.u32 %v557, 16
      %v808 = vor.u32 %v805, %v806
      %v809 = vrot.slane %v805, 4
      %v811 = vshrl.u32 %v558, 16
      %v813 = vrot.slane %v811, 7
      %v814 = vshll.u32 %v558, 16
      %v816 = vor.u32 %v813, %v814
      %v817 = vsel %vm563, %v809, %v816
      %v818 = vrot.slane %v813, 4
      %v820 = vshrl.u32 %v559, 16
      %v822 = vrot.slane %v820, 7
      %v823 = vshll.u32 %v559, 16
      %v825 = vor.u32 %v822, %v823
      %v826 = vrot.slane %v822, 4
      %v828 = vshrl.u32 %v560, 16
      %v830 = vrot.slane %v828, 7
      %v831 = vshll.u32 %v560, 16
      %v833 = vor.u32 %v830, %v831
      %v834 = vsel %vm563, %v826, %v833
      %v835 = vrot.slane %v830, 4
      %s884 = scalar_lea.vmem [#allocation2], 12
      %vm885 = vcmask 1043456
      %vm886 = vsmask.f32 7938
      %vm887 = vmand %vm885, %vm886
      %v888 = vld [vmem:[%s884] sm:$0xf]
      %v889 = vsel %vm887, %v570, %v888
      %890 = vst [vmem:[%s884] sm:$0xf] %v889
      %891 = vst [vmem:[%s884 + $0x4] sm:$0xf] %v579
      %vm892 = vcmask 1040384
      %vm893 = vmand %vm892, %vm561
      %v894 = vld [vmem:[%s884 + $0x8] sm:$0x1]
      %v895 = vsel %vm893, %v580, %v894
      %896 = vst [vmem:[%s884 + $0x8] sm:$0x1] %v895
      %v897 = vld [vmem:[%s884 + $0xc] sm:$0xf]
      %v898 = vsel %vm887, %v587, %v897
      %899 = vst [vmem:[%s884 + $0xc] sm:$0xf] %v898
      %900 = vst [vmem:[%s884 + $0x10] sm:$0xf] %v596
      %v901 = vld [vmem:[%s884 + $0x14] sm:$0x1]
      %v902 = vsel %vm893, %v597, %v901
      %903 = vst [vmem:[%s884 + $0x14] sm:$0x1] %v902
      %v904 = vld [vmem:[%s884 + $0x18] sm:$0xf]
      %v905 = vsel %vm887, %v604, %v904
      %906 = vst [vmem:[%s884 + $0x18] sm:$0xf] %v905
      %907 = vst [vmem:[%s884 + $0x1c] sm:$0xf] %v613
      %v908 = vld [vmem:[%s884 + $0x20] sm:$0x1]
      %v909 = vsel %vm893, %v614, %v908
      %910 = vst [vmem:[%s884 + $0x20] sm:$0x1] %v909
      %v911 = vld [vmem:[%s884 + $0x24] sm:$0xf]
      %v912 = vsel %vm887, %v621, %v911
      %913 = vst [vmem:[%s884 + $0x24] sm:$0xf] %v912
      %914 = vst [vmem:[%s884 + $0x28] sm:$0xf] %v630
      %v915 = vld [vmem:[%s884 + $0x2c] sm:$0x1]
      %v916 = vsel %vm893, %v631, %v915
      %917 = vst [vmem:[%s884 + $0x2c] sm:$0x1] %v916
      %v918 = vld [vmem:[%s884 + $0x30] sm:$0xf]
      %v919 = vsel %vm887, %v638, %v918
      %920 = vst [vmem:[%s884 + $0x30] sm:$0xf] %v919
      %921 = vst [vmem:[%s884 + $0x34] sm:$0xf] %v647
      %v922 = vld [vmem:[%s884 + $0x38] sm:$0x1]
      %v923 = vsel %vm893, %v648, %v922
      %924 = vst [vmem:[%s884 + $0x38] sm:$0x1] %v923
      %v925 = vld [vmem:[%s884 + $0x3c] sm:$0xf]
      %v926 = vsel %vm887, %v655, %v925
      %927 = vst [vmem:[%s884 + $0x3c] sm:$0xf] %v926
      %928 = vst [vmem:[%s884 + $0x40] sm:$0xf] %v664
      %v929 = vld [vmem:[%s884 + $0x44] sm:$0x1]
      %v930 = vsel %vm893, %v665, %v929
      %931 = vst [vmem:[%s884 + $0x44] sm:$0x1] %v930
      %v932 = vld [vmem:[%s884 + $0x48] sm:$0xf]
      %v933 = vsel %vm887, %v672, %v932
      %934 = vst [vmem:[%s884 + $0x48] sm:$0xf] %v933
      %935 = vst [vmem:[%s884 + $0x4c] sm:$0xf] %v681
      %v936 = vld [vmem:[%s884 + $0x50] sm:$0x1]
      %v937 = vsel %vm893, %v682, %v936
      %938 = vst [vmem:[%s884 + $0x50] sm:$0x1] %v937
      %v939 = vld [vmem:[%s884 + $0x54] sm:$0xf]
      %v940 = vsel %vm887, %v689, %v939
      %941 = vst [vmem:[%s884 + $0x54] sm:$0xf] %v940
      %942 = vst [vmem:[%s884 + $0x58] sm:$0xf] %v698
      %v943 = vld [vmem:[%s884 + $0x5c] sm:$0x1]
      %v944 = vsel %vm893, %v699, %v943
      %945 = vst [vmem:[%s884 + $0x5c] sm:$0x1] %v944
      %v946 = vld [vmem:[%s884 + $0x60] sm:$0xf]
      %v947 = vsel %vm887, %v706, %v946
      %948 = vst [vmem:[%s884 + $0x60] sm:$0xf] %v947
      %949 = vst [vmem:[%s884 + $0x64] sm:$0xf] %v715
      %v950 = vld [vmem:[%s884 + $0x68] sm:$0x1]
      %v951 = vsel %vm893, %v716, %v950
      %952 = vst [vmem:[%s884 + $0x68] sm:$0x1] %v951
      %v953 = vld [vmem:[%s884 + $0x6c] sm:$0xf]
      %v954 = vsel %vm887, %v723, %v953
      %955 = vst [vmem:[%s884 + $0x6c] sm:$0xf] %v954
      %956 = vst [vmem:[%s884 + $0x70] sm:$0xf] %v732
      %v957 = vld [vmem:[%s884 + $0x74] sm:$0x1]
      %v958 = vsel %vm893, %v733, %v957
      %959 = vst [vmem:[%s884 + $0x74] sm:$0x1] %v958
      %v960 = vld [vmem:[%s884 + $0x78] sm:$0xf]
      %v961 = vsel %vm887, %v740, %v960
      %962 = vst [vmem:[%s884 + $0x78] sm:$0xf] %v961
      %963 = vst [vmem:[%s884 + $0x7c] sm:$0xf] %v749
      %v964 = vld [vmem:[%s884 + $0x80] sm:$0x1]
      %v965 = vsel %vm893, %v750, %v964
      %966 = vst [vmem:[%s884 + $0x80] sm:$0x1] %v965
      %v967 = vld [vmem:[%s884 + $0x84] sm:$0xf]
      %v968 = vsel %vm887, %v757, %v967
      %969 = vst [vmem:[%s884 + $0x84] sm:$0xf] %v968
      %970 = vst [vmem:[%s884 + $0x88] sm:$0xf] %v766
      %v971 = vld [vmem:[%s884 + $0x8c] sm:$0x1]
      %v972 = vsel %vm893, %v767, %v971
      %973 = vst [vmem:[%s884 + $0x8c] sm:$0x1] %v972
      %v974 = vld [vmem:[%s884 + $0x90] sm:$0xf]
      %v975 = vsel %vm887, %v774, %v974
      %976 = vst [vmem:[%s884 + $0x90] sm:$0xf] %v975
      %977 = vst [vmem:[%s884 + $0x94] sm:$0xf] %v783
      %v978 = vld [vmem:[%s884 + $0x98] sm:$0x1]
      %v979 = vsel %vm893, %v784, %v978
      %980 = vst [vmem:[%s884 + $0x98] sm:$0x1] %v979
      %v981 = vld [vmem:[%s884 + $0x9c] sm:$0xf]
      %v982 = vsel %vm887, %v791, %v981
      %983 = vst [vmem:[%s884 + $0x9c] sm:$0xf] %v982
      %984 = vst [vmem:[%s884 + $0xa0] sm:$0xf] %v800
      %v985 = vld [vmem:[%s884 + $0xa4] sm:$0x1]
      %v986 = vsel %vm893, %v801, %v985
      %987 = vst [vmem:[%s884 + $0xa4] sm:$0x1] %v986
      %v988 = vld [vmem:[%s884 + $0xa8] sm:$0xf]
      %v989 = vsel %vm887, %v808, %v988
      %990 = vst [vmem:[%s884 + $0xa8] sm:$0xf] %v989
      %991 = vst [vmem:[%s884 + $0xac] sm:$0xf] %v817
      %v992 = vld [vmem:[%s884 + $0xb0] sm:$0x1]
      %v993 = vsel %vm893, %v818, %v992
      %994 = vst [vmem:[%s884 + $0xb0] sm:$0x1] %v993
      %v995 = vld [vmem:[%s884 + $0xb4] sm:$0xf]
      %v996 = vsel %vm887, %v825, %v995
      %997 = vst [vmem:[%s884 + $0xb4] sm:$0xf] %v996
      %998 = vst [vmem:[%s884 + $0xb8] sm:$0xf] %v834
      %v999 = vld [vmem:[%s884 + $0xbc] sm:$0x1]
      %v1000 = vsel %vm893, %v835, %v999
      %1001 = vst [vmem:[%s884 + $0xbc] sm:$0x1] %v1000
      %v1002 = vld [vmem:[#allocation2] sm:$0xf]
      %v1003 = vld [vmem:[#allocation2 + $0x4] sm:$0xf]
      %v1004 = vld [vmem:[#allocation2 + $0x8] sm:$0xf]
      %v1005 = vld [vmem:[#allocation2 + $0xc] sm:$0xf]
      %v1006 = vld [vmem:[#allocation2 + $0x10] sm:$0xf]
      %v1007 = vld [vmem:[#allocation2 + $0x14] sm:$0xf]
      %v1008 = vld [vmem:[#allocation2 + $0x18] sm:$0xf]
      %v1009 = vld [vmem:[#allocation2 + $0x1c] sm:$0xf]
      %v1010 = vld [vmem:[#allocation2 + $0x20] sm:$0xf]
      %v1011 = vld [vmem:[#allocation2 + $0x24] sm:$0xf]
      %v1012 = vld [vmem:[#allocation2 + $0x28] sm:$0xf]
      %v1013 = vld [vmem:[#allocation2 + $0x2c] sm:$0xf]
      %v1014 = vld [vmem:[#allocation2 + $0x30] sm:$0xf]
      %v1015 = vld [vmem:[#allocation2 + $0x34] sm:$0xf]
      %v1016 = vld [vmem:[#allocation2 + $0x38] sm:$0xf]
      %v1017 = vld [vmem:[#allocation2 + $0x3c] sm:$0xf]
      %v1018 = vld [vmem:[#allocation2 + $0x40] sm:$0xf]
      %v1019 = vld [vmem:[#allocation2 + $0x44] sm:$0xf]
      %v1020 = vld [vmem:[#allocation2 + $0x48] sm:$0xf]
      %v1021 = vld [vmem:[#allocation2 + $0x4c] sm:$0xf]
      %v1022 = vld [vmem:[#allocation2 + $0x50] sm:$0xf]
      %v1023 = vld [vmem:[#allocation2 + $0x54] sm:$0xf]
      %v1024 = vld [vmem:[#allocation2 + $0x58] sm:$0xf]
      %v1025 = vld [vmem:[#allocation2 + $0x5c] sm:$0xf]
      %v1026 = vld [vmem:[#allocation2 + $0x60] sm:$0xf]
      %v1027 = vld [vmem:[#allocation2 + $0x64] sm:$0xf]
      %v1028 = vld [vmem:[#allocation2 + $0x68] sm:$0xf]
      %v1029 = vld [vmem:[#allocation2 + $0x6c] sm:$0xf]
      %v1030 = vld [vmem:[#allocation2 + $0x70] sm:$0xf]
      %v1031 = vld [vmem:[#allocation2 + $0x74] sm:$0xf]
      %v1032 = vld [vmem:[#allocation2 + $0x78] sm:$0xf]
      %v1033 = vld [vmem:[#allocation2 + $0x7c] sm:$0xf]
      %v1034 = vld [vmem:[#allocation2 + $0x80] sm:$0xf]
      %v1035 = vld [vmem:[#allocation2 + $0x84] sm:$0xf]
      %v1036 = vld [vmem:[#allocation2 + $0x88] sm:$0xf]
      %v1037 = vld [vmem:[#allocation2 + $0x8c] sm:$0xf]
      %v1038 = vld [vmem:[#allocation2 + $0x90] sm:$0xf]
      %v1039 = vld [vmem:[#allocation2 + $0x94] sm:$0xf]
      %v1040 = vld [vmem:[#allocation2 + $0x98] sm:$0xf]
      %v1041 = vld [vmem:[#allocation2 + $0x9c] sm:$0xf]
      %v1042 = vld [vmem:[#allocation2 + $0xa0] sm:$0xf]
      %v1043 = vld [vmem:[#allocation2 + $0xa4] sm:$0xf]
      %v1044 = vld [vmem:[#allocation2 + $0xa8] sm:$0xf]
      %v1045 = vld [vmem:[#allocation2 + $0xac] sm:$0xf]
      %v1046 = vld [vmem:[#allocation2 + $0xb0] sm:$0xf]
      %v1047 = vld [vmem:[#allocation2 + $0xb4] sm:$0xf]
      %v1048 = vld [vmem:[#allocation2 + $0xb8] sm:$0xf]
      %v1049 = vld [vmem:[#allocation2 + $0xbc] sm:$0xf]
      %v1050 = vld [vmem:[#allocation2 + $0xc0] sm:$0xf]
      %v1051 = vld [vmem:[#allocation2 + $0xc4] sm:$0xf]
      %v1052 = vld [vmem:[#allocation2 + $0xc8] sm:$0xf]
      %v1053 = vld [vmem:[#allocation2 + $0xcc] sm:$0xf]
      %v1054 = vld [vmem:[#allocation2 + $0xd0] sm:$0xf]
      %v1055 = vld [vmem:[#allocation2 + $0xd4] sm:$0xf]
      %v1056 = vld [vmem:[%s3] sm:$0xf]
      %v1057 = vld [vmem:[%s3 + $0x4] sm:$0xf]
      %v1058 = vld [vmem:[%s3 + $0x8] sm:$0xf]
      %v1059 = vld [vmem:[%s3 + $0xc] sm:$0xf]
      %v1060 = vld [vmem:[%s3 + $0x10] sm:$0xf]
      %v1061 = vld [vmem:[%s3 + $0x14] sm:$0xf]
      %v1062 = vld [vmem:[%s3 + $0x18] sm:$0xf]
      %v1063 = vld [vmem:[%s3 + $0x1c] sm:$0xf]
      %v1064 = vld [vmem:[%s3 + $0x20] sm:$0xf]
      %v1065 = vld [vmem:[%s3 + $0x24] sm:$0xf]
      %v1066 = vld [vmem:[%s3 + $0x28] sm:$0xf]
      %v1067 = vld [vmem:[%s3 + $0x2c] sm:$0xf]
      %v1068 = vld [vmem:[%s3 + $0x30] sm:$0xf]
      %v1069 = vld [vmem:[%s3 + $0x34] sm:$0xf]
      %v1070 = vld [vmem:[%s3 + $0x38] sm:$0xf]
      %v1071 = vld [vmem:[%s3 + $0x3c] sm:$0xf]
      %vm1072 = vsmask.f32 3328
      %vm1073 = vsmask.f32 7440
      %vm1074 = vmor %vm1072, %vm1073
      %v1076 = vshrl.u32 %v1002, 16
      %v1078 = vrot.slane %v1076, 4
      %v1079 = vshll.u32 %v1002, 16
      %v1081 = vrot.slane %v1079, 5
      %v1082 = vor.u32 %v1078, %v1081
      %v1083 = vrot.slane %v1082, 4
      %v1085 = vshll.u32 %v1003, 16
      %v1087 = vrot.slane %v1085, 5
      %v1088 = vsel %vm1074, %v1083, %v1087
      %v1089 = vshrl.u32 %v1003, 16
      %v1091 = vrot.slane %v1089, 4
      %v1092 = vor.u32 %v1091, %v1087
      %v1093 = vrot.slane %v1092, 4
      %v1095 = vshll.u32 %v1004, 16
      %v1097 = vrot.slane %v1095, 5
      %v1098 = vsel %vm1074, %v1093, %v1097
      %v1100 = vshrl.u32 %v1005, 16
      %v1102 = vrot.slane %v1100, 4
      %v1103 = vshll.u32 %v1005, 16
      %v1105 = vrot.slane %v1103, 5
      %v1106 = vor.u32 %v1102, %v1105
      %v1107 = vrot.slane %v1106, 4
      %v1109 = vshll.u32 %v1006, 16
      %v1111 = vrot.slane %v1109, 5
      %v1112 = vsel %vm1074, %v1107, %v1111
      %v1113 = vshrl.u32 %v1006, 16
      %v1115 = vrot.slane %v1113, 4
      %v1116 = vor.u32 %v1115, %v1111
      %v1117 = vrot.slane %v1116, 4
      %v1119 = vshll.u32 %v1007, 16
      %v1121 = vrot.slane %v1119, 5
      %v1122 = vsel %vm1074, %v1117, %v1121
      %v1124 = vshrl.u32 %v1008, 16
      %v1126 = vrot.slane %v1124, 4
      %v1127 = vshll.u32 %v1008, 16
      %v1129 = vrot.slane %v1127, 5
      %v1130 = vor.u32 %v1126, %v1129
      %v1131 = vrot.slane %v1130, 4
      %v1133 = vshll.u32 %v1009, 16
      %v1135 = vrot.slane %v1133, 5
      %v1136 = vsel %vm1074, %v1131, %v1135
      %v1137 = vshrl.u32 %v1009, 16
      %v1139 = vrot.slane %v1137, 4
      %v1140 = vor.u32 %v1139, %v1135
      %v1141 = vrot.slane %v1140, 4
      %v1143 = vshll.u32 %v1010, 16
      %v1145 = vrot.slane %v1143, 5
      %v1146 = vsel %vm1074, %v1141, %v1145
      %v1148 = vshrl.u32 %v1011, 16
      %v1150 = vrot.slane %v1148, 4
      %v1151 = vshll.u32 %v1011, 16
      %v1153 = vrot.slane %v1151, 5
      %v1154 = vor.u32 %v1150, %v1153
      %v1155 = vrot.slane %v1154, 4
      %v1157 = vshll.u32 %v1012, 16
      %v1159 = vrot.slane %v1157, 5
      %v1160 = vsel %vm1074, %v1155, %v1159
      %v1161 = vshrl.u32 %v1012, 16
      %v1163 = vrot.slane %v1161, 4
      %v1164 = vor.u32 %v1163, %v1159
      %v1165 = vrot.slane %v1164, 4
      %v1167 = vshll.u32 %v1013, 16
      %v1169 = vrot.slane %v1167, 5
      %v1170 = vsel %vm1074, %v1165, %v1169
      %v1172 = vshrl.u32 %v1014, 16
      %v1174 = vrot.slane %v1172, 4
      %v1175 = vshll.u32 %v1014, 16
      %v1177 = vrot.slane %v1175, 5
      %v1178 = vor.u32 %v1174, %v1177
      %v1179 = vrot.slane %v1178, 4
      %v1181 = vshll.u32 %v1015, 16
      %v1183 = vrot.slane %v1181, 5
      %v1184 = vsel %vm1074, %v1179, %v1183
      %v1185 = vshrl.u32 %v1015, 16
      %v1187 = vrot.slane %v1185, 4
      %v1188 = vor.u32 %v1187, %v1183
      %v1189 = vrot.slane %v1188, 4
      %v1191 = vshll.u32 %v1016, 16
      %v1193 = vrot.slane %v1191, 5
      %v1194 = vsel %vm1074, %v1189, %v1193
      %v1196 = vshrl.u32 %v1017, 16
      %v1198 = vrot.slane %v1196, 4
      %v1199 = vshll.u32 %v1017, 16
      %v1201 = vrot.slane %v1199, 5
      %v1202 = vor.u32 %v1198, %v1201
      %v1203 = vrot.slane %v1202, 4
      %v1205 = vshll.u32 %v1018, 16
      %v1207 = vrot.slane %v1205, 5
      %v1208 = vsel %vm1074, %v1203, %v1207
      %v1209 = vshrl.u32 %v1018, 16
      %v1211 = vrot.slane %v1209, 4
      %v1212 = vor.u32 %v1211, %v1207
      %v1213 = vrot.slane %v1212, 4
      %v1215 = vshll.u32 %v1019, 16
      %v1217 = vrot.slane %v1215, 5
      %v1218 = vsel %vm1074, %v1213, %v1217
      %v1220 = vshrl.u32 %v1020, 16
      %v1222 = vrot.slane %v1220, 4
      %v1223 = vshll.u32 %v1020, 16
      %v1225 = vrot.slane %v1223, 5
      %v1226 = vor.u32 %v1222, %v1225
      %v1227 = vrot.slane %v1226, 4
      %v1229 = vshll.u32 %v1021, 16
      %v1231 = vrot.slane %v1229, 5
      %v1232 = vsel %vm1074, %v1227, %v1231
      %v1233 = vshrl.u32 %v1021, 16
      %v1235 = vrot.slane %v1233, 4
      %v1236 = vor.u32 %v1235, %v1231
      %v1237 = vrot.slane %v1236, 4
      %v1239 = vshll.u32 %v1022, 16
      %v1241 = vrot.slane %v1239, 5
      %v1242 = vsel %vm1074, %v1237, %v1241
      %v1244 = vshrl.u32 %v1023, 16
      %v1246 = vrot.slane %v1244, 4
      %v1247 = vshll.u32 %v1023, 16
      %v1249 = vrot.slane %v1247, 5
      %v1250 = vor.u32 %v1246, %v1249
      %v1251 = vrot.slane %v1250, 4
      %v1253 = vshll.u32 %v1024, 16
      %v1255 = vrot.slane %v1253, 5
      %v1256 = vsel %vm1074, %v1251, %v1255
      %v1257 = vshrl.u32 %v1024, 16
      %v1259 = vrot.slane %v1257, 4
      %v1260 = vor.u32 %v1259, %v1255
      %v1261 = vrot.slane %v1260, 4
      %v1263 = vshll.u32 %v1025, 16
      %v1265 = vrot.slane %v1263, 5
      %v1266 = vsel %vm1074, %v1261, %v1265
      %v1268 = vshrl.u32 %v1026, 16
      %v1270 = vrot.slane %v1268, 4
      %v1271 = vshll.u32 %v1026, 16
      %v1273 = vrot.slane %v1271, 5
      %v1274 = vor.u32 %v1270, %v1273
      %v1275 = vrot.slane %v1274, 4
      %v1277 = vshll.u32 %v1027, 16
      %v1279 = vrot.slane %v1277, 5
      %v1280 = vsel %vm1074, %v1275, %v1279
      %v1281 = vshrl.u32 %v1027, 16
      %v1283 = vrot.slane %v1281, 4
      %v1284 = vor.u32 %v1283, %v1279
      %v1285 = vrot.slane %v1284, 4
      %v1287 = vshll.u32 %v1028, 16
      %v1289 = vrot.slane %v1287, 5
      %v1290 = vsel %vm1074, %v1285, %v1289
      %v1292 = vshrl.u32 %v1029, 16
      %v1294 = vrot.slane %v1292, 4
      %v1295 = vshll.u32 %v1029, 16
      %v1297 = vrot.slane %v1295, 5
      %v1298 = vor.u32 %v1294, %v1297
      %v1299 = vrot.slane %v1298, 4
      %v1301 = vshll.u32 %v1030, 16
      %v1303 = vrot.slane %v1301, 5
      %v1304 = vsel %vm1074, %v1299, %v1303
      %v1305 = vshrl.u32 %v1030, 16
      %v1307 = vrot.slane %v1305, 4
      %v1308 = vor.u32 %v1307, %v1303
      %v1309 = vrot.slane %v1308, 4
      %v1311 = vshll.u32 %v1031, 16
      %v1313 = vrot.slane %v1311, 5
      %v1314 = vsel %vm1074, %v1309, %v1313
      %v1316 = vshrl.u32 %v1032, 16
      %v1318 = vrot.slane %v1316, 4
      %v1319 = vshll.u32 %v1032, 16
      %v1321 = vrot.slane %v1319, 5
      %v1322 = vor.u32 %v1318, %v1321
      %v1323 = vrot.slane %v1322, 4
      %v1325 = vshll.u32 %v1033, 16
      %v1327 = vrot.slane %v1325, 5
      %v1328 = vsel %vm1074, %v1323, %v1327
      %v1329 = vshrl.u32 %v1033, 16
      %v1331 = vrot.slane %v1329, 4
      %v1332 = vor.u32 %v1331, %v1327
      %v1333 = vrot.slane %v1332, 4
      %v1335 = vshll.u32 %v1034, 16
      %v1337 = vrot.slane %v1335, 5
      %v1338 = vsel %vm1074, %v1333, %v1337
      %v1340 = vshrl.u32 %v1035, 16
      %v1342 = vrot.slane %v1340, 4
      %v1343 = vshll.u32 %v1035, 16
      %v1345 = vrot.slane %v1343, 5
      %v1346 = vor.u32 %v1342, %v1345
      %v1347 = vrot.slane %v1346, 4
      %v1349 = vshll.u32 %v1036, 16
      %v1351 = vrot.slane %v1349, 5
      %v1352 = vsel %vm1074, %v1347, %v1351
      %v1353 = vshrl.u32 %v1036, 16
      %v1355 = vrot.slane %v1353, 4
      %v1356 = vor.u32 %v1355, %v1351
      %v1357 = vrot.slane %v1356, 4
      %v1359 = vshll.u32 %v1037, 16
      %v1361 = vrot.slane %v1359, 5
      %v1362 = vsel %vm1074, %v1357, %v1361
      %v1364 = vshrl.u32 %v1038, 16
      %v1366 = vrot.slane %v1364, 4
      %v1367 = vshll.u32 %v1038, 16
      %v1369 = vrot.slane %v1367, 5
      %v1370 = vor.u32 %v1366, %v1369
      %v1371 = vrot.slane %v1370, 4
      %v1373 = vshll.u32 %v1039, 16
      %v1375 = vrot.slane %v1373, 5
      %v1376 = vsel %vm1074, %v1371, %v1375
      %v1377 = vshrl.u32 %v1039, 16
      %v1379 = vrot.slane %v1377, 4
      %v1380 = vor.u32 %v1379, %v1375
      %v1381 = vrot.slane %v1380, 4
      %v1383 = vshll.u32 %v1040, 16
      %v1385 = vrot.slane %v1383, 5
      %v1386 = vsel %vm1074, %v1381, %v1385
      %v1388 = vshrl.u32 %v1041, 16
      %v1390 = vrot.slane %v1388, 4
      %v1391 = vshll.u32 %v1041, 16
      %v1393 = vrot.slane %v1391, 5
      %v1394 = vor.u32 %v1390, %v1393
      %v1395 = vrot.slane %v1394, 4
      %v1397 = vshll.u32 %v1042, 16
      %v1399 = vrot.slane %v1397, 5
      %v1400 = vsel %vm1074, %v1395, %v1399
      %v1401 = vshrl.u32 %v1042, 16
      %v1403 = vrot.slane %v1401, 4
      %v1404 = vor.u32 %v1403, %v1399
      %v1405 = vrot.slane %v1404, 4
      %v1407 = vshll.u32 %v1043, 16
      %v1409 = vrot.slane %v1407, 5
      %v1410 = vsel %vm1074, %v1405, %v1409
      %v1412 = vshrl.u32 %v1044, 16
      %v1414 = vrot.slane %v1412, 4
      %v1415 = vshll.u32 %v1044, 16
      %v1417 = vrot.slane %v1415, 5
      %v1418 = vor.u32 %v1414, %v1417
      %v1419 = vrot.slane %v1418, 4
      %v1421 = vshll.u32 %v1045, 16
      %v1423 = vrot.slane %v1421, 5
      %v1424 = vsel %vm1074, %v1419, %v1423
      %v1425 = vshrl.u32 %v1045, 16
      %v1427 = vrot.slane %v1425, 4
      %v1428 = vor.u32 %v1427, %v1423
      %v1429 = vrot.slane %v1428, 4
      %v1431 = vshll.u32 %v1046, 16
      %v1433 = vrot.slane %v1431, 5
      %v1434 = vsel %vm1074, %v1429, %v1433
      %v1436 = vshrl.u32 %v1047, 16
      %v1438 = vrot.slane %v1436, 4
      %v1439 = vshll.u32 %v1047, 16
      %v1441 = vrot.slane %v1439, 5
      %v1442 = vor.u32 %v1438, %v1441
      %v1443 = vrot.slane %v1442, 4
      %v1445 = vshll.u32 %v1048, 16
      %v1447 = vrot.slane %v1445, 5
      %v1448 = vsel %vm1074, %v1443, %v1447
      %v1449 = vshrl.u32 %v1048, 16
      %v1451 = vrot.slane %v1449, 4
      %v1452 = vor.u32 %v1451, %v1447
      %v1453 = vrot.slane %v1452, 4
      %v1455 = vshll.u32 %v1049, 16
      %v1457 = vrot.slane %v1455, 5
      %v1458 = vsel %vm1074, %v1453, %v1457
      %s1459 = scalar_lea.vmem %s3, 64
      %v1460 = vld [vmem:[%s1459] sm:$0xf]
      %v1461 = vld [vmem:[%s1459 + $0x4] sm:$0xf]
      %v1462 = vld [vmem:[%s1459 + $0x8] sm:$0xf]
      %v1463 = vld [vmem:[%s1459 + $0xc] sm:$0xf]
      %v1464 = vld [vmem:[%s1459 + $0x10] sm:$0xf]
      %v1465 = vld [vmem:[%s1459 + $0x14] sm:$0xf]
      %v1466 = vld [vmem:[%s1459 + $0x18] sm:$0xf]
      %v1467 = vld [vmem:[%s1459 + $0x1c] sm:$0xf]
      %v1468 = vld [vmem:[%s1459 + $0x20] sm:$0xf]
      %v1469 = vld [vmem:[%s1459 + $0x24] sm:$0xf]
      %v1470 = vld [vmem:[%s1459 + $0x28] sm:$0xf]
      %v1471 = vld [vmem:[%s1459 + $0x2c] sm:$0xf]
      %v1472 = vld [vmem:[%s1459 + $0x30] sm:$0xf]
      %v1473 = vld [vmem:[%s1459 + $0x34] sm:$0xf]
      %v1474 = vld [vmem:[%s1459 + $0x38] sm:$0xf]
      %v1475 = vld [vmem:[%s1459 + $0x3c] sm:$0xf]
      %v1476 = vunpack.c.l.b16 %v1088
      %v1477 = vunpack.c.l.b16 %v1098
      %v1478 = vunpack.c.l.b16 %v1112
      %v1479 = vunpack.c.l.b16 %v1122
      %v1480 = vunpack.c.l.b16 %v1136
      %v1481 = vunpack.c.l.b16 %v1146
      %v1482 = vunpack.c.l.b16 %v1160
      %v1483 = vunpack.c.l.b16 %v1170
      %v1484 = vunpack.c.l.b16 %v1184
      %v1485 = vunpack.c.l.b16 %v1194
      %v1486 = vunpack.c.l.b16 %v1208
      %v1487 = vunpack.c.l.b16 %v1218
      %v1488 = vunpack.c.l.b16 %v1232
      %v1489 = vunpack.c.l.b16 %v1242
      %v1490 = vunpack.c.l.b16 %v1256
      %v1491 = vunpack.c.l.b16 %v1266
      %v1492 = vunpack.c.l.b16 %v1280
      %v1493 = vunpack.c.l.b16 %v1290
      %v1494 = vunpack.c.l.b16 %v1304
      %v1495 = vunpack.c.l.b16 %v1314
      %v1496 = vunpack.c.l.b16 %v1328
      %v1497 = vunpack.c.l.b16 %v1338
      %v1498 = vunpack.c.l.b16 %v1352
      %v1499 = vunpack.c.l.b16 %v1362
      %v1500 = vunpack.c.l.b16 %v1376
      %v1501 = vunpack.c.l.b16 %v1386
      %v1502 = vunpack.c.l.b16 %v1400
      %v1503 = vunpack.c.l.b16 %v1410
      %v1504 = vunpack.c.l.b16 %v1424
      %v1505 = vunpack.c.l.b16 %v1434
      %v1506 = vunpack.c.l.b16 %v1448
      %v1507 = vunpack.c.l.b16 %v1458
      %v1508 = vpack.c.b16 %v1477, %v1476
      %v1509 = vpack.c.b16 %v1479, %v1478
      %v1510 = vpack.c.b16 %v1481, %v1480
      %v1511 = vpack.c.b16 %v1483, %v1482
      %v1512 = vpack.c.b16 %v1485, %v1484
      %v1513 = vpack.c.b16 %v1487, %v1486
      %v1514 = vpack.c.b16 %v1489, %v1488
      %v1515 = vpack.c.b16 %v1491, %v1490
      %v1516 = vpack.c.b16 %v1493, %v1492
      %v1517 = vpack.c.b16 %v1495, %v1494
      %v1518 = vpack.c.b16 %v1497, %v1496
      %v1519 = vpack.c.b16 %v1499, %v1498
      %v1520 = vpack.c.b16 %v1501, %v1500
      %v1521 = vpack.c.b16 %v1503, %v1502
      %v1522 = vpack.c.b16 %v1505, %v1504
      %v1523 = vpack.c.b16 %v1507, %v1506
      %v1556 = vunpack.c.l.b16 %v1460
      %v1557 = vunpack.c.l.b16 %v1461
      %v1558 = vunpack.c.l.b16 %v1462
      %v1559 = vunpack.c.l.b16 %v1463
      %v1560 = vunpack.c.l.b16 %v1464
      %v1561 = vunpack.c.l.b16 %v1465
      %v1562 = vunpack.c.l.b16 %v1466
      %v1563 = vunpack.c.l.b16 %v1467
      %v1564 = vunpack.c.l.b16 %v1468
      %v1565 = vunpack.c.l.b16 %v1469
      %v1566 = vunpack.c.l.b16 %v1470
      %v1567 = vunpack.c.l.b16 %v1471
      %v1568 = vunpack.c.l.b16 %v1472
      %v1569 = vunpack.c.l.b16 %v1473
      %v1570 = vunpack.c.l.b16 %v1474
      %v1571 = vunpack.c.l.b16 %v1475
      %v1572 = vpack.c.b16 %v1557, %v1556
      %v1573 = vpack.c.b16 %v1559, %v1558
      %v1574 = vpack.c.b16 %v1561, %v1560
      %v1575 = vpack.c.b16 %v1563, %v1562
      %v1576 = vpack.c.b16 %v1565, %v1564
      %v1577 = vpack.c.b16 %v1567, %v1566
      %v1578 = vpack.c.b16 %v1569, %v1568
      %v1579 = vpack.c.b16 %v1571, %v1570
      %1588 = vmatprep.subr.bf16.mxu0 0
      %1589 = vmatpush1.bf16.msra.mxu0 %v1579
      %1590 = vmatprep.subr.bf16.mxu0 0
      %1591 = vmatpush1.bf16.msra.mxu0 %v1578
      %1592 = vmatprep.subr.bf16.mxu0 0
      %1593 = vmatpush1.bf16.msra.mxu0 %v1577
      %1594 = vmatprep.subr.bf16.mxu0 0
      %1595 = vmatpush1.bf16.msra.mxu0 %v1576
      %1596 = vmatprep.subr.bf16.mxu0 0
      %1597 = vmatpush1.bf16.msra.mxu0 %v1575
      %1598 = vmatprep.subr.bf16.mxu0 0
      %1599 = vmatpush1.bf16.msra.mxu0 %v1574
      %1600 = vmatprep.subr.bf16.mxu0 0
      %1601 = vmatpush1.bf16.msra.mxu0 %v1573
      %1602 = vmatprep.subr.bf16.mxu0 0
      %1603 = vmatpush1.bf16.msra.mxu0 %v1572
      %1604 = vmatprep.subr.bf16.mxu0 0
      %1605 = vmatpush2.bf16.msra.mxu0 0
      %1606 = vmatprep.subr.bf16.mxu0 0
      %1607 = vmatpush2.bf16.msra.mxu0 0
      %1608 = vmatprep.subr.bf16.mxu0 0
      %1609 = vmatpush2.bf16.msra.mxu0 0
      %1610 = vmatprep.subr.bf16.mxu0 0
      %1611 = vmatpush2.bf16.msra.mxu0 0
      %1612 = vmatprep.subr.bf16.mxu0 0
      %1613 = vmatpush2.bf16.msra.mxu0 0
      %1614 = vmatprep.subr.bf16.mxu0 0
      %1615 = vmatpush2.bf16.msra.mxu0 0
      %1616 = vmatprep.subr.bf16.mxu0 0
      %1617 = vmatpush2.bf16.msra.mxu0 0
      %1618 = vmatprep.subr.bf16.mxu0 0
      %1619 = vmatpush2.bf16.msra.mxu0 0
      %1620 = vmatprep.mubr.bf16.mxu0 0
      %1621 = vmatmul.mubr.bf16.gmra.mxu0 %v1508
      %v1622 = vpop.f32.mrf.mxu0
      %v1623 = vadd.f32 0.0, %v1622
      %v1624 = vpop.f32.mrf.mxu0
      %v1625 = vpop.f32.mrf.mxu0
      %v1626 = vadd.f32 0.0, %v1625
      %v1627 = vpop.f32.mrf.mxu0
      %1628 = vmatprep.mubr.bf16.mxu0 0
      %1629 = vmatmul.mubr.bf16.gmra.mxu0 %v1509
      %v1630 = vpop.f32.mrf.mxu0
      %v1631 = vadd.f32 0.0, %v1630
      %v1632 = vpop.f32.mrf.mxu0
      %v1633 = vpop.f32.mrf.mxu0
      %v1634 = vadd.f32 0.0, %v1633
      %v1635 = vpop.f32.mrf.mxu0
      %1636 = vmatprep.mubr.bf16.mxu0 0
      %1637 = vmatmul.mubr.bf16.gmra.mxu0 %v1510
      %v1638 = vpop.f32.mrf.mxu0
      %v1639 = vadd.f32 0.0, %v1638
      %v1640 = vpop.f32.mrf.mxu0
      %v1641 = vpop.f32.mrf.mxu0
      %v1642 = vadd.f32 0.0, %v1641
      %v1643 = vpop.f32.mrf.mxu0
      %1644 = vmatprep.mubr.bf16.mxu0 0
      %1645 = vmatmul.mubr.bf16.gmra.mxu0 %v1511
      %v1646 = vpop.f32.mrf.mxu0
      %v1647 = vadd.f32 0.0, %v1646
      %v1648 = vpop.f32.mrf.mxu0
      %v1649 = vpop.f32.mrf.mxu0
      %v1650 = vadd.f32 0.0, %v1649
      %v1651 = vpop.f32.mrf.mxu0
      %1652 = vmatprep.mubr.bf16.mxu0 0
      %1653 = vmatmul.mubr.bf16.gmra.mxu0 %v1512
      %v1654 = vpop.f32.mrf.mxu0
      %v1655 = vadd.f32 0.0, %v1654
      %v1656 = vpop.f32.mrf.mxu0
      %v1657 = vpop.f32.mrf.mxu0
      %v1658 = vadd.f32 0.0, %v1657
      %v1659 = vpop.f32.mrf.mxu0
      %1660 = vmatprep.mubr.bf16.mxu0 0
      %1661 = vmatmul.mubr.bf16.gmra.mxu0 %v1513
      %v1662 = vpop.f32.mrf.mxu0
      %v1663 = vadd.f32 0.0, %v1662
      %v1664 = vpop.f32.mrf.mxu0
      %v1665 = vpop.f32.mrf.mxu0
      %v1666 = vadd.f32 0.0, %v1665
      %v1667 = vpop.f32.mrf.mxu0
      %1668 = vmatprep.mubr.bf16.mxu0 0
      %1669 = vmatmul.mubr.bf16.gmra.mxu0 %v1514
      %v1670 = vpop.f32.mrf.mxu0
      %v1671 = vadd.f32 0.0, %v1670
      %v1672 = vpop.f32.mrf.mxu0
      %v1673 = vpop.f32.mrf.mxu0
      %v1674 = vadd.f32 0.0, %v1673
      %v1675 = vpop.f32.mrf.mxu0
      %1676 = vmatprep.mubr.bf16.mxu0 0
      %1677 = vmatmul.mubr.bf16.gmra.mxu0 %v1515
      %v1678 = vpop.f32.mrf.mxu0
      %v1679 = vadd.f32 0.0, %v1678
      %v1680 = vpop.f32.mrf.mxu0
      %v1681 = vpop.f32.mrf.mxu0
      %v1682 = vadd.f32 0.0, %v1681
      %v1683 = vpop.f32.mrf.mxu0
      %1684 = vmatprep.mubr.bf16.mxu0 0
      %1685 = vmatmul.mubr.bf16.gmra.mxu0 %v1516
      %v1686 = vpop.f32.mrf.mxu0
      %v1687 = vadd.f32 0.0, %v1686
      %v1688 = vpop.f32.mrf.mxu0
      %v1689 = vpop.f32.mrf.mxu0
      %v1690 = vadd.f32 0.0, %v1689
      %v1691 = vpop.f32.mrf.mxu0
      %1692 = vmatprep.mubr.bf16.mxu0 0
      %1693 = vmatmul.mubr.bf16.gmra.mxu0 %v1517
      %v1694 = vpop.f32.mrf.mxu0
      %v1695 = vadd.f32 0.0, %v1694
      %v1696 = vpop.f32.mrf.mxu0
      %v1697 = vpop.f32.mrf.mxu0
      %v1698 = vadd.f32 0.0, %v1697
      %v1699 = vpop.f32.mrf.mxu0
      %1700 = vmatprep.mubr.bf16.mxu0 0
      %1701 = vmatmul.mubr.bf16.gmra.mxu0 %v1518
      %v1702 = vpop.f32.mrf.mxu0
      %v1703 = vadd.f32 0.0, %v1702
      %v1704 = vpop.f32.mrf.mxu0
      %v1705 = vpop.f32.mrf.mxu0
      %v1706 = vadd.f32 0.0, %v1705
      %v1707 = vpop.f32.mrf.mxu0
      %1708 = vmatprep.mubr.bf16.mxu0 0
      %1709 = vmatmul.mubr.bf16.gmra.mxu0 %v1519
      %v1710 = vpop.f32.mrf.mxu0
      %v1711 = vadd.f32 0.0, %v1710
      %v1712 = vpop.f32.mrf.mxu0
      %v1713 = vpop.f32.mrf.mxu0
      %v1714 = vadd.f32 0.0, %v1713
      %v1715 = vpop.f32.mrf.mxu0
      %1716 = vmatprep.mubr.bf16.mxu0 0
      %1717 = vmatmul.mubr.bf16.gmra.mxu0 %v1520
      %v1718 = vpop.f32.mrf.mxu0
      %v1719 = vadd.f32 0.0, %v1718
      %v1720 = vpop.f32.mrf.mxu0
      %v1721 = vpop.f32.mrf.mxu0
      %v1722 = vadd.f32 0.0, %v1721
      %v1723 = vpop.f32.mrf.mxu0
      %1724 = vmatprep.mubr.bf16.mxu0 0
      %1725 = vmatmul.mubr.bf16.gmra.mxu0 %v1521
      %v1726 = vpop.f32.mrf.mxu0
      %v1727 = vadd.f32 0.0, %v1726
      %v1728 = vpop.f32.mrf.mxu0
      %v1729 = vpop.f32.mrf.mxu0
      %v1730 = vadd.f32 0.0, %v1729
      %v1731 = vpop.f32.mrf.mxu0
      %1732 = vmatprep.mubr.bf16.mxu0 0
      %1733 = vmatmul.mubr.bf16.gmra.mxu0 %v1522
      %v1734 = vpop.f32.mrf.mxu0
      %v1735 = vadd.f32 0.0, %v1734
      %v1736 = vpop.f32.mrf.mxu0
      %v1737 = vpop.f32.mrf.mxu0
      %v1738 = vadd.f32 0.0, %v1737
      %v1739 = vpop.f32.mrf.mxu0
      %1740 = vmatprep.mubr.bf16.mxu0 0
      %1741 = vmatmul.mubr.bf16.gmra.mxu0 %v1523
      %v1742 = vpop.f32.mrf.mxu0
      %v1743 = vadd.f32 0.0, %v1742
      %v1744 = vpop.f32.mrf.mxu0
      %v1745 = vpop.f32.mrf.mxu0
      %v1746 = vadd.f32 0.0, %v1745
      %v1747 = vpop.f32.mrf.mxu0
      %1748 = vdwg.mxu0
      %v1781 = vunpack.c.l.b16 %v1002
      %v1782 = vunpack.c.l.b16 %v1003
      %v1783 = vunpack.c.l.b16 %v1005
      %v1784 = vunpack.c.l.b16 %v1006
      %v1785 = vunpack.c.l.b16 %v1008
      %v1786 = vunpack.c.l.b16 %v1009
      %v1787 = vunpack.c.l.b16 %v1011
      %v1788 = vunpack.c.l.b16 %v1012
      %v1789 = vunpack.c.l.b16 %v1014
      %v1790 = vunpack.c.l.b16 %v1015
      %v1791 = vunpack.c.l.b16 %v1017
      %v1792 = vunpack.c.l.b16 %v1018
      %v1793 = vunpack.c.l.b16 %v1020
      %v1794 = vunpack.c.l.b16 %v1021
      %v1795 = vunpack.c.l.b16 %v1023
      %v1796 = vunpack.c.l.b16 %v1024
      %v1797 = vunpack.c.l.b16 %v1026
      %v1798 = vunpack.c.l.b16 %v1027
      %v1799 = vunpack.c.l.b16 %v1029
      %v1800 = vunpack.c.l.b16 %v1030
      %v1801 = vunpack.c.l.b16 %v1032
      %v1802 = vunpack.c.l.b16 %v1033
      %v1803 = vunpack.c.l.b16 %v1035
      %v1804 = vunpack.c.l.b16 %v1036
      %v1805 = vunpack.c.l.b16 %v1038
      %v1806 = vunpack.c.l.b16 %v1039
      %v1807 = vunpack.c.l.b16 %v1041
      %v1808 = vunpack.c.l.b16 %v1042
      %v1809 = vunpack.c.l.b16 %v1044
      %v1810 = vunpack.c.l.b16 %v1045
      %v1811 = vunpack.c.l.b16 %v1047
      %v1812 = vunpack.c.l.b16 %v1048
      %v1813 = vpack.c.b16 %v1782, %v1781
      %v1814 = vpack.c.b16 %v1784, %v1783
      %v1815 = vpack.c.b16 %v1786, %v1785
      %v1816 = vpack.c.b16 %v1788, %v1787
      %v1817 = vpack.c.b16 %v1790, %v1789
      %v1818 = vpack.c.b16 %v1792, %v1791
      %v1819 = vpack.c.b16 %v1794, %v1793
      %v1820 = vpack.c.b16 %v1796, %v1795
      %v1821 = vpack.c.b16 %v1798, %v1797
      %v1822 = vpack.c.b16 %v1800, %v1799
      %v1823 = vpack.c.b16 %v1802, %v1801
      %v1824 = vpack.c.b16 %v1804, %v1803
      %v1825 = vpack.c.b16 %v1806, %v1805
      %v1826 = vpack.c.b16 %v1808, %v1807
      %v1827 = vpack.c.b16 %v1810, %v1809
      %v1828 = vpack.c.b16 %v1812, %v1811
      %v1861 = vunpack.c.l.b16 %v1056
      %v1862 = vunpack.c.l.b16 %v1057
      %v1863 = vunpack.c.l.b16 %v1058
      %v1864 = vunpack.c.l.b16 %v1059
      %v1865 = vunpack.c.l.b16 %v1060
      %v1866 = vunpack.c.l.b16 %v1061
      %v1867 = vunpack.c.l.b16 %v1062
      %v1868 = vunpack.c.l.b16 %v1063
      %v1869 = vunpack.c.l.b16 %v1064
      %v1870 = vunpack.c.l.b16 %v1065
      %v1871 = vunpack.c.l.b16 %v1066
      %v1872 = vunpack.c.l.b16 %v1067
      %v1873 = vunpack.c.l.b16 %v1068
      %v1874 = vunpack.c.l.b16 %v1069
      %v1875 = vunpack.c.l.b16 %v1070
      %v1876 = vunpack.c.l.b16 %v1071
      %v1877 = vpack.c.b16 %v1862, %v1861
      %v1878 = vpack.c.b16 %v1864, %v1863
      %v1879 = vpack.c.b16 %v1866, %v1865
      %v1880 = vpack.c.b16 %v1868, %v1867
      %v1881 = vpack.c.b16 %v1870, %v1869
      %v1882 = vpack.c.b16 %v1872, %v1871
      %v1883 = vpack.c.b16 %v1874, %v1873
      %v1884 = vpack.c.b16 %v1876, %v1875
      %1893 = vmatprep.subr.bf16.mxu0 0
      %1894 = vmatpush1.bf16.msra.mxu0 %v1884
      %1895 = vmatprep.subr.bf16.mxu0 0
      %1896 = vmatpush1.bf16.msra.mxu0 %v1883
      %1897 = vmatprep.subr.bf16.mxu0 0
      %1898 = vmatpush1.bf16.msra.mxu0 %v1882
      %1899 = vmatprep.subr.bf16.mxu0 0
      %1900 = vmatpush1.bf16.msra.mxu0 %v1881
      %1901 = vmatprep.subr.bf16.mxu0 0
      %1902 = vmatpush1.bf16.msra.mxu0 %v1880
      %1903 = vmatprep.subr.bf16.mxu0 0
      %1904 = vmatpush1.bf16.msra.mxu0 %v1879
      %1905 = vmatprep.subr.bf16.mxu0 0
      %1906 = vmatpush1.bf16.msra.mxu0 %v1878
      %1907 = vmatprep.subr.bf16.mxu0 0
      %1908 = vmatpush1.bf16.msra.mxu0 %v1877
      %1909 = vmatprep.subr.bf16.mxu0 0
      %1910 = vmatpush2.bf16.msra.mxu0 0
      %1911 = vmatprep.subr.bf16.mxu0 0
      %1912 = vmatpush2.bf16.msra.mxu0 0
      %1913 = vmatprep.subr.bf16.mxu0 0
      %1914 = vmatpush2.bf16.msra.mxu0 0
      %1915 = vmatprep.subr.bf16.mxu0 0
      %1916 = vmatpush2.bf16.msra.mxu0 0
      %1917 = vmatprep.subr.bf16.mxu0 0
      %1918 = vmatpush2.bf16.msra.mxu0 0
      %1919 = vmatprep.subr.bf16.mxu0 0
      %1920 = vmatpush2.bf16.msra.mxu0 0
      %1921 = vmatprep.subr.bf16.mxu0 0
      %1922 = vmatpush2.bf16.msra.mxu0 0
      %1923 = vmatprep.subr.bf16.mxu0 0
      %1924 = vmatpush2.bf16.msra.mxu0 0
      %1925 = vmatprep.mubr.bf16.mxu0 0
      %1926 = vmatmul.mubr.bf16.gmra.mxu0 %v1813
      %v1927 = vpop.f32.mrf.mxu0
      %v1928 = vadd.f32 %v1623, %v1927
      %v1929 = vpop.f32.mrf.mxu0
      %v1930 = vpop.f32.mrf.mxu0
      %v1931 = vadd.f32 %v1626, %v1930
      %v1932 = vpop.f32.mrf.mxu0
      %1933 = vmatprep.mubr.bf16.mxu0 0
      %1934 = vmatmul.mubr.bf16.gmra.mxu0 %v1814
      %v1935 = vpop.f32.mrf.mxu0
      %v1936 = vadd.f32 %v1631, %v1935
      %v1937 = vpop.f32.mrf.mxu0
      %v1938 = vpop.f32.mrf.mxu0
      %v1939 = vadd.f32 %v1634, %v1938
      %v1940 = vpop.f32.mrf.mxu0
      %1941 = vmatprep.mubr.bf16.mxu0 0
      %1942 = vmatmul.mubr.bf16.gmra.mxu0 %v1815
      %v1943 = vpop.f32.mrf.mxu0
      %v1944 = vadd.f32 %v1639, %v1943
      %v1945 = vpop.f32.mrf.mxu0
      %v1946 = vpop.f32.mrf.mxu0
      %v1947 = vadd.f32 %v1642, %v1946
      %v1948 = vpop.f32.mrf.mxu0
      %1949 = vmatprep.mubr.bf16.mxu0 0
      %1950 = vmatmul.mubr.bf16.gmra.mxu0 %v1816
      %v1951 = vpop.f32.mrf.mxu0
      %v1952 = vadd.f32 %v1647, %v1951
      %v1953 = vpop.f32.mrf.mxu0
      %v1954 = vpop.f32.mrf.mxu0
      %v1955 = vadd.f32 %v1650, %v1954
      %v1956 = vpop.f32.mrf.mxu0
      %1957 = vmatprep.mubr.bf16.mxu0 0
      %1958 = vmatmul.mubr.bf16.gmra.mxu0 %v1817
      %v1959 = vpop.f32.mrf.mxu0
      %v1960 = vadd.f32 %v1655, %v1959
      %v1961 = vpop.f32.mrf.mxu0
      %v1962 = vpop.f32.mrf.mxu0
      %v1963 = vadd.f32 %v1658, %v1962
      %v1964 = vpop.f32.mrf.mxu0
      %1965 = vmatprep.mubr.bf16.mxu0 0
      %1966 = vmatmul.mubr.bf16.gmra.mxu0 %v1818
      %v1967 = vpop.f32.mrf.mxu0
      %v1968 = vadd.f32 %v1663, %v1967
      %v1969 = vpop.f32.mrf.mxu0
      %v1970 = vpop.f32.mrf.mxu0
      %v1971 = vadd.f32 %v1666, %v1970
      %v1972 = vpop.f32.mrf.mxu0
      %1973 = vmatprep.mubr.bf16.mxu0 0
      %1974 = vmatmul.mubr.bf16.gmra.mxu0 %v1819
      %v1975 = vpop.f32.mrf.mxu0
      %v1976 = vadd.f32 %v1671, %v1975
      %v1977 = vpop.f32.mrf.mxu0
      %v1978 = vpop.f32.mrf.mxu0
      %v1979 = vadd.f32 %v1674, %v1978
      %v1980 = vpop.f32.mrf.mxu0
      %1981 = vmatprep.mubr.bf16.mxu0 0
      %1982 = vmatmul.mubr.bf16.gmra.mxu0 %v1820
      %v1983 = vpop.f32.mrf.mxu0
      %v1984 = vadd.f32 %v1679, %v1983
      %v1985 = vpop.f32.mrf.mxu0
      %v1986 = vpop.f32.mrf.mxu0
      %v1987 = vadd.f32 %v1682, %v1986
      %v1988 = vpop.f32.mrf.mxu0
      %1989 = vmatprep.mubr.bf16.mxu0 0
      %1990 = vmatmul.mubr.bf16.gmra.mxu0 %v1821
      %v1991 = vpop.f32.mrf.mxu0
      %v1992 = vadd.f32 %v1687, %v1991
      %v1993 = vpop.f32.mrf.mxu0
      %v1994 = vpop.f32.mrf.mxu0
      %v1995 = vadd.f32 %v1690, %v1994
      %v1996 = vpop.f32.mrf.mxu0
      %1997 = vmatprep.mubr.bf16.mxu0 0
      %1998 = vmatmul.mubr.bf16.gmra.mxu0 %v1822
      %v1999 = vpop.f32.mrf.mxu0
      %v2000 = vadd.f32 %v1695, %v1999
      %v2001 = vpop.f32.mrf.mxu0
      %v2002 = vpop.f32.mrf.mxu0
      %v2003 = vadd.f32 %v1698, %v2002
      %v2004 = vpop.f32.mrf.mxu0
      %2005 = vmatprep.mubr.bf16.mxu0 0
      %2006 = vmatmul.mubr.bf16.gmra.mxu0 %v1823
      %v2007 = vpop.f32.mrf.mxu0
      %v2008 = vadd.f32 %v1703, %v2007
      %v2009 = vpop.f32.mrf.mxu0
      %v2010 = vpop.f32.mrf.mxu0
      %v2011 = vadd.f32 %v1706, %v2010
      %v2012 = vpop.f32.mrf.mxu0
      %2013 = vmatprep.mubr.bf16.mxu0 0
      %2014 = vmatmul.mubr.bf16.gmra.mxu0 %v1824
      %v2015 = vpop.f32.mrf.mxu0
      %v2016 = vadd.f32 %v1711, %v2015
      %v2017 = vpop.f32.mrf.mxu0
      %v2018 = vpop.f32.mrf.mxu0
      %v2019 = vadd.f32 %v1714, %v2018
      %v2020 = vpop.f32.mrf.mxu0
      %2021 = vmatprep.mubr.bf16.mxu0 0
      %2022 = vmatmul.mubr.bf16.gmra.mxu0 %v1825
      %v2023 = vpop.f32.mrf.mxu0
      %v2024 = vadd.f32 %v1719, %v2023
      %v2025 = vpop.f32.mrf.mxu0
      %v2026 = vpop.f32.mrf.mxu0
      %v2027 = vadd.f32 %v1722, %v2026
      %v2028 = vpop.f32.mrf.mxu0
      %2029 = vmatprep.mubr.bf16.mxu0 0
      %2030 = vmatmul.mubr.bf16.gmra.mxu0 %v1826
      %v2031 = vpop.f32.mrf.mxu0
      %v2032 = vadd.f32 %v1727, %v2031
      %v2033 = vpop.f32.mrf.mxu0
      %v2034 = vpop.f32.mrf.mxu0
      %v2035 = vadd.f32 %v1730, %v2034
      %v2036 = vpop.f32.mrf.mxu0
      %2037 = vmatprep.mubr.bf16.mxu0 0
      %2038 = vmatmul.mubr.bf16.gmra.mxu0 %v1827
      %v2039 = vpop.f32.mrf.mxu0
      %v2040 = vadd.f32 %v1735, %v2039
      %v2041 = vpop.f32.mrf.mxu0
      %v2042 = vpop.f32.mrf.mxu0
      %v2043 = vadd.f32 %v1738, %v2042
      %v2044 = vpop.f32.mrf.mxu0
      %2045 = vmatprep.mubr.bf16.mxu0 0
      %2046 = vmatmul.mubr.bf16.gmra.mxu0 %v1828
      %v2047 = vpop.f32.mrf.mxu0
      %v2048 = vadd.f32 %v1743, %v2047
      %v2049 = vpop.f32.mrf.mxu0
      %v2050 = vpop.f32.mrf.mxu0
      %v2051 = vadd.f32 %v1746, %v2050
      %v2052 = vpop.f32.mrf.mxu0
      %2053 = vdwg.mxu0
      %vm2070 = vcmask 1042432
      %vm2071 = vcmask 1046532
      %vm2072 = vmor %vm2070, %vm2071
      %v2073 = vrot.slane %v1002, 5
      %v2074 = vrot.slane %v2073, 4
      %v2075 = vrot.slane %v1003, 5
      %v2076 = vsel %vm2072, %v2074, %v2075
      %v2077 = vrot.slane %v2075, 4
      %v2078 = vrot.slane %v1004, 5
      %v2079 = vsel %vm2072, %v2077, %v2078
      %v2080 = vrot.slane %v1005, 5
      %v2081 = vrot.slane %v2080, 4
      %v2082 = vrot.slane %v1006, 5
      %v2083 = vsel %vm2072, %v2081, %v2082
      %v2084 = vrot.slane %v2082, 4
      %v2085 = vrot.slane %v1007, 5
      %v2086 = vsel %vm2072, %v2084, %v2085
      %v2087 = vrot.slane %v1008, 5
      %v2088 = vrot.slane %v2087, 4
      %v2089 = vrot.slane %v1009, 5
      %v2090 = vsel %vm2072, %v2088, %v2089
      %v2091 = vrot.slane %v2089, 4
      %v2092 = vrot.slane %v1010, 5
      %v2093 = vsel %vm2072, %v2091, %v2092
      %v2094 = vrot.slane %v1011, 5
      %v2095 = vrot.slane %v2094, 4
      %v2096 = vrot.slane %v1012, 5
      %v2097 = vsel %vm2072, %v2095, %v2096
      %v2098 = vrot.slane %v2096, 4
      %v2099 = vrot.slane %v1013, 5
      %v2100 = vsel %vm2072, %v2098, %v2099
      %v2101 = vrot.slane %v1014, 5
      %v2102 = vrot.slane %v2101, 4
      %v2103 = vrot.slane %v1015, 5
      %v2104 = vsel %vm2072, %v2102, %v2103
      %v2105 = vrot.slane %v2103, 4
      %v2106 = vrot.slane %v1016, 5
      %v2107 = vsel %vm2072, %v2105, %v2106
      %v2108 = vrot.slane %v1017, 5
      %v2109 = vrot.slane %v2108, 4
      %v2110 = vrot.slane %v1018, 5
      %v2111 = vsel %vm2072, %v2109, %v2110
      %v2112 = vrot.slane %v2110, 4
      %v2113 = vrot.slane %v1019, 5
      %v2114 = vsel %vm2072, %v2112, %v2113
      %v2115 = vrot.slane %v1020, 5
      %v2116 = vrot.slane %v2115, 4
      %v2117 = vrot.slane %v1021, 5
      %v2118 = vsel %vm2072, %v2116, %v2117
      %v2119 = vrot.slane %v2117, 4
      %v2120 = vrot.slane %v1022, 5
      %v2121 = vsel %vm2072, %v2119, %v2120
      %v2122 = vrot.slane %v1023, 5
      %v2123 = vrot.slane %v2122, 4
      %v2124 = vrot.slane %v1024, 5
      %v2125 = vsel %vm2072, %v2123, %v2124
      %v2126 = vrot.slane %v2124, 4
      %v2127 = vrot.slane %v1025, 5
      %v2128 = vsel %vm2072, %v2126, %v2127
      %v2129 = vrot.slane %v1026, 5
      %v2130 = vrot.slane %v2129, 4
      %v2131 = vrot.slane %v1027, 5
      %v2132 = vsel %vm2072, %v2130, %v2131
      %v2133 = vrot.slane %v2131, 4
      %v2134 = vrot.slane %v1028, 5
      %v2135 = vsel %vm2072, %v2133, %v2134
      %v2136 = vrot.slane %v1029, 5
      %v2137 = vrot.slane %v2136, 4
      %v2138 = vrot.slane %v1030, 5
      %v2139 = vsel %vm2072, %v2137, %v2138
      %v2140 = vrot.slane %v2138, 4
      %v2141 = vrot.slane %v1031, 5
      %v2142 = vsel %vm2072, %v2140, %v2141
      %v2143 = vrot.slane %v1032, 5
      %v2144 = vrot.slane %v2143, 4
      %v2145 = vrot.slane %v1033, 5
      %v2146 = vsel %vm2072, %v2144, %v2145
      %v2147 = vrot.slane %v2145, 4
      %v2148 = vrot.slane %v1034, 5
      %v2149 = vsel %vm2072, %v2147, %v2148
      %v2150 = vrot.slane %v1035, 5
      %v2151 = vrot.slane %v2150, 4
      %v2152 = vrot.slane %v1036, 5
      %v2153 = vsel %vm2072, %v2151, %v2152
      %v2154 = vrot.slane %v2152, 4
      %v2155 = vrot.slane %v1037, 5
      %v2156 = vsel %vm2072, %v2154, %v2155
      %v2157 = vrot.slane %v1038, 5
      %v2158 = vrot.slane %v2157, 4
      %v2159 = vrot.slane %v1039, 5
      %v2160 = vsel %vm2072, %v2158, %v2159
      %v2161 = vrot.slane %v2159, 4
      %v2162 = vrot.slane %v1040, 5
      %v2163 = vsel %vm2072, %v2161, %v2162
      %v2164 = vrot.slane %v1041, 5
      %v2165 = vrot.slane %v2164, 4
      %v2166 = vrot.slane %v1042, 5
      %v2167 = vsel %vm2072, %v2165, %v2166
      %v2168 = vrot.slane %v2166, 4
      %v2169 = vrot.slane %v1043, 5
      %v2170 = vsel %vm2072, %v2168, %v2169
      %v2171 = vrot.slane %v1044, 5
      %v2172 = vrot.slane %v2171, 4
      %v2173 = vrot.slane %v1045, 5
      %v2174 = vsel %vm2072, %v2172, %v2173
      %v2175 = vrot.slane %v2173, 4
      %v2176 = vrot.slane %v1046, 5
      %v2177 = vsel %vm2072, %v2175, %v2176
      %v2178 = vrot.slane %v1047, 5
      %v2179 = vrot.slane %v2178, 4
      %v2180 = vrot.slane %v1048, 5
      %v2181 = vsel %vm2072, %v2179, %v2180
      %v2182 = vrot.slane %v2180, 4
      %v2183 = vrot.slane %v1049, 5
      %v2184 = vsel %vm2072, %v2182, %v2183
      %s2185 = scalar_lea.vmem %s3, 128
      %v2186 = vld [vmem:[%s2185] sm:$0xf]
      %v2187 = vld [vmem:[%s2185 + $0x4] sm:$0xf]
      %v2188 = vld [vmem:[%s2185 + $0x8] sm:$0xf]
      %v2189 = vld [vmem:[%s2185 + $0xc] sm:$0xf]
      %v2190 = vld [vmem:[%s2185 + $0x10] sm:$0xf]
      %v2191 = vld [vmem:[%s2185 + $0x14] sm:$0xf]
      %v2192 = vld [vmem:[%s2185 + $0x18] sm:$0xf]
      %v2193 = vld [vmem:[%s2185 + $0x1c] sm:$0xf]
      %v2194 = vld [vmem:[%s2185 + $0x20] sm:$0xf]
      %v2195 = vld [vmem:[%s2185 + $0x24] sm:$0xf]
      %v2196 = vld [vmem:[%s2185 + $0x28] sm:$0xf]
      %v2197 = vld [vmem:[%s2185 + $0x2c] sm:$0xf]
      %v2198 = vld [vmem:[%s2185 + $0x30] sm:$0xf]
      %v2199 = vld [vmem:[%s2185 + $0x34] sm:$0xf]
      %v2200 = vld [vmem:[%s2185 + $0x38] sm:$0xf]
      %v2201 = vld [vmem:[%s2185 + $0x3c] sm:$0xf]
      %v2202 = vunpack.c.l.b16 %v2076
      %v2203 = vunpack.c.l.b16 %v2079
      %v2204 = vunpack.c.l.b16 %v2083
      %v2205 = vunpack.c.l.b16 %v2086
      %v2206 = vunpack.c.l.b16 %v2090
      %v2207 = vunpack.c.l.b16 %v2093
      %v2208 = vunpack.c.l.b16 %v2097
      %v2209 = vunpack.c.l.b16 %v2100
      %v2210 = vunpack.c.l.b16 %v2104
      %v2211 = vunpack.c.l.b16 %v2107
      %v2212 = vunpack.c.l.b16 %v2111
      %v2213 = vunpack.c.l.b16 %v2114
      %v2214 = vunpack.c.l.b16 %v2118
      %v2215 = vunpack.c.l.b16 %v2121
      %v2216 = vunpack.c.l.b16 %v2125
      %v2217 = vunpack.c.l.b16 %v2128
      %v2218 = vunpack.c.l.b16 %v2132
      %v2219 = vunpack.c.l.b16 %v2135
      %v2220 = vunpack.c.l.b16 %v2139
      %v2221 = vunpack.c.l.b16 %v2142
      %v2222 = vunpack.c.l.b16 %v2146
      %v2223 = vunpack.c.l.b16 %v2149
      %v2224 = vunpack.c.l.b16 %v2153
      %v2225 = vunpack.c.l.b16 %v2156
      %v2226 = vunpack.c.l.b16 %v2160
      %v2227 = vunpack.c.l.b16 %v2163
      %v2228 = vunpack.c.l.b16 %v2167
      %v2229 = vunpack.c.l.b16 %v2170
      %v2230 = vunpack.c.l.b16 %v2174
      %v2231 = vunpack.c.l.b16 %v2177
      %v2232 = vunpack.c.l.b16 %v2181
      %v2233 = vunpack.c.l.b16 %v2184
      %v2234 = vpack.c.b16 %v2203, %v2202
      %v2235 = vpack.c.b16 %v2205, %v2204
      %v2236 = vpack.c.b16 %v2207, %v2206
      %v2237 = vpack.c.b16 %v2209, %v2208
      %v2238 = vpack.c.b16 %v2211, %v2210
      %v2239 = vpack.c.b16 %v2213, %v2212
      %v2240 = vpack.c.b16 %v2215, %v2214
      %v2241 = vpack.c.b16 %v2217, %v2216
      %v2242 = vpack.c.b16 %v2219, %v2218
      %v2243 = vpack.c.b16 %v2221, %v2220
      %v2244 = vpack.c.b16 %v2223, %v2222
      %v2245 = vpack.c.b16 %v2225, %v2224
      %v2246 = vpack.c.b16 %v2227, %v2226
      %v2247 = vpack.c.b16 %v2229, %v2228
      %v2248 = vpack.c.b16 %v2231, %v2230
      %v2249 = vpack.c.b16 %v2233, %v2232
      %v2282 = vunpack.c.l.b16 %v2186
      %v2283 = vunpack.c.l.b16 %v2187
      %v2284 = vunpack.c.l.b16 %v2188
      %v2285 = vunpack.c.l.b16 %v2189
      %v2286 = vunpack.c.l.b16 %v2190
      %v2287 = vunpack.c.l.b16 %v2191
      %v2288 = vunpack.c.l.b16 %v2192
      %v2289 = vunpack.c.l.b16 %v2193
      %v2290 = vunpack.c.l.b16 %v2194
      %v2291 = vunpack.c.l.b16 %v2195
      %v2292 = vunpack.c.l.b16 %v2196
      %v2293 = vunpack.c.l.b16 %v2197
      %v2294 = vunpack.c.l.b16 %v2198
      %v2295 = vunpack.c.l.b16 %v2199
      %v2296 = vunpack.c.l.b16 %v2200
      %v2297 = vunpack.c.l.b16 %v2201
      %v2298 = vpack.c.b16 %v2283, %v2282
      %v2299 = vpack.c.b16 %v2285, %v2284
      %v2300 = vpack.c.b16 %v2287, %v2286
      %v2301 = vpack.c.b16 %v2289, %v2288
      %v2302 = vpack.c.b16 %v2291, %v2290
      %v2303 = vpack.c.b16 %v2293, %v2292
      %v2304 = vpack.c.b16 %v2295, %v2294
      %v2305 = vpack.c.b16 %v2297, %v2296
      %2314 = vmatprep.subr.bf16.mxu0 0
      %2315 = vmatpush1.bf16.msra.mxu0 %v2305
      %2316 = vmatprep.subr.bf16.mxu0 0
      %2317 = vmatpush1.bf16.msra.mxu0 %v2304
      %2318 = vmatprep.subr.bf16.mxu0 0
      %2319 = vmatpush1.bf16.msra.mxu0 %v2303
      %2320 = vmatprep.subr.bf16.mxu0 0
      %2321 = vmatpush1.bf16.msra.mxu0 %v2302
      %2322 = vmatprep.subr.bf16.mxu0 0
      %2323 = vmatpush1.bf16.msra.mxu0 %v2301
      %2324 = vmatprep.subr.bf16.mxu0 0
      %2325 = vmatpush1.bf16.msra.mxu0 %v2300
      %2326 = vmatprep.subr.bf16.mxu0 0
      %2327 = vmatpush1.bf16.msra.mxu0 %v2299
      %2328 = vmatprep.subr.bf16.mxu0 0
      %2329 = vmatpush1.bf16.msra.mxu0 %v2298
      %2330 = vmatprep.subr.bf16.mxu0 0
      %2331 = vmatpush2.bf16.msra.mxu0 0
      %2332 = vmatprep.subr.bf16.mxu0 0
      %2333 = vmatpush2.bf16.msra.mxu0 0
      %2334 = vmatprep.subr.bf16.mxu0 0
      %2335 = vmatpush2.bf16.msra.mxu0 0
      %2336 = vmatprep.subr.bf16.mxu0 0
      %2337 = vmatpush2.bf16.msra.mxu0 0
      %2338 = vmatprep.subr.bf16.mxu0 0
      %2339 = vmatpush2.bf16.msra.mxu0 0
      %2340 = vmatprep.subr.bf16.mxu0 0
      %2341 = vmatpush2.bf16.msra.mxu0 0
      %2342 = vmatprep.subr.bf16.mxu0 0
      %2343 = vmatpush2.bf16.msra.mxu0 0
      %2344 = vmatprep.subr.bf16.mxu0 0
      %2345 = vmatpush2.bf16.msra.mxu0 0
      %2346 = vmatprep.mubr.bf16.mxu0 0
      %2347 = vmatmul.mubr.bf16.gmra.mxu0 %v2234
      %v2348 = vpop.f32.mrf.mxu0
      %v2349 = vadd.f32 0.0, %v2348
      %v2350 = vpop.f32.mrf.mxu0
      %v2351 = vpop.f32.mrf.mxu0
      %v2352 = vadd.f32 0.0, %v2351
      %v2353 = vpop.f32.mrf.mxu0
      %2354 = vmatprep.mubr.bf16.mxu0 0
      %2355 = vmatmul.mubr.bf16.gmra.mxu0 %v2235
      %v2356 = vpop.f32.mrf.mxu0
      %v2357 = vadd.f32 0.0, %v2356
      %v2358 = vpop.f32.mrf.mxu0
      %v2359 = vpop.f32.mrf.mxu0
      %v2360 = vadd.f32 0.0, %v2359
      %v2361 = vpop.f32.mrf.mxu0
      %2362 = vmatprep.mubr.bf16.mxu0 0
      %2363 = vmatmul.mubr.bf16.gmra.mxu0 %v2236
      %v2364 = vpop.f32.mrf.mxu0
      %v2365 = vadd.f32 0.0, %v2364
      %v2366 = vpop.f32.mrf.mxu0
      %v2367 = vpop.f32.mrf.mxu0
      %v2368 = vadd.f32 0.0, %v2367
      %v2369 = vpop.f32.mrf.mxu0
      %2370 = vmatprep.mubr.bf16.mxu0 0
      %2371 = vmatmul.mubr.bf16.gmra.mxu0 %v2237
      %v2372 = vpop.f32.mrf.mxu0
      %v2373 = vadd.f32 0.0, %v2372
      %v2374 = vpop.f32.mrf.mxu0
      %v2375 = vpop.f32.mrf.mxu0
      %v2376 = vadd.f32 0.0, %v2375
      %v2377 = vpop.f32.mrf.mxu0
      %2378 = vmatprep.mubr.bf16.mxu0 0
      %2379 = vmatmul.mubr.bf16.gmra.mxu0 %v2238
      %v2380 = vpop.f32.mrf.mxu0
      %v2381 = vadd.f32 0.0, %v2380
      %v2382 = vpop.f32.mrf.mxu0
      %v2383 = vpop.f32.mrf.mxu0
      %v2384 = vadd.f32 0.0, %v2383
      %v2385 = vpop.f32.mrf.mxu0
      %2386 = vmatprep.mubr.bf16.mxu0 0
      %2387 = vmatmul.mubr.bf16.gmra.mxu0 %v2239
      %v2388 = vpop.f32.mrf.mxu0
      %v2389 = vadd.f32 0.0, %v2388
      %v2390 = vpop.f32.mrf.mxu0
      %v2391 = vpop.f32.mrf.mxu0
      %v2392 = vadd.f32 0.0, %v2391
      %v2393 = vpop.f32.mrf.mxu0
      %2394 = vmatprep.mubr.bf16.mxu0 0
      %2395 = vmatmul.mubr.bf16.gmra.mxu0 %v2240
      %v2396 = vpop.f32.mrf.mxu0
      %v2397 = vadd.f32 0.0, %v2396
      %v2398 = vpop.f32.mrf.mxu0
      %v2399 = vpop.f32.mrf.mxu0
      %v2400 = vadd.f32 0.0, %v2399
      %v2401 = vpop.f32.mrf.mxu0
      %2402 = vmatprep.mubr.bf16.mxu0 0
      %2403 = vmatmul.mubr.bf16.gmra.mxu0 %v2241
      %v2404 = vpop.f32.mrf.mxu0
      %v2405 = vadd.f32 0.0, %v2404
      %v2406 = vpop.f32.mrf.mxu0
      %v2407 = vpop.f32.mrf.mxu0
      %v2408 = vadd.f32 0.0, %v2407
      %v2409 = vpop.f32.mrf.mxu0
      %2410 = vmatprep.mubr.bf16.mxu0 0
      %2411 = vmatmul.mubr.bf16.gmra.mxu0 %v2242
      %v2412 = vpop.f32.mrf.mxu0
      %v2413 = vadd.f32 0.0, %v2412
      %v2414 = vpop.f32.mrf.mxu0
      %v2415 = vpop.f32.mrf.mxu0
      %v2416 = vadd.f32 0.0, %v2415
      %v2417 = vpop.f32.mrf.mxu0
      %2418 = vmatprep.mubr.bf16.mxu0 0
      %2419 = vmatmul.mubr.bf16.gmra.mxu0 %v2243
      %v2420 = vpop.f32.mrf.mxu0
      %v2421 = vadd.f32 0.0, %v2420
      %v2422 = vpop.f32.mrf.mxu0
      %v2423 = vpop.f32.mrf.mxu0
      %v2424 = vadd.f32 0.0, %v2423
      %v2425 = vpop.f32.mrf.mxu0
      %2426 = vmatprep.mubr.bf16.mxu0 0
      %2427 = vmatmul.mubr.bf16.gmra.mxu0 %v2244
      %v2428 = vpop.f32.mrf.mxu0
      %v2429 = vadd.f32 0.0, %v2428
      %v2430 = vpop.f32.mrf.mxu0
      %v2431 = vpop.f32.mrf.mxu0
      %v2432 = vadd.f32 0.0, %v2431
      %v2433 = vpop.f32.mrf.mxu0
      %2434 = vmatprep.mubr.bf16.mxu0 0
      %2435 = vmatmul.mubr.bf16.gmra.mxu0 %v2245
      %v2436 = vpop.f32.mrf.mxu0
      %v2437 = vadd.f32 0.0, %v2436
      %v2438 = vpop.f32.mrf.mxu0
      %v2439 = vpop.f32.mrf.mxu0
      %v2440 = vadd.f32 0.0, %v2439
      %v2441 = vpop.f32.mrf.mxu0
      %2442 = vmatprep.mubr.bf16.mxu0 0
      %2443 = vmatmul.mubr.bf16.gmra.mxu0 %v2246
      %v2444 = vpop.f32.mrf.mxu0
      %v2445 = vadd.f32 0.0, %v2444
      %v2446 = vpop.f32.mrf.mxu0
      %v2447 = vpop.f32.mrf.mxu0
      %v2448 = vadd.f32 0.0, %v2447
      %v2449 = vpop.f32.mrf.mxu0
      %2450 = vmatprep.mubr.bf16.mxu0 0
      %2451 = vmatmul.mubr.bf16.gmra.mxu0 %v2247
      %v2452 = vpop.f32.mrf.mxu0
      %v2453 = vadd.f32 0.0, %v2452
      %v2454 = vpop.f32.mrf.mxu0
      %v2455 = vpop.f32.mrf.mxu0
      %v2456 = vadd.f32 0.0, %v2455
      %v2457 = vpop.f32.mrf.mxu0
      %2458 = vmatprep.mubr.bf16.mxu0 0
      %2459 = vmatmul.mubr.bf16.gmra.mxu0 %v2248
      %v2460 = vpop.f32.mrf.mxu0
      %v2461 = vadd.f32 0.0, %v2460
      %v2462 = vpop.f32.mrf.mxu0
      %v2463 = vpop.f32.mrf.mxu0
      %v2464 = vadd.f32 0.0, %v2463
      %v2465 = vpop.f32.mrf.mxu0
      %2466 = vmatprep.mubr.bf16.mxu0 0
      %2467 = vmatmul.mubr.bf16.gmra.mxu0 %v2249
      %v2468 = vpop.f32.mrf.mxu0
      %v2469 = vadd.f32 0.0, %v2468
      %v2470 = vpop.f32.mrf.mxu0
      %v2471 = vpop.f32.mrf.mxu0
      %v2472 = vadd.f32 0.0, %v2471
      %v2473 = vpop.f32.mrf.mxu0
      %2474 = vdwg.mxu0
      %v2475 = vadd.f32 %v1928, %v2349
      %v2476 = vadd.f32 %v1931, %v2352
      %v2477 = vadd.f32 %v1936, %v2357
      %v2478 = vadd.f32 %v1939, %v2360
      %v2479 = vadd.f32 %v1944, %v2365
      %v2480 = vadd.f32 %v1947, %v2368
      %v2481 = vadd.f32 %v1952, %v2373
      %v2482 = vadd.f32 %v1955, %v2376
      %v2483 = vadd.f32 %v1960, %v2381
      %v2484 = vadd.f32 %v1963, %v2384
      %v2485 = vadd.f32 %v1968, %v2389
      %v2486 = vadd.f32 %v1971, %v2392
      %v2487 = vadd.f32 %v1976, %v2397
      %v2488 = vadd.f32 %v1979, %v2400
      %v2489 = vadd.f32 %v1984, %v2405
      %v2490 = vadd.f32 %v1987, %v2408
      %v2491 = vadd.f32 %v1992, %v2413
      %v2492 = vadd.f32 %v1995, %v2416
      %v2493 = vadd.f32 %v2000, %v2421
      %v2494 = vadd.f32 %v2003, %v2424
      %v2495 = vadd.f32 %v2008, %v2429
      %v2496 = vadd.f32 %v2011, %v2432
      %v2497 = vadd.f32 %v2016, %v2437
      %v2498 = vadd.f32 %v2019, %v2440
      %v2499 = vadd.f32 %v2024, %v2445
      %v2500 = vadd.f32 %v2027, %v2448
      %v2501 = vadd.f32 %v2032, %v2453
      %v2502 = vadd.f32 %v2035, %v2456
      %v2503 = vadd.f32 %v2040, %v2461
      %v2504 = vadd.f32 %v2043, %v2464
      %v2505 = vadd.f32 %v2048, %v2469
      %v2506 = vadd.f32 %v2051, %v2472
      %s2507 = scalar_lea.vmem %s3, 192
      %v2508 = vld [vmem:[%s2507] sm:$0xf]
      %v2509 = vld [vmem:[%s2507 + $0x4] sm:$0xf]
      %v2510 = vld [vmem:[%s2507 + $0x8] sm:$0xf]
      %v2511 = vld [vmem:[%s2507 + $0xc] sm:$0xf]
      %v2512 = vld [vmem:[%s2507 + $0x10] sm:$0xf]
      %v2513 = vld [vmem:[%s2507 + $0x14] sm:$0xf]
      %v2514 = vld [vmem:[%s2507 + $0x18] sm:$0xf]
      %v2515 = vld [vmem:[%s2507 + $0x1c] sm:$0xf]
      %v2516 = vld [vmem:[%s2507 + $0x20] sm:$0xf]
      %v2517 = vld [vmem:[%s2507 + $0x24] sm:$0xf]
      %v2518 = vld [vmem:[%s2507 + $0x28] sm:$0xf]
      %v2519 = vld [vmem:[%s2507 + $0x2c] sm:$0xf]
      %v2520 = vld [vmem:[%s2507 + $0x30] sm:$0xf]
      %v2521 = vld [vmem:[%s2507 + $0x34] sm:$0xf]
      %v2522 = vld [vmem:[%s2507 + $0x38] sm:$0xf]
      %v2523 = vld [vmem:[%s2507 + $0x3c] sm:$0xf]
      %v2526 = vunpack.c.l.b16 %v1050
      %v2527 = vunpack.c.l.b16 %v1051
      %v2528 = vpack.c.b16 %v2527, %v2526
      %v2546 = vunpack.c.l.b16 %v2508
      %v2547 = vunpack.c.l.b16 %v2509
      %v2548 = vunpack.c.l.b16 %v2510
      %v2549 = vunpack.c.l.b16 %v2511
      %v2550 = vunpack.c.l.b16 %v2512
      %v2551 = vunpack.c.l.b16 %v2513
      %v2552 = vunpack.c.l.b16 %v2514
      %v2553 = vunpack.c.l.b16 %v2515
      %v2554 = vunpack.c.l.b16 %v2516
      %v2555 = vunpack.c.l.b16 %v2517
      %v2556 = vunpack.c.l.b16 %v2518
      %v2557 = vunpack.c.l.b16 %v2519
      %v2558 = vunpack.c.l.b16 %v2520
      %v2559 = vunpack.c.l.b16 %v2521
      %v2560 = vunpack.c.l.b16 %v2522
      %v2561 = vunpack.c.l.b16 %v2523
      %v2562 = vpack.c.b16 %v2547, %v2546
      %v2563 = vpack.c.b16 %v2549, %v2548
      %v2564 = vpack.c.b16 %v2551, %v2550
      %v2565 = vpack.c.b16 %v2553, %v2552
      %v2566 = vpack.c.b16 %v2555, %v2554
      %v2567 = vpack.c.b16 %v2557, %v2556
      %v2568 = vpack.c.b16 %v2559, %v2558
      %v2569 = vpack.c.b16 %v2561, %v2560
      %2578 = vmatprep.subr.bf16.mxu0 0
      %2579 = vmatpush1.bf16.msra.mxu0 %v2569
      %2580 = vmatprep.subr.bf16.mxu0 0
      %2581 = vmatpush1.bf16.msra.mxu0 %v2568
      %2582 = vmatprep.subr.bf16.mxu0 0
      %2583 = vmatpush1.bf16.msra.mxu0 %v2567
      %2584 = vmatprep.subr.bf16.mxu0 0
      %2585 = vmatpush1.bf16.msra.mxu0 %v2566
      %2586 = vmatprep.subr.bf16.mxu0 0
      %2587 = vmatpush1.bf16.msra.mxu0 %v2565
      %2588 = vmatprep.subr.bf16.mxu0 0
      %2589 = vmatpush1.bf16.msra.mxu0 %v2564
      %2590 = vmatprep.subr.bf16.mxu0 0
      %2591 = vmatpush1.bf16.msra.mxu0 %v2563
      %2592 = vmatprep.subr.bf16.mxu0 0
      %2593 = vmatpush1.bf16.msra.mxu0 %v2562
      %2594 = vmatprep.subr.bf16.mxu0 0
      %2595 = vmatpush2.bf16.msra.mxu0 0
      %2596 = vmatprep.subr.bf16.mxu0 0
      %2597 = vmatpush2.bf16.msra.mxu0 0
      %2598 = vmatprep.subr.bf16.mxu0 0
      %2599 = vmatpush2.bf16.msra.mxu0 0
      %2600 = vmatprep.subr.bf16.mxu0 0
      %2601 = vmatpush2.bf16.msra.mxu0 0
      %2602 = vmatprep.subr.bf16.mxu0 0
      %2603 = vmatpush2.bf16.msra.mxu0 0
      %2604 = vmatprep.subr.bf16.mxu0 0
      %2605 = vmatpush2.bf16.msra.mxu0 0
      %2606 = vmatprep.subr.bf16.mxu0 0
      %2607 = vmatpush2.bf16.msra.mxu0 0
      %2608 = vmatprep.subr.bf16.mxu0 0
      %2609 = vmatpush2.bf16.msra.mxu0 0
      %2610 = vmatprep.mubr.bf16.mxu0 0
      %2611 = vmatmul.mubr.bf16.gmra.mxu0 %v1814
      %v2612 = vpop.f32.mrf.mxu0
      %v2613 = vadd.f32 0.0, %v2612
      %v2614 = vpop.f32.mrf.mxu0
      %v2615 = vpop.f32.mrf.mxu0
      %v2616 = vadd.f32 0.0, %v2615
      %v2617 = vpop.f32.mrf.mxu0
      %2618 = vmatprep.mubr.bf16.mxu0 0
      %2619 = vmatmul.mubr.bf16.gmra.mxu0 %v1815
      %v2620 = vpop.f32.mrf.mxu0
      %v2621 = vadd.f32 0.0, %v2620
      %v2622 = vpop.f32.mrf.mxu0
      %v2623 = vpop.f32.mrf.mxu0
      %v2624 = vadd.f32 0.0, %v2623
      %v2625 = vpop.f32.mrf.mxu0
      %2626 = vmatprep.mubr.bf16.mxu0 0
      %2627 = vmatmul.mubr.bf16.gmra.mxu0 %v1816
      %v2628 = vpop.f32.mrf.mxu0
      %v2629 = vadd.f32 0.0, %v2628
      %v2630 = vpop.f32.mrf.mxu0
      %v2631 = vpop.f32.mrf.mxu0
      %v2632 = vadd.f32 0.0, %v2631
      %v2633 = vpop.f32.mrf.mxu0
      %2634 = vmatprep.mubr.bf16.mxu0 0
      %2635 = vmatmul.mubr.bf16.gmra.mxu0 %v1817
      %v2636 = vpop.f32.mrf.mxu0
      %v2637 = vadd.f32 0.0, %v2636
      %v2638 = vpop.f32.mrf.mxu0
      %v2639 = vpop.f32.mrf.mxu0
      %v2640 = vadd.f32 0.0, %v2639
      %v2641 = vpop.f32.mrf.mxu0
      %2642 = vmatprep.mubr.bf16.mxu0 0
      %2643 = vmatmul.mubr.bf16.gmra.mxu0 %v1818
      %v2644 = vpop.f32.mrf.mxu0
      %v2645 = vadd.f32 0.0, %v2644
      %v2646 = vpop.f32.mrf.mxu0
      %v2647 = vpop.f32.mrf.mxu0
      %v2648 = vadd.f32 0.0, %v2647
      %v2649 = vpop.f32.mrf.mxu0
      %2650 = vmatprep.mubr.bf16.mxu0 0
      %2651 = vmatmul.mubr.bf16.gmra.mxu0 %v1819
      %v2652 = vpop.f32.mrf.mxu0
      %v2653 = vadd.f32 0.0, %v2652
      %v2654 = vpop.f32.mrf.mxu0
      %v2655 = vpop.f32.mrf.mxu0
      %v2656 = vadd.f32 0.0, %v2655
      %v2657 = vpop.f32.mrf.mxu0
      %2658 = vmatprep.mubr.bf16.mxu0 0
      %2659 = vmatmul.mubr.bf16.gmra.mxu0 %v1820
      %v2660 = vpop.f32.mrf.mxu0
      %v2661 = vadd.f32 0.0, %v2660
      %v2662 = vpop.f32.mrf.mxu0
      %v2663 = vpop.f32.mrf.mxu0
      %v2664 = vadd.f32 0.0, %v2663
      %v2665 = vpop.f32.mrf.mxu0
      %2666 = vmatprep.mubr.bf16.mxu0 0
      %2667 = vmatmul.mubr.bf16.gmra.mxu0 %v1821
      %v2668 = vpop.f32.mrf.mxu0
      %v2669 = vadd.f32 0.0, %v2668
      %v2670 = vpop.f32.mrf.mxu0
      %v2671 = vpop.f32.mrf.mxu0
      %v2672 = vadd.f32 0.0, %v2671
      %v2673 = vpop.f32.mrf.mxu0
      %2674 = vmatprep.mubr.bf16.mxu0 0
      %2675 = vmatmul.mubr.bf16.gmra.mxu0 %v1822
      %v2676 = vpop.f32.mrf.mxu0
      %v2677 = vadd.f32 0.0, %v2676
      %v2678 = vpop.f32.mrf.mxu0
      %v2679 = vpop.f32.mrf.mxu0
      %v2680 = vadd.f32 0.0, %v2679
      %v2681 = vpop.f32.mrf.mxu0
      %2682 = vmatprep.mubr.bf16.mxu0 0
      %2683 = vmatmul.mubr.bf16.gmra.mxu0 %v1823
      %v2684 = vpop.f32.mrf.mxu0
      %v2685 = vadd.f32 0.0, %v2684
      %v2686 = vpop.f32.mrf.mxu0
      %v2687 = vpop.f32.mrf.mxu0
      %v2688 = vadd.f32 0.0, %v2687
      %v2689 = vpop.f32.mrf.mxu0
      %2690 = vmatprep.mubr.bf16.mxu0 0
      %2691 = vmatmul.mubr.bf16.gmra.mxu0 %v1824
      %v2692 = vpop.f32.mrf.mxu0
      %v2693 = vadd.f32 0.0, %v2692
      %v2694 = vpop.f32.mrf.mxu0
      %v2695 = vpop.f32.mrf.mxu0
      %v2696 = vadd.f32 0.0, %v2695
      %v2697 = vpop.f32.mrf.mxu0
      %2698 = vmatprep.mubr.bf16.mxu0 0
      %2699 = vmatmul.mubr.bf16.gmra.mxu0 %v1825
      %v2700 = vpop.f32.mrf.mxu0
      %v2701 = vadd.f32 0.0, %v2700
      %v2702 = vpop.f32.mrf.mxu0
      %v2703 = vpop.f32.mrf.mxu0
      %v2704 = vadd.f32 0.0, %v2703
      %v2705 = vpop.f32.mrf.mxu0
      %2706 = vmatprep.mubr.bf16.mxu0 0
      %2707 = vmatmul.mubr.bf16.gmra.mxu0 %v1826
      %v2708 = vpop.f32.mrf.mxu0
      %v2709 = vadd.f32 0.0, %v2708
      %v2710 = vpop.f32.mrf.mxu0
      %v2711 = vpop.f32.mrf.mxu0
      %v2712 = vadd.f32 0.0, %v2711
      %v2713 = vpop.f32.mrf.mxu0
      %2714 = vmatprep.mubr.bf16.mxu0 0
      %2715 = vmatmul.mubr.bf16.gmra.mxu0 %v1827
      %v2716 = vpop.f32.mrf.mxu0
      %v2717 = vadd.f32 0.0, %v2716
      %v2718 = vpop.f32.mrf.mxu0
      %v2719 = vpop.f32.mrf.mxu0
      %v2720 = vadd.f32 0.0, %v2719
      %v2721 = vpop.f32.mrf.mxu0
      %2722 = vmatprep.mubr.bf16.mxu0 0
      %2723 = vmatmul.mubr.bf16.gmra.mxu0 %v1828
      %v2724 = vpop.f32.mrf.mxu0
      %v2725 = vadd.f32 0.0, %v2724
      %v2726 = vpop.f32.mrf.mxu0
      %v2727 = vpop.f32.mrf.mxu0
      %v2728 = vadd.f32 0.0, %v2727
      %v2729 = vpop.f32.mrf.mxu0
      %2730 = vmatprep.mubr.bf16.mxu0 0
      %2731 = vmatmul.mubr.bf16.gmra.mxu0 %v2528
      %v2732 = vpop.f32.mrf.mxu0
      %v2733 = vadd.f32 0.0, %v2732
      %v2734 = vpop.f32.mrf.mxu0
      %v2735 = vpop.f32.mrf.mxu0
      %v2736 = vadd.f32 0.0, %v2735
      %v2737 = vpop.f32.mrf.mxu0
      %2738 = vdwg.mxu0
      %v2739 = vadd.f32 %v2475, %v2613
      %v2740 = vadd.f32 %v2476, %v2616
      %v2741 = vadd.f32 %v2477, %v2621
      %v2742 = vadd.f32 %v2478, %v2624
      %v2743 = vadd.f32 %v2479, %v2629
      %v2744 = vadd.f32 %v2480, %v2632
      %v2745 = vadd.f32 %v2481, %v2637
      %v2746 = vadd.f32 %v2482, %v2640
      %v2747 = vadd.f32 %v2483, %v2645
      %v2748 = vadd.f32 %v2484, %v2648
      %v2749 = vadd.f32 %v2485, %v2653
      %v2750 = vadd.f32 %v2486, %v2656
      %v2751 = vadd.f32 %v2487, %v2661
      %v2752 = vadd.f32 %v2488, %v2664
      %v2753 = vadd.f32 %v2489, %v2669
      %v2754 = vadd.f32 %v2490, %v2672
      %v2755 = vadd.f32 %v2491, %v2677
      %v2756 = vadd.f32 %v2492, %v2680
      %v2757 = vadd.f32 %v2493, %v2685
      %v2758 = vadd.f32 %v2494, %v2688
      %v2759 = vadd.f32 %v2495, %v2693
      %v2760 = vadd.f32 %v2496, %v2696
      %v2761 = vadd.f32 %v2497, %v2701
      %v2762 = vadd.f32 %v2498, %v2704
      %v2763 = vadd.f32 %v2499, %v2709
      %v2764 = vadd.f32 %v2500, %v2712
      %v2765 = vadd.f32 %v2501, %v2717
      %v2766 = vadd.f32 %v2502, %v2720
      %v2767 = vadd.f32 %v2503, %v2725
      %v2768 = vadd.f32 %v2504, %v2728
      %v2769 = vadd.f32 %v2505, %v2733
      %v2770 = vadd.f32 %v2506, %v2736
      %v2772 = vshrl.u32 %v1050, 16
      %v2774 = vrot.slane %v2772, 4
      %v2775 = vshll.u32 %v1050, 16
      %v2777 = vrot.slane %v2775, 5
      %v2778 = vor.u32 %v2774, %v2777
      %v2779 = vrot.slane %v2778, 4
      %v2781 = vshll.u32 %v1051, 16
      %v2783 = vrot.slane %v2781, 5
      %v2784 = vsel %vm1074, %v2779, %v2783
      %v2785 = vshrl.u32 %v1051, 16
      %v2787 = vrot.slane %v2785, 4
      %v2788 = vor.u32 %v2787, %v2783
      %v2789 = vrot.slane %v2788, 4
      %v2791 = vshll.u32 %v1052, 16
      %v2793 = vrot.slane %v2791, 5
      %v2794 = vsel %vm1074, %v2789, %v2793
      %s2795 = scalar_lea.vmem %s3, 256
      %v2796 = vld [vmem:[%s2795] sm:$0xf]
      %v2797 = vld [vmem:[%s2795 + $0x4] sm:$0xf]
      %v2798 = vld [vmem:[%s2795 + $0x8] sm:$0xf]
      %v2799 = vld [vmem:[%s2795 + $0xc] sm:$0xf]
      %v2800 = vld [vmem:[%s2795 + $0x10] sm:$0xf]
      %v2801 = vld [vmem:[%s2795 + $0x14] sm:$0xf]
      %v2802 = vld [vmem:[%s2795 + $0x18] sm:$0xf]
      %v2803 = vld [vmem:[%s2795 + $0x1c] sm:$0xf]
      %v2804 = vld [vmem:[%s2795 + $0x20] sm:$0xf]
      %v2805 = vld [vmem:[%s2795 + $0x24] sm:$0xf]
      %v2806 = vld [vmem:[%s2795 + $0x28] sm:$0xf]
      %v2807 = vld [vmem:[%s2795 + $0x2c] sm:$0xf]
      %v2808 = vld [vmem:[%s2795 + $0x30] sm:$0xf]
      %v2809 = vld [vmem:[%s2795 + $0x34] sm:$0xf]
      %v2810 = vld [vmem:[%s2795 + $0x38] sm:$0xf]
      %v2811 = vld [vmem:[%s2795 + $0x3c] sm:$0xf]
      %v2812 = vunpack.c.l.b16 %v2784
      %v2813 = vunpack.c.l.b16 %v2794
      %v2814 = vpack.c.b16 %v2813, %v2812
      %v2832 = vunpack.c.l.b16 %v2796
      %v2833 = vunpack.c.l.b16 %v2797
      %v2834 = vunpack.c.l.b16 %v2798
      %v2835 = vunpack.c.l.b16 %v2799
      %v2836 = vunpack.c.l.b16 %v2800
      %v2837 = vunpack.c.l.b16 %v2801
      %v2838 = vunpack.c.l.b16 %v2802
      %v2839 = vunpack.c.l.b16 %v2803
      %v2840 = vunpack.c.l.b16 %v2804
      %v2841 = vunpack.c.l.b16 %v2805
      %v2842 = vunpack.c.l.b16 %v2806
      %v2843 = vunpack.c.l.b16 %v2807
      %v2844 = vunpack.c.l.b16 %v2808
      %v2845 = vunpack.c.l.b16 %v2809
      %v2846 = vunpack.c.l.b16 %v2810
      %v2847 = vunpack.c.l.b16 %v2811
      %v2848 = vpack.c.b16 %v2833, %v2832
      %v2849 = vpack.c.b16 %v2835, %v2834
      %v2850 = vpack.c.b16 %v2837, %v2836
      %v2851 = vpack.c.b16 %v2839, %v2838
      %v2852 = vpack.c.b16 %v2841, %v2840
      %v2853 = vpack.c.b16 %v2843, %v2842
      %v2854 = vpack.c.b16 %v2845, %v2844
      %v2855 = vpack.c.b16 %v2847, %v2846
      %2864 = vmatprep.subr.bf16.mxu0 0
      %2865 = vmatpush1.bf16.msra.mxu0 %v2855
      %2866 = vmatprep.subr.bf16.mxu0 0
      %2867 = vmatpush1.bf16.msra.mxu0 %v2854
      %2868 = vmatprep.subr.bf16.mxu0 0
      %2869 = vmatpush1.bf16.msra.mxu0 %v2853
      %2870 = vmatprep.subr.bf16.mxu0 0
      %2871 = vmatpush1.bf16.msra.mxu0 %v2852
      %2872 = vmatprep.subr.bf16.mxu0 0
      %2873 = vmatpush1.bf16.msra.mxu0 %v2851
      %2874 = vmatprep.subr.bf16.mxu0 0
      %2875 = vmatpush1.bf16.msra.mxu0 %v2850
      %2876 = vmatprep.subr.bf16.mxu0 0
      %2877 = vmatpush1.bf16.msra.mxu0 %v2849
      %2878 = vmatprep.subr.bf16.mxu0 0
      %2879 = vmatpush1.bf16.msra.mxu0 %v2848
      %2880 = vmatprep.subr.bf16.mxu0 0
      %2881 = vmatpush2.bf16.msra.mxu0 0
      %2882 = vmatprep.subr.bf16.mxu0 0
      %2883 = vmatpush2.bf16.msra.mxu0 0
      %2884 = vmatprep.subr.bf16.mxu0 0
      %2885 = vmatpush2.bf16.msra.mxu0 0
      %2886 = vmatprep.subr.bf16.mxu0 0
      %2887 = vmatpush2.bf16.msra.mxu0 0
      %2888 = vmatprep.subr.bf16.mxu0 0
      %2889 = vmatpush2.bf16.msra.mxu0 0
      %2890 = vmatprep.subr.bf16.mxu0 0
      %2891 = vmatpush2.bf16.msra.mxu0 0
      %2892 = vmatprep.subr.bf16.mxu0 0
      %2893 = vmatpush2.bf16.msra.mxu0 0
      %2894 = vmatprep.subr.bf16.mxu0 0
      %2895 = vmatpush2.bf16.msra.mxu0 0
      %2896 = vmatprep.mubr.bf16.mxu0 0
      %2897 = vmatmul.mubr.bf16.gmra.mxu0 %v1509
      %v2898 = vpop.f32.mrf.mxu0
      %v2899 = vadd.f32 0.0, %v2898
      %v2900 = vpop.f32.mrf.mxu0
      %v2901 = vpop.f32.mrf.mxu0
      %v2902 = vadd.f32 0.0, %v2901
      %v2903 = vpop.f32.mrf.mxu0
      %2904 = vmatprep.mubr.bf16.mxu0 0
      %2905 = vmatmul.mubr.bf16.gmra.mxu0 %v1510
      %v2906 = vpop.f32.mrf.mxu0
      %v2907 = vadd.f32 0.0, %v2906
      %v2908 = vpop.f32.mrf.mxu0
      %v2909 = vpop.f32.mrf.mxu0
      %v2910 = vadd.f32 0.0, %v2909
      %v2911 = vpop.f32.mrf.mxu0
      %2912 = vmatprep.mubr.bf16.mxu0 0
      %2913 = vmatmul.mubr.bf16.gmra.mxu0 %v1511
      %v2914 = vpop.f32.mrf.mxu0
      %v2915 = vadd.f32 0.0, %v2914
      %v2916 = vpop.f32.mrf.mxu0
      %v2917 = vpop.f32.mrf.mxu0
      %v2918 = vadd.f32 0.0, %v2917
      %v2919 = vpop.f32.mrf.mxu0
      %2920 = vmatprep.mubr.bf16.mxu0 0
      %2921 = vmatmul.mubr.bf16.gmra.mxu0 %v1512
      %v2922 = vpop.f32.mrf.mxu0
      %v2923 = vadd.f32 0.0, %v2922
      %v2924 = vpop.f32.mrf.mxu0
      %v2925 = vpop.f32.mrf.mxu0
      %v2926 = vadd.f32 0.0, %v2925
      %v2927 = vpop.f32.mrf.mxu0
      %2928 = vmatprep.mubr.bf16.mxu0 0
      %2929 = vmatmul.mubr.bf16.gmra.mxu0 %v1513
      %v2930 = vpop.f32.mrf.mxu0
      %v2931 = vadd.f32 0.0, %v2930
      %v2932 = vpop.f32.mrf.mxu0
      %v2933 = vpop.f32.mrf.mxu0
      %v2934 = vadd.f32 0.0, %v2933
      %v2935 = vpop.f32.mrf.mxu0
      %2936 = vmatprep.mubr.bf16.mxu0 0
      %2937 = vmatmul.mubr.bf16.gmra.mxu0 %v1514
      %v2938 = vpop.f32.mrf.mxu0
      %v2939 = vadd.f32 0.0, %v2938
      %v2940 = vpop.f32.mrf.mxu0
      %v2941 = vpop.f32.mrf.mxu0
      %v2942 = vadd.f32 0.0, %v2941
      %v2943 = vpop.f32.mrf.mxu0
      %2944 = vmatprep.mubr.bf16.mxu0 0
      %2945 = vmatmul.mubr.bf16.gmra.mxu0 %v1515
      %v2946 = vpop.f32.mrf.mxu0
      %v2947 = vadd.f32 0.0, %v2946
      %v2948 = vpop.f32.mrf.mxu0
      %v2949 = vpop.f32.mrf.mxu0
      %v2950 = vadd.f32 0.0, %v2949
      %v2951 = vpop.f32.mrf.mxu0
      %2952 = vmatprep.mubr.bf16.mxu0 0
      %2953 = vmatmul.mubr.bf16.gmra.mxu0 %v1516
      %v2954 = vpop.f32.mrf.mxu0
      %v2955 = vadd.f32 0.0, %v2954
      %v2956 = vpop.f32.mrf.mxu0
      %v2957 = vpop.f32.mrf.mxu0
      %v2958 = vadd.f32 0.0, %v2957
      %v2959 = vpop.f32.mrf.mxu0
      %2960 = vmatprep.mubr.bf16.mxu0 0
      %2961 = vmatmul.mubr.bf16.gmra.mxu0 %v1517
      %v2962 = vpop.f32.mrf.mxu0
      %v2963 = vadd.f32 0.0, %v2962
      %v2964 = vpop.f32.mrf.mxu0
      %v2965 = vpop.f32.mrf.mxu0
      %v2966 = vadd.f32 0.0, %v2965
      %v2967 = vpop.f32.mrf.mxu0
      %2968 = vmatprep.mubr.bf16.mxu0 0
      %2969 = vmatmul.mubr.bf16.gmra.mxu0 %v1518
      %v2970 = vpop.f32.mrf.mxu0
      %v2971 = vadd.f32 0.0, %v2970
      %v2972 = vpop.f32.mrf.mxu0
      %v2973 = vpop.f32.mrf.mxu0
      %v2974 = vadd.f32 0.0, %v2973
      %v2975 = vpop.f32.mrf.mxu0
      %2976 = vmatprep.mubr.bf16.mxu0 0
      %2977 = vmatmul.mubr.bf16.gmra.mxu0 %v1519
      %v2978 = vpop.f32.mrf.mxu0
      %v2979 = vadd.f32 0.0, %v2978
      %v2980 = vpop.f32.mrf.mxu0
      %v2981 = vpop.f32.mrf.mxu0
      %v2982 = vadd.f32 0.0, %v2981
      %v2983 = vpop.f32.mrf.mxu0
      %2984 = vmatprep.mubr.bf16.mxu0 0
      %2985 = vmatmul.mubr.bf16.gmra.mxu0 %v1520
      %v2986 = vpop.f32.mrf.mxu0
      %v2987 = vadd.f32 0.0, %v2986
      %v2988 = vpop.f32.mrf.mxu0
      %v2989 = vpop.f32.mrf.mxu0
      %v2990 = vadd.f32 0.0, %v2989
      %v2991 = vpop.f32.mrf.mxu0
      %2992 = vmatprep.mubr.bf16.mxu0 0
      %2993 = vmatmul.mubr.bf16.gmra.mxu0 %v1521
      %v2994 = vpop.f32.mrf.mxu0
      %v2995 = vadd.f32 0.0, %v2994
      %v2996 = vpop.f32.mrf.mxu0
      %v2997 = vpop.f32.mrf.mxu0
      %v2998 = vadd.f32 0.0, %v2997
      %v2999 = vpop.f32.mrf.mxu0
      %3000 = vmatprep.mubr.bf16.mxu0 0
      %3001 = vmatmul.mubr.bf16.gmra.mxu0 %v1522
      %v3002 = vpop.f32.mrf.mxu0
      %v3003 = vadd.f32 0.0, %v3002
      %v3004 = vpop.f32.mrf.mxu0
      %v3005 = vpop.f32.mrf.mxu0
      %v3006 = vadd.f32 0.0, %v3005
      %v3007 = vpop.f32.mrf.mxu0
      %3008 = vmatprep.mubr.bf16.mxu0 0
      %3009 = vmatmul.mubr.bf16.gmra.mxu0 %v1523
      %v3010 = vpop.f32.mrf.mxu0
      %v3011 = vadd.f32 0.0, %v3010
      %v3012 = vpop.f32.mrf.mxu0
      %v3013 = vpop.f32.mrf.mxu0
      %v3014 = vadd.f32 0.0, %v3013
      %v3015 = vpop.f32.mrf.mxu0
      %3016 = vmatprep.mubr.bf16.mxu0 0
      %3017 = vmatmul.mubr.bf16.gmra.mxu0 %v2814
      %v3018 = vpop.f32.mrf.mxu0
      %v3019 = vadd.f32 0.0, %v3018
      %v3020 = vpop.f32.mrf.mxu0
      %v3021 = vpop.f32.mrf.mxu0
      %v3022 = vadd.f32 0.0, %v3021
      %v3023 = vpop.f32.mrf.mxu0
      %3024 = vdwg.mxu0
      %v3025 = vadd.f32 %v2739, %v2899
      %v3026 = vadd.f32 %v2740, %v2902
      %v3027 = vadd.f32 %v2741, %v2907
      %v3028 = vadd.f32 %v2742, %v2910
      %v3029 = vadd.f32 %v2743, %v2915
      %v3030 = vadd.f32 %v2744, %v2918
      %v3031 = vadd.f32 %v2745, %v2923
      %v3032 = vadd.f32 %v2746, %v2926
      %v3033 = vadd.f32 %v2747, %v2931
      %v3034 = vadd.f32 %v2748, %v2934
      %v3035 = vadd.f32 %v2749, %v2939
      %v3036 = vadd.f32 %v2750, %v2942
      %v3037 = vadd.f32 %v2751, %v2947
      %v3038 = vadd.f32 %v2752, %v2950
      %v3039 = vadd.f32 %v2753, %v2955
      %v3040 = vadd.f32 %v2754, %v2958
      %v3041 = vadd.f32 %v2755, %v2963
      %v3042 = vadd.f32 %v2756, %v2966
      %v3043 = vadd.f32 %v2757, %v2971
      %v3044 = vadd.f32 %v2758, %v2974
      %v3045 = vadd.f32 %v2759, %v2979
      %v3046 = vadd.f32 %v2760, %v2982
      %v3047 = vadd.f32 %v2761, %v2987
      %v3048 = vadd.f32 %v2762, %v2990
      %v3049 = vadd.f32 %v2763, %v2995
      %v3050 = vadd.f32 %v2764, %v2998
      %v3051 = vadd.f32 %v2765, %v3003
      %v3052 = vadd.f32 %v2766, %v3006
      %v3053 = vadd.f32 %v2767, %v3011
      %v3054 = vadd.f32 %v2768, %v3014
      %v3055 = vadd.f32 %v2769, %v3019
      %v3056 = vadd.f32 %v2770, %v3022
      %v3058 = vrot.slane %v1050, 5
      %v3059 = vrot.slane %v3058, 4
      %v3060 = vrot.slane %v1051, 5
      %v3061 = vsel %vm2072, %v3059, %v3060
      %v3062 = vrot.slane %v3060, 4
      %v3063 = vrot.slane %v1052, 5
      %v3064 = vsel %vm2072, %v3062, %v3063
      %s3065 = scalar_lea.vmem %s3, 320
      %v3066 = vld [vmem:[%s3065] sm:$0xf]
      %v3067 = vld [vmem:[%s3065 + $0x4] sm:$0xf]
      %v3068 = vld [vmem:[%s3065 + $0x8] sm:$0xf]
      %v3069 = vld [vmem:[%s3065 + $0xc] sm:$0xf]
      %v3070 = vld [vmem:[%s3065 + $0x10] sm:$0xf]
      %v3071 = vld [vmem:[%s3065 + $0x14] sm:$0xf]
      %v3072 = vld [vmem:[%s3065 + $0x18] sm:$0xf]
      %v3073 = vld [vmem:[%s3065 + $0x1c] sm:$0xf]
      %v3074 = vld [vmem:[%s3065 + $0x20] sm:$0xf]
      %v3075 = vld [vmem:[%s3065 + $0x24] sm:$0xf]
      %v3076 = vld [vmem:[%s3065 + $0x28] sm:$0xf]
      %v3077 = vld [vmem:[%s3065 + $0x2c] sm:$0xf]
      %v3078 = vld [vmem:[%s3065 + $0x30] sm:$0xf]
      %v3079 = vld [vmem:[%s3065 + $0x34] sm:$0xf]
      %v3080 = vld [vmem:[%s3065 + $0x38] sm:$0xf]
      %v3081 = vld [vmem:[%s3065 + $0x3c] sm:$0xf]
      %v3082 = vunpack.c.l.b16 %v3061
      %v3083 = vunpack.c.l.b16 %v3064
      %v3084 = vpack.c.b16 %v3083, %v3082
      %v3102 = vunpack.c.l.b16 %v3066
      %v3103 = vunpack.c.l.b16 %v3067
      %v3104 = vunpack.c.l.b16 %v3068
      %v3105 = vunpack.c.l.b16 %v3069
      %v3106 = vunpack.c.l.b16 %v3070
      %v3107 = vunpack.c.l.b16 %v3071
      %v3108 = vunpack.c.l.b16 %v3072
      %v3109 = vunpack.c.l.b16 %v3073
      %v3110 = vunpack.c.l.b16 %v3074
      %v3111 = vunpack.c.l.b16 %v3075
      %v3112 = vunpack.c.l.b16 %v3076
      %v3113 = vunpack.c.l.b16 %v3077
      %v3114 = vunpack.c.l.b16 %v3078
      %v3115 = vunpack.c.l.b16 %v3079
      %v3116 = vunpack.c.l.b16 %v3080
      %v3117 = vunpack.c.l.b16 %v3081
      %v3118 = vpack.c.b16 %v3103, %v3102
      %v3119 = vpack.c.b16 %v3105, %v3104
      %v3120 = vpack.c.b16 %v3107, %v3106
      %v3121 = vpack.c.b16 %v3109, %v3108
      %v3122 = vpack.c.b16 %v3111, %v3110
      %v3123 = vpack.c.b16 %v3113, %v3112
      %v3124 = vpack.c.b16 %v3115, %v3114
      %v3125 = vpack.c.b16 %v3117, %v3116
      %3134 = vmatprep.subr.bf16.mxu0 0
      %3135 = vmatpush1.bf16.msra.mxu0 %v3125
      %3136 = vmatprep.subr.bf16.mxu0 0
      %3137 = vmatpush1.bf16.msra.mxu0 %v3124
      %3138 = vmatprep.subr.bf16.mxu0 0
      %3139 = vmatpush1.bf16.msra.mxu0 %v3123
      %3140 = vmatprep.subr.bf16.mxu0 0
      %3141 = vmatpush1.bf16.msra.mxu0 %v3122
      %3142 = vmatprep.subr.bf16.mxu0 0
      %3143 = vmatpush1.bf16.msra.mxu0 %v3121
      %3144 = vmatprep.subr.bf16.mxu0 0
      %3145 = vmatpush1.bf16.msra.mxu0 %v3120
      %3146 = vmatprep.subr.bf16.mxu0 0
      %3147 = vmatpush1.bf16.msra.mxu0 %v3119
      %3148 = vmatprep.subr.bf16.mxu0 0
      %3149 = vmatpush1.bf16.msra.mxu0 %v3118
      %3150 = vmatprep.subr.bf16.mxu0 0
      %3151 = vmatpush2.bf16.msra.mxu0 0
      %3152 = vmatprep.subr.bf16.mxu0 0
      %3153 = vmatpush2.bf16.msra.mxu0 0
      %3154 = vmatprep.subr.bf16.mxu0 0
      %3155 = vmatpush2.bf16.msra.mxu0 0
      %3156 = vmatprep.subr.bf16.mxu0 0
      %3157 = vmatpush2.bf16.msra.mxu0 0
      %3158 = vmatprep.subr.bf16.mxu0 0
      %3159 = vmatpush2.bf16.msra.mxu0 0
      %3160 = vmatprep.subr.bf16.mxu0 0
      %3161 = vmatpush2.bf16.msra.mxu0 0
      %3162 = vmatprep.subr.bf16.mxu0 0
      %3163 = vmatpush2.bf16.msra.mxu0 0
      %3164 = vmatprep.subr.bf16.mxu0 0
      %3165 = vmatpush2.bf16.msra.mxu0 0
      %3166 = vmatprep.mubr.bf16.mxu0 0
      %3167 = vmatmul.mubr.bf16.gmra.mxu0 %v2235
      %v3168 = vpop.f32.mrf.mxu0
      %v3169 = vadd.f32 0.0, %v3168
      %v3170 = vpop.f32.mrf.mxu0
      %v3171 = vpop.f32.mrf.mxu0
      %v3172 = vadd.f32 0.0, %v3171
      %v3173 = vpop.f32.mrf.mxu0
      %3174 = vmatprep.mubr.bf16.mxu0 0
      %3175 = vmatmul.mubr.bf16.gmra.mxu0 %v2236
      %v3176 = vpop.f32.mrf.mxu0
      %v3177 = vadd.f32 0.0, %v3176
      %v3178 = vpop.f32.mrf.mxu0
      %v3179 = vpop.f32.mrf.mxu0
      %v3180 = vadd.f32 0.0, %v3179
      %v3181 = vpop.f32.mrf.mxu0
      %3182 = vmatprep.mubr.bf16.mxu0 0
      %3183 = vmatmul.mubr.bf16.gmra.mxu0 %v2237
      %v3184 = vpop.f32.mrf.mxu0
      %v3185 = vadd.f32 0.0, %v3184
      %v3186 = vpop.f32.mrf.mxu0
      %v3187 = vpop.f32.mrf.mxu0
      %v3188 = vadd.f32 0.0, %v3187
      %v3189 = vpop.f32.mrf.mxu0
      %3190 = vmatprep.mubr.bf16.mxu0 0
      %3191 = vmatmul.mubr.bf16.gmra.mxu0 %v2238
      %v3192 = vpop.f32.mrf.mxu0
      %v3193 = vadd.f32 0.0, %v3192
      %v3194 = vpop.f32.mrf.mxu0
      %v3195 = vpop.f32.mrf.mxu0
      %v3196 = vadd.f32 0.0, %v3195
      %v3197 = vpop.f32.mrf.mxu0
      %3198 = vmatprep.mubr.bf16.mxu0 0
      %3199 = vmatmul.mubr.bf16.gmra.mxu0 %v2239
      %v3200 = vpop.f32.mrf.mxu0
      %v3201 = vadd.f32 0.0, %v3200
      %v3202 = vpop.f32.mrf.mxu0
      %v3203 = vpop.f32.mrf.mxu0
      %v3204 = vadd.f32 0.0, %v3203
      %v3205 = vpop.f32.mrf.mxu0
      %3206 = vmatprep.mubr.bf16.mxu0 0
      %3207 = vmatmul.mubr.bf16.gmra.mxu0 %v2240
      %v3208 = vpop.f32.mrf.mxu0
      %v3209 = vadd.f32 0.0, %v3208
      %v3210 = vpop.f32.mrf.mxu0
      %v3211 = vpop.f32.mrf.mxu0
      %v3212 = vadd.f32 0.0, %v3211
      %v3213 = vpop.f32.mrf.mxu0
      %3214 = vmatprep.mubr.bf16.mxu0 0
      %3215 = vmatmul.mubr.bf16.gmra.mxu0 %v2241
      %v3216 = vpop.f32.mrf.mxu0
      %v3217 = vadd.f32 0.0, %v3216
      %v3218 = vpop.f32.mrf.mxu0
      %v3219 = vpop.f32.mrf.mxu0
      %v3220 = vadd.f32 0.0, %v3219
      %v3221 = vpop.f32.mrf.mxu0
      %3222 = vmatprep.mubr.bf16.mxu0 0
      %3223 = vmatmul.mubr.bf16.gmra.mxu0 %v2242
      %v3224 = vpop.f32.mrf.mxu0
      %v3225 = vadd.f32 0.0, %v3224
      %v3226 = vpop.f32.mrf.mxu0
      %v3227 = vpop.f32.mrf.mxu0
      %v3228 = vadd.f32 0.0, %v3227
      %v3229 = vpop.f32.mrf.mxu0
      %3230 = vmatprep.mubr.bf16.mxu0 0
      %3231 = vmatmul.mubr.bf16.gmra.mxu0 %v2243
      %v3232 = vpop.f32.mrf.mxu0
      %v3233 = vadd.f32 0.0, %v3232
      %v3234 = vpop.f32.mrf.mxu0
      %v3235 = vpop.f32.mrf.mxu0
      %v3236 = vadd.f32 0.0, %v3235
      %v3237 = vpop.f32.mrf.mxu0
      %3238 = vmatprep.mubr.bf16.mxu0 0
      %3239 = vmatmul.mubr.bf16.gmra.mxu0 %v2244
      %v3240 = vpop.f32.mrf.mxu0
      %v3241 = vadd.f32 0.0, %v3240
      %v3242 = vpop.f32.mrf.mxu0
      %v3243 = vpop.f32.mrf.mxu0
      %v3244 = vadd.f32 0.0, %v3243
      %v3245 = vpop.f32.mrf.mxu0
      %3246 = vmatprep.mubr.bf16.mxu0 0
      %3247 = vmatmul.mubr.bf16.gmra.mxu0 %v2245
      %v3248 = vpop.f32.mrf.mxu0
      %v3249 = vadd.f32 0.0, %v3248
      %v3250 = vpop.f32.mrf.mxu0
      %v3251 = vpop.f32.mrf.mxu0
      %v3252 = vadd.f32 0.0, %v3251
      %v3253 = vpop.f32.mrf.mxu0
      %3254 = vmatprep.mubr.bf16.mxu0 0
      %3255 = vmatmul.mubr.bf16.gmra.mxu0 %v2246
      %v3256 = vpop.f32.mrf.mxu0
      %v3257 = vadd.f32 0.0, %v3256
      %v3258 = vpop.f32.mrf.mxu0
      %v3259 = vpop.f32.mrf.mxu0
      %v3260 = vadd.f32 0.0, %v3259
      %v3261 = vpop.f32.mrf.mxu0
      %3262 = vmatprep.mubr.bf16.mxu0 0
      %3263 = vmatmul.mubr.bf16.gmra.mxu0 %v2247
      %v3264 = vpop.f32.mrf.mxu0
      %v3265 = vadd.f32 0.0, %v3264
      %v3266 = vpop.f32.mrf.mxu0
      %v3267 = vpop.f32.mrf.mxu0
      %v3268 = vadd.f32 0.0, %v3267
      %v3269 = vpop.f32.mrf.mxu0
      %3270 = vmatprep.mubr.bf16.mxu0 0
      %3271 = vmatmul.mubr.bf16.gmra.mxu0 %v2248
      %v3272 = vpop.f32.mrf.mxu0
      %v3273 = vadd.f32 0.0, %v3272
      %v3274 = vpop.f32.mrf.mxu0
      %v3275 = vpop.f32.mrf.mxu0
      %v3276 = vadd.f32 0.0, %v3275
      %v3277 = vpop.f32.mrf.mxu0
      %3278 = vmatprep.mubr.bf16.mxu0 0
      %3279 = vmatmul.mubr.bf16.gmra.mxu0 %v2249
      %v3280 = vpop.f32.mrf.mxu0
      %v3281 = vadd.f32 0.0, %v3280
      %v3282 = vpop.f32.mrf.mxu0
      %v3283 = vpop.f32.mrf.mxu0
      %v3284 = vadd.f32 0.0, %v3283
      %v3285 = vpop.f32.mrf.mxu0
      %3286 = vmatprep.mubr.bf16.mxu0 0
      %3287 = vmatmul.mubr.bf16.gmra.mxu0 %v3084
      %v3288 = vpop.f32.mrf.mxu0
      %v3289 = vadd.f32 0.0, %v3288
      %v3290 = vpop.f32.mrf.mxu0
      %v3291 = vpop.f32.mrf.mxu0
      %v3292 = vadd.f32 0.0, %v3291
      %v3293 = vpop.f32.mrf.mxu0
      %3294 = vdwg.mxu0
      %v3295 = vadd.f32 %v3025, %v3169
      %v3296 = vadd.f32 %v3026, %v3172
      %v3297 = vadd.f32 %v3027, %v3177
      %v3298 = vadd.f32 %v3028, %v3180
      %v3299 = vadd.f32 %v3029, %v3185
      %v3300 = vadd.f32 %v3030, %v3188
      %v3301 = vadd.f32 %v3031, %v3193
      %v3302 = vadd.f32 %v3032, %v3196
      %v3303 = vadd.f32 %v3033, %v3201
      %v3304 = vadd.f32 %v3034, %v3204
      %v3305 = vadd.f32 %v3035, %v3209
      %v3306 = vadd.f32 %v3036, %v3212
      %v3307 = vadd.f32 %v3037, %v3217
      %v3308 = vadd.f32 %v3038, %v3220
      %v3309 = vadd.f32 %v3039, %v3225
      %v3310 = vadd.f32 %v3040, %v3228
      %v3311 = vadd.f32 %v3041, %v3233
      %v3312 = vadd.f32 %v3042, %v3236
      %v3313 = vadd.f32 %v3043, %v3241
      %v3314 = vadd.f32 %v3044, %v3244
      %v3315 = vadd.f32 %v3045, %v3249
      %v3316 = vadd.f32 %v3046, %v3252
      %v3317 = vadd.f32 %v3047, %v3257
      %v3318 = vadd.f32 %v3048, %v3260
      %v3319 = vadd.f32 %v3049, %v3265
      %v3320 = vadd.f32 %v3050, %v3268
      %v3321 = vadd.f32 %v3051, %v3273
      %v3322 = vadd.f32 %v3052, %v3276
      %v3323 = vadd.f32 %v3053, %v3281
      %v3324 = vadd.f32 %v3054, %v3284
      %v3325 = vadd.f32 %v3055, %v3289
      %v3326 = vadd.f32 %v3056, %v3292
      %s3327 = scalar_lea.vmem %s3, 384
      %v3328 = vld [vmem:[%s3327] sm:$0xf]
      %v3329 = vld [vmem:[%s3327 + $0x4] sm:$0xf]
      %v3330 = vld [vmem:[%s3327 + $0x8] sm:$0xf]
      %v3331 = vld [vmem:[%s3327 + $0xc] sm:$0xf]
      %v3332 = vld [vmem:[%s3327 + $0x10] sm:$0xf]
      %v3333 = vld [vmem:[%s3327 + $0x14] sm:$0xf]
      %v3334 = vld [vmem:[%s3327 + $0x18] sm:$0xf]
      %v3335 = vld [vmem:[%s3327 + $0x1c] sm:$0xf]
      %v3336 = vld [vmem:[%s3327 + $0x20] sm:$0xf]
      %v3337 = vld [vmem:[%s3327 + $0x24] sm:$0xf]
      %v3338 = vld [vmem:[%s3327 + $0x28] sm:$0xf]
      %v3339 = vld [vmem:[%s3327 + $0x2c] sm:$0xf]
      %v3340 = vld [vmem:[%s3327 + $0x30] sm:$0xf]
      %v3341 = vld [vmem:[%s3327 + $0x34] sm:$0xf]
      %v3342 = vld [vmem:[%s3327 + $0x38] sm:$0xf]
      %v3343 = vld [vmem:[%s3327 + $0x3c] sm:$0xf]
      %v3346 = vunpack.c.l.b16 %v1053
      %v3347 = vunpack.c.l.b16 %v1054
      %v3348 = vpack.c.b16 %v3347, %v3346
      %v3366 = vunpack.c.l.b16 %v3328
      %v3367 = vunpack.c.l.b16 %v3329
      %v3368 = vunpack.c.l.b16 %v3330
      %v3369 = vunpack.c.l.b16 %v3331
      %v3370 = vunpack.c.l.b16 %v3332
      %v3371 = vunpack.c.l.b16 %v3333
      %v3372 = vunpack.c.l.b16 %v3334
      %v3373 = vunpack.c.l.b16 %v3335
      %v3374 = vunpack.c.l.b16 %v3336
      %v3375 = vunpack.c.l.b16 %v3337
      %v3376 = vunpack.c.l.b16 %v3338
      %v3377 = vunpack.c.l.b16 %v3339
      %v3378 = vunpack.c.l.b16 %v3340
      %v3379 = vunpack.c.l.b16 %v3341
      %v3380 = vunpack.c.l.b16 %v3342
      %v3381 = vunpack.c.l.b16 %v3343
      %v3382 = vpack.c.b16 %v3367, %v3366
      %v3383 = vpack.c.b16 %v3369, %v3368
      %v3384 = vpack.c.b16 %v3371, %v3370
      %v3385 = vpack.c.b16 %v3373, %v3372
      %v3386 = vpack.c.b16 %v3375, %v3374
      %v3387 = vpack.c.b16 %v3377, %v3376
      %v3388 = vpack.c.b16 %v3379, %v3378
      %v3389 = vpack.c.b16 %v3381, %v3380
      %3398 = vmatprep.subr.bf16.mxu0 0
      %3399 = vmatpush1.bf16.msra.mxu0 %v3389
      %3400 = vmatprep.subr.bf16.mxu0 0
      %3401 = vmatpush1.bf16.msra.mxu0 %v3388
      %3402 = vmatprep.subr.bf16.mxu0 0
      %3403 = vmatpush1.bf16.msra.mxu0 %v3387
      %3404 = vmatprep.subr.bf16.mxu0 0
      %3405 = vmatpush1.bf16.msra.mxu0 %v3386
      %3406 = vmatprep.subr.bf16.mxu0 0
      %3407 = vmatpush1.bf16.msra.mxu0 %v3385
      %3408 = vmatprep.subr.bf16.mxu0 0
      %3409 = vmatpush1.bf16.msra.mxu0 %v3384
      %3410 = vmatprep.subr.bf16.mxu0 0
      %3411 = vmatpush1.bf16.msra.mxu0 %v3383
      %3412 = vmatprep.subr.bf16.mxu0 0
      %3413 = vmatpush1.bf16.msra.mxu0 %v3382
      %3414 = vmatprep.subr.bf16.mxu0 0
      %3415 = vmatpush2.bf16.msra.mxu0 0
      %3416 = vmatprep.subr.bf16.mxu0 0
      %3417 = vmatpush2.bf16.msra.mxu0 0
      %3418 = vmatprep.subr.bf16.mxu0 0
      %3419 = vmatpush2.bf16.msra.mxu0 0
      %3420 = vmatprep.subr.bf16.mxu0 0
      %3421 = vmatpush2.bf16.msra.mxu0 0
      %3422 = vmatprep.subr.bf16.mxu0 0
      %3423 = vmatpush2.bf16.msra.mxu0 0
      %3424 = vmatprep.subr.bf16.mxu0 0
      %3425 = vmatpush2.bf16.msra.mxu0 0
      %3426 = vmatprep.subr.bf16.mxu0 0
      %3427 = vmatpush2.bf16.msra.mxu0 0
      %3428 = vmatprep.subr.bf16.mxu0 0
      %3429 = vmatpush2.bf16.msra.mxu0 0
      %3430 = vmatprep.mubr.bf16.mxu0 0
      %3431 = vmatmul.mubr.bf16.gmra.mxu0 %v1815
      %v3432 = vpop.f32.mrf.mxu0
      %v3433 = vadd.f32 0.0, %v3432
      %v3434 = vpop.f32.mrf.mxu0
      %v3435 = vpop.f32.mrf.mxu0
      %v3436 = vadd.f32 0.0, %v3435
      %v3437 = vpop.f32.mrf.mxu0
      %3438 = vmatprep.mubr.bf16.mxu0 0
      %3439 = vmatmul.mubr.bf16.gmra.mxu0 %v1816
      %v3440 = vpop.f32.mrf.mxu0
      %v3441 = vadd.f32 0.0, %v3440
      %v3442 = vpop.f32.mrf.mxu0
      %v3443 = vpop.f32.mrf.mxu0
      %v3444 = vadd.f32 0.0, %v3443
      %v3445 = vpop.f32.mrf.mxu0
      %3446 = vmatprep.mubr.bf16.mxu0 0
      %3447 = vmatmul.mubr.bf16.gmra.mxu0 %v1817
      %v3448 = vpop.f32.mrf.mxu0
      %v3449 = vadd.f32 0.0, %v3448
      %v3450 = vpop.f32.mrf.mxu0
      %v3451 = vpop.f32.mrf.mxu0
      %v3452 = vadd.f32 0.0, %v3451
      %v3453 = vpop.f32.mrf.mxu0
      %3454 = vmatprep.mubr.bf16.mxu0 0
      %3455 = vmatmul.mubr.bf16.gmra.mxu0 %v1818
      %v3456 = vpop.f32.mrf.mxu0
      %v3457 = vadd.f32 0.0, %v3456
      %v3458 = vpop.f32.mrf.mxu0
      %v3459 = vpop.f32.mrf.mxu0
      %v3460 = vadd.f32 0.0, %v3459
      %v3461 = vpop.f32.mrf.mxu0
      %3462 = vmatprep.mubr.bf16.mxu0 0
      %3463 = vmatmul.mubr.bf16.gmra.mxu0 %v1819
      %v3464 = vpop.f32.mrf.mxu0
      %v3465 = vadd.f32 0.0, %v3464
      %v3466 = vpop.f32.mrf.mxu0
      %v3467 = vpop.f32.mrf.mxu0
      %v3468 = vadd.f32 0.0, %v3467
      %v3469 = vpop.f32.mrf.mxu0
      %3470 = vmatprep.mubr.bf16.mxu0 0
      %3471 = vmatmul.mubr.bf16.gmra.mxu0 %v1820
      %v3472 = vpop.f32.mrf.mxu0
      %v3473 = vadd.f32 0.0, %v3472
      %v3474 = vpop.f32.mrf.mxu0
      %v3475 = vpop.f32.mrf.mxu0
      %v3476 = vadd.f32 0.0, %v3475
      %v3477 = vpop.f32.mrf.mxu0
      %3478 = vmatprep.mubr.bf16.mxu0 0
      %3479 = vmatmul.mubr.bf16.gmra.mxu0 %v1821
      %v3480 = vpop.f32.mrf.mxu0
      %v3481 = vadd.f32 0.0, %v3480
      %v3482 = vpop.f32.mrf.mxu0
      %v3483 = vpop.f32.mrf.mxu0
      %v3484 = vadd.f32 0.0, %v3483
      %v3485 = vpop.f32.mrf.mxu0
      %3486 = vmatprep.mubr.bf16.mxu0 0
      %3487 = vmatmul.mubr.bf16.gmra.mxu0 %v1822
      %v3488 = vpop.f32.mrf.mxu0
      %v3489 = vadd.f32 0.0, %v3488
      %v3490 = vpop.f32.mrf.mxu0
      %v3491 = vpop.f32.mrf.mxu0
      %v3492 = vadd.f32 0.0, %v3491
      %v3493 = vpop.f32.mrf.mxu0
      %3494 = vmatprep.mubr.bf16.mxu0 0
      %3495 = vmatmul.mubr.bf16.gmra.mxu0 %v1823
      %v3496 = vpop.f32.mrf.mxu0
      %v3497 = vadd.f32 0.0, %v3496
      %v3498 = vpop.f32.mrf.mxu0
      %v3499 = vpop.f32.mrf.mxu0
      %v3500 = vadd.f32 0.0, %v3499
      %v3501 = vpop.f32.mrf.mxu0
      %3502 = vmatprep.mubr.bf16.mxu0 0
      %3503 = vmatmul.mubr.bf16.gmra.mxu0 %v1824
      %v3504 = vpop.f32.mrf.mxu0
      %v3505 = vadd.f32 0.0, %v3504
      %v3506 = vpop.f32.mrf.mxu0
      %v3507 = vpop.f32.mrf.mxu0
      %v3508 = vadd.f32 0.0, %v3507
      %v3509 = vpop.f32.mrf.mxu0
      %3510 = vmatprep.mubr.bf16.mxu0 0
      %3511 = vmatmul.mubr.bf16.gmra.mxu0 %v1825
      %v3512 = vpop.f32.mrf.mxu0
      %v3513 = vadd.f32 0.0, %v3512
      %v3514 = vpop.f32.mrf.mxu0
      %v3515 = vpop.f32.mrf.mxu0
      %v3516 = vadd.f32 0.0, %v3515
      %v3517 = vpop.f32.mrf.mxu0
      %3518 = vmatprep.mubr.bf16.mxu0 0
      %3519 = vmatmul.mubr.bf16.gmra.mxu0 %v1826
      %v3520 = vpop.f32.mrf.mxu0
      %v3521 = vadd.f32 0.0, %v3520
      %v3522 = vpop.f32.mrf.mxu0
      %v3523 = vpop.f32.mrf.mxu0
      %v3524 = vadd.f32 0.0, %v3523
      %v3525 = vpop.f32.mrf.mxu0
      %3526 = vmatprep.mubr.bf16.mxu0 0
      %3527 = vmatmul.mubr.bf16.gmra.mxu0 %v1827
      %v3528 = vpop.f32.mrf.mxu0
      %v3529 = vadd.f32 0.0, %v3528
      %v3530 = vpop.f32.mrf.mxu0
      %v3531 = vpop.f32.mrf.mxu0
      %v3532 = vadd.f32 0.0, %v3531
      %v3533 = vpop.f32.mrf.mxu0
      %3534 = vmatprep.mubr.bf16.mxu0 0
      %3535 = vmatmul.mubr.bf16.gmra.mxu0 %v1828
      %v3536 = vpop.f32.mrf.mxu0
      %v3537 = vadd.f32 0.0, %v3536
      %v3538 = vpop.f32.mrf.mxu0
      %v3539 = vpop.f32.mrf.mxu0
      %v3540 = vadd.f32 0.0, %v3539
      %v3541 = vpop.f32.mrf.mxu0
      %3542 = vmatprep.mubr.bf16.mxu0 0
      %3543 = vmatmul.mubr.bf16.gmra.mxu0 %v2528
      %v3544 = vpop.f32.mrf.mxu0
      %v3545 = vadd.f32 0.0, %v3544
      %v3546 = vpop.f32.mrf.mxu0
      %v3547 = vpop.f32.mrf.mxu0
      %v3548 = vadd.f32 0.0, %v3547
      %v3549 = vpop.f32.mrf.mxu0
      %3550 = vmatprep.mubr.bf16.mxu0 0
      %3551 = vmatmul.mubr.bf16.gmra.mxu0 %v3348
      %v3552 = vpop.f32.mrf.mxu0
      %v3553 = vadd.f32 0.0, %v3552
      %v3554 = vpop.f32.mrf.mxu0
      %v3555 = vpop.f32.mrf.mxu0
      %v3556 = vadd.f32 0.0, %v3555
      %v3557 = vpop.f32.mrf.mxu0
      %3558 = vdwg.mxu0
      %v3559 = vadd.f32 %v3295, %v3433
      %v3560 = vadd.f32 %v3296, %v3436
      %v3561 = vadd.f32 %v3297, %v3441
      %v3562 = vadd.f32 %v3298, %v3444
      %v3563 = vadd.f32 %v3299, %v3449
      %v3564 = vadd.f32 %v3300, %v3452
      %v3565 = vadd.f32 %v3301, %v3457
      %v3566 = vadd.f32 %v3302, %v3460
      %v3567 = vadd.f32 %v3303, %v3465
      %v3568 = vadd.f32 %v3304, %v3468
      %v3569 = vadd.f32 %v3305, %v3473
      %v3570 = vadd.f32 %v3306, %v3476
      %v3571 = vadd.f32 %v3307, %v3481
      %v3572 = vadd.f32 %v3308, %v3484
      %v3573 = vadd.f32 %v3309, %v3489
      %v3574 = vadd.f32 %v3310, %v3492
      %v3575 = vadd.f32 %v3311, %v3497
      %v3576 = vadd.f32 %v3312, %v3500
      %v3577 = vadd.f32 %v3313, %v3505
      %v3578 = vadd.f32 %v3314, %v3508
      %v3579 = vadd.f32 %v3315, %v3513
      %v3580 = vadd.f32 %v3316, %v3516
      %v3581 = vadd.f32 %v3317, %v3521
      %v3582 = vadd.f32 %v3318, %v3524
      %v3583 = vadd.f32 %v3319, %v3529
      %v3584 = vadd.f32 %v3320, %v3532
      %v3585 = vadd.f32 %v3321, %v3537
      %v3586 = vadd.f32 %v3322, %v3540
      %v3587 = vadd.f32 %v3323, %v3545
      %v3588 = vadd.f32 %v3324, %v3548
      %v3589 = vadd.f32 %v3325, %v3553
      %v3590 = vadd.f32 %v3326, %v3556
      %v3592 = vshrl.u32 %v1053, 16
      %v3594 = vrot.slane %v3592, 4
      %v3595 = vshll.u32 %v1053, 16
      %v3597 = vrot.slane %v3595, 5
      %v3598 = vor.u32 %v3594, %v3597
      %v3599 = vrot.slane %v3598, 4
      %v3601 = vshll.u32 %v1054, 16
      %v3603 = vrot.slane %v3601, 5
      %v3604 = vsel %vm1074, %v3599, %v3603
      %v3605 = vshrl.u32 %v1054, 16
      %v3607 = vrot.slane %v3605, 4
      %v3608 = vor.u32 %v3607, %v3603
      %v3609 = vrot.slane %v3608, 4
      %v3611 = vshll.u32 %v1055, 16
      %v3613 = vrot.slane %v3611, 5
      %v3614 = vsel %vm1074, %v3609, %v3613
      %s3615 = scalar_lea.vmem %s3, 448
      %v3616 = vld [vmem:[%s3615] sm:$0xf]
      %v3617 = vld [vmem:[%s3615 + $0x4] sm:$0xf]
      %v3618 = vld [vmem:[%s3615 + $0x8] sm:$0xf]
      %v3619 = vld [vmem:[%s3615 + $0xc] sm:$0xf]
      %v3620 = vld [vmem:[%s3615 + $0x10] sm:$0xf]
      %v3621 = vld [vmem:[%s3615 + $0x14] sm:$0xf]
      %v3622 = vld [vmem:[%s3615 + $0x18] sm:$0xf]
      %v3623 = vld [vmem:[%s3615 + $0x1c] sm:$0xf]
      %v3624 = vld [vmem:[%s3615 + $0x20] sm:$0xf]
      %v3625 = vld [vmem:[%s3615 + $0x24] sm:$0xf]
      %v3626 = vld [vmem:[%s3615 + $0x28] sm:$0xf]
      %v3627 = vld [vmem:[%s3615 + $0x2c] sm:$0xf]
      %v3628 = vld [vmem:[%s3615 + $0x30] sm:$0xf]
      %v3629 = vld [vmem:[%s3615 + $0x34] sm:$0xf]
      %v3630 = vld [vmem:[%s3615 + $0x38] sm:$0xf]
      %v3631 = vld [vmem:[%s3615 + $0x3c] sm:$0xf]
      %v3632 = vunpack.c.l.b16 %v3604
      %v3633 = vunpack.c.l.b16 %v3614
      %v3634 = vpack.c.b16 %v3633, %v3632
      %v3652 = vunpack.c.l.b16 %v3616
      %v3653 = vunpack.c.l.b16 %v3617
      %v3654 = vunpack.c.l.b16 %v3618
      %v3655 = vunpack.c.l.b16 %v3619
      %v3656 = vunpack.c.l.b16 %v3620
      %v3657 = vunpack.c.l.b16 %v3621
      %v3658 = vunpack.c.l.b16 %v3622
      %v3659 = vunpack.c.l.b16 %v3623
      %v3660 = vunpack.c.l.b16 %v3624
      %v3661 = vunpack.c.l.b16 %v3625
      %v3662 = vunpack.c.l.b16 %v3626
      %v3663 = vunpack.c.l.b16 %v3627
      %v3664 = vunpack.c.l.b16 %v3628
      %v3665 = vunpack.c.l.b16 %v3629
      %v3666 = vunpack.c.l.b16 %v3630
      %v3667 = vunpack.c.l.b16 %v3631
      %v3668 = vpack.c.b16 %v3653, %v3652
      %v3669 = vpack.c.b16 %v3655, %v3654
      %v3670 = vpack.c.b16 %v3657, %v3656
      %v3671 = vpack.c.b16 %v3659, %v3658
      %v3672 = vpack.c.b16 %v3661, %v3660
      %v3673 = vpack.c.b16 %v3663, %v3662
      %v3674 = vpack.c.b16 %v3665, %v3664
      %v3675 = vpack.c.b16 %v3667, %v3666
      %3684 = vmatprep.subr.bf16.mxu0 0
      %3685 = vmatpush1.bf16.msra.mxu0 %v3675
      %3686 = vmatprep.subr.bf16.mxu0 0
      %3687 = vmatpush1.bf16.msra.mxu0 %v3674
      %3688 = vmatprep.subr.bf16.mxu0 0
      %3689 = vmatpush1.bf16.msra.mxu0 %v3673
      %3690 = vmatprep.subr.bf16.mxu0 0
      %3691 = vmatpush1.bf16.msra.mxu0 %v3672
      %3692 = vmatprep.subr.bf16.mxu0 0
      %3693 = vmatpush1.bf16.msra.mxu0 %v3671
      %3694 = vmatprep.subr.bf16.mxu0 0
      %3695 = vmatpush1.bf16.msra.mxu0 %v3670
      %3696 = vmatprep.subr.bf16.mxu0 0
      %3697 = vmatpush1.bf16.msra.mxu0 %v3669
      %3698 = vmatprep.subr.bf16.mxu0 0
      %3699 = vmatpush1.bf16.msra.mxu0 %v3668
      %3700 = vmatprep.subr.bf16.mxu0 0
      %3701 = vmatpush2.bf16.msra.mxu0 0
      %3702 = vmatprep.subr.bf16.mxu0 0
      %3703 = vmatpush2.bf16.msra.mxu0 0
      %3704 = vmatprep.subr.bf16.mxu0 0
      %3705 = vmatpush2.bf16.msra.mxu0 0
      %3706 = vmatprep.subr.bf16.mxu0 0
      %3707 = vmatpush2.bf16.msra.mxu0 0
      %3708 = vmatprep.subr.bf16.mxu0 0
      %3709 = vmatpush2.bf16.msra.mxu0 0
      %3710 = vmatprep.subr.bf16.mxu0 0
      %3711 = vmatpush2.bf16.msra.mxu0 0
      %3712 = vmatprep.subr.bf16.mxu0 0
      %3713 = vmatpush2.bf16.msra.mxu0 0
      %3714 = vmatprep.subr.bf16.mxu0 0
      %3715 = vmatpush2.bf16.msra.mxu0 0
      %3716 = vmatprep.mubr.bf16.mxu0 0
      %3717 = vmatmul.mubr.bf16.gmra.mxu0 %v1510
      %v3718 = vpop.f32.mrf.mxu0
      %v3719 = vadd.f32 0.0, %v3718
      %v3720 = vpop.f32.mrf.mxu0
      %v3721 = vpop.f32.mrf.mxu0
      %v3722 = vadd.f32 0.0, %v3721
      %v3723 = vpop.f32.mrf.mxu0
      %3724 = vmatprep.mubr.bf16.mxu0 0
      %3725 = vmatmul.mubr.bf16.gmra.mxu0 %v1511
      %v3726 = vpop.f32.mrf.mxu0
      %v3727 = vadd.f32 0.0, %v3726
      %v3728 = vpop.f32.mrf.mxu0
      %v3729 = vpop.f32.mrf.mxu0
      %v3730 = vadd.f32 0.0, %v3729
      %v3731 = vpop.f32.mrf.mxu0
      %3732 = vmatprep.mubr.bf16.mxu0 0
      %3733 = vmatmul.mubr.bf16.gmra.mxu0 %v1512
      %v3734 = vpop.f32.mrf.mxu0
      %v3735 = vadd.f32 0.0, %v3734
      %v3736 = vpop.f32.mrf.mxu0
      %v3737 = vpop.f32.mrf.mxu0
      %v3738 = vadd.f32 0.0, %v3737
      %v3739 = vpop.f32.mrf.mxu0
      %3740 = vmatprep.mubr.bf16.mxu0 0
      %3741 = vmatmul.mubr.bf16.gmra.mxu0 %v1513
      %v3742 = vpop.f32.mrf.mxu0
      %v3743 = vadd.f32 0.0, %v3742
      %v3744 = vpop.f32.mrf.mxu0
      %v3745 = vpop.f32.mrf.mxu0
      %v3746 = vadd.f32 0.0, %v3745
      %v3747 = vpop.f32.mrf.mxu0
      %3748 = vmatprep.mubr.bf16.mxu0 0
      %3749 = vmatmul.mubr.bf16.gmra.mxu0 %v1514
      %v3750 = vpop.f32.mrf.mxu0
      %v3751 = vadd.f32 0.0, %v3750
      %v3752 = vpop.f32.mrf.mxu0
      %v3753 = vpop.f32.mrf.mxu0
      %v3754 = vadd.f32 0.0, %v3753
      %v3755 = vpop.f32.mrf.mxu0
      %3756 = vmatprep.mubr.bf16.mxu0 0
      %3757 = vmatmul.mubr.bf16.gmra.mxu0 %v1515
      %v3758 = vpop.f32.mrf.mxu0
      %v3759 = vadd.f32 0.0, %v3758
      %v3760 = vpop.f32.mrf.mxu0
      %v3761 = vpop.f32.mrf.mxu0
      %v3762 = vadd.f32 0.0, %v3761
      %v3763 = vpop.f32.mrf.mxu0
      %3764 = vmatprep.mubr.bf16.mxu0 0
      %3765 = vmatmul.mubr.bf16.gmra.mxu0 %v1516
      %v3766 = vpop.f32.mrf.mxu0
      %v3767 = vadd.f32 0.0, %v3766
      %v3768 = vpop.f32.mrf.mxu0
      %v3769 = vpop.f32.mrf.mxu0
      %v3770 = vadd.f32 0.0, %v3769
      %v3771 = vpop.f32.mrf.mxu0
      %3772 = vmatprep.mubr.bf16.mxu0 0
      %3773 = vmatmul.mubr.bf16.gmra.mxu0 %v1517
      %v3774 = vpop.f32.mrf.mxu0
      %v3775 = vadd.f32 0.0, %v3774
      %v3776 = vpop.f32.mrf.mxu0
      %v3777 = vpop.f32.mrf.mxu0
      %v3778 = vadd.f32 0.0, %v3777
      %v3779 = vpop.f32.mrf.mxu0
      %3780 = vmatprep.mubr.bf16.mxu0 0
      %3781 = vmatmul.mubr.bf16.gmra.mxu0 %v1518
      %v3782 = vpop.f32.mrf.mxu0
      %v3783 = vadd.f32 0.0, %v3782
      %v3784 = vpop.f32.mrf.mxu0
      %v3785 = vpop.f32.mrf.mxu0
      %v3786 = vadd.f32 0.0, %v3785
      %v3787 = vpop.f32.mrf.mxu0
      %3788 = vmatprep.mubr.bf16.mxu0 0
      %3789 = vmatmul.mubr.bf16.gmra.mxu0 %v1519
      %v3790 = vpop.f32.mrf.mxu0
      %v3791 = vadd.f32 0.0, %v3790
      %v3792 = vpop.f32.mrf.mxu0
      %v3793 = vpop.f32.mrf.mxu0
      %v3794 = vadd.f32 0.0, %v3793
      %v3795 = vpop.f32.mrf.mxu0
      %3796 = vmatprep.mubr.bf16.mxu0 0
      %3797 = vmatmul.mubr.bf16.gmra.mxu0 %v1520
      %v3798 = vpop.f32.mrf.mxu0
      %v3799 = vadd.f32 0.0, %v3798
      %v3800 = vpop.f32.mrf.mxu0
      %v3801 = vpop.f32.mrf.mxu0
      %v3802 = vadd.f32 0.0, %v3801
      %v3803 = vpop.f32.mrf.mxu0
      %3804 = vmatprep.mubr.bf16.mxu0 0
      %3805 = vmatmul.mubr.bf16.gmra.mxu0 %v1521
      %v3806 = vpop.f32.mrf.mxu0
      %v3807 = vadd.f32 0.0, %v3806
      %v3808 = vpop.f32.mrf.mxu0
      %v3809 = vpop.f32.mrf.mxu0
      %v3810 = vadd.f32 0.0, %v3809
      %v3811 = vpop.f32.mrf.mxu0
      %3812 = vmatprep.mubr.bf16.mxu0 0
      %3813 = vmatmul.mubr.bf16.gmra.mxu0 %v1522
      %v3814 = vpop.f32.mrf.mxu0
      %v3815 = vadd.f32 0.0, %v3814
      %v3816 = vpop.f32.mrf.mxu0
      %v3817 = vpop.f32.mrf.mxu0
      %v3818 = vadd.f32 0.0, %v3817
      %v3819 = vpop.f32.mrf.mxu0
      %3820 = vmatprep.mubr.bf16.mxu0 0
      %3821 = vmatmul.mubr.bf16.gmra.mxu0 %v1523
      %v3822 = vpop.f32.mrf.mxu0
      %v3823 = vadd.f32 0.0, %v3822
      %v3824 = vpop.f32.mrf.mxu0
      %v3825 = vpop.f32.mrf.mxu0
      %v3826 = vadd.f32 0.0, %v3825
      %v3827 = vpop.f32.mrf.mxu0
      %3828 = vmatprep.mubr.bf16.mxu0 0
      %3829 = vmatmul.mubr.bf16.gmra.mxu0 %v2814
      %v3830 = vpop.f32.mrf.mxu0
      %v3831 = vadd.f32 0.0, %v3830
      %v3832 = vpop.f32.mrf.mxu0
      %v3833 = vpop.f32.mrf.mxu0
      %v3834 = vadd.f32 0.0, %v3833
      %v3835 = vpop.f32.mrf.mxu0
      %3836 = vmatprep.mubr.bf16.mxu0 0
      %3837 = vmatmul.mubr.bf16.gmra.mxu0 %v3634
      %v3838 = vpop.f32.mrf.mxu0
      %v3839 = vadd.f32 0.0, %v3838
      %v3840 = vpop.f32.mrf.mxu0
      %v3841 = vpop.f32.mrf.mxu0
      %v3842 = vadd.f32 0.0, %v3841
      %v3843 = vpop.f32.mrf.mxu0
      %3844 = vdwg.mxu0
      %v3845 = vadd.f32 %v3559, %v3719
      %v3846 = vadd.f32 %v3560, %v3722
      %v3847 = vadd.f32 %v3561, %v3727
      %v3848 = vadd.f32 %v3562, %v3730
      %v3849 = vadd.f32 %v3563, %v3735
      %v3850 = vadd.f32 %v3564, %v3738
      %v3851 = vadd.f32 %v3565, %v3743
      %v3852 = vadd.f32 %v3566, %v3746
      %v3853 = vadd.f32 %v3567, %v3751
      %v3854 = vadd.f32 %v3568, %v3754
      %v3855 = vadd.f32 %v3569, %v3759
      %v3856 = vadd.f32 %v3570, %v3762
      %v3857 = vadd.f32 %v3571, %v3767
      %v3858 = vadd.f32 %v3572, %v3770
      %v3859 = vadd.f32 %v3573, %v3775
      %v3860 = vadd.f32 %v3574, %v3778
      %v3861 = vadd.f32 %v3575, %v3783
      %v3862 = vadd.f32 %v3576, %v3786
      %v3863 = vadd.f32 %v3577, %v3791
      %v3864 = vadd.f32 %v3578, %v3794
      %v3865 = vadd.f32 %v3579, %v3799
      %v3866 = vadd.f32 %v3580, %v3802
      %v3867 = vadd.f32 %v3581, %v3807
      %v3868 = vadd.f32 %v3582, %v3810
      %v3869 = vadd.f32 %v3583, %v3815
      %v3870 = vadd.f32 %v3584, %v3818
      %v3871 = vadd.f32 %v3585, %v3823
      %v3872 = vadd.f32 %v3586, %v3826
      %v3873 = vadd.f32 %v3587, %v3831
      %v3874 = vadd.f32 %v3588, %v3834
      %v3875 = vadd.f32 %v3589, %v3839
      %v3876 = vadd.f32 %v3590, %v3842
      %v3878 = vrot.slane %v1053, 5
      %v3879 = vrot.slane %v3878, 4
      %v3880 = vrot.slane %v1054, 5
      %v3881 = vsel %vm2072, %v3879, %v3880
      %v3882 = vrot.slane %v3880, 4
      %v3883 = vrot.slane %v1055, 5
      %v3884 = vsel %vm2072, %v3882, %v3883
      %s3885 = scalar_lea.vmem %s3, 512
      %v3886 = vld [vmem:[%s3885] sm:$0xf]
      %v3887 = vld [vmem:[%s3885 + $0x4] sm:$0xf]
      %v3888 = vld [vmem:[%s3885 + $0x8] sm:$0xf]
      %v3889 = vld [vmem:[%s3885 + $0xc] sm:$0xf]
      %v3890 = vld [vmem:[%s3885 + $0x10] sm:$0xf]
      %v3891 = vld [vmem:[%s3885 + $0x14] sm:$0xf]
      %v3892 = vld [vmem:[%s3885 + $0x18] sm:$0xf]
      %v3893 = vld [vmem:[%s3885 + $0x1c] sm:$0xf]
      %v3894 = vld [vmem:[%s3885 + $0x20] sm:$0xf]
      %v3895 = vld [vmem:[%s3885 + $0x24] sm:$0xf]
      %v3896 = vld [vmem:[%s3885 + $0x28] sm:$0xf]
      %v3897 = vld [vmem:[%s3885 + $0x2c] sm:$0xf]
      %v3898 = vld [vmem:[%s3885 + $0x30] sm:$0xf]
      %v3899 = vld [vmem:[%s3885 + $0x34] sm:$0xf]
      %v3900 = vld [vmem:[%s3885 + $0x38] sm:$0xf]
      %v3901 = vld [vmem:[%s3885 + $0x3c] sm:$0xf]
      %v3902 = vunpack.c.l.b16 %v3881
      %v3903 = vunpack.c.l.b16 %v3884
      %v3904 = vpack.c.b16 %v3903, %v3902
      %v3922 = vunpack.c.l.b16 %v3886
      %v3923 = vunpack.c.l.b16 %v3887
      %v3924 = vunpack.c.l.b16 %v3888
      %v3925 = vunpack.c.l.b16 %v3889
      %v3926 = vunpack.c.l.b16 %v3890
      %v3927 = vunpack.c.l.b16 %v3891
      %v3928 = vunpack.c.l.b16 %v3892
      %v3929 = vunpack.c.l.b16 %v3893
      %v3930 = vunpack.c.l.b16 %v3894
      %v3931 = vunpack.c.l.b16 %v3895
      %v3932 = vunpack.c.l.b16 %v3896
      %v3933 = vunpack.c.l.b16 %v3897
      %v3934 = vunpack.c.l.b16 %v3898
      %v3935 = vunpack.c.l.b16 %v3899
      %v3936 = vunpack.c.l.b16 %v3900
      %v3937 = vunpack.c.l.b16 %v3901
      %v3938 = vpack.c.b16 %v3923, %v3922
      %v3939 = vpack.c.b16 %v3925, %v3924
      %v3940 = vpack.c.b16 %v3927, %v3926
      %v3941 = vpack.c.b16 %v3929, %v3928
      %v3942 = vpack.c.b16 %v3931, %v3930
      %v3943 = vpack.c.b16 %v3933, %v3932
      %v3944 = vpack.c.b16 %v3935, %v3934
      %v3945 = vpack.c.b16 %v3937, %v3936
      %3954 = vmatprep.subr.bf16.mxu0 0
      %3955 = vmatpush1.bf16.msra.mxu0 %v3945
      %3956 = vmatprep.subr.bf16.mxu0 0
      %3957 = vmatpush1.bf16.msra.mxu0 %v3944
      %3958 = vmatprep.subr.bf16.mxu0 0
      %3959 = vmatpush1.bf16.msra.mxu0 %v3943
      %3960 = vmatprep.subr.bf16.mxu0 0
      %3961 = vmatpush1.bf16.msra.mxu0 %v3942
      %3962 = vmatprep.subr.bf16.mxu0 0
      %3963 = vmatpush1.bf16.msra.mxu0 %v3941
      %3964 = vmatprep.subr.bf16.mxu0 0
      %3965 = vmatpush1.bf16.msra.mxu0 %v3940
      %3966 = vmatprep.subr.bf16.mxu0 0
      %3967 = vmatpush1.bf16.msra.mxu0 %v3939
      %3968 = vmatprep.subr.bf16.mxu0 0
      %3969 = vmatpush1.bf16.msra.mxu0 %v3938
      %3970 = vmatprep.subr.bf16.mxu0 0
      %3971 = vmatpush2.bf16.msra.mxu0 0
      %3972 = vmatprep.subr.bf16.mxu0 0
      %3973 = vmatpush2.bf16.msra.mxu0 0
      %3974 = vmatprep.subr.bf16.mxu0 0
      %3975 = vmatpush2.bf16.msra.mxu0 0
      %3976 = vmatprep.subr.bf16.mxu0 0
      %3977 = vmatpush2.bf16.msra.mxu0 0
      %3978 = vmatprep.subr.bf16.mxu0 0
      %3979 = vmatpush2.bf16.msra.mxu0 0
      %3980 = vmatprep.subr.bf16.mxu0 0
      %3981 = vmatpush2.bf16.msra.mxu0 0
      %3982 = vmatprep.subr.bf16.mxu0 0
      %3983 = vmatpush2.bf16.msra.mxu0 0
      %3984 = vmatprep.subr.bf16.mxu0 0
      %3985 = vmatpush2.bf16.msra.mxu0 0
      %3986 = vmatprep.mubr.bf16.mxu0 0
      %3987 = vmatmul.mubr.bf16.gmra.mxu0 %v2236
      %v3988 = vpop.f32.mrf.mxu0
      %v3989 = vadd.f32 0.0, %v3988
      %v3990 = vpop.f32.mrf.mxu0
      %v3991 = vpop.f32.mrf.mxu0
      %v3992 = vadd.f32 0.0, %v3991
      %v3993 = vpop.f32.mrf.mxu0
      %3994 = vmatprep.mubr.bf16.mxu0 0
      %3995 = vmatmul.mubr.bf16.gmra.mxu0 %v2237
      %v3996 = vpop.f32.mrf.mxu0
      %v3997 = vadd.f32 0.0, %v3996
      %v3998 = vpop.f32.mrf.mxu0
      %v3999 = vpop.f32.mrf.mxu0
      %v4000 = vadd.f32 0.0, %v3999
      %v4001 = vpop.f32.mrf.mxu0
      %4002 = vmatprep.mubr.bf16.mxu0 0
      %4003 = vmatmul.mubr.bf16.gmra.mxu0 %v2238
      %v4004 = vpop.f32.mrf.mxu0
      %v4005 = vadd.f32 0.0, %v4004
      %v4006 = vpop.f32.mrf.mxu0
      %v4007 = vpop.f32.mrf.mxu0
      %v4008 = vadd.f32 0.0, %v4007
      %v4009 = vpop.f32.mrf.mxu0
      %4010 = vmatprep.mubr.bf16.mxu0 0
      %4011 = vmatmul.mubr.bf16.gmra.mxu0 %v2239
      %v4012 = vpop.f32.mrf.mxu0
      %v4013 = vadd.f32 0.0, %v4012
      %v4014 = vpop.f32.mrf.mxu0
      %v4015 = vpop.f32.mrf.mxu0
      %v4016 = vadd.f32 0.0, %v4015
      %v4017 = vpop.f32.mrf.mxu0
      %4018 = vmatprep.mubr.bf16.mxu0 0
      %4019 = vmatmul.mubr.bf16.gmra.mxu0 %v2240
      %v4020 = vpop.f32.mrf.mxu0
      %v4021 = vadd.f32 0.0, %v4020
      %v4022 = vpop.f32.mrf.mxu0
      %v4023 = vpop.f32.mrf.mxu0
      %v4024 = vadd.f32 0.0, %v4023
      %v4025 = vpop.f32.mrf.mxu0
      %4026 = vmatprep.mubr.bf16.mxu0 0
      %4027 = vmatmul.mubr.bf16.gmra.mxu0 %v2241
      %v4028 = vpop.f32.mrf.mxu0
      %v4029 = vadd.f32 0.0, %v4028
      %v4030 = vpop.f32.mrf.mxu0
      %v4031 = vpop.f32.mrf.mxu0
      %v4032 = vadd.f32 0.0, %v4031
      %v4033 = vpop.f32.mrf.mxu0
      %4034 = vmatprep.mubr.bf16.mxu0 0
      %4035 = vmatmul.mubr.bf16.gmra.mxu0 %v2242
      %v4036 = vpop.f32.mrf.mxu0
      %v4037 = vadd.f32 0.0, %v4036
      %v4038 = vpop.f32.mrf.mxu0
      %v4039 = vpop.f32.mrf.mxu0
      %v4040 = vadd.f32 0.0, %v4039
      %v4041 = vpop.f32.mrf.mxu0
      %4042 = vmatprep.mubr.bf16.mxu0 0
      %4043 = vmatmul.mubr.bf16.gmra.mxu0 %v2243
      %v4044 = vpop.f32.mrf.mxu0
      %v4045 = vadd.f32 0.0, %v4044
      %v4046 = vpop.f32.mrf.mxu0
      %v4047 = vpop.f32.mrf.mxu0
      %v4048 = vadd.f32 0.0, %v4047
      %v4049 = vpop.f32.mrf.mxu0
      %4050 = vmatprep.mubr.bf16.mxu0 0
      %4051 = vmatmul.mubr.bf16.gmra.mxu0 %v2244
      %v4052 = vpop.f32.mrf.mxu0
      %v4053 = vadd.f32 0.0, %v4052
      %v4054 = vpop.f32.mrf.mxu0
      %v4055 = vpop.f32.mrf.mxu0
      %v4056 = vadd.f32 0.0, %v4055
      %v4057 = vpop.f32.mrf.mxu0
      %4058 = vmatprep.mubr.bf16.mxu0 0
      %4059 = vmatmul.mubr.bf16.gmra.mxu0 %v2245
      %v4060 = vpop.f32.mrf.mxu0
      %v4061 = vadd.f32 0.0, %v4060
      %v4062 = vpop.f32.mrf.mxu0
      %v4063 = vpop.f32.mrf.mxu0
      %v4064 = vadd.f32 0.0, %v4063
      %v4065 = vpop.f32.mrf.mxu0
      %4066 = vmatprep.mubr.bf16.mxu0 0
      %4067 = vmatmul.mubr.bf16.gmra.mxu0 %v2246
      %v4068 = vpop.f32.mrf.mxu0
      %v4069 = vadd.f32 0.0, %v4068
      %v4070 = vpop.f32.mrf.mxu0
      %v4071 = vpop.f32.mrf.mxu0
      %v4072 = vadd.f32 0.0, %v4071
      %v4073 = vpop.f32.mrf.mxu0
      %4074 = vmatprep.mubr.bf16.mxu0 0
      %4075 = vmatmul.mubr.bf16.gmra.mxu0 %v2247
      %v4076 = vpop.f32.mrf.mxu0
      %v4077 = vadd.f32 0.0, %v4076
      %v4078 = vpop.f32.mrf.mxu0
      %v4079 = vpop.f32.mrf.mxu0
      %v4080 = vadd.f32 0.0, %v4079
      %v4081 = vpop.f32.mrf.mxu0
      %4082 = vmatprep.mubr.bf16.mxu0 0
      %4083 = vmatmul.mubr.bf16.gmra.mxu0 %v2248
      %v4084 = vpop.f32.mrf.mxu0
      %v4085 = vadd.f32 0.0, %v4084
      %v4086 = vpop.f32.mrf.mxu0
      %v4087 = vpop.f32.mrf.mxu0
      %v4088 = vadd.f32 0.0, %v4087
      %v4089 = vpop.f32.mrf.mxu0
      %4090 = vmatprep.mubr.bf16.mxu0 0
      %4091 = vmatmul.mubr.bf16.gmra.mxu0 %v2249
      %v4092 = vpop.f32.mrf.mxu0
      %v4093 = vadd.f32 0.0, %v4092
      %v4094 = vpop.f32.mrf.mxu0
      %v4095 = vpop.f32.mrf.mxu0
      %v4096 = vadd.f32 0.0, %v4095
      %v4097 = vpop.f32.mrf.mxu0
      %4098 = vmatprep.mubr.bf16.mxu0 0
      %4099 = vmatmul.mubr.bf16.gmra.mxu0 %v3084
      %v4100 = vpop.f32.mrf.mxu0
      %v4101 = vadd.f32 0.0, %v4100
      %v4102 = vpop.f32.mrf.mxu0
      %v4103 = vpop.f32.mrf.mxu0
      %v4104 = vadd.f32 0.0, %v4103
      %v4105 = vpop.f32.mrf.mxu0
      %4106 = vmatprep.mubr.bf16.mxu0 0
      %4107 = vmatmul.mubr.bf16.gmra.mxu0 %v3904
      %v4108 = vpop.f32.mrf.mxu0
      %v4109 = vadd.f32 0.0, %v4108
      %v4110 = vpop.f32.mrf.mxu0
      %v4111 = vpop.f32.mrf.mxu0
      %v4112 = vadd.f32 0.0, %v4111
      %v4113 = vpop.f32.mrf.mxu0
      %4114 = vdwg.mxu0
      %v4115 = vadd.f32 %v3845, %v3989
      %v4116 = vadd.f32 %v3846, %v3992
      %v4117 = vadd.f32 %v3847, %v3997
      %v4118 = vadd.f32 %v3848, %v4000
      %v4119 = vadd.f32 %v3849, %v4005
      %v4120 = vadd.f32 %v3850, %v4008
      %v4121 = vadd.f32 %v3851, %v4013
      %v4122 = vadd.f32 %v3852, %v4016
      %v4123 = vadd.f32 %v3853, %v4021
      %v4124 = vadd.f32 %v3854, %v4024
      %v4125 = vadd.f32 %v3855, %v4029
      %v4126 = vadd.f32 %v3856, %v4032
      %v4127 = vadd.f32 %v3857, %v4037
      %v4128 = vadd.f32 %v3858, %v4040
      %v4129 = vadd.f32 %v3859, %v4045
      %v4130 = vadd.f32 %v3860, %v4048
      %v4131 = vadd.f32 %v3861, %v4053
      %v4132 = vadd.f32 %v3862, %v4056
      %v4133 = vadd.f32 %v3863, %v4061
      %v4134 = vadd.f32 %v3864, %v4064
      %v4135 = vadd.f32 %v3865, %v4069
      %v4136 = vadd.f32 %v3866, %v4072
      %v4137 = vadd.f32 %v3867, %v4077
      %v4138 = vadd.f32 %v3868, %v4080
      %v4139 = vadd.f32 %v3869, %v4085
      %v4140 = vadd.f32 %v3870, %v4088
      %v4141 = vadd.f32 %v3871, %v4093
      %v4142 = vadd.f32 %v3872, %v4096
      %v4143 = vadd.f32 %v3873, %v4101
      %v4144 = vadd.f32 %v3874, %v4104
      %v4145 = vadd.f32 %v3875, %v4109
      %v4146 = vadd.f32 %v3876, %v4112
      %4147 = vst [vmem:[%s231] sm:$0xff] %v4115
      %4148 = vst [vmem:[%s231 + $0x8] sm:$0xff] %v4116
      %4149 = vst [vmem:[%s231 + $0x10] sm:$0xff] %v4117
      %4150 = vst [vmem:[%s231 + $0x18] sm:$0xff] %v4118
      %4151 = vst [vmem:[%s231 + $0x20] sm:$0xff] %v4119
      %4152 = vst [vmem:[%s231 + $0x28] sm:$0xff] %v4120
      %4153 = vst [vmem:[%s231 + $0x30] sm:$0xff] %v4121
      %4154 = vst [vmem:[%s231 + $0x38] sm:$0xff] %v4122
      %4155 = vst [vmem:[%s231 + $0x40] sm:$0xff] %v4123
      %4156 = vst [vmem:[%s231 + $0x48] sm:$0xff] %v4124
      %4157 = vst [vmem:[%s231 + $0x50] sm:$0xff] %v4125
      %4158 = vst [vmem:[%s231 + $0x58] sm:$0xff] %v4126
      %4159 = vst [vmem:[%s231 + $0x60] sm:$0xff] %v4127
      %4160 = vst [vmem:[%s231 + $0x68] sm:$0xff] %v4128
      %4161 = vst [vmem:[%s231 + $0x70] sm:$0xff] %v4129
      %4162 = vst [vmem:[%s231 + $0x78] sm:$0xff] %v4130
      %4163 = vst [vmem:[%s231 + $0x80] sm:$0xff] %v4131
      %4164 = vst [vmem:[%s231 + $0x88] sm:$0xff] %v4132
      %4165 = vst [vmem:[%s231 + $0x90] sm:$0xff] %v4133
      %4166 = vst [vmem:[%s231 + $0x98] sm:$0xff] %v4134
      %4167 = vst [vmem:[%s231 + $0xa0] sm:$0xff] %v4135
      %4168 = vst [vmem:[%s231 + $0xa8] sm:$0xff] %v4136
      %4169 = vst [vmem:[%s231 + $0xb0] sm:$0xff] %v4137
      %4170 = vst [vmem:[%s231 + $0xb8] sm:$0xff] %v4138
      %4171 = vst [vmem:[%s231 + $0xc0] sm:$0xff] %v4139
      %4172 = vst [vmem:[%s231 + $0xc8] sm:$0xff] %v4140
      %4173 = vst [vmem:[%s231 + $0xd0] sm:$0xff] %v4141
      %4174 = vst [vmem:[%s231 + $0xd8] sm:$0xff] %v4142
      %4175 = vst [vmem:[%s231 + $0xe0] sm:$0xff] %v4143
      %4176 = vst [vmem:[%s231 + $0xe8] sm:$0xff] %v4144
      %4177 = vst [vmem:[%s231 + $0xf0] sm:$0xff] %v4145
      %4178 = vst [vmem:[%s231 + $0xf8] sm:$0xff] %v4146
      %v4179 = vadd.f32 %v4115, %v4116
      %v4180 = vadd.f32 %v4179, %v4117
      %v4181 = vadd.f32 %v4180, %v4118
      %v4182 = vadd.f32 %v4181, %v4119
      %v4183 = vadd.f32 %v4182, %v4120
      %v4184 = vadd.f32 %v4183, %v4121
      %v4185 = vadd.f32 %v4184, %v4122
      %v4186 = vadd.f32 %v4185, %v4123
      %v4187 = vadd.f32 %v4186, %v4124
      %v4188 = vadd.f32 %v4187, %v4125
      %v4189 = vadd.f32 %v4188, %v4126
      %v4190 = vadd.f32 %v4189, %v4127
      %v4191 = vadd.f32 %v4190, %v4128
      %v4192 = vadd.f32 %v4191, %v4129
      %v4193 = vadd.f32 %v4192, %v4130
      %v4194 = vadd.f32 %v4193, %v4131
      %v4195 = vadd.f32 %v4194, %v4132
      %v4196 = vadd.f32 %v4195, %v4133
      %v4197 = vadd.f32 %v4196, %v4134
      %v4198 = vadd.f32 %v4197, %v4135
      %v4199 = vadd.f32 %v4198, %v4136
      %v4200 = vadd.f32 %v4199, %v4137
      %v4201 = vadd.f32 %v4200, %v4138
      %v4202 = vadd.f32 %v4201, %v4139
      %v4203 = vadd.f32 %v4202, %v4140
      %v4204 = vadd.f32 %v4203, %v4141
      %v4205 = vadd.f32 %v4204, %v4142
      %v4206 = vadd.f32 %v4205, %v4143
      %v4207 = vadd.f32 %v4206, %v4144
      %v4208 = vadd.f32 %v4207, %v4145
      %v4209 = vadd.f32 %v4208, %v4146
      %v4210 = vrot.slane %v4209, 4
      %v4211 = vadd.f32 %v4209, %v4210
      %v4212 = vrot.slane %v4211, 2
      %v4213 = vadd.f32 %v4211, %v4212
      %v4214 = vrot.slane %v4213, 1
      %v4215 = vadd.f32 %v4213, %v4214
      %v4216 = vmul.f32 %v4115, %v4115
      %v4217 = vmul.f32 %v4116, %v4116
      %v4218 = vmul.f32 %v4117, %v4117
      %v4219 = vmul.f32 %v4118, %v4118
      %v4220 = vmul.f32 %v4119, %v4119
      %v4221 = vmul.f32 %v4120, %v4120
      %v4222 = vmul.f32 %v4121, %v4121
      %v4223 = vmul.f32 %v4122, %v4122
      %v4224 = vmul.f32 %v4123, %v4123
      %v4225 = vmul.f32 %v4124, %v4124
      %v4226 = vmul.f32 %v4125, %v4125
      %v4227 = vmul.f32 %v4126, %v4126
      %v4228 = vmul.f32 %v4127, %v4127
      %v4229 = vmul.f32 %v4128, %v4128
      %v4230 = vmul.f32 %v4129, %v4129
      %v4231 = vmul.f32 %v4130, %v4130
      %v4232 = vmul.f32 %v4131, %v4131
      %v4233 = vmul.f32 %v4132, %v4132
      %v4234 = vmul.f32 %v4133, %v4133
      %v4235 = vmul.f32 %v4134, %v4134
      %v4236 = vmul.f32 %v4135, %v4135
      %v4237 = vmul.f32 %v4136, %v4136
      %v4238 = vmul.f32 %v4137, %v4137
      %v4239 = vmul.f32 %v4138, %v4138
      %v4240 = vmul.f32 %v4139, %v4139
      %v4241 = vmul.f32 %v4140, %v4140
      %v4242 = vmul.f32 %v4141, %v4141
      %v4243 = vmul.f32 %v4142, %v4142
      %v4244 = vmul.f32 %v4143, %v4143
      %v4245 = vmul.f32 %v4144, %v4144
      %v4246 = vmul.f32 %v4145, %v4145
      %v4247 = vmul.f32 %v4146, %v4146
      %v4248 = vadd.f32 %v4216, %v4217
      %v4249 = vadd.f32 %v4248, %v4218
      %v4250 = vadd.f32 %v4249, %v4219
      %v4251 = vadd.f32 %v4250, %v4220
      %v4252 = vadd.f32 %v4251, %v4221
      %v4253 = vadd.f32 %v4252, %v4222
      %v4254 = vadd.f32 %v4253, %v4223
      %v4255 = vadd.f32 %v4254, %v4224
      %v4256 = vadd.f32 %v4255, %v4225
      %v4257 = vadd.f32 %v4256, %v4226
      %v4258 = vadd.f32 %v4257, %v4227
      %v4259 = vadd.f32 %v4258, %v4228
      %v4260 = vadd.f32 %v4259, %v4229
      %v4261 = vadd.f32 %v4260, %v4230
      %v4262 = vadd.f32 %v4261, %v4231
      %v4263 = vadd.f32 %v4262, %v4232
      %v4264 = vadd.f32 %v4263, %v4233
      %v4265 = vadd.f32 %v4264, %v4234
      %v4266 = vadd.f32 %v4265, %v4235
      %v4267 = vadd.f32 %v4266, %v4236
      %v4268 = vadd.f32 %v4267, %v4237
      %v4269 = vadd.f32 %v4268, %v4238
      %v4270 = vadd.f32 %v4269, %v4239
      %v4271 = vadd.f32 %v4270, %v4240
      %v4272 = vadd.f32 %v4271, %v4241
      %v4273 = vadd.f32 %v4272, %v4242
      %v4274 = vadd.f32 %v4273, %v4243
      %v4275 = vadd.f32 %v4274, %v4244
      %v4276 = vadd.f32 %v4275, %v4245
      %v4277 = vadd.f32 %v4276, %v4246
      %v4278 = vadd.f32 %v4277, %v4247
      %v4279 = vrot.slane %v4278, 4
      %v4280 = vadd.f32 %v4278, %v4279
      %v4281 = vrot.slane %v4280, 2
      %v4282 = vadd.f32 %v4280, %v4281
      %v4283 = vrot.slane %v4282, 1
      %v4284 = vadd.f32 %v4282, %v4283
      %vm4285 = vcmask 1040384
      %v4286 = vsel %vm4285, %v4215, %v4284
      %4287 = vst [vmem:[%s235] sm:$0x3] %v4286
      %p4288 = scmp.lt.s32.totalorder %s17, 1
      %s4289 = scalar_select %p4288, %s17, 1
      %s4290 = smul.addr %s4289, 32
      %s4291 = smul.addr %s4290, 8
      %s4292 = scalar_lea.vmem %s4, %s4291
      %p4293 = scmp.lt.s32.totalorder %s17, 1
      %s4294 = scalar_select %p4293, %s17, 1
      %s4295 = smul.addr %s4294, 2
      %s4296 = scalar_lea.vmem %s5, %s4295
      // Predicated region
      $region37: #{residual_block.4} parent=35 // pred_check
        %p4297 = pneg %p124
      $region38: #{residual_block.4} parent=35 // pred_check_branch
        %4299 = sbr.rel (%p4297) target = $region40
      $region39: #{residual_block.4} parent=35 // pred_region
        _
      $region40: #{residual_block.4} parent=35 // pred_fallthru
        _
      // Predicated region
      $region41: #{residual_block.4} parent=35 // pred_check
        %p4300 = pneg %p150
      $region42: #{residual_block.4} parent=35 // pred_check_branch
        %4302 = sbr.rel (%p4300) target = $region44
      $region43: #{residual_block.4} parent=35 // pred_region
        _
      $region44: #{residual_block.4} parent=35 // pred_fallthru
        _
    $region36: #{residual_block.4} parent=5 // pred_fallthru
      _
    %p4303 = scmp.le.s32.totalorder 2, %s12
    // Predicated region
    $region45: #{residual_block.4} parent=5 // pred_check
      %p4304 = pneg %p4303
    $region46: #{residual_block.4} parent=5 // pred_check_branch
      %4306 = sbr.rel (%p4304) target = $region48
    $region47: #{residual_block.4} parent=5 // pred_region
      %s4307 = ssub.s32 %s12, 2
      // Predicated region
      $region49: #{residual_block.4} parent=47 // pred_check
        %p4308 = pneg %p130
      $region50: #{residual_block.4} parent=47 // pred_check_branch
        %4310 = sbr.rel (%p4308) target = $region52
      $region51: #{residual_block.4} parent=47 // pred_region
        %p4311 = scmp.lt.s32.totalorder %s18, 1
        %s4312 = scalar_select %p4311, %s18, 1
        %s4313 = smul.addr %s4312, 32
        %s4314 = smul.addr %s4313, 8
        %s4315 = scalar_lea.vmem %s4, %s4314
      $region52: #{residual_block.4} parent=47 // pred_fallthru
        _
      // Predicated region
      $region53: #{residual_block.4} parent=47 // pred_check
        %p4316 = pneg %p156
      $region54: #{residual_block.4} parent=47 // pred_check_branch
        %4318 = sbr.rel (%p4316) target = $region56
      $region55: #{residual_block.4} parent=47 // pred_region
        %p4319 = scmp.lt.s32.totalorder %s18, 1
        %s4320 = scalar_select %p4319, %s18, 1
        %s4321 = smul.addr %s4320, 2
        %s4322 = scalar_lea.vmem %s5, %s4321
      $region56: #{residual_block.4} parent=47 // pred_fallthru
        _
    $region48: #{residual_block.4} parent=5 // pred_fallthru
      _
  $region6: #{residual_block.4} parent=0 // loop_footer
    %s16 = sadd.s32 1, %s12
  $region7: #{residual_block.4} parent=0 // loop_footer_branch
    %11 = sbr.rel target = $region3
  $region8: #{residual_block.4} parent=0 // loop_exit
    _

// kernel: residual_block.3
$region0: #{residual_block.3}
  #allocation0 [shape = 'u32[]', space=smem, size = 0x4, offset = 0x4, fixed_abs, tag = 'smem constant byte address 0x4 - core index']
  #allocation1 [shape = 'u32[144,128]{1,0:T(1,128)}', space=vmem, size = 0x12000, scoped, tag = 'internal scratch']
  %s0 = inlined_call_operand.vmem [shape: bf16[2,18,24,128], index: 0, kind: input, shape index: {}]
  %s1 = inlined_call_operand.vmem [shape: bf16[9,128,128], index: 1, kind: input, shape index: {}]
  %s2 = inlined_call_operand.vmem [shape: bf16[2,256,128], index: 2, kind: output, shape index: {0}]
  %s3 = inlined_call_operand.vmem [shape: f32[2,2,128], index: 3, kind: output, shape index: {1}]
  %4 = xla_tuple %s2, %s3
  %s5 = sld [smem:[#allocation0]]
  $region49: #{residual_block.3} parent=0
    _
  %s7 = ssub.s32 1, %s5
  %s8 = scalar_select 0, %s7, %s5
  loop: start=0, step=1, limit=4
  $region2: #{residual_block.3} parent=0 // loop_pre_header
    _
  $region3: #{residual_block.3} parent=0 // loop_header
    %s10 = sphi 0, %s14
    %p11 = scmp.ge.s32.totalorder %s10, 4
    %s20 = sphi 0, %s22
    %s23 = sphi 0, %s20
    %s24 = sphi 0, %s23
    %s40 = sphi 0, %s24
    %s44 = sphi 0, %s44
    %s46 = sphi 0, %s44
    %s47 = sphi 0, %s46
    %s61 = sphi 0, %s47
    %s67 = sphi 0, %s69
    %s70 = sphi 0, %s67
    %s71 = sphi 0, %s70
    %s87 = sphi 0, %s71
    %s93 = sphi 0, %s95
    %s96 = sphi 0, %s93
    %s97 = sphi 0, %s96
    %s113 = sphi 0, %s97
  $region4: #{residual_block.3} parent=0 // loop_header_branch
    %13 = sbr.rel (%p11) target = $region8
  $region5: #{residual_block.3} parent=0 // loop_body
    %s15 = ssub.s32 %s10, 1
    %s16 = ssub.s32 %s10, 2
    %s17 = sadd.s32 %s10, 1
    %s18 = ssub.s32 %s10, %s17
    %p19 = scmp.eq.s32.totalorder %s18, 0
    %s21 = sadd.s32 %s20, 1
    %s22 = scalar_select %p19, %s20, %s21
    %p25 = pneg %p19
    %p26 = scmp.eq.s32.totalorder %s10, 1
    %p27 = por %p25, %p26
    %p28 = scmp.ne.s32.totalorder %s20, %s23
    %p29 = scmp.eq.s32.totalorder %s10, 0
    %p30 = por %p28, %p29
    %p31 = scmp.ne.s32.totalorder %s20, %s23
    %p32 = scmp.eq.s32.totalorder %s15, 1
    %p33 = por %p31, %p32
    %p34 = scmp.ne.s32.totalorder %s23, %s24
    %p35 = scmp.eq.s32.totalorder %s15, 0
    %p36 = por %p34, %p35
    %p37 = scmp.ne.s32.totalorder %s23, %s24
    %p38 = scmp.eq.s32.totalorder %s16, 1
    %p39 = por %p37, %p38
    %p41 = scmp.ne.s32.totalorder %s24, %s40
    %p42 = scmp.eq.s32.totalorder %s16, 0
    %p43 = por %p41, %p42
    %s45 = sadd.s32 %s44, 1
    %p48 = scmp.eq.s32.totalorder %s10, 1
    %p49 = scmp.ne.s32.totalorder %s44, %s46
    %p50 = scmp.eq.s32.totalorder %s10, 0
    %p51 = por %p49, %p50
    %p52 = scmp.ne.s32.totalorder %s44, %s46
    %p53 = scmp.eq.s32.totalorder %s15, 1
    %p54 = por %p52, %p53
    %p55 = scmp.ne.s32.totalorder %s46, %s47
    %p56 = scmp.eq.s32.totalorder %s15, 0
    %p57 = por %p55, %p56
    %p58 = scmp.ne.s32.totalorder %s46, %s47
    %p59 = scmp.eq.s32.totalorder %s16, 1
    %p60 = por %p58, %p59
    %p62 = scmp.ne.s32.totalorder %s47, %s61
    %p63 = scmp.eq.s32.totalorder %s16, 0
    %p64 = por %p62, %p63
    %s65 = ssub.s32 %s10, %s17
    %p66 = scmp.eq.s32.totalorder %s65, 0
    %s68 = sadd.s32 %s67, 1
    %s69 = scalar_select %p66, %s67, %s68
    %p72 = pneg %p66
    %p73 = scmp.eq.s32.totalorder %s10, 1
    %p74 = por %p72, %p73
    %p75 = scmp.ne.s32.totalorder %s67, %s70
    %p76 = scmp.eq.s32.totalorder %s10, 0
    %p77 = por %p75, %p76
    %p78 = scmp.ne.s32.totalorder %s67, %s70
    %p79 = scmp.eq.s32.totalorder %s15, 1
    %p80 = por %p78, %p79
    %p81 = scmp.ne.s32.totalorder %s70, %s71
    %p82 = scmp.eq.s32.totalorder %s15, 0
    %p83 = por %p81, %p82
    %p84 = scmp.ne.s32.totalorder %s70, %s71
    %p85 = scmp.eq.s32.totalorder %s16, 1
    %p86 = por %p84, %p85
    %p88 = scmp.ne.s32.totalorder %s71, %s87
    %p89 = scmp.eq.s32.totalorder %s16, 0
    %p90 = por %p88, %p89
    %s91 = ssub.s32 %s10, %s17
    %p92 = scmp.eq.s32.totalorder %s91, 0
    %s94 = sadd.s32 %s93, 1
    %s95 = scalar_select %p92, %s93, %s94
    %p98 = pneg %p92
    %p99 = scmp.eq.s32.totalorder %s10, 1
    %p100 = por %p98, %p99
    %p101 = scmp.ne.s32.totalorder %s93, %s96
    %p102 = scmp.eq.s32.totalorder %s10, 0
    %p103 = por %p101, %p102
    %p104 = scmp.ne.s32.totalorder %s93, %s96
    %p105 = scmp.eq.s32.totalorder %s15, 1
    %p106 = por %p104, %p105
    %p107 = scmp.ne.s32.totalorder %s96, %s97
    %p108 = scmp.eq.s32.totalorder %s15, 0
    %p109 = por %p107, %p108
    %p110 = scmp.ne.s32.totalorder %s96, %s97
    %p111 = scmp.eq.s32.totalorder %s16, 1
    %p112 = por %p110, %p111
    %p114 = scmp.ne.s32.totalorder %s97, %s113
    %p115 = scmp.eq.s32.totalorder %s16, 0
    %p116 = por %p114, %p115
    %p117 = scmp.le.s32.totalorder 1, %s10
    %p118 = scmp.lt.s32.totalorder %s10, 3
    %p119 = pnand %p117, %p118
    %p120 = pneg %p119
    // Predicated region
    $region9: #{residual_block.3} parent=5 // pred_check
      _
    $region10: #{residual_block.3} parent=5 // pred_check_branch
      %122 = sbr.rel (%p119) target = $region12
    $region11: #{residual_block.3} parent=5 // pred_region
      %s123 = ssub.s32 %s10, 1
      // Predicated region
      $region13: #{residual_block.3} parent=11 // pred_check
        %p124 = pneg %p57
      $region14: #{residual_block.3} parent=11 // pred_check_branch
        %126 = sbr.rel (%p124) target = $region16
      $region15: #{residual_block.3} parent=11 // pred_region
        _
      $region16: #{residual_block.3} parent=11 // pred_fallthru
        _
    $region12: #{residual_block.3} parent=5 // pred_fallthru
      _
    %p127 = scmp.lt.s32.totalorder %s10, 2
    // Predicated region
    $region17: #{residual_block.3} parent=5 // pred_check
      %p128 = pneg %p127
    $region18: #{residual_block.3} parent=5 // pred_check_branch
      %130 = sbr.rel (%p128) target = $region20
    $region19: #{residual_block.3} parent=5 // pred_region
      // Predicated region
      $region21: #{residual_block.3} parent=19 // pred_check
        %p131 = pneg %p30
      $region22: #{residual_block.3} parent=19 // pred_check_branch
        %133 = sbr.rel (%p131) target = $region24
      $region23: #{residual_block.3} parent=19 // pred_region
        %p134 = scmp.lt.s32.totalorder %s10, 1
        %s135 = scalar_select %p134, %s10, 1
        %s136 = smul.addr %s135, 54
        %s137 = smul.addr %s136, 4
        %s138 = scalar_lea.vmem %s0, %s137
      $region24: #{residual_block.3} parent=19 // pred_fallthru
        _
    $region20: #{residual_block.3} parent=5 // pred_fallthru
      _
    %p139 = scmp.le.s32.totalorder 1, %s10
    %p140 = scmp.lt.s32.totalorder %s10, 3
    %p141 = pnand %p139, %p140
    %p142 = pneg %p141
    // Predicated region
    $region25: #{residual_block.3} parent=5 // pred_check
      _
    $region26: #{residual_block.3} parent=5 // pred_check_branch
      %144 = sbr.rel (%p141) target = $region28
    $region27: #{residual_block.3} parent=5 // pred_region
      %s145 = ssub.s32 %s10, 1
      %p146 = scmp.lt.s32.totalorder %s15, 1
      %s147 = scalar_select %p146, %s15, 1
      %s148 = smul.addr %s147, 54
      %s149 = smul.addr %s148, 4
      %s150 = scalar_lea.vmem %s0, %s149
      %p151 = pneg %p36
      %p152 = pneg %p33
      %p153 = pneg %p57
      %p154 = pneg %p54
      %p155 = pneg %p83
      %p156 = pneg %p80
      %p157 = scmp.lt.s32.totalorder %s15, 1
      %s158 = scalar_select %p157, %s15, 1
      %s159 = smul.addr %s158, 32
      %s160 = smul.addr %s159, 4
      %s161 = scalar_lea.vmem %s2, %s160
      %p162 = pneg %p109
      %p163 = pneg %p106
      %p164 = scmp.lt.s32.totalorder %s15, 1
      %s165 = scalar_select %p164, %s15, 1
      %s166 = smul.addr %s165, 2
      %s167 = scalar_lea.vmem %s3, %s166
      %p168 = scmp.lt.s32.totalorder %s15, 1
      %s169 = scalar_select %p168, %s15, 1
      %s170 = smul.addr %s169, 54
      %s171 = smul.addr %s170, 4
      %s172 = scalar_lea.vmem %s0, %s171
      %p173 = scmp.lt.s32.totalorder %s15, 1
      %s174 = scalar_select %p173, %s15, 1
      %s175 = smul.addr %s174, 32
      %s176 = smul.addr %s175, 4
      %s177 = scalar_lea.vmem %s2, %s176
      %p178 = scmp.lt.s32.totalorder %s15, 1
      %s179 = scalar_select %p178, %s15, 1
      %s180 = smul.addr %s179, 2
      %s181 = scalar_lea.vmem %s3, %s180
      %v183 = vld [vmem:[%s172] sm:$0xf]
      %v184 = vld [vmem:[%s172 + $0x4] sm:$0xf]
      %v185 = vld [vmem:[%s172 + $0x8] sm:$0xf]
      %v186 = vld [vmem:[%s172 + $0xc] sm:$0xf]
      %v187 = vld [vmem:[%s172 + $0x10] sm:$0xf]
      %v188 = vld [vmem:[%s172 + $0x14] sm:$0xf]
      %v189 = vld [vmem:[%s172 + $0x18] sm:$0xf]
      %v190 = vld [vmem:[%s172 + $0x1c] sm:$0xf]
      %v191 = vld [vmem:[%s172 + $0x20] sm:$0xf]
      %v192 = vld [vmem:[%s172 + $0x24] sm:$0xf]
      %v193 = vld [vmem:[%s172 + $0x28] sm:$0xf]
      %v194 = vld [vmem:[%s172 + $0x2c] sm:$0xf]
      %v195 = vld [vmem:[%s172 + $0x30] sm:$0xf]
      %v196 = vld [vmem:[%s172 + $0x34] sm:$0xf]
      %v197 = vld [vmem:[%s172 + $0x38] sm:$0xf]
      %v198 = vld [vmem:[%s172 + $0x3c] sm:$0xf]
      %v199 = vld [vmem:[%s172 + $0x40] sm:$0xf]
      %v200 = vld [vmem:[%s172 + $0x44] sm:$0xf]
      %v201 = vld [vmem:[%s172 + $0x48] sm:$0xf]
      %v202 = vld [vmem:[%s172 + $0x4c] sm:$0xf]
      %v203 = vld [vmem:[%s172 + $0x50] sm:$0xf]
      %v204 = vld [vmem:[%s172 + $0x54] sm:$0xf]
      %v205 = vld [vmem:[%s172 + $0x58] sm:$0xf]
      %v206 = vld [vmem:[%s172 + $0x5c] sm:$0xf]
      %v207 = vld [vmem:[%s172 + $0x60] sm:$0xf]
      %v208 = vld [vmem:[%s172 + $0x64] sm:$0xf]
      %v209 = vld [vmem:[%s172 + $0x68] sm:$0xf]
      %v210 = vld [vmem:[%s172 + $0x6c] sm:$0xf]
      %v211 = vld [vmem:[%s172 + $0x70] sm:$0xf]
      %v212 = vld [vmem:[%s172 + $0x74] sm:$0xf]
      %v213 = vld [vmem:[%s172 + $0x78] sm:$0xf]
      %v214 = vld [vmem:[%s172 + $0x7c] sm:$0xf]
      %v215 = vld [vmem:[%s172 + $0x80] sm:$0xf]
      %v216 = vld [vmem:[%s172 + $0x84] sm:$0xf]
      %v217 = vld [vmem:[%s172 + $0x88] sm:$0xf]
      %v218 = vld [vmem:[%s172 + $0x8c] sm:$0xf]
      %v219 = vld [vmem:[%s172 + $0x90] sm:$0xf]
      %v220 = vld [vmem:[%s172 + $0x94] sm:$0xf]
      %v221 = vld [vmem:[%s172 + $0x98] sm:$0xf]
      %v222 = vld [vmem:[%s172 + $0x9c] sm:$0xf]
      %v223 = vld [vmem:[%s172 + $0xa0] sm:$0xf]
      %v224 = vld [vmem:[%s172 + $0xa4] sm:$0xf]
      %v225 = vld [vmem:[%s172 + $0xa8] sm:$0xf]
      %v226 = vld [vmem:[%s172 + $0xac] sm:$0xf]
      %v227 = vld [vmem:[%s172 + $0xb0] sm:$0xf]
      %v228 = vld [vmem:[%s172 + $0xb4] sm:$0xf]
      %v229 = vld [vmem:[%s172 + $0xb8] sm:$0xf]
      %v230 = vld [vmem:[%s172 + $0xbc] sm:$0xf]
      %v231 = vld [vmem:[%s172 + $0xc0] sm:$0xf]
      %v232 = vld [vmem:[%s172 + $0xc4] sm:$0xf]
      %v233 = vld [vmem:[%s172 + $0xc8] sm:$0xf]
      %v234 = vld [vmem:[%s172 + $0xcc] sm:$0xf]
      %v235 = vld [vmem:[%s172 + $0xd0] sm:$0xf]
      %v236 = vld [vmem:[%s172 + $0xd4] sm:$0xf]
      %v237 = vld [vmem:[%s1] sm:$0xf]
      %v238 = vld [vmem:[%s1 + $0x4] sm:$0xf]
      %v239 = vld [vmem:[%s1 + $0x8] sm:$0xf]
      %v240 = vld [vmem:[%s1 + $0xc] sm:$0xf]
      %v241 = vld [vmem:[%s1 + $0x10] sm:$0xf]
      %v242 = vld [vmem:[%s1 + $0x14] sm:$0xf]
      %v243 = vld [vmem:[%s1 + $0x18] sm:$0xf]
      %v244 = vld [vmem:[%s1 + $0x1c] sm:$0xf]
      %v245 = vld [vmem:[%s1 + $0x20] sm:$0xf]
      %v246 = vld [vmem:[%s1 + $0x24] sm:$0xf]
      %v247 = vld [vmem:[%s1 + $0x28] sm:$0xf]
      %v248 = vld [vmem:[%s1 + $0x2c] sm:$0xf]
      %v249 = vld [vmem:[%s1 + $0x30] sm:$0xf]
      %v250 = vld [vmem:[%s1 + $0x34] sm:$0xf]
      %v251 = vld [vmem:[%s1 + $0x38] sm:$0xf]
      %v252 = vld [vmem:[%s1 + $0x3c] sm:$0xf]
      %vm253 = vsmask.f32 3328
      %vm254 = vsmask.f32 7440
      %vm255 = vmor %vm253, %vm254
      %v257 = vshrl.u32 %v183, 16
      %v259 = vrot.slane %v257, 4
      %v260 = vshll.u32 %v183, 16
      %v262 = vrot.slane %v260, 5
      %v263 = vor.u32 %v259, %v262
      %v264 = vrot.slane %v263, 4
      %v266 = vshll.u32 %v184, 16
      %v268 = vrot.slane %v266, 5
      %v269 = vsel %vm255, %v264, %v268
      %v270 = vshrl.u32 %v184, 16
      %v272 = vrot.slane %v270, 4
      %v273 = vor.u32 %v272, %v268
      %v274 = vrot.slane %v273, 4
      %v276 = vshll.u32 %v185, 16
      %v278 = vrot.slane %v276, 5
      %v279 = vsel %vm255, %v274, %v278
      %v281 = vshrl.u32 %v186, 16
      %v283 = vrot.slane %v281, 4
      %v284 = vshll.u32 %v186, 16
      %v286 = vrot.slane %v284, 5
      %v287 = vor.u32 %v283, %v286
      %v288 = vrot.slane %v287, 4
      %v290 = vshll.u32 %v187, 16
      %v292 = vrot.slane %v290, 5
      %v293 = vsel %vm255, %v288, %v292
      %v294 = vshrl.u32 %v187, 16
      %v296 = vrot.slane %v294, 4
      %v297 = vor.u32 %v296, %v292
      %v298 = vrot.slane %v297, 4
      %v300 = vshll.u32 %v188, 16
      %v302 = vrot.slane %v300, 5
      %v303 = vsel %vm255, %v298, %v302
      %v305 = vshrl.u32 %v189, 16
      %v307 = vrot.slane %v305, 4
      %v308 = vshll.u32 %v189, 16
      %v310 = vrot.slane %v308, 5
      %v311 = vor.u32 %v307, %v310
      %v312 = vrot.slane %v311, 4
      %v314 = vshll.u32 %v190, 16
      %v316 = vrot.slane %v314, 5
      %v317 = vsel %vm255, %v312, %v316
      %v318 = vshrl.u32 %v190, 16
      %v320 = vrot.slane %v318, 4
      %v321 = vor.u32 %v320, %v316
      %v322 = vrot.slane %v321, 4
      %v324 = vshll.u32 %v191, 16
      %v326 = vrot.slane %v324, 5
      %v327 = vsel %vm255, %v322, %v326
      %v329 = vshrl.u32 %v192, 16
      %v331 = vrot.slane %v329, 4
      %v332 = vshll.u32 %v192, 16
      %v334 = vrot.slane %v332, 5
      %v335 = vor.u32 %v331, %v334
      %v336 = vrot.slane %v335, 4
      %v338 = vshll.u32 %v193, 16
      %v340 = vrot.slane %v338, 5
      %v341 = vsel %vm255, %v336, %v340
      %v342 = vshrl.u32 %v193, 16
      %v344 = vrot.slane %v342, 4
      %v345 = vor.u32 %v344, %v340
      %v346 = vrot.slane %v345, 4
      %v348 = vshll.u32 %v194, 16
      %v350 = vrot.slane %v348, 5
      %v351 = vsel %vm255, %v346, %v350
      %v353 = vshrl.u32 %v195, 16
      %v355 = vrot.slane %v353, 4
      %v356 = vshll.u32 %v195, 16
      %v358 = vrot.slane %v356, 5
      %v359 = vor.u32 %v355, %v358
      %v360 = vrot.slane %v359, 4
      %v362 = vshll.u32 %v196, 16
      %v364 = vrot.slane %v362, 5
      %v365 = vsel %vm255, %v360, %v364
      %v366 = vshrl.u32 %v196, 16
      %v368 = vrot.slane %v366, 4
      %v369 = vor.u32 %v368, %v364
      %v370 = vrot.slane %v369, 4
      %v372 = vshll.u32 %v197, 16
      %v374 = vrot.slane %v372, 5
      %v375 = vsel %vm255, %v370, %v374
      %v377 = vshrl.u32 %v198, 16
      %v379 = vrot.slane %v377, 4
      %v380 = vshll.u32 %v198, 16
      %v382 = vrot.slane %v380, 5
      %v383 = vor.u32 %v379, %v382
      %v384 = vrot.slane %v383, 4
      %v386 = vshll.u32 %v199, 16
      %v388 = vrot.slane %v386, 5
      %v389 = vsel %vm255, %v384, %v388
      %v390 = vshrl.u32 %v199, 16
      %v392 = vrot.slane %v390, 4
      %v393 = vor.u32 %v392, %v388
      %v394 = vrot.slane %v393, 4
      %v396 = vshll.u32 %v200, 16
      %v398 = vrot.slane %v396, 5
      %v399 = vsel %vm255, %v394, %v398
      %v401 = vshrl.u32 %v201, 16
      %v403 = vrot.slane %v401, 4
      %v404 = vshll.u32 %v201, 16
      %v406 = vrot.slane %v404, 5
      %v407 = vor.u32 %v403, %v406
      %v408 = vrot.slane %v407, 4
      %v410 = vshll.u32 %v202, 16
      %v412 = vrot.slane %v410, 5
      %v413 = vsel %vm255, %v408, %v412
      %v414 = vshrl.u32 %v202, 16
      %v416 = vrot.slane %v414, 4
      %v417 = vor.u32 %v416, %v412
      %v418 = vrot.slane %v417, 4
      %v420 = vshll.u32 %v203, 16
      %v422 = vrot.slane %v420, 5
      %v423 = vsel %vm255, %v418, %v422
      %v425 = vshrl.u32 %v204, 16
      %v427 = vrot.slane %v425, 4
      %v428 = vshll.u32 %v204, 16
      %v430 = vrot.slane %v428, 5
      %v431 = vor.u32 %v427, %v430
      %v432 = vrot.slane %v431, 4
      %v434 = vshll.u32 %v205, 16
      %v436 = vrot.slane %v434, 5
      %v437 = vsel %vm255, %v432, %v436
      %v438 = vshrl.u32 %v205, 16
      %v440 = vrot.slane %v438, 4
      %v441 = vor.u32 %v440, %v436
      %v442 = vrot.slane %v441, 4
      %v444 = vshll.u32 %v206, 16
      %v446 = vrot.slane %v444, 5
      %v447 = vsel %vm255, %v442, %v446
      %v449 = vshrl.u32 %v207, 16
      %v451 = vrot.slane %v449, 4
      %v452 = vshll.u32 %v207, 16
      %v454 = vrot.slane %v452, 5
      %v455 = vor.u32 %v451, %v454
      %v456 = vrot.slane %v455, 4
      %v458 = vshll.u32 %v208, 16
      %v460 = vrot.slane %v458, 5
      %v461 = vsel %vm255, %v456, %v460
      %v462 = vshrl.u32 %v208, 16
      %v464 = vrot.slane %v462, 4
      %v465 = vor.u32 %v464, %v460
      %v466 = vrot.slane %v465, 4
      %v468 = vshll.u32 %v209, 16
      %v470 = vrot.slane %v468, 5
      %v471 = vsel %vm255, %v466, %v470
      %v473 = vshrl.u32 %v210, 16
      %v475 = vrot.slane %v473, 4
      %v476 = vshll.u32 %v210, 16
      %v478 = vrot.slane %v476, 5
      %v479 = vor.u32 %v475, %v478
      %v480 = vrot.slane %v479, 4
      %v482 = vshll.u32 %v211, 16
      %v484 = vrot.slane %v482, 5
      %v485 = vsel %vm255, %v480, %v484
      %v486 = vshrl.u32 %v211, 16
      %v488 = vrot.slane %v486, 4
      %v489 = vor.u32 %v488, %v484
      %v490 = vrot.slane %v489, 4
      %v492 = vshll.u32 %v212, 16
      %v494 = vrot.slane %v492, 5
      %v495 = vsel %vm255, %v490, %v494
      %v497 = vshrl.u32 %v213, 16
      %v499 = vrot.slane %v497, 4
      %v500 = vshll.u32 %v213, 16
      %v502 = vrot.slane %v500, 5
      %v503 = vor.u32 %v499, %v502
      %v504 = vrot.slane %v503, 4
      %v506 = vshll.u32 %v214, 16
      %v508 = vrot.slane %v506, 5
      %v509 = vsel %vm255, %v504, %v508
      %v510 = vshrl.u32 %v214, 16
      %v512 = vrot.slane %v510, 4
      %v513 = vor.u32 %v512, %v508
      %v514 = vrot.slane %v513, 4
      %v516 = vshll.u32 %v215, 16
      %v518 = vrot.slane %v516, 5
      %v519 = vsel %vm255, %v514, %v518
      %v521 = vshrl.u32 %v216, 16
      %v523 = vrot.slane %v521, 4
      %v524 = vshll.u32 %v216, 16
      %v526 = vrot.slane %v524, 5
      %v527 = vor.u32 %v523, %v526
      %v528 = vrot.slane %v527, 4
      %v530 = vshll.u32 %v217, 16
      %v532 = vrot.slane %v530, 5
      %v533 = vsel %vm255, %v528, %v532
      %v534 = vshrl.u32 %v217, 16
      %v536 = vrot.slane %v534, 4
      %v537 = vor.u32 %v536, %v532
      %v538 = vrot.slane %v537, 4
      %v540 = vshll.u32 %v218, 16
      %v542 = vrot.slane %v540, 5
      %v543 = vsel %vm255, %v538, %v542
      %v545 = vshrl.u32 %v219, 16
      %v547 = vrot.slane %v545, 4
      %v548 = vshll.u32 %v219, 16
      %v550 = vrot.slane %v548, 5
      %v551 = vor.u32 %v547, %v550
      %v552 = vrot.slane %v551, 4
      %v554 = vshll.u32 %v220, 16
      %v556 = vrot.slane %v554, 5
      %v557 = vsel %vm255, %v552, %v556
      %v558 = vshrl.u32 %v220, 16
      %v560 = vrot.slane %v558, 4
      %v561 = vor.u32 %v560, %v556
      %v562 = vrot.slane %v561, 4
      %v564 = vshll.u32 %v221, 16
      %v566 = vrot.slane %v564, 5
      %v567 = vsel %vm255, %v562, %v566
      %v569 = vshrl.u32 %v222, 16
      %v571 = vrot.slane %v569, 4
      %v572 = vshll.u32 %v222, 16
      %v574 = vrot.slane %v572, 5
      %v575 = vor.u32 %v571, %v574
      %v576 = vrot.slane %v575, 4
      %v578 = vshll.u32 %v223, 16
      %v580 = vrot.slane %v578, 5
      %v581 = vsel %vm255, %v576, %v580
      %v582 = vshrl.u32 %v223, 16
      %v584 = vrot.slane %v582, 4
      %v585 = vor.u32 %v584, %v580
      %v586 = vrot.slane %v585, 4
      %v588 = vshll.u32 %v224, 16
      %v590 = vrot.slane %v588, 5
      %v591 = vsel %vm255, %v586, %v590
      %v593 = vshrl.u32 %v225, 16
      %v595 = vrot.slane %v593, 4
      %v596 = vshll.u32 %v225, 16
      %v598 = vrot.slane %v596, 5
      %v599 = vor.u32 %v595, %v598
      %v600 = vrot.slane %v599, 4
      %v602 = vshll.u32 %v226, 16
      %v604 = vrot.slane %v602, 5
      %v605 = vsel %vm255, %v600, %v604
      %v606 = vshrl.u32 %v226, 16
      %v608 = vrot.slane %v606, 4
      %v609 = vor.u32 %v608, %v604
      %v610 = vrot.slane %v609, 4
      %v612 = vshll.u32 %v227, 16
      %v614 = vrot.slane %v612, 5
      %v615 = vsel %vm255, %v610, %v614
      %v617 = vshrl.u32 %v228, 16
      %v619 = vrot.slane %v617, 4
      %v620 = vshll.u32 %v228, 16
      %v622 = vrot.slane %v620, 5
      %v623 = vor.u32 %v619, %v622
      %v624 = vrot.slane %v623, 4
      %v626 = vshll.u32 %v229, 16
      %v628 = vrot.slane %v626, 5
      %v629 = vsel %vm255, %v624, %v628
      %v630 = vshrl.u32 %v229, 16
      %v632 = vrot.slane %v630, 4
      %v633 = vor.u32 %v632, %v628
      %v634 = vrot.slane %v633, 4
      %v636 = vshll.u32 %v230, 16
      %v638 = vrot.slane %v636, 5
      %v639 = vsel %vm255, %v634, %v638
      %s640 = scalar_lea.vmem %s1, 64
      %v641 = vld [vmem:[%s640] sm:$0xf]
      %v642 = vld [vmem:[%s640 + $0x4] sm:$0xf]
      %v643 = vld [vmem:[%s640 + $0x8] sm:$0xf]
      %v644 = vld [vmem:[%s640 + $0xc] sm:$0xf]
      %v645 = vld [vmem:[%s640 + $0x10] sm:$0xf]
      %v646 = vld [vmem:[%s640 + $0x14] sm:$0xf]
      %v647 = vld [vmem:[%s640 + $0x18] sm:$0xf]
      %v648 = vld [vmem:[%s640 + $0x1c] sm:$0xf]
      %v649 = vld [vmem:[%s640 + $0x20] sm:$0xf]
      %v650 = vld [vmem:[%s640 + $0x24] sm:$0xf]
      %v651 = vld [vmem:[%s640 + $0x28] sm:$0xf]
      %v652 = vld [vmem:[%s640 + $0x2c] sm:$0xf]
      %v653 = vld [vmem:[%s640 + $0x30] sm:$0xf]
      %v654 = vld [vmem:[%s640 + $0x34] sm:$0xf]
      %v655 = vld [vmem:[%s640 + $0x38] sm:$0xf]
      %v656 = vld [vmem:[%s640 + $0x3c] sm:$0xf]
      %v657 = vunpack.c.l.b16 %v269
      %v658 = vunpack.c.l.b16 %v279
      %v659 = vunpack.c.l.b16 %v293
      %v660 = vunpack.c.l.b16 %v303
      %v661 = vunpack.c.l.b16 %v317
      %v662 = vunpack.c.l.b16 %v327
      %v663 = vunpack.c.l.b16 %v341
      %v664 = vunpack.c.l.b16 %v351
      %v665 = vunpack.c.l.b16 %v365
      %v666 = vunpack.c.l.b16 %v375
      %v667 = vunpack.c.l.b16 %v389
      %v668 = vunpack.c.l.b16 %v399
      %v669 = vunpack.c.l.b16 %v413
      %v670 = vunpack.c.l.b16 %v423
      %v671 = vunpack.c.l.b16 %v437
      %v672 = vunpack.c.l.b16 %v447
      %v673 = vunpack.c.l.b16 %v461
      %v674 = vunpack.c.l.b16 %v471
      %v675 = vunpack.c.l.b16 %v485
      %v676 = vunpack.c.l.b16 %v495
      %v677 = vunpack.c.l.b16 %v509
      %v678 = vunpack.c.l.b16 %v519
      %v679 = vunpack.c.l.b16 %v533
      %v680 = vunpack.c.l.b16 %v543
      %v681 = vunpack.c.l.b16 %v557
      %v682 = vunpack.c.l.b16 %v567
      %v683 = vunpack.c.l.b16 %v581
      %v684 = vunpack.c.l.b16 %v591
      %v685 = vunpack.c.l.b16 %v605
      %v686 = vunpack.c.l.b16 %v615
      %v687 = vunpack.c.l.b16 %v629
      %v688 = vunpack.c.l.b16 %v639
      %v689 = vpack.c.b16 %v658, %v657
      %v690 = vpack.c.b16 %v660, %v659
      %v691 = vpack.c.b16 %v662, %v661
      %v692 = vpack.c.b16 %v664, %v663
      %v693 = vpack.c.b16 %v666, %v665
      %v694 = vpack.c.b16 %v668, %v667
      %v695 = vpack.c.b16 %v670, %v669
      %v696 = vpack.c.b16 %v672, %v671
      %v697 = vpack.c.b16 %v674, %v673
      %v698 = vpack.c.b16 %v676, %v675
      %v699 = vpack.c.b16 %v678, %v677
      %v700 = vpack.c.b16 %v680, %v679
      %v701 = vpack.c.b16 %v682, %v681
      %v702 = vpack.c.b16 %v684, %v683
      %v703 = vpack.c.b16 %v686, %v685
      %v704 = vpack.c.b16 %v688, %v687
      %v737 = vunpack.c.l.b16 %v641
      %v738 = vunpack.c.l.b16 %v642
      %v739 = vunpack.c.l.b16 %v643
      %v740 = vunpack.c.l.b16 %v644
      %v741 = vunpack.c.l.b16 %v645
      %v742 = vunpack.c.l.b16 %v646
      %v743 = vunpack.c.l.b16 %v647
      %v744 = vunpack.c.l.b16 %v648
      %v745 = vunpack.c.l.b16 %v649
      %v746 = vunpack.c.l.b16 %v650
      %v747 = vunpack.c.l.b16 %v651
      %v748 = vunpack.c.l.b16 %v652
      %v749 = vunpack.c.l.b16 %v653
      %v750 = vunpack.c.l.b16 %v654
      %v751 = vunpack.c.l.b16 %v655
      %v752 = vunpack.c.l.b16 %v656
      %v753 = vpack.c.b16 %v738, %v737
      %v754 = vpack.c.b16 %v740, %v739
      %v755 = vpack.c.b16 %v742, %v741
      %v756 = vpack.c.b16 %v744, %v743
      %v757 = vpack.c.b16 %v746, %v745
      %v758 = vpack.c.b16 %v748, %v747
      %v759 = vpack.c.b16 %v750, %v749
      %v760 = vpack.c.b16 %v752, %v751
      %769 = vmatprep.subr.bf16.mxu0 0
      %770 = vmatpush1.bf16.msra.mxu0 %v760
      %771 = vmatprep.subr.bf16.mxu0 0
      %772 = vmatpush1.bf16.msra.mxu0 %v759
      %773 = vmatprep.subr.bf16.mxu0 0
      %774 = vmatpush1.bf16.msra.mxu0 %v758
      %775 = vmatprep.subr.bf16.mxu0 0
      %776 = vmatpush1.bf16.msra.mxu0 %v757
      %777 = vmatprep.subr.bf16.mxu0 0
      %778 = vmatpush1.bf16.msra.mxu0 %v756
      %779 = vmatprep.subr.bf16.mxu0 0
      %780 = vmatpush1.bf16.msra.mxu0 %v755
      %781 = vmatprep.subr.bf16.mxu0 0
      %782 = vmatpush1.bf16.msra.mxu0 %v754
      %783 = vmatprep.subr.bf16.mxu0 0
      %784 = vmatpush1.bf16.msra.mxu0 %v753
      %785 = vmatprep.subr.bf16.mxu0 0
      %786 = vmatpush2.bf16.msra.mxu0 0
      %787 = vmatprep.subr.bf16.mxu0 0
      %788 = vmatpush2.bf16.msra.mxu0 0
      %789 = vmatprep.subr.bf16.mxu0 0
      %790 = vmatpush2.bf16.msra.mxu0 0
      %791 = vmatprep.subr.bf16.mxu0 0
      %792 = vmatpush2.bf16.msra.mxu0 0
      %793 = vmatprep.subr.bf16.mxu0 0
      %794 = vmatpush2.bf16.msra.mxu0 0
      %795 = vmatprep.subr.bf16.mxu0 0
      %796 = vmatpush2.bf16.msra.mxu0 0
      %797 = vmatprep.subr.bf16.mxu0 0
      %798 = vmatpush2.bf16.msra.mxu0 0
      %799 = vmatprep.subr.bf16.mxu0 0
      %800 = vmatpush2.bf16.msra.mxu0 0
      %801 = vmatprep.mubr.bf16.mxu0 0
      %802 = vmatmul.mubr.bf16.gmra.mxu0 %v689
      %v803 = vpop.f32.mrf.mxu0
      %v804 = vadd.f32 0.0, %v803
      %v805 = vpop.f32.mrf.mxu0
      %v806 = vpop.f32.mrf.mxu0
      %v807 = vadd.f32 0.0, %v806
      %v808 = vpop.f32.mrf.mxu0
      %809 = vmatprep.mubr.bf16.mxu0 0
      %810 = vmatmul.mubr.bf16.gmra.mxu0 %v690
      %v811 = vpop.f32.mrf.mxu0
      %v812 = vadd.f32 0.0, %v811
      %v813 = vpop.f32.mrf.mxu0
      %v814 = vpop.f32.mrf.mxu0
      %v815 = vadd.f32 0.0, %v814
      %v816 = vpop.f32.mrf.mxu0
      %817 = vmatprep.mubr.bf16.mxu0 0
      %818 = vmatmul.mubr.bf16.gmra.mxu0 %v691
      %v819 = vpop.f32.mrf.mxu0
      %v820 = vadd.f32 0.0, %v819
      %v821 = vpop.f32.mrf.mxu0
      %v822 = vpop.f32.mrf.mxu0
      %v823 = vadd.f32 0.0, %v822
      %v824 = vpop.f32.mrf.mxu0
      %825 = vmatprep.mubr.bf16.mxu0 0
      %826 = vmatmul.mubr.bf16.gmra.mxu0 %v692
      %v827 = vpop.f32.mrf.mxu0
      %v828 = vadd.f32 0.0, %v827
      %v829 = vpop.f32.mrf.mxu0
      %v830 = vpop.f32.mrf.mxu0
      %v831 = vadd.f32 0.0, %v830
      %v832 = vpop.f32.mrf.mxu0
      %833 = vmatprep.mubr.bf16.mxu0 0
      %834 = vmatmul.mubr.bf16.gmra.mxu0 %v693
      %v835 = vpop.f32.mrf.mxu0
      %v836 = vadd.f32 0.0, %v835
      %v837 = vpop.f32.mrf.mxu0
      %v838 = vpop.f32.mrf.mxu0
      %v839 = vadd.f32 0.0, %v838
      %v840 = vpop.f32.mrf.mxu0
      %841 = vmatprep.mubr.bf16.mxu0 0
      %842 = vmatmul.mubr.bf16.gmra.mxu0 %v694
      %v843 = vpop.f32.mrf.mxu0
      %v844 = vadd.f32 0.0, %v843
      %v845 = vpop.f32.mrf.mxu0
      %v846 = vpop.f32.mrf.mxu0
      %v847 = vadd.f32 0.0, %v846
      %v848 = vpop.f32.mrf.mxu0
      %849 = vmatprep.mubr.bf16.mxu0 0
      %850 = vmatmul.mubr.bf16.gmra.mxu0 %v695
      %v851 = vpop.f32.mrf.mxu0
      %v852 = vadd.f32 0.0, %v851
      %v853 = vpop.f32.mrf.mxu0
      %v854 = vpop.f32.mrf.mxu0
      %v855 = vadd.f32 0.0, %v854
      %v856 = vpop.f32.mrf.mxu0
      %857 = vmatprep.mubr.bf16.mxu0 0
      %858 = vmatmul.mubr.bf16.gmra.mxu0 %v696
      %v859 = vpop.f32.mrf.mxu0
      %v860 = vadd.f32 0.0, %v859
      %v861 = vpop.f32.mrf.mxu0
      %v862 = vpop.f32.mrf.mxu0
      %v863 = vadd.f32 0.0, %v862
      %v864 = vpop.f32.mrf.mxu0
      %865 = vmatprep.mubr.bf16.mxu0 0
      %866 = vmatmul.mubr.bf16.gmra.mxu0 %v697
      %v867 = vpop.f32.mrf.mxu0
      %v868 = vadd.f32 0.0, %v867
      %v869 = vpop.f32.mrf.mxu0
      %v870 = vpop.f32.mrf.mxu0
      %v871 = vadd.f32 0.0, %v870
      %v872 = vpop.f32.mrf.mxu0
      %873 = vmatprep.mubr.bf16.mxu0 0
      %874 = vmatmul.mubr.bf16.gmra.mxu0 %v698
      %v875 = vpop.f32.mrf.mxu0
      %v876 = vadd.f32 0.0, %v875
      %v877 = vpop.f32.mrf.mxu0
      %v878 = vpop.f32.mrf.mxu0
      %v879 = vadd.f32 0.0, %v878
      %v880 = vpop.f32.mrf.mxu0
      %881 = vmatprep.mubr.bf16.mxu0 0
      %882 = vmatmul.mubr.bf16.gmra.mxu0 %v699
      %v883 = vpop.f32.mrf.mxu0
      %v884 = vadd.f32 0.0, %v883
      %v885 = vpop.f32.mrf.mxu0
      %v886 = vpop.f32.mrf.mxu0
      %v887 = vadd.f32 0.0, %v886
      %v888 = vpop.f32.mrf.mxu0
      %889 = vmatprep.mubr.bf16.mxu0 0
      %890 = vmatmul.mubr.bf16.gmra.mxu0 %v700
      %v891 = vpop.f32.mrf.mxu0
      %v892 = vadd.f32 0.0, %v891
      %v893 = vpop.f32.mrf.mxu0
      %v894 = vpop.f32.mrf.mxu0
      %v895 = vadd.f32 0.0, %v894
      %v896 = vpop.f32.mrf.mxu0
      %897 = vmatprep.mubr.bf16.mxu0 0
      %898 = vmatmul.mubr.bf16.gmra.mxu0 %v701
      %v899 = vpop.f32.mrf.mxu0
      %v900 = vadd.f32 0.0, %v899
      %v901 = vpop.f32.mrf.mxu0
      %v902 = vpop.f32.mrf.mxu0
      %v903 = vadd.f32 0.0, %v902
      %v904 = vpop.f32.mrf.mxu0
      %905 = vmatprep.mubr.bf16.mxu0 0
      %906 = vmatmul.mubr.bf16.gmra.mxu0 %v702
      %v907 = vpop.f32.mrf.mxu0
      %v908 = vadd.f32 0.0, %v907
      %v909 = vpop.f32.mrf.mxu0
      %v910 = vpop.f32.mrf.mxu0
      %v911 = vadd.f32 0.0, %v910
      %v912 = vpop.f32.mrf.mxu0
      %913 = vmatprep.mubr.bf16.mxu0 0
      %914 = vmatmul.mubr.bf16.gmra.mxu0 %v703
      %v915 = vpop.f32.mrf.mxu0
      %v916 = vadd.f32 0.0, %v915
      %v917 = vpop.f32.mrf.mxu0
      %v918 = vpop.f32.mrf.mxu0
      %v919 = vadd.f32 0.0, %v918
      %v920 = vpop.f32.mrf.mxu0
      %921 = vmatprep.mubr.bf16.mxu0 0
      %922 = vmatmul.mubr.bf16.gmra.mxu0 %v704
      %v923 = vpop.f32.mrf.mxu0
      %v924 = vadd.f32 0.0, %v923
      %v925 = vpop.f32.mrf.mxu0
      %v926 = vpop.f32.mrf.mxu0
      %v927 = vadd.f32 0.0, %v926
      %v928 = vpop.f32.mrf.mxu0
      %929 = vdwg.mxu0
      %v962 = vunpack.c.l.b16 %v183
      %v963 = vunpack.c.l.b16 %v184
      %v964 = vunpack.c.l.b16 %v186
      %v965 = vunpack.c.l.b16 %v187
      %v966 = vunpack.c.l.b16 %v189
      %v967 = vunpack.c.l.b16 %v190
      %v968 = vunpack.c.l.b16 %v192
      %v969 = vunpack.c.l.b16 %v193
      %v970 = vunpack.c.l.b16 %v195
      %v971 = vunpack.c.l.b16 %v196
      %v972 = vunpack.c.l.b16 %v198
      %v973 = vunpack.c.l.b16 %v199
      %v974 = vunpack.c.l.b16 %v201
      %v975 = vunpack.c.l.b16 %v202
      %v976 = vunpack.c.l.b16 %v204
      %v977 = vunpack.c.l.b16 %v205
      %v978 = vunpack.c.l.b16 %v207
      %v979 = vunpack.c.l.b16 %v208
      %v980 = vunpack.c.l.b16 %v210
      %v981 = vunpack.c.l.b16 %v211
      %v982 = vunpack.c.l.b16 %v213
      %v983 = vunpack.c.l.b16 %v214
      %v984 = vunpack.c.l.b16 %v216
      %v985 = vunpack.c.l.b16 %v217
      %v986 = vunpack.c.l.b16 %v219
      %v987 = vunpack.c.l.b16 %v220
      %v988 = vunpack.c.l.b16 %v222
      %v989 = vunpack.c.l.b16 %v223
      %v990 = vunpack.c.l.b16 %v225
      %v991 = vunpack.c.l.b16 %v226
      %v992 = vunpack.c.l.b16 %v228
      %v993 = vunpack.c.l.b16 %v229
      %v994 = vpack.c.b16 %v963, %v962
      %v995 = vpack.c.b16 %v965, %v964
      %v996 = vpack.c.b16 %v967, %v966
      %v997 = vpack.c.b16 %v969, %v968
      %v998 = vpack.c.b16 %v971, %v970
      %v999 = vpack.c.b16 %v973, %v972
      %v1000 = vpack.c.b16 %v975, %v974
      %v1001 = vpack.c.b16 %v977, %v976
      %v1002 = vpack.c.b16 %v979, %v978
      %v1003 = vpack.c.b16 %v981, %v980
      %v1004 = vpack.c.b16 %v983, %v982
      %v1005 = vpack.c.b16 %v985, %v984
      %v1006 = vpack.c.b16 %v987, %v986
      %v1007 = vpack.c.b16 %v989, %v988
      %v1008 = vpack.c.b16 %v991, %v990
      %v1009 = vpack.c.b16 %v993, %v992
      %v1042 = vunpack.c.l.b16 %v237
      %v1043 = vunpack.c.l.b16 %v238
      %v1044 = vunpack.c.l.b16 %v239
      %v1045 = vunpack.c.l.b16 %v240
      %v1046 = vunpack.c.l.b16 %v241
      %v1047 = vunpack.c.l.b16 %v242
      %v1048 = vunpack.c.l.b16 %v243
      %v1049 = vunpack.c.l.b16 %v244
      %v1050 = vunpack.c.l.b16 %v245
      %v1051 = vunpack.c.l.b16 %v246
      %v1052 = vunpack.c.l.b16 %v247
      %v1053 = vunpack.c.l.b16 %v248
      %v1054 = vunpack.c.l.b16 %v249
      %v1055 = vunpack.c.l.b16 %v250
      %v1056 = vunpack.c.l.b16 %v251
      %v1057 = vunpack.c.l.b16 %v252
      %v1058 = vpack.c.b16 %v1043, %v1042
      %v1059 = vpack.c.b16 %v1045, %v1044
      %v1060 = vpack.c.b16 %v1047, %v1046
      %v1061 = vpack.c.b16 %v1049, %v1048
      %v1062 = vpack.c.b16 %v1051, %v1050
      %v1063 = vpack.c.b16 %v1053, %v1052
      %v1064 = vpack.c.b16 %v1055, %v1054
      %v1065 = vpack.c.b16 %v1057, %v1056
      %1074 = vmatprep.subr.bf16.mxu0 0
      %1075 = vmatpush1.bf16.msra.mxu0 %v1065
      %1076 = vmatprep.subr.bf16.mxu0 0
      %1077 = vmatpush1.bf16.msra.mxu0 %v1064
      %1078 = vmatprep.subr.bf16.mxu0 0
      %1079 = vmatpush1.bf16.msra.mxu0 %v1063
      %1080 = vmatprep.subr.bf16.mxu0 0
      %1081 = vmatpush1.bf16.msra.mxu0 %v1062
      %1082 = vmatprep.subr.bf16.mxu0 0
      %1083 = vmatpush1.bf16.msra.mxu0 %v1061
      %1084 = vmatprep.subr.bf16.mxu0 0
      %1085 = vmatpush1.bf16.msra.mxu0 %v1060
      %1086 = vmatprep.subr.bf16.mxu0 0
      %1087 = vmatpush1.bf16.msra.mxu0 %v1059
      %1088 = vmatprep.subr.bf16.mxu0 0
      %1089 = vmatpush1.bf16.msra.mxu0 %v1058
      %1090 = vmatprep.subr.bf16.mxu0 0
      %1091 = vmatpush2.bf16.msra.mxu0 0
      %1092 = vmatprep.subr.bf16.mxu0 0
      %1093 = vmatpush2.bf16.msra.mxu0 0
      %1094 = vmatprep.subr.bf16.mxu0 0
      %1095 = vmatpush2.bf16.msra.mxu0 0
      %1096 = vmatprep.subr.bf16.mxu0 0
      %1097 = vmatpush2.bf16.msra.mxu0 0
      %1098 = vmatprep.subr.bf16.mxu0 0
      %1099 = vmatpush2.bf16.msra.mxu0 0
      %1100 = vmatprep.subr.bf16.mxu0 0
      %1101 = vmatpush2.bf16.msra.mxu0 0
      %1102 = vmatprep.subr.bf16.mxu0 0
      %1103 = vmatpush2.bf16.msra.mxu0 0
      %1104 = vmatprep.subr.bf16.mxu0 0
      %1105 = vmatpush2.bf16.msra.mxu0 0
      %1106 = vmatprep.mubr.bf16.mxu0 0
      %1107 = vmatmul.mubr.bf16.gmra.mxu0 %v994
      %v1108 = vpop.f32.mrf.mxu0
      %v1109 = vadd.f32 %v804, %v1108
      %v1110 = vpop.f32.mrf.mxu0
      %v1111 = vpop.f32.mrf.mxu0
      %v1112 = vadd.f32 %v807, %v1111
      %v1113 = vpop.f32.mrf.mxu0
      %1114 = vmatprep.mubr.bf16.mxu0 0
      %1115 = vmatmul.mubr.bf16.gmra.mxu0 %v995
      %v1116 = vpop.f32.mrf.mxu0
      %v1117 = vadd.f32 %v812, %v1116
      %v1118 = vpop.f32.mrf.mxu0
      %v1119 = vpop.f32.mrf.mxu0
      %v1120 = vadd.f32 %v815, %v1119
      %v1121 = vpop.f32.mrf.mxu0
      %1122 = vmatprep.mubr.bf16.mxu0 0
      %1123 = vmatmul.mubr.bf16.gmra.mxu0 %v996
      %v1124 = vpop.f32.mrf.mxu0
      %v1125 = vadd.f32 %v820, %v1124
      %v1126 = vpop.f32.mrf.mxu0
      %v1127 = vpop.f32.mrf.mxu0
      %v1128 = vadd.f32 %v823, %v1127
      %v1129 = vpop.f32.mrf.mxu0
      %1130 = vmatprep.mubr.bf16.mxu0 0
      %1131 = vmatmul.mubr.bf16.gmra.mxu0 %v997
      %v1132 = vpop.f32.mrf.mxu0
      %v1133 = vadd.f32 %v828, %v1132
      %v1134 = vpop.f32.mrf.mxu0
      %v1135 = vpop.f32.mrf.mxu0
      %v1136 = vadd.f32 %v831, %v1135
      %v1137 = vpop.f32.mrf.mxu0
      %1138 = vmatprep.mubr.bf16.mxu0 0
      %1139 = vmatmul.mubr.bf16.gmra.mxu0 %v998
      %v1140 = vpop.f32.mrf.mxu0
      %v1141 = vadd.f32 %v836, %v1140
      %v1142 = vpop.f32.mrf.mxu0
      %v1143 = vpop.f32.mrf.mxu0
      %v1144 = vadd.f32 %v839, %v1143
      %v1145 = vpop.f32.mrf.mxu0
      %1146 = vmatprep.mubr.bf16.mxu0 0
      %1147 = vmatmul.mubr.bf16.gmra.mxu0 %v999
      %v1148 = vpop.f32.mrf.mxu0
      %v1149 = vadd.f32 %v844, %v1148
      %v1150 = vpop.f32.mrf.mxu0
      %v1151 = vpop.f32.mrf.mxu0
      %v1152 = vadd.f32 %v847, %v1151
      %v1153 = vpop.f32.mrf.mxu0
      %1154 = vmatprep.mubr.bf16.mxu0 0
      %1155 = vmatmul.mubr.bf16.gmra.mxu0 %v1000
      %v1156 = vpop.f32.mrf.mxu0
      %v1157 = vadd.f32 %v852, %v1156
      %v1158 = vpop.f32.mrf.mxu0
      %v1159 = vpop.f32.mrf.mxu0
      %v1160 = vadd.f32 %v855, %v1159
      %v1161 = vpop.f32.mrf.mxu0
      %1162 = vmatprep.mubr.bf16.mxu0 0
      %1163 = vmatmul.mubr.bf16.gmra.mxu0 %v1001
      %v1164 = vpop.f32.mrf.mxu0
      %v1165 = vadd.f32 %v860, %v1164
      %v1166 = vpop.f32.mrf.mxu0
      %v1167 = vpop.f32.mrf.mxu0
      %v1168 = vadd.f32 %v863, %v1167
      %v1169 = vpop.f32.mrf.mxu0
      %1170 = vmatprep.mubr.bf16.mxu0 0
      %1171 = vmatmul.mubr.bf16.gmra.mxu0 %v1002
      %v1172 = vpop.f32.mrf.mxu0
      %v1173 = vadd.f32 %v868, %v1172
      %v1174 = vpop.f32.mrf.mxu0
      %v1175 = vpop.f32.mrf.mxu0
      %v1176 = vadd.f32 %v871, %v1175
      %v1177 = vpop.f32.mrf.mxu0
      %1178 = vmatprep.mubr.bf16.mxu0 0
      %1179 = vmatmul.mubr.bf16.gmra.mxu0 %v1003
      %v1180 = vpop.f32.mrf.mxu0
      %v1181 = vadd.f32 %v876, %v1180
      %v1182 = vpop.f32.mrf.mxu0
      %v1183 = vpop.f32.mrf.mxu0
      %v1184 = vadd.f32 %v879, %v1183
      %v1185 = vpop.f32.mrf.mxu0
      %1186 = vmatprep.mubr.bf16.mxu0 0
      %1187 = vmatmul.mubr.bf16.gmra.mxu0 %v1004
      %v1188 = vpop.f32.mrf.mxu0
      %v1189 = vadd.f32 %v884, %v1188
      %v1190 = vpop.f32.mrf.mxu0
      %v1191 = vpop.f32.mrf.mxu0
      %v1192 = vadd.f32 %v887, %v1191
      %v1193 = vpop.f32.mrf.mxu0
      %1194 = vmatprep.mubr.bf16.mxu0 0
      %1195 = vmatmul.mubr.bf16.gmra.mxu0 %v1005
      %v1196 = vpop.f32.mrf.mxu0
      %v1197 = vadd.f32 %v892, %v1196
      %v1198 = vpop.f32.mrf.mxu0
      %v1199 = vpop.f32.mrf.mxu0
      %v1200 = vadd.f32 %v895, %v1199
      %v1201 = vpop.f32.mrf.mxu0
      %1202 = vmatprep.mubr.bf16.mxu0 0
      %1203 = vmatmul.mubr.bf16.gmra.mxu0 %v1006
      %v1204 = vpop.f32.mrf.mxu0
      %v1205 = vadd.f32 %v900, %v1204
      %v1206 = vpop.f32.mrf.mxu0
      %v1207 = vpop.f32.mrf.mxu0
      %v1208 = vadd.f32 %v903, %v1207
      %v1209 = vpop.f32.mrf.mxu0
      %1210 = vmatprep.mubr.bf16.mxu0 0
      %1211 = vmatmul.mubr.bf16.gmra.mxu0 %v1007
      %v1212 = vpop.f32.mrf.mxu0
      %v1213 = vadd.f32 %v908, %v1212
      %v1214 = vpop.f32.mrf.mxu0
      %v1215 = vpop.f32.mrf.mxu0
      %v1216 = vadd.f32 %v911, %v1215
      %v1217 = vpop.f32.mrf.mxu0
      %1218 = vmatprep.mubr.bf16.mxu0 0
      %1219 = vmatmul.mubr.bf16.gmra.mxu0 %v1008
      %v1220 = vpop.f32.mrf.mxu0
      %v1221 = vadd.f32 %v916, %v1220
      %v1222 = vpop.f32.mrf.mxu0
      %v1223 = vpop.f32.mrf.mxu0
      %v1224 = vadd.f32 %v919, %v1223
      %v1225 = vpop.f32.mrf.mxu0
      %1226 = vmatprep.mubr.bf16.mxu0 0
      %1227 = vmatmul.mubr.bf16.gmra.mxu0 %v1009
      %v1228 = vpop.f32.mrf.mxu0
      %v1229 = vadd.f32 %v924, %v1228
      %v1230 = vpop.f32.mrf.mxu0
      %v1231 = vpop.f32.mrf.mxu0
      %v1232 = vadd.f32 %v927, %v1231
      %v1233 = vpop.f32.mrf.mxu0
      %1234 = vdwg.mxu0
      %vm1251 = vcmask 1042432
      %vm1252 = vcmask 1046532
      %vm1253 = vmor %vm1251, %vm1252
      %v1254 = vrot.slane %v183, 5
      %v1255 = vrot.slane %v1254, 4
      %v1256 = vrot.slane %v184, 5
      %v1257 = vsel %vm1253, %v1255, %v1256
      %v1258 = vrot.slane %v1256, 4
      %v1259 = vrot.slane %v185, 5
      %v1260 = vsel %vm1253, %v1258, %v1259
      %v1261 = vrot.slane %v186, 5
      %v1262 = vrot.slane %v1261, 4
      %v1263 = vrot.slane %v187, 5
      %v1264 = vsel %vm1253, %v1262, %v1263
      %v1265 = vrot.slane %v1263, 4
      %v1266 = vrot.slane %v188, 5
      %v1267 = vsel %vm1253, %v1265, %v1266
      %v1268 = vrot.slane %v189, 5
      %v1269 = vrot.slane %v1268, 4
      %v1270 = vrot.slane %v190, 5
      %v1271 = vsel %vm1253, %v1269, %v1270
      %v1272 = vrot.slane %v1270, 4
      %v1273 = vrot.slane %v191, 5
      %v1274 = vsel %vm1253, %v1272, %v1273
      %v1275 = vrot.slane %v192, 5
      %v1276 = vrot.slane %v1275, 4
      %v1277 = vrot.slane %v193, 5
      %v1278 = vsel %vm1253, %v1276, %v1277
      %v1279 = vrot.slane %v1277, 4
      %v1280 = vrot.slane %v194, 5
      %v1281 = vsel %vm1253, %v1279, %v1280
      %v1282 = vrot.slane %v195, 5
      %v1283 = vrot.slane %v1282, 4
      %v1284 = vrot.slane %v196, 5
      %v1285 = vsel %vm1253, %v1283, %v1284
      %v1286 = vrot.slane %v1284, 4
      %v1287 = vrot.slane %v197, 5
      %v1288 = vsel %vm1253, %v1286, %v1287
      %v1289 = vrot.slane %v198, 5
      %v1290 = vrot.slane %v1289, 4
      %v1291 = vrot.slane %v199, 5
      %v1292 = vsel %vm1253, %v1290, %v1291
      %v1293 = vrot.slane %v1291, 4
      %v1294 = vrot.slane %v200, 5
      %v1295 = vsel %vm1253, %v1293, %v1294
      %v1296 = vrot.slane %v201, 5
      %v1297 = vrot.slane %v1296, 4
      %v1298 = vrot.slane %v202, 5
      %v1299 = vsel %vm1253, %v1297, %v1298
      %v1300 = vrot.slane %v1298, 4
      %v1301 = vrot.slane %v203, 5
      %v1302 = vsel %vm1253, %v1300, %v1301
      %v1303 = vrot.slane %v204, 5
      %v1304 = vrot.slane %v1303, 4
      %v1305 = vrot.slane %v205, 5
      %v1306 = vsel %vm1253, %v1304, %v1305
      %v1307 = vrot.slane %v1305, 4
      %v1308 = vrot.slane %v206, 5
      %v1309 = vsel %vm1253, %v1307, %v1308
      %v1310 = vrot.slane %v207, 5
      %v1311 = vrot.slane %v1310, 4
      %v1312 = vrot.slane %v208, 5
      %v1313 = vsel %vm1253, %v1311, %v1312
      %v1314 = vrot.slane %v1312, 4
      %v1315 = vrot.slane %v209, 5
      %v1316 = vsel %vm1253, %v1314, %v1315
      %v1317 = vrot.slane %v210, 5
      %v1318 = vrot.slane %v1317, 4
      %v1319 = vrot.slane %v211, 5
      %v1320 = vsel %vm1253, %v1318, %v1319
      %v1321 = vrot.slane %v1319, 4
      %v1322 = vrot.slane %v212, 5
      %v1323 = vsel %vm1253, %v1321, %v1322
      %v1324 = vrot.slane %v213, 5
      %v1325 = vrot.slane %v1324, 4
      %v1326 = vrot.slane %v214, 5
      %v1327 = vsel %vm1253, %v1325, %v1326
      %v1328 = vrot.slane %v1326, 4
      %v1329 = vrot.slane %v215, 5
      %v1330 = vsel %vm1253, %v1328, %v1329
      %v1331 = vrot.slane %v216, 5
      %v1332 = vrot.slane %v1331, 4
      %v1333 = vrot.slane %v217, 5
      %v1334 = vsel %vm1253, %v1332, %v1333
      %v1335 = vrot.slane %v1333, 4
      %v1336 = vrot.slane %v218, 5
      %v1337 = vsel %vm1253, %v1335, %v1336
      %v1338 = vrot.slane %v219, 5
      %v1339 = vrot.slane %v1338, 4
      %v1340 = vrot.slane %v220, 5
      %v1341 = vsel %vm1253, %v1339, %v1340
      %v1342 = vrot.slane %v1340, 4
      %v1343 = vrot.slane %v221, 5
      %v1344 = vsel %vm1253, %v1342, %v1343
      %v1345 = vrot.slane %v222, 5
      %v1346 = vrot.slane %v1345, 4
      %v1347 = vrot.slane %v223, 5
      %v1348 = vsel %vm1253, %v1346, %v1347
      %v1349 = vrot.slane %v1347, 4
      %v1350 = vrot.slane %v224, 5
      %v1351 = vsel %vm1253, %v1349, %v1350
      %v1352 = vrot.slane %v225, 5
      %v1353 = vrot.slane %v1352, 4
      %v1354 = vrot.slane %v226, 5
      %v1355 = vsel %vm1253, %v1353, %v1354
      %v1356 = vrot.slane %v1354, 4
      %v1357 = vrot.slane %v227, 5
      %v1358 = vsel %vm1253, %v1356, %v1357
      %v1359 = vrot.slane %v228, 5
      %v1360 = vrot.slane %v1359, 4
      %v1361 = vrot.slane %v229, 5
      %v1362 = vsel %vm1253, %v1360, %v1361
      %v1363 = vrot.slane %v1361, 4
      %v1364 = vrot.slane %v230, 5
      %v1365 = vsel %vm1253, %v1363, %v1364
      %s1366 = scalar_lea.vmem %s1, 128
      %v1367 = vld [vmem:[%s1366] sm:$0xf]
      %v1368 = vld [vmem:[%s1366 + $0x4] sm:$0xf]
      %v1369 = vld [vmem:[%s1366 + $0x8] sm:$0xf]
      %v1370 = vld [vmem:[%s1366 + $0xc] sm:$0xf]
      %v1371 = vld [vmem:[%s1366 + $0x10] sm:$0xf]
      %v1372 = vld [vmem:[%s1366 + $0x14] sm:$0xf]
      %v1373 = vld [vmem:[%s1366 + $0x18] sm:$0xf]
      %v1374 = vld [vmem:[%s1366 + $0x1c] sm:$0xf]
      %v1375 = vld [vmem:[%s1366 + $0x20] sm:$0xf]
      %v1376 = vld [vmem:[%s1366 + $0x24] sm:$0xf]
      %v1377 = vld [vmem:[%s1366 + $0x28] sm:$0xf]
      %v1378 = vld [vmem:[%s1366 + $0x2c] sm:$0xf]
      %v1379 = vld [vmem:[%s1366 + $0x30] sm:$0xf]
      %v1380 = vld [vmem:[%s1366 + $0x34] sm:$0xf]
      %v1381 = vld [vmem:[%s1366 + $0x38] sm:$0xf]
      %v1382 = vld [vmem:[%s1366 + $0x3c] sm:$0xf]
      %v1383 = vunpack.c.l.b16 %v1257
      %v1384 = vunpack.c.l.b16 %v1260
      %v1385 = vunpack.c.l.b16 %v1264
      %v1386 = vunpack.c.l.b16 %v1267
      %v1387 = vunpack.c.l.b16 %v1271
      %v1388 = vunpack.c.l.b16 %v1274
      %v1389 = vunpack.c.l.b16 %v1278
      %v1390 = vunpack.c.l.b16 %v1281
      %v1391 = vunpack.c.l.b16 %v1285
      %v1392 = vunpack.c.l.b16 %v1288
      %v1393 = vunpack.c.l.b16 %v1292
      %v1394 = vunpack.c.l.b16 %v1295
      %v1395 = vunpack.c.l.b16 %v1299
      %v1396 = vunpack.c.l.b16 %v1302
      %v1397 = vunpack.c.l.b16 %v1306
      %v1398 = vunpack.c.l.b16 %v1309
      %v1399 = vunpack.c.l.b16 %v1313
      %v1400 = vunpack.c.l.b16 %v1316
      %v1401 = vunpack.c.l.b16 %v1320
      %v1402 = vunpack.c.l.b16 %v1323
      %v1403 = vunpack.c.l.b16 %v1327
      %v1404 = vunpack.c.l.b16 %v1330
      %v1405 = vunpack.c.l.b16 %v1334
      %v1406 = vunpack.c.l.b16 %v1337
      %v1407 = vunpack.c.l.b16 %v1341
      %v1408 = vunpack.c.l.b16 %v1344
      %v1409 = vunpack.c.l.b16 %v1348
      %v1410 = vunpack.c.l.b16 %v1351
      %v1411 = vunpack.c.l.b16 %v1355
      %v1412 = vunpack.c.l.b16 %v1358
      %v1413 = vunpack.c.l.b16 %v1362
      %v1414 = vunpack.c.l.b16 %v1365
      %v1415 = vpack.c.b16 %v1384, %v1383
      %v1416 = vpack.c.b16 %v1386, %v1385
      %v1417 = vpack.c.b16 %v1388, %v1387
      %v1418 = vpack.c.b16 %v1390, %v1389
      %v1419 = vpack.c.b16 %v1392, %v1391
      %v1420 = vpack.c.b16 %v1394, %v1393
      %v1421 = vpack.c.b16 %v1396, %v1395
      %v1422 = vpack.c.b16 %v1398, %v1397
      %v1423 = vpack.c.b16 %v1400, %v1399
      %v1424 = vpack.c.b16 %v1402, %v1401
      %v1425 = vpack.c.b16 %v1404, %v1403
      %v1426 = vpack.c.b16 %v1406, %v1405
      %v1427 = vpack.c.b16 %v1408, %v1407
      %v1428 = vpack.c.b16 %v1410, %v1409
      %v1429 = vpack.c.b16 %v1412, %v1411
      %v1430 = vpack.c.b16 %v1414, %v1413
      %v1463 = vunpack.c.l.b16 %v1367
      %v1464 = vunpack.c.l.b16 %v1368
      %v1465 = vunpack.c.l.b16 %v1369
      %v1466 = vunpack.c.l.b16 %v1370
      %v1467 = vunpack.c.l.b16 %v1371
      %v1468 = vunpack.c.l.b16 %v1372
      %v1469 = vunpack.c.l.b16 %v1373
      %v1470 = vunpack.c.l.b16 %v1374
      %v1471 = vunpack.c.l.b16 %v1375
      %v1472 = vunpack.c.l.b16 %v1376
      %v1473 = vunpack.c.l.b16 %v1377
      %v1474 = vunpack.c.l.b16 %v1378
      %v1475 = vunpack.c.l.b16 %v1379
      %v1476 = vunpack.c.l.b16 %v1380
      %v1477 = vunpack.c.l.b16 %v1381
      %v1478 = vunpack.c.l.b16 %v1382
      %v1479 = vpack.c.b16 %v1464, %v1463
      %v1480 = vpack.c.b16 %v1466, %v1465
      %v1481 = vpack.c.b16 %v1468, %v1467
      %v1482 = vpack.c.b16 %v1470, %v1469
      %v1483 = vpack.c.b16 %v1472, %v1471
      %v1484 = vpack.c.b16 %v1474, %v1473
      %v1485 = vpack.c.b16 %v1476, %v1475
      %v1486 = vpack.c.b16 %v1478, %v1477
      %1495 = vmatprep.subr.bf16.mxu0 0
      %1496 = vmatpush1.bf16.msra.mxu0 %v1486
      %1497 = vmatprep.subr.bf16.mxu0 0
      %1498 = vmatpush1.bf16.msra.mxu0 %v1485
      %1499 = vmatprep.subr.bf16.mxu0 0
      %1500 = vmatpush1.bf16.msra.mxu0 %v1484
      %1501 = vmatprep.subr.bf16.mxu0 0
      %1502 = vmatpush1.bf16.msra.mxu0 %v1483
      %1503 = vmatprep.subr.bf16.mxu0 0
      %1504 = vmatpush1.bf16.msra.mxu0 %v1482
      %1505 = vmatprep.subr.bf16.mxu0 0
      %1506 = vmatpush1.bf16.msra.mxu0 %v1481
      %1507 = vmatprep.subr.bf16.mxu0 0
      %1508 = vmatpush1.bf16.msra.mxu0 %v1480
      %1509 = vmatprep.subr.bf16.mxu0 0
      %1510 = vmatpush1.bf16.msra.mxu0 %v1479
      %1511 = vmatprep.subr.bf16.mxu0 0
      %1512 = vmatpush2.bf16.msra.mxu0 0
      %1513 = vmatprep.subr.bf16.mxu0 0
      %1514 = vmatpush2.bf16.msra.mxu0 0
      %1515 = vmatprep.subr.bf16.mxu0 0
      %1516 = vmatpush2.bf16.msra.mxu0 0
      %1517 = vmatprep.subr.bf16.mxu0 0
      %1518 = vmatpush2.bf16.msra.mxu0 0
      %1519 = vmatprep.subr.bf16.mxu0 0
      %1520 = vmatpush2.bf16.msra.mxu0 0
      %1521 = vmatprep.subr.bf16.mxu0 0
      %1522 = vmatpush2.bf16.msra.mxu0 0
      %1523 = vmatprep.subr.bf16.mxu0 0
      %1524 = vmatpush2.bf16.msra.mxu0 0
      %1525 = vmatprep.subr.bf16.mxu0 0
      %1526 = vmatpush2.bf16.msra.mxu0 0
      %1527 = vmatprep.mubr.bf16.mxu0 0
      %1528 = vmatmul.mubr.bf16.gmra.mxu0 %v1415
      %v1529 = vpop.f32.mrf.mxu0
      %v1530 = vadd.f32 0.0, %v1529
      %v1531 = vpop.f32.mrf.mxu0
      %v1532 = vpop.f32.mrf.mxu0
      %v1533 = vadd.f32 0.0, %v1532
      %v1534 = vpop.f32.mrf.mxu0
      %1535 = vmatprep.mubr.bf16.mxu0 0
      %1536 = vmatmul.mubr.bf16.gmra.mxu0 %v1416
      %v1537 = vpop.f32.mrf.mxu0
      %v1538 = vadd.f32 0.0, %v1537
      %v1539 = vpop.f32.mrf.mxu0
      %v1540 = vpop.f32.mrf.mxu0
      %v1541 = vadd.f32 0.0, %v1540
      %v1542 = vpop.f32.mrf.mxu0
      %1543 = vmatprep.mubr.bf16.mxu0 0
      %1544 = vmatmul.mubr.bf16.gmra.mxu0 %v1417
      %v1545 = vpop.f32.mrf.mxu0
      %v1546 = vadd.f32 0.0, %v1545
      %v1547 = vpop.f32.mrf.mxu0
      %v1548 = vpop.f32.mrf.mxu0
      %v1549 = vadd.f32 0.0, %v1548
      %v1550 = vpop.f32.mrf.mxu0
      %1551 = vmatprep.mubr.bf16.mxu0 0
      %1552 = vmatmul.mubr.bf16.gmra.mxu0 %v1418
      %v1553 = vpop.f32.mrf.mxu0
      %v1554 = vadd.f32 0.0, %v1553
      %v1555 = vpop.f32.mrf.mxu0
      %v1556 = vpop.f32.mrf.mxu0
      %v1557 = vadd.f32 0.0, %v1556
      %v1558 = vpop.f32.mrf.mxu0
      %1559 = vmatprep.mubr.bf16.mxu0 0
      %1560 = vmatmul.mubr.bf16.gmra.mxu0 %v1419
      %v1561 = vpop.f32.mrf.mxu0
      %v1562 = vadd.f32 0.0, %v1561
      %v1563 = vpop.f32.mrf.mxu0
      %v1564 = vpop.f32.mrf.mxu0
      %v1565 = vadd.f32 0.0, %v1564
      %v1566 = vpop.f32.mrf.mxu0
      %1567 = vmatprep.mubr.bf16.mxu0 0
      %1568 = vmatmul.mubr.bf16.gmra.mxu0 %v1420
      %v1569 = vpop.f32.mrf.mxu0
      %v1570 = vadd.f32 0.0, %v1569
      %v1571 = vpop.f32.mrf.mxu0
      %v1572 = vpop.f32.mrf.mxu0
      %v1573 = vadd.f32 0.0, %v1572
      %v1574 = vpop.f32.mrf.mxu0
      %1575 = vmatprep.mubr.bf16.mxu0 0
      %1576 = vmatmul.mubr.bf16.gmra.mxu0 %v1421
      %v1577 = vpop.f32.mrf.mxu0
      %v1578 = vadd.f32 0.0, %v1577
      %v1579 = vpop.f32.mrf.mxu0
      %v1580 = vpop.f32.mrf.mxu0
      %v1581 = vadd.f32 0.0, %v1580
      %v1582 = vpop.f32.mrf.mxu0
      %1583 = vmatprep.mubr.bf16.mxu0 0
      %1584 = vmatmul.mubr.bf16.gmra.mxu0 %v1422
      %v1585 = vpop.f32.mrf.mxu0
      %v1586 = vadd.f32 0.0, %v1585
      %v1587 = vpop.f32.mrf.mxu0
      %v1588 = vpop.f32.mrf.mxu0
      %v1589 = vadd.f32 0.0, %v1588
      %v1590 = vpop.f32.mrf.mxu0
      %1591 = vmatprep.mubr.bf16.mxu0 0
      %1592 = vmatmul.mubr.bf16.gmra.mxu0 %v1423
      %v1593 = vpop.f32.mrf.mxu0
      %v1594 = vadd.f32 0.0, %v1593
      %v1595 = vpop.f32.mrf.mxu0
      %v1596 = vpop.f32.mrf.mxu0
      %v1597 = vadd.f32 0.0, %v1596
      %v1598 = vpop.f32.mrf.mxu0
      %1599 = vmatprep.mubr.bf16.mxu0 0
      %1600 = vmatmul.mubr.bf16.gmra.mxu0 %v1424
      %v1601 = vpop.f32.mrf.mxu0
      %v1602 = vadd.f32 0.0, %v1601
      %v1603 = vpop.f32.mrf.mxu0
      %v1604 = vpop.f32.mrf.mxu0
      %v1605 = vadd.f32 0.0, %v1604
      %v1606 = vpop.f32.mrf.mxu0
      %1607 = vmatprep.mubr.bf16.mxu0 0
      %1608 = vmatmul.mubr.bf16.gmra.mxu0 %v1425
      %v1609 = vpop.f32.mrf.mxu0
      %v1610 = vadd.f32 0.0, %v1609
      %v1611 = vpop.f32.mrf.mxu0
      %v1612 = vpop.f32.mrf.mxu0
      %v1613 = vadd.f32 0.0, %v1612
      %v1614 = vpop.f32.mrf.mxu0
      %1615 = vmatprep.mubr.bf16.mxu0 0
      %1616 = vmatmul.mubr.bf16.gmra.mxu0 %v1426
      %v1617 = vpop.f32.mrf.mxu0
      %v1618 = vadd.f32 0.0, %v1617
      %v1619 = vpop.f32.mrf.mxu0
      %v1620 = vpop.f32.mrf.mxu0
      %v1621 = vadd.f32 0.0, %v1620
      %v1622 = vpop.f32.mrf.mxu0
      %1623 = vmatprep.mubr.bf16.mxu0 0
      %1624 = vmatmul.mubr.bf16.gmra.mxu0 %v1427
      %v1625 = vpop.f32.mrf.mxu0
      %v1626 = vadd.f32 0.0, %v1625
      %v1627 = vpop.f32.mrf.mxu0
      %v1628 = vpop.f32.mrf.mxu0
      %v1629 = vadd.f32 0.0, %v1628
      %v1630 = vpop.f32.mrf.mxu0
      %1631 = vmatprep.mubr.bf16.mxu0 0
      %1632 = vmatmul.mubr.bf16.gmra.mxu0 %v1428
      %v1633 = vpop.f32.mrf.mxu0
      %v1634 = vadd.f32 0.0, %v1633
      %v1635 = vpop.f32.mrf.mxu0
      %v1636 = vpop.f32.mrf.mxu0
      %v1637 = vadd.f32 0.0, %v1636
      %v1638 = vpop.f32.mrf.mxu0
      %1639 = vmatprep.mubr.bf16.mxu0 0
      %1640 = vmatmul.mubr.bf16.gmra.mxu0 %v1429
      %v1641 = vpop.f32.mrf.mxu0
      %v1642 = vadd.f32 0.0, %v1641
      %v1643 = vpop.f32.mrf.mxu0
      %v1644 = vpop.f32.mrf.mxu0
      %v1645 = vadd.f32 0.0, %v1644
      %v1646 = vpop.f32.mrf.mxu0
      %1647 = vmatprep.mubr.bf16.mxu0 0
      %1648 = vmatmul.mubr.bf16.gmra.mxu0 %v1430
      %v1649 = vpop.f32.mrf.mxu0
      %v1650 = vadd.f32 0.0, %v1649
      %v1651 = vpop.f32.mrf.mxu0
      %v1652 = vpop.f32.mrf.mxu0
      %v1653 = vadd.f32 0.0, %v1652
      %v1654 = vpop.f32.mrf.mxu0
      %1655 = vdwg.mxu0
      %v1656 = vadd.f32 %v1109, %v1530
      %v1657 = vadd.f32 %v1112, %v1533
      %v1658 = vadd.f32 %v1117, %v1538
      %v1659 = vadd.f32 %v1120, %v1541
      %v1660 = vadd.f32 %v1125, %v1546
      %v1661 = vadd.f32 %v1128, %v1549
      %v1662 = vadd.f32 %v1133, %v1554
      %v1663 = vadd.f32 %v1136, %v1557
      %v1664 = vadd.f32 %v1141, %v1562
      %v1665 = vadd.f32 %v1144, %v1565
      %v1666 = vadd.f32 %v1149, %v1570
      %v1667 = vadd.f32 %v1152, %v1573
      %v1668 = vadd.f32 %v1157, %v1578
      %v1669 = vadd.f32 %v1160, %v1581
      %v1670 = vadd.f32 %v1165, %v1586
      %v1671 = vadd.f32 %v1168, %v1589
      %v1672 = vadd.f32 %v1173, %v1594
      %v1673 = vadd.f32 %v1176, %v1597
      %v1674 = vadd.f32 %v1181, %v1602
      %v1675 = vadd.f32 %v1184, %v1605
      %v1676 = vadd.f32 %v1189, %v1610
      %v1677 = vadd.f32 %v1192, %v1613
      %v1678 = vadd.f32 %v1197, %v1618
      %v1679 = vadd.f32 %v1200, %v1621
      %v1680 = vadd.f32 %v1205, %v1626
      %v1681 = vadd.f32 %v1208, %v1629
      %v1682 = vadd.f32 %v1213, %v1634
      %v1683 = vadd.f32 %v1216, %v1637
      %v1684 = vadd.f32 %v1221, %v1642
      %v1685 = vadd.f32 %v1224, %v1645
      %v1686 = vadd.f32 %v1229, %v1650
      %v1687 = vadd.f32 %v1232, %v1653
      %s1688 = scalar_lea.vmem %s1, 192
      %v1689 = vld [vmem:[%s1688] sm:$0xf]
      %v1690 = vld [vmem:[%s1688 + $0x4] sm:$0xf]
      %v1691 = vld [vmem:[%s1688 + $0x8] sm:$0xf]
      %v1692 = vld [vmem:[%s1688 + $0xc] sm:$0xf]
      %v1693 = vld [vmem:[%s1688 + $0x10] sm:$0xf]
      %v1694 = vld [vmem:[%s1688 + $0x14] sm:$0xf]
      %v1695 = vld [vmem:[%s1688 + $0x18] sm:$0xf]
      %v1696 = vld [vmem:[%s1688 + $0x1c] sm:$0xf]
      %v1697 = vld [vmem:[%s1688 + $0x20] sm:$0xf]
      %v1698 = vld [vmem:[%s1688 + $0x24] sm:$0xf]
      %v1699 = vld [vmem:[%s1688 + $0x28] sm:$0xf]
      %v1700 = vld [vmem:[%s1688 + $0x2c] sm:$0xf]
      %v1701 = vld [vmem:[%s1688 + $0x30] sm:$0xf]
      %v1702 = vld [vmem:[%s1688 + $0x34] sm:$0xf]
      %v1703 = vld [vmem:[%s1688 + $0x38] sm:$0xf]
      %v1704 = vld [vmem:[%s1688 + $0x3c] sm:$0xf]
      %v1707 = vunpack.c.l.b16 %v231
      %v1708 = vunpack.c.l.b16 %v232
      %v1709 = vpack.c.b16 %v1708, %v1707
      %v1727 = vunpack.c.l.b16 %v1689
      %v1728 = vunpack.c.l.b16 %v1690
      %v1729 = vunpack.c.l.b16 %v1691
      %v1730 = vunpack.c.l.b16 %v1692
      %v1731 = vunpack.c.l.b16 %v1693
      %v1732 = vunpack.c.l.b16 %v1694
      %v1733 = vunpack.c.l.b16 %v1695
      %v1734 = vunpack.c.l.b16 %v1696
      %v1735 = vunpack.c.l.b16 %v1697
      %v1736 = vunpack.c.l.b16 %v1698
      %v1737 = vunpack.c.l.b16 %v1699
      %v1738 = vunpack.c.l.b16 %v1700
      %v1739 = vunpack.c.l.b16 %v1701
      %v1740 = vunpack.c.l.b16 %v1702
      %v1741 = vunpack.c.l.b16 %v1703
      %v1742 = vunpack.c.l.b16 %v1704
      %v1743 = vpack.c.b16 %v1728, %v1727
      %v1744 = vpack.c.b16 %v1730, %v1729
      %v1745 = vpack.c.b16 %v1732, %v1731
      %v1746 = vpack.c.b16 %v1734, %v1733
      %v1747 = vpack.c.b16 %v1736, %v1735
      %v1748 = vpack.c.b16 %v1738, %v1737
      %v1749 = vpack.c.b16 %v1740, %v1739
      %v1750 = vpack.c.b16 %v1742, %v1741
      %1759 = vmatprep.subr.bf16.mxu0 0
      %1760 = vmatpush1.bf16.msra.mxu0 %v1750
      %1761 = vmatprep.subr.bf16.mxu0 0
      %1762 = vmatpush1.bf16.msra.mxu0 %v1749
      %1763 = vmatprep.subr.bf16.mxu0 0
      %1764 = vmatpush1.bf16.msra.mxu0 %v1748
      %1765 = vmatprep.subr.bf16.mxu0 0
      %1766 = vmatpush1.bf16.msra.mxu0 %v1747
      %1767 = vmatprep.subr.bf16.mxu0 0
      %1768 = vmatpush1.bf16.msra.mxu0 %v1746
      %1769 = vmatprep.subr.bf16.mxu0 0
      %1770 = vmatpush1.bf16.msra.mxu0 %v1745
      %1771 = vmatprep.subr.bf16.mxu0 0
      %1772 = vmatpush1.bf16.msra.mxu0 %v1744
      %1773 = vmatprep.subr.bf16.mxu0 0
      %1774 = vmatpush1.bf16.msra.mxu0 %v1743
      %1775 = vmatprep.subr.bf16.mxu0 0
      %1776 = vmatpush2.bf16.msra.mxu0 0
      %1777 = vmatprep.subr.bf16.mxu0 0
      %1778 = vmatpush2.bf16.msra.mxu0 0
      %1779 = vmatprep.subr.bf16.mxu0 0
      %1780 = vmatpush2.bf16.msra.mxu0 0
      %1781 = vmatprep.subr.bf16.mxu0 0
      %1782 = vmatpush2.bf16.msra.mxu0 0
      %1783 = vmatprep.subr.bf16.mxu0 0
      %1784 = vmatpush2.bf16.msra.mxu0 0
      %1785 = vmatprep.subr.bf16.mxu0 0
      %1786 = vmatpush2.bf16.msra.mxu0 0
      %1787 = vmatprep.subr.bf16.mxu0 0
      %1788 = vmatpush2.bf16.msra.mxu0 0
      %1789 = vmatprep.subr.bf16.mxu0 0
      %1790 = vmatpush2.bf16.msra.mxu0 0
      %1791 = vmatprep.mubr.bf16.mxu0 0
      %1792 = vmatmul.mubr.bf16.gmra.mxu0 %v995
      %v1793 = vpop.f32.mrf.mxu0
      %v1794 = vadd.f32 0.0, %v1793
      %v1795 = vpop.f32.mrf.mxu0
      %v1796 = vpop.f32.mrf.mxu0
      %v1797 = vadd.f32 0.0, %v1796
      %v1798 = vpop.f32.mrf.mxu0
      %1799 = vmatprep.mubr.bf16.mxu0 0
      %1800 = vmatmul.mubr.bf16.gmra.mxu0 %v996
      %v1801 = vpop.f32.mrf.mxu0
      %v1802 = vadd.f32 0.0, %v1801
      %v1803 = vpop.f32.mrf.mxu0
      %v1804 = vpop.f32.mrf.mxu0
      %v1805 = vadd.f32 0.0, %v1804
      %v1806 = vpop.f32.mrf.mxu0
      %1807 = vmatprep.mubr.bf16.mxu0 0
      %1808 = vmatmul.mubr.bf16.gmra.mxu0 %v997
      %v1809 = vpop.f32.mrf.mxu0
      %v1810 = vadd.f32 0.0, %v1809
      %v1811 = vpop.f32.mrf.mxu0
      %v1812 = vpop.f32.mrf.mxu0
      %v1813 = vadd.f32 0.0, %v1812
      %v1814 = vpop.f32.mrf.mxu0
      %1815 = vmatprep.mubr.bf16.mxu0 0
      %1816 = vmatmul.mubr.bf16.gmra.mxu0 %v998
      %v1817 = vpop.f32.mrf.mxu0
      %v1818 = vadd.f32 0.0, %v1817
      %v1819 = vpop.f32.mrf.mxu0
      %v1820 = vpop.f32.mrf.mxu0
      %v1821 = vadd.f32 0.0, %v1820
      %v1822 = vpop.f32.mrf.mxu0
      %1823 = vmatprep.mubr.bf16.mxu0 0
      %1824 = vmatmul.mubr.bf16.gmra.mxu0 %v999
      %v1825 = vpop.f32.mrf.mxu0
      %v1826 = vadd.f32 0.0, %v1825
      %v1827 = vpop.f32.mrf.mxu0
      %v1828 = vpop.f32.mrf.mxu0
      %v1829 = vadd.f32 0.0, %v1828
      %v1830 = vpop.f32.mrf.mxu0
      %1831 = vmatprep.mubr.bf16.mxu0 0
      %1832 = vmatmul.mubr.bf16.gmra.mxu0 %v1000
      %v1833 = vpop.f32.mrf.mxu0
      %v1834 = vadd.f32 0.0, %v1833
      %v1835 = vpop.f32.mrf.mxu0
      %v1836 = vpop.f32.mrf.mxu0
      %v1837 = vadd.f32 0.0, %v1836
      %v1838 = vpop.f32.mrf.mxu0
      %1839 = vmatprep.mubr.bf16.mxu0 0
      %1840 = vmatmul.mubr.bf16.gmra.mxu0 %v1001
      %v1841 = vpop.f32.mrf.mxu0
      %v1842 = vadd.f32 0.0, %v1841
      %v1843 = vpop.f32.mrf.mxu0
      %v1844 = vpop.f32.mrf.mxu0
      %v1845 = vadd.f32 0.0, %v1844
      %v1846 = vpop.f32.mrf.mxu0
      %1847 = vmatprep.mubr.bf16.mxu0 0
      %1848 = vmatmul.mubr.bf16.gmra.mxu0 %v1002
      %v1849 = vpop.f32.mrf.mxu0
      %v1850 = vadd.f32 0.0, %v1849
      %v1851 = vpop.f32.mrf.mxu0
      %v1852 = vpop.f32.mrf.mxu0
      %v1853 = vadd.f32 0.0, %v1852
      %v1854 = vpop.f32.mrf.mxu0
      %1855 = vmatprep.mubr.bf16.mxu0 0
      %1856 = vmatmul.mubr.bf16.gmra.mxu0 %v1003
      %v1857 = vpop.f32.mrf.mxu0
      %v1858 = vadd.f32 0.0, %v1857
      %v1859 = vpop.f32.mrf.mxu0
      %v1860 = vpop.f32.mrf.mxu0
      %v1861 = vadd.f32 0.0, %v1860
      %v1862 = vpop.f32.mrf.mxu0
      %1863 = vmatprep.mubr.bf16.mxu0 0
      %1864 = vmatmul.mubr.bf16.gmra.mxu0 %v1004
      %v1865 = vpop.f32.mrf.mxu0
      %v1866 = vadd.f32 0.0, %v1865
      %v1867 = vpop.f32.mrf.mxu0
      %v1868 = vpop.f32.mrf.mxu0
      %v1869 = vadd.f32 0.0, %v1868
      %v1870 = vpop.f32.mrf.mxu0
      %1871 = vmatprep.mubr.bf16.mxu0 0
      %1872 = vmatmul.mubr.bf16.gmra.mxu0 %v1005
      %v1873 = vpop.f32.mrf.mxu0
      %v1874 = vadd.f32 0.0, %v1873
      %v1875 = vpop.f32.mrf.mxu0
      %v1876 = vpop.f32.mrf.mxu0
      %v1877 = vadd.f32 0.0, %v1876
      %v1878 = vpop.f32.mrf.mxu0
      %1879 = vmatprep.mubr.bf16.mxu0 0
      %1880 = vmatmul.mubr.bf16.gmra.mxu0 %v1006
      %v1881 = vpop.f32.mrf.mxu0
      %v1882 = vadd.f32 0.0, %v1881
      %v1883 = vpop.f32.mrf.mxu0
      %v1884 = vpop.f32.mrf.mxu0
      %v1885 = vadd.f32 0.0, %v1884
      %v1886 = vpop.f32.mrf.mxu0
      %1887 = vmatprep.mubr.bf16.mxu0 0
      %1888 = vmatmul.mubr.bf16.gmra.mxu0 %v1007
      %v1889 = vpop.f32.mrf.mxu0
      %v1890 = vadd.f32 0.0, %v1889
      %v1891 = vpop.f32.mrf.mxu0
      %v1892 = vpop.f32.mrf.mxu0
      %v1893 = vadd.f32 0.0, %v1892
      %v1894 = vpop.f32.mrf.mxu0
      %1895 = vmatprep.mubr.bf16.mxu0 0
      %1896 = vmatmul.mubr.bf16.gmra.mxu0 %v1008
      %v1897 = vpop.f32.mrf.mxu0
      %v1898 = vadd.f32 0.0, %v1897
      %v1899 = vpop.f32.mrf.mxu0
      %v1900 = vpop.f32.mrf.mxu0
      %v1901 = vadd.f32 0.0, %v1900
      %v1902 = vpop.f32.mrf.mxu0
      %1903 = vmatprep.mubr.bf16.mxu0 0
      %1904 = vmatmul.mubr.bf16.gmra.mxu0 %v1009
      %v1905 = vpop.f32.mrf.mxu0
      %v1906 = vadd.f32 0.0, %v1905
      %v1907 = vpop.f32.mrf.mxu0
      %v1908 = vpop.f32.mrf.mxu0
      %v1909 = vadd.f32 0.0, %v1908
      %v1910 = vpop.f32.mrf.mxu0
      %1911 = vmatprep.mubr.bf16.mxu0 0
      %1912 = vmatmul.mubr.bf16.gmra.mxu0 %v1709
      %v1913 = vpop.f32.mrf.mxu0
      %v1914 = vadd.f32 0.0, %v1913
      %v1915 = vpop.f32.mrf.mxu0
      %v1916 = vpop.f32.mrf.mxu0
      %v1917 = vadd.f32 0.0, %v1916
      %v1918 = vpop.f32.mrf.mxu0
      %1919 = vdwg.mxu0
      %v1920 = vadd.f32 %v1656, %v1794
      %v1921 = vadd.f32 %v1657, %v1797
      %v1922 = vadd.f32 %v1658, %v1802
      %v1923 = vadd.f32 %v1659, %v1805
      %v1924 = vadd.f32 %v1660, %v1810
      %v1925 = vadd.f32 %v1661, %v1813
      %v1926 = vadd.f32 %v1662, %v1818
      %v1927 = vadd.f32 %v1663, %v1821
      %v1928 = vadd.f32 %v1664, %v1826
      %v1929 = vadd.f32 %v1665, %v1829
      %v1930 = vadd.f32 %v1666, %v1834
      %v1931 = vadd.f32 %v1667, %v1837
      %v1932 = vadd.f32 %v1668, %v1842
      %v1933 = vadd.f32 %v1669, %v1845
      %v1934 = vadd.f32 %v1670, %v1850
      %v1935 = vadd.f32 %v1671, %v1853
      %v1936 = vadd.f32 %v1672, %v1858
      %v1937 = vadd.f32 %v1673, %v1861
      %v1938 = vadd.f32 %v1674, %v1866
      %v1939 = vadd.f32 %v1675, %v1869
      %v1940 = vadd.f32 %v1676, %v1874
      %v1941 = vadd.f32 %v1677, %v1877
      %v1942 = vadd.f32 %v1678, %v1882
      %v1943 = vadd.f32 %v1679, %v1885
      %v1944 = vadd.f32 %v1680, %v1890
      %v1945 = vadd.f32 %v1681, %v1893
      %v1946 = vadd.f32 %v1682, %v1898
      %v1947 = vadd.f32 %v1683, %v1901
      %v1948 = vadd.f32 %v1684, %v1906
      %v1949 = vadd.f32 %v1685, %v1909
      %v1950 = vadd.f32 %v1686, %v1914
      %v1951 = vadd.f32 %v1687, %v1917
      %v1953 = vshrl.u32 %v231, 16
      %v1955 = vrot.slane %v1953, 4
      %v1956 = vshll.u32 %v231, 16
      %v1958 = vrot.slane %v1956, 5
      %v1959 = vor.u32 %v1955, %v1958
      %v1960 = vrot.slane %v1959, 4
      %v1962 = vshll.u32 %v232, 16
      %v1964 = vrot.slane %v1962, 5
      %v1965 = vsel %vm255, %v1960, %v1964
      %v1966 = vshrl.u32 %v232, 16
      %v1968 = vrot.slane %v1966, 4
      %v1969 = vor.u32 %v1968, %v1964
      %v1970 = vrot.slane %v1969, 4
      %v1972 = vshll.u32 %v233, 16
      %v1974 = vrot.slane %v1972, 5
      %v1975 = vsel %vm255, %v1970, %v1974
      %s1976 = scalar_lea.vmem %s1, 256
      %v1977 = vld [vmem:[%s1976] sm:$0xf]
      %v1978 = vld [vmem:[%s1976 + $0x4] sm:$0xf]
      %v1979 = vld [vmem:[%s1976 + $0x8] sm:$0xf]
      %v1980 = vld [vmem:[%s1976 + $0xc] sm:$0xf]
      %v1981 = vld [vmem:[%s1976 + $0x10] sm:$0xf]
      %v1982 = vld [vmem:[%s1976 + $0x14] sm:$0xf]
      %v1983 = vld [vmem:[%s1976 + $0x18] sm:$0xf]
      %v1984 = vld [vmem:[%s1976 + $0x1c] sm:$0xf]
      %v1985 = vld [vmem:[%s1976 + $0x20] sm:$0xf]
      %v1986 = vld [vmem:[%s1976 + $0x24] sm:$0xf]
      %v1987 = vld [vmem:[%s1976 + $0x28] sm:$0xf]
      %v1988 = vld [vmem:[%s1976 + $0x2c] sm:$0xf]
      %v1989 = vld [vmem:[%s1976 + $0x30] sm:$0xf]
      %v1990 = vld [vmem:[%s1976 + $0x34] sm:$0xf]
      %v1991 = vld [vmem:[%s1976 + $0x38] sm:$0xf]
      %v1992 = vld [vmem:[%s1976 + $0x3c] sm:$0xf]
      %v1993 = vunpack.c.l.b16 %v1965
      %v1994 = vunpack.c.l.b16 %v1975
      %v1995 = vpack.c.b16 %v1994, %v1993
      %v2013 = vunpack.c.l.b16 %v1977
      %v2014 = vunpack.c.l.b16 %v1978
      %v2015 = vunpack.c.l.b16 %v1979
      %v2016 = vunpack.c.l.b16 %v1980
      %v2017 = vunpack.c.l.b16 %v1981
      %v2018 = vunpack.c.l.b16 %v1982
      %v2019 = vunpack.c.l.b16 %v1983
      %v2020 = vunpack.c.l.b16 %v1984
      %v2021 = vunpack.c.l.b16 %v1985
      %v2022 = vunpack.c.l.b16 %v1986
      %v2023 = vunpack.c.l.b16 %v1987
      %v2024 = vunpack.c.l.b16 %v1988
      %v2025 = vunpack.c.l.b16 %v1989
      %v2026 = vunpack.c.l.b16 %v1990
      %v2027 = vunpack.c.l.b16 %v1991
      %v2028 = vunpack.c.l.b16 %v1992
      %v2029 = vpack.c.b16 %v2014, %v2013
      %v2030 = vpack.c.b16 %v2016, %v2015
      %v2031 = vpack.c.b16 %v2018, %v2017
      %v2032 = vpack.c.b16 %v2020, %v2019
      %v2033 = vpack.c.b16 %v2022, %v2021
      %v2034 = vpack.c.b16 %v2024, %v2023
      %v2035 = vpack.c.b16 %v2026, %v2025
      %v2036 = vpack.c.b16 %v2028, %v2027
      %2045 = vmatprep.subr.bf16.mxu0 0
      %2046 = vmatpush1.bf16.msra.mxu0 %v2036
      %2047 = vmatprep.subr.bf16.mxu0 0
      %2048 = vmatpush1.bf16.msra.mxu0 %v2035
      %2049 = vmatprep.subr.bf16.mxu0 0
      %2050 = vmatpush1.bf16.msra.mxu0 %v2034
      %2051 = vmatprep.subr.bf16.mxu0 0
      %2052 = vmatpush1.bf16.msra.mxu0 %v2033
      %2053 = vmatprep.subr.bf16.mxu0 0
      %2054 = vmatpush1.bf16.msra.mxu0 %v2032
      %2055 = vmatprep.subr.bf16.mxu0 0
      %2056 = vmatpush1.bf16.msra.mxu0 %v2031
      %2057 = vmatprep.subr.bf16.mxu0 0
      %2058 = vmatpush1.bf16.msra.mxu0 %v2030
      %2059 = vmatprep.subr.bf16.mxu0 0
      %2060 = vmatpush1.bf16.msra.mxu0 %v2029
      %2061 = vmatprep.subr.bf16.mxu0 0
      %2062 = vmatpush2.bf16.msra.mxu0 0
      %2063 = vmatprep.subr.bf16.mxu0 0
      %2064 = vmatpush2.bf16.msra.mxu0 0
      %2065 = vmatprep.subr.bf16.mxu0 0
      %2066 = vmatpush2.bf16.msra.mxu0 0
      %2067 = vmatprep.subr.bf16.mxu0 0
      %2068 = vmatpush2.bf16.msra.mxu0 0
      %2069 = vmatprep.subr.bf16.mxu0 0
      %2070 = vmatpush2.bf16.msra.mxu0 0
      %2071 = vmatprep.subr.bf16.mxu0 0
      %2072 = vmatpush2.bf16.msra.mxu0 0
      %2073 = vmatprep.subr.bf16.mxu0 0
      %2074 = vmatpush2.bf16.msra.mxu0 0
      %2075 = vmatprep.subr.bf16.mxu0 0
      %2076 = vmatpush2.bf16.msra.mxu0 0
      %2077 = vmatprep.mubr.bf16.mxu0 0
      %2078 = vmatmul.mubr.bf16.gmra.mxu0 %v690
      %v2079 = vpop.f32.mrf.mxu0
      %v2080 = vadd.f32 0.0, %v2079
      %v2081 = vpop.f32.mrf.mxu0
      %v2082 = vpop.f32.mrf.mxu0
      %v2083 = vadd.f32 0.0, %v2082
      %v2084 = vpop.f32.mrf.mxu0
      %2085 = vmatprep.mubr.bf16.mxu0 0
      %2086 = vmatmul.mubr.bf16.gmra.mxu0 %v691
      %v2087 = vpop.f32.mrf.mxu0
      %v2088 = vadd.f32 0.0, %v2087
      %v2089 = vpop.f32.mrf.mxu0
      %v2090 = vpop.f32.mrf.mxu0
      %v2091 = vadd.f32 0.0, %v2090
      %v2092 = vpop.f32.mrf.mxu0
      %2093 = vmatprep.mubr.bf16.mxu0 0
      %2094 = vmatmul.mubr.bf16.gmra.mxu0 %v692
      %v2095 = vpop.f32.mrf.mxu0
      %v2096 = vadd.f32 0.0, %v2095
      %v2097 = vpop.f32.mrf.mxu0
      %v2098 = vpop.f32.mrf.mxu0
      %v2099 = vadd.f32 0.0, %v2098
      %v2100 = vpop.f32.mrf.mxu0
      %2101 = vmatprep.mubr.bf16.mxu0 0
      %2102 = vmatmul.mubr.bf16.gmra.mxu0 %v693
      %v2103 = vpop.f32.mrf.mxu0
      %v2104 = vadd.f32 0.0, %v2103
      %v2105 = vpop.f32.mrf.mxu0
      %v2106 = vpop.f32.mrf.mxu0
      %v2107 = vadd.f32 0.0, %v2106
      %v2108 = vpop.f32.mrf.mxu0
      %2109 = vmatprep.mubr.bf16.mxu0 0
      %2110 = vmatmul.mubr.bf16.gmra.mxu0 %v694
      %v2111 = vpop.f32.mrf.mxu0
      %v2112 = vadd.f32 0.0, %v2111
      %v2113 = vpop.f32.mrf.mxu0
      %v2114 = vpop.f32.mrf.mxu0
      %v2115 = vadd.f32 0.0, %v2114
      %v2116 = vpop.f32.mrf.mxu0
      %2117 = vmatprep.mubr.bf16.mxu0 0
      %2118 = vmatmul.mubr.bf16.gmra.mxu0 %v695
      %v2119 = vpop.f32.mrf.mxu0
      %v2120 = vadd.f32 0.0, %v2119
      %v2121 = vpop.f32.mrf.mxu0
      %v2122 = vpop.f32.mrf.mxu0
      %v2123 = vadd.f32 0.0, %v2122
      %v2124 = vpop.f32.mrf.mxu0
      %2125 = vmatprep.mubr.bf16.mxu0 0
      %2126 = vmatmul.mubr.bf16.gmra.mxu0 %v696
      %v2127 = vpop.f32.mrf.mxu0
      %v2128 = vadd.f32 0.0, %v2127
      %v2129 = vpop.f32.mrf.mxu0
      %v2130 = vpop.f32.mrf.mxu0
      %v2131 = vadd.f32 0.0, %v2130
      %v2132 = vpop.f32.mrf.mxu0
      %2133 = vmatprep.mubr.bf16.mxu0 0
      %2134 = vmatmul.mubr.bf16.gmra.mxu0 %v697
      %v2135 = vpop.f32.mrf.mxu0
      %v2136 = vadd.f32 0.0, %v2135
      %v2137 = vpop.f32.mrf.mxu0
      %v2138 = vpop.f32.mrf.mxu0
      %v2139 = vadd.f32 0.0, %v2138
      %v2140 = vpop.f32.mrf.mxu0
      %2141 = vmatprep.mubr.bf16.mxu0 0
      %2142 = vmatmul.mubr.bf16.gmra.mxu0 %v698
      %v2143 = vpop.f32.mrf.mxu0
      %v2144 = vadd.f32 0.0, %v2143
      %v2145 = vpop.f32.mrf.mxu0
      %v2146 = vpop.f32.mrf.mxu0
      %v2147 = vadd.f32 0.0, %v2146
      %v2148 = vpop.f32.mrf.mxu0
      %2149 = vmatprep.mubr.bf16.mxu0 0
      %2150 = vmatmul.mubr.bf16.gmra.mxu0 %v699
      %v2151 = vpop.f32.mrf.mxu0
      %v2152 = vadd.f32 0.0, %v2151
      %v2153 = vpop.f32.mrf.mxu0
      %v2154 = vpop.f32.mrf.mxu0
      %v2155 = vadd.f32 0.0, %v2154
      %v2156 = vpop.f32.mrf.mxu0
      %2157 = vmatprep.mubr.bf16.mxu0 0
      %2158 = vmatmul.mubr.bf16.gmra.mxu0 %v700
      %v2159 = vpop.f32.mrf.mxu0
      %v2160 = vadd.f32 0.0, %v2159
      %v2161 = vpop.f32.mrf.mxu0
      %v2162 = vpop.f32.mrf.mxu0
      %v2163 = vadd.f32 0.0, %v2162
      %v2164 = vpop.f32.mrf.mxu0
      %2165 = vmatprep.mubr.bf16.mxu0 0
      %2166 = vmatmul.mubr.bf16.gmra.mxu0 %v701
      %v2167 = vpop.f32.mrf.mxu0
      %v2168 = vadd.f32 0.0, %v2167
      %v2169 = vpop.f32.mrf.mxu0
      %v2170 = vpop.f32.mrf.mxu0
      %v2171 = vadd.f32 0.0, %v2170
      %v2172 = vpop.f32.mrf.mxu0
      %2173 = vmatprep.mubr.bf16.mxu0 0
      %2174 = vmatmul.mubr.bf16.gmra.mxu0 %v702
      %v2175 = vpop.f32.mrf.mxu0
      %v2176 = vadd.f32 0.0, %v2175
      %v2177 = vpop.f32.mrf.mxu0
      %v2178 = vpop.f32.mrf.mxu0
      %v2179 = vadd.f32 0.0, %v2178
      %v2180 = vpop.f32.mrf.mxu0
      %2181 = vmatprep.mubr.bf16.mxu0 0
      %2182 = vmatmul.mubr.bf16.gmra.mxu0 %v703
      %v2183 = vpop.f32.mrf.mxu0
      %v2184 = vadd.f32 0.0, %v2183
      %v2185 = vpop.f32.mrf.mxu0
      %v2186 = vpop.f32.mrf.mxu0
      %v2187 = vadd.f32 0.0, %v2186
      %v2188 = vpop.f32.mrf.mxu0
      %2189 = vmatprep.mubr.bf16.mxu0 0
      %2190 = vmatmul.mubr.bf16.gmra.mxu0 %v704
      %v2191 = vpop.f32.mrf.mxu0
      %v2192 = vadd.f32 0.0, %v2191
      %v2193 = vpop.f32.mrf.mxu0
      %v2194 = vpop.f32.mrf.mxu0
      %v2195 = vadd.f32 0.0, %v2194
      %v2196 = vpop.f32.mrf.mxu0
      %2197 = vmatprep.mubr.bf16.mxu0 0
      %2198 = vmatmul.mubr.bf16.gmra.mxu0 %v1995
      %v2199 = vpop.f32.mrf.mxu0
      %v2200 = vadd.f32 0.0, %v2199
      %v2201 = vpop.f32.mrf.mxu0
      %v2202 = vpop.f32.mrf.mxu0
      %v2203 = vadd.f32 0.0, %v2202
      %v2204 = vpop.f32.mrf.mxu0
      %2205 = vdwg.mxu0
      %v2206 = vadd.f32 %v1920, %v2080
      %v2207 = vadd.f32 %v1921, %v2083
      %v2208 = vadd.f32 %v1922, %v2088
      %v2209 = vadd.f32 %v1923, %v2091
      %v2210 = vadd.f32 %v1924, %v2096
      %v2211 = vadd.f32 %v1925, %v2099
      %v2212 = vadd.f32 %v1926, %v2104
      %v2213 = vadd.f32 %v1927, %v2107
      %v2214 = vadd.f32 %v1928, %v2112
      %v2215 = vadd.f32 %v1929, %v2115
      %v2216 = vadd.f32 %v1930, %v2120
      %v2217 = vadd.f32 %v1931, %v2123
      %v2218 = vadd.f32 %v1932, %v2128
      %v2219 = vadd.f32 %v1933, %v2131
      %v2220 = vadd.f32 %v1934, %v2136
      %v2221 = vadd.f32 %v1935, %v2139
      %v2222 = vadd.f32 %v1936, %v2144
      %v2223 = vadd.f32 %v1937, %v2147
      %v2224 = vadd.f32 %v1938, %v2152
      %v2225 = vadd.f32 %v1939, %v2155
      %v2226 = vadd.f32 %v1940, %v2160
      %v2227 = vadd.f32 %v1941, %v2163
      %v2228 = vadd.f32 %v1942, %v2168
      %v2229 = vadd.f32 %v1943, %v2171
      %v2230 = vadd.f32 %v1944, %v2176
      %v2231 = vadd.f32 %v1945, %v2179
      %v2232 = vadd.f32 %v1946, %v2184
      %v2233 = vadd.f32 %v1947, %v2187
      %v2234 = vadd.f32 %v1948, %v2192
      %v2235 = vadd.f32 %v1949, %v2195
      %v2236 = vadd.f32 %v1950, %v2200
      %v2237 = vadd.f32 %v1951, %v2203
      %v2239 = vrot.slane %v231, 5
      %v2240 = vrot.slane %v2239, 4
      %v2241 = vrot.slane %v232, 5
      %v2242 = vsel %vm1253, %v2240, %v2241
      %v2243 = vrot.slane %v2241, 4
      %v2244 = vrot.slane %v233, 5
      %v2245 = vsel %vm1253, %v2243, %v2244
      %s2246 = scalar_lea.vmem %s1, 320
      %v2247 = vld [vmem:[%s2246] sm:$0xf]
      %v2248 = vld [vmem:[%s2246 + $0x4] sm:$0xf]
      %v2249 = vld [vmem:[%s2246 + $0x8] sm:$0xf]
      %v2250 = vld [vmem:[%s2246 + $0xc] sm:$0xf]
      %v2251 = vld [vmem:[%s2246 + $0x10] sm:$0xf]
      %v2252 = vld [vmem:[%s2246 + $0x14] sm:$0xf]
      %v2253 = vld [vmem:[%s2246 + $0x18] sm:$0xf]
      %v2254 = vld [vmem:[%s2246 + $0x1c] sm:$0xf]
      %v2255 = vld [vmem:[%s2246 + $0x20] sm:$0xf]
      %v2256 = vld [vmem:[%s2246 + $0x24] sm:$0xf]
      %v2257 = vld [vmem:[%s2246 + $0x28] sm:$0xf]
      %v2258 = vld [vmem:[%s2246 + $0x2c] sm:$0xf]
      %v2259 = vld [vmem:[%s2246 + $0x30] sm:$0xf]
      %v2260 = vld [vmem:[%s2246 + $0x34] sm:$0xf]
      %v2261 = vld [vmem:[%s2246 + $0x38] sm:$0xf]
      %v2262 = vld [vmem:[%s2246 + $0x3c] sm:$0xf]
      %v2263 = vunpack.c.l.b16 %v2242
      %v2264 = vunpack.c.l.b16 %v2245
      %v2265 = vpack.c.b16 %v2264, %v2263
      %v2283 = vunpack.c.l.b16 %v2247
      %v2284 = vunpack.c.l.b16 %v2248
      %v2285 = vunpack.c.l.b16 %v2249
      %v2286 = vunpack.c.l.b16 %v2250
      %v2287 = vunpack.c.l.b16 %v2251
      %v2288 = vunpack.c.l.b16 %v2252
      %v2289 = vunpack.c.l.b16 %v2253
      %v2290 = vunpack.c.l.b16 %v2254
      %v2291 = vunpack.c.l.b16 %v2255
      %v2292 = vunpack.c.l.b16 %v2256
      %v2293 = vunpack.c.l.b16 %v2257
      %v2294 = vunpack.c.l.b16 %v2258
      %v2295 = vunpack.c.l.b16 %v2259
      %v2296 = vunpack.c.l.b16 %v2260
      %v2297 = vunpack.c.l.b16 %v2261
      %v2298 = vunpack.c.l.b16 %v2262
      %v2299 = vpack.c.b16 %v2284, %v2283
      %v2300 = vpack.c.b16 %v2286, %v2285
      %v2301 = vpack.c.b16 %v2288, %v2287
      %v2302 = vpack.c.b16 %v2290, %v2289
      %v2303 = vpack.c.b16 %v2292, %v2291
      %v2304 = vpack.c.b16 %v2294, %v2293
      %v2305 = vpack.c.b16 %v2296, %v2295
      %v2306 = vpack.c.b16 %v2298, %v2297
      %2315 = vmatprep.subr.bf16.mxu0 0
      %2316 = vmatpush1.bf16.msra.mxu0 %v2306
      %2317 = vmatprep.subr.bf16.mxu0 0
      %2318 = vmatpush1.bf16.msra.mxu0 %v2305
      %2319 = vmatprep.subr.bf16.mxu0 0
      %2320 = vmatpush1.bf16.msra.mxu0 %v2304
      %2321 = vmatprep.subr.bf16.mxu0 0
      %2322 = vmatpush1.bf16.msra.mxu0 %v2303
      %2323 = vmatprep.subr.bf16.mxu0 0
      %2324 = vmatpush1.bf16.msra.mxu0 %v2302
      %2325 = vmatprep.subr.bf16.mxu0 0
      %2326 = vmatpush1.bf16.msra.mxu0 %v2301
      %2327 = vmatprep.subr.bf16.mxu0 0
      %2328 = vmatpush1.bf16.msra.mxu0 %v2300
      %2329 = vmatprep.subr.bf16.mxu0 0
      %2330 = vmatpush1.bf16.msra.mxu0 %v2299
      %2331 = vmatprep.subr.bf16.mxu0 0
      %2332 = vmatpush2.bf16.msra.mxu0 0
      %2333 = vmatprep.subr.bf16.mxu0 0
      %2334 = vmatpush2.bf16.msra.mxu0 0
      %2335 = vmatprep.subr.bf16.mxu0 0
      %2336 = vmatpush2.bf16.msra.mxu0 0
      %2337 = vmatprep.subr.bf16.mxu0 0
      %2338 = vmatpush2.bf16.msra.mxu0 0
      %2339 = vmatprep.subr.bf16.mxu0 0
      %2340 = vmatpush2.bf16.msra.mxu0 0
      %2341 = vmatprep.subr.bf16.mxu0 0
      %2342 = vmatpush2.bf16.msra.mxu0 0
      %2343 = vmatprep.subr.bf16.mxu0 0
      %2344 = vmatpush2.bf16.msra.mxu0 0
      %2345 = vmatprep.subr.bf16.mxu0 0
      %2346 = vmatpush2.bf16.msra.mxu0 0
      %2347 = vmatprep.mubr.bf16.mxu0 0
      %2348 = vmatmul.mubr.bf16.gmra.mxu0 %v1416
      %v2349 = vpop.f32.mrf.mxu0
      %v2350 = vadd.f32 0.0, %v2349
      %v2351 = vpop.f32.mrf.mxu0
      %v2352 = vpop.f32.mrf.mxu0
      %v2353 = vadd.f32 0.0, %v2352
      %v2354 = vpop.f32.mrf.mxu0
      %2355 = vmatprep.mubr.bf16.mxu0 0
      %2356 = vmatmul.mubr.bf16.gmra.mxu0 %v1417
      %v2357 = vpop.f32.mrf.mxu0
      %v2358 = vadd.f32 0.0, %v2357
      %v2359 = vpop.f32.mrf.mxu0
      %v2360 = vpop.f32.mrf.mxu0
      %v2361 = vadd.f32 0.0, %v2360
      %v2362 = vpop.f32.mrf.mxu0
      %2363 = vmatprep.mubr.bf16.mxu0 0
      %2364 = vmatmul.mubr.bf16.gmra.mxu0 %v1418
      %v2365 = vpop.f32.mrf.mxu0
      %v2366 = vadd.f32 0.0, %v2365
      %v2367 = vpop.f32.mrf.mxu0
      %v2368 = vpop.f32.mrf.mxu0
      %v2369 = vadd.f32 0.0, %v2368
      %v2370 = vpop.f32.mrf.mxu0
      %2371 = vmatprep.mubr.bf16.mxu0 0
      %2372 = vmatmul.mubr.bf16.gmra.mxu0 %v1419
      %v2373 = vpop.f32.mrf.mxu0
      %v2374 = vadd.f32 0.0, %v2373
      %v2375 = vpop.f32.mrf.mxu0
      %v2376 = vpop.f32.mrf.mxu0
      %v2377 = vadd.f32 0.0, %v2376
      %v2378 = vpop.f32.mrf.mxu0
      %2379 = vmatprep.mubr.bf16.mxu0 0
      %2380 = vmatmul.mubr.bf16.gmra.mxu0 %v1420
      %v2381 = vpop.f32.mrf.mxu0
      %v2382 = vadd.f32 0.0, %v2381
      %v2383 = vpop.f32.mrf.mxu0
      %v2384 = vpop.f32.mrf.mxu0
      %v2385 = vadd.f32 0.0, %v2384
      %v2386 = vpop.f32.mrf.mxu0
      %2387 = vmatprep.mubr.bf16.mxu0 0
      %2388 = vmatmul.mubr.bf16.gmra.mxu0 %v1421
      %v2389 = vpop.f32.mrf.mxu0
      %v2390 = vadd.f32 0.0, %v2389
      %v2391 = vpop.f32.mrf.mxu0
      %v2392 = vpop.f32.mrf.mxu0
      %v2393 = vadd.f32 0.0, %v2392
      %v2394 = vpop.f32.mrf.mxu0
      %2395 = vmatprep.mubr.bf16.mxu0 0
      %2396 = vmatmul.mubr.bf16.gmra.mxu0 %v1422
      %v2397 = vpop.f32.mrf.mxu0
      %v2398 = vadd.f32 0.0, %v2397
      %v2399 = vpop.f32.mrf.mxu0
      %v2400 = vpop.f32.mrf.mxu0
      %v2401 = vadd.f32 0.0, %v2400
      %v2402 = vpop.f32.mrf.mxu0
      %2403 = vmatprep.mubr.bf16.mxu0 0
      %2404 = vmatmul.mubr.bf16.gmra.mxu0 %v1423
      %v2405 = vpop.f32.mrf.mxu0
      %v2406 = vadd.f32 0.0, %v2405
      %v2407 = vpop.f32.mrf.mxu0
      %v2408 = vpop.f32.mrf.mxu0
      %v2409 = vadd.f32 0.0, %v2408
      %v2410 = vpop.f32.mrf.mxu0
      %2411 = vmatprep.mubr.bf16.mxu0 0
      %2412 = vmatmul.mubr.bf16.gmra.mxu0 %v1424
      %v2413 = vpop.f32.mrf.mxu0
      %v2414 = vadd.f32 0.0, %v2413
      %v2415 = vpop.f32.mrf.mxu0
      %v2416 = vpop.f32.mrf.mxu0
      %v2417 = vadd.f32 0.0, %v2416
      %v2418 = vpop.f32.mrf.mxu0
      %2419 = vmatprep.mubr.bf16.mxu0 0
      %2420 = vmatmul.mubr.bf16.gmra.mxu0 %v1425
      %v2421 = vpop.f32.mrf.mxu0
      %v2422 = vadd.f32 0.0, %v2421
      %v2423 = vpop.f32.mrf.mxu0
      %v2424 = vpop.f32.mrf.mxu0
      %v2425 = vadd.f32 0.0, %v2424
      %v2426 = vpop.f32.mrf.mxu0
      %2427 = vmatprep.mubr.bf16.mxu0 0
      %2428 = vmatmul.mubr.bf16.gmra.mxu0 %v1426
      %v2429 = vpop.f32.mrf.mxu0
      %v2430 = vadd.f32 0.0, %v2429
      %v2431 = vpop.f32.mrf.mxu0
      %v2432 = vpop.f32.mrf.mxu0
      %v2433 = vadd.f32 0.0, %v2432
      %v2434 = vpop.f32.mrf.mxu0
      %2435 = vmatprep.mubr.bf16.mxu0 0
      %2436 = vmatmul.mubr.bf16.gmra.mxu0 %v1427
      %v2437 = vpop.f32.mrf.mxu0
      %v2438 = vadd.f32 0.0, %v2437
      %v2439 = vpop.f32.mrf.mxu0
      %v2440 = vpop.f32.mrf.mxu0
      %v2441 = vadd.f32 0.0, %v2440
      %v2442 = vpop.f32.mrf.mxu0
      %2443 = vmatprep.mubr.bf16.mxu0 0
      %2444 = vmatmul.mubr.bf16.gmra.mxu0 %v1428
      %v2445 = vpop.f32.mrf.mxu0
      %v2446 = vadd.f32 0.0, %v2445
      %v2447 = vpop.f32.mrf.mxu0
      %v2448 = vpop.f32.mrf.mxu0
      %v2449 = vadd.f32 0.0, %v2448
      %v2450 = vpop.f32.mrf.mxu0
      %2451 = vmatprep.mubr.bf16.mxu0 0
      %2452 = vmatmul.mubr.bf16.gmra.mxu0 %v1429
      %v2453 = vpop.f32.mrf.mxu0
      %v2454 = vadd.f32 0.0, %v2453
      %v2455 = vpop.f32.mrf.mxu0
      %v2456 = vpop.f32.mrf.mxu0
      %v2457 = vadd.f32 0.0, %v2456
      %v2458 = vpop.f32.mrf.mxu0
      %2459 = vmatprep.mubr.bf16.mxu0 0
      %2460 = vmatmul.mubr.bf16.gmra.mxu0 %v1430
      %v2461 = vpop.f32.mrf.mxu0
      %v2462 = vadd.f32 0.0, %v2461
      %v2463 = vpop.f32.mrf.mxu0
      %v2464 = vpop.f32.mrf.mxu0
      %v2465 = vadd.f32 0.0, %v2464
      %v2466 = vpop.f32.mrf.mxu0
      %2467 = vmatprep.mubr.bf16.mxu0 0
      %2468 = vmatmul.mubr.bf16.gmra.mxu0 %v2265
      %v2469 = vpop.f32.mrf.mxu0
      %v2470 = vadd.f32 0.0, %v2469
      %v2471 = vpop.f32.mrf.mxu0
      %v2472 = vpop.f32.mrf.mxu0
      %v2473 = vadd.f32 0.0, %v2472
      %v2474 = vpop.f32.mrf.mxu0
      %2475 = vdwg.mxu0
      %v2476 = vadd.f32 %v2206, %v2350
      %v2477 = vadd.f32 %v2207, %v2353
      %v2478 = vadd.f32 %v2208, %v2358
      %v2479 = vadd.f32 %v2209, %v2361
      %v2480 = vadd.f32 %v2210, %v2366
      %v2481 = vadd.f32 %v2211, %v2369
      %v2482 = vadd.f32 %v2212, %v2374
      %v2483 = vadd.f32 %v2213, %v2377
      %v2484 = vadd.f32 %v2214, %v2382
      %v2485 = vadd.f32 %v2215, %v2385
      %v2486 = vadd.f32 %v2216, %v2390
      %v2487 = vadd.f32 %v2217, %v2393
      %v2488 = vadd.f32 %v2218, %v2398
      %v2489 = vadd.f32 %v2219, %v2401
      %v2490 = vadd.f32 %v2220, %v2406
      %v2491 = vadd.f32 %v2221, %v2409
      %v2492 = vadd.f32 %v2222, %v2414
      %v2493 = vadd.f32 %v2223, %v2417
      %v2494 = vadd.f32 %v2224, %v2422
      %v2495 = vadd.f32 %v2225, %v2425
      %v2496 = vadd.f32 %v2226, %v2430
      %v2497 = vadd.f32 %v2227, %v2433
      %v2498 = vadd.f32 %v2228, %v2438
      %v2499 = vadd.f32 %v2229, %v2441
      %v2500 = vadd.f32 %v2230, %v2446
      %v2501 = vadd.f32 %v2231, %v2449
      %v2502 = vadd.f32 %v2232, %v2454
      %v2503 = vadd.f32 %v2233, %v2457
      %v2504 = vadd.f32 %v2234, %v2462
      %v2505 = vadd.f32 %v2235, %v2465
      %v2506 = vadd.f32 %v2236, %v2470
      %v2507 = vadd.f32 %v2237, %v2473
      %s2508 = scalar_lea.vmem %s1, 384
      %v2509 = vld [vmem:[%s2508] sm:$0xf]
      %v2510 = vld [vmem:[%s2508 + $0x4] sm:$0xf]
      %v2511 = vld [vmem:[%s2508 + $0x8] sm:$0xf]
      %v2512 = vld [vmem:[%s2508 + $0xc] sm:$0xf]
      %v2513 = vld [vmem:[%s2508 + $0x10] sm:$0xf]
      %v2514 = vld [vmem:[%s2508 + $0x14] sm:$0xf]
      %v2515 = vld [vmem:[%s2508 + $0x18] sm:$0xf]
      %v2516 = vld [vmem:[%s2508 + $0x1c] sm:$0xf]
      %v2517 = vld [vmem:[%s2508 + $0x20] sm:$0xf]
      %v2518 = vld [vmem:[%s2508 + $0x24] sm:$0xf]
      %v2519 = vld [vmem:[%s2508 + $0x28] sm:$0xf]
      %v2520 = vld [vmem:[%s2508 + $0x2c] sm:$0xf]
      %v2521 = vld [vmem:[%s2508 + $0x30] sm:$0xf]
      %v2522 = vld [vmem:[%s2508 + $0x34] sm:$0xf]
      %v2523 = vld [vmem:[%s2508 + $0x38] sm:$0xf]
      %v2524 = vld [vmem:[%s2508 + $0x3c] sm:$0xf]
      %v2527 = vunpack.c.l.b16 %v234
      %v2528 = vunpack.c.l.b16 %v235
      %v2529 = vpack.c.b16 %v2528, %v2527
      %v2547 = vunpack.c.l.b16 %v2509
      %v2548 = vunpack.c.l.b16 %v2510
      %v2549 = vunpack.c.l.b16 %v2511
      %v2550 = vunpack.c.l.b16 %v2512
      %v2551 = vunpack.c.l.b16 %v2513
      %v2552 = vunpack.c.l.b16 %v2514
      %v2553 = vunpack.c.l.b16 %v2515
      %v2554 = vunpack.c.l.b16 %v2516
      %v2555 = vunpack.c.l.b16 %v2517
      %v2556 = vunpack.c.l.b16 %v2518
      %v2557 = vunpack.c.l.b16 %v2519
      %v2558 = vunpack.c.l.b16 %v2520
      %v2559 = vunpack.c.l.b16 %v2521
      %v2560 = vunpack.c.l.b16 %v2522
      %v2561 = vunpack.c.l.b16 %v2523
      %v2562 = vunpack.c.l.b16 %v2524
      %v2563 = vpack.c.b16 %v2548, %v2547
      %v2564 = vpack.c.b16 %v2550, %v2549
      %v2565 = vpack.c.b16 %v2552, %v2551
      %v2566 = vpack.c.b16 %v2554, %v2553
      %v2567 = vpack.c.b16 %v2556, %v2555
      %v2568 = vpack.c.b16 %v2558, %v2557
      %v2569 = vpack.c.b16 %v2560, %v2559
      %v2570 = vpack.c.b16 %v2562, %v2561
      %2579 = vmatprep.subr.bf16.mxu0 0
      %2580 = vmatpush1.bf16.msra.mxu0 %v2570
      %2581 = vmatprep.subr.bf16.mxu0 0
      %2582 = vmatpush1.bf16.msra.mxu0 %v2569
      %2583 = vmatprep.subr.bf16.mxu0 0
      %2584 = vmatpush1.bf16.msra.mxu0 %v2568
      %2585 = vmatprep.subr.bf16.mxu0 0
      %2586 = vmatpush1.bf16.msra.mxu0 %v2567
      %2587 = vmatprep.subr.bf16.mxu0 0
      %2588 = vmatpush1.bf16.msra.mxu0 %v2566
      %2589 = vmatprep.subr.bf16.mxu0 0
      %2590 = vmatpush1.bf16.msra.mxu0 %v2565
      %2591 = vmatprep.subr.bf16.mxu0 0
      %2592 = vmatpush1.bf16.msra.mxu0 %v2564
      %2593 = vmatprep.subr.bf16.mxu0 0
      %2594 = vmatpush1.bf16.msra.mxu0 %v2563
      %2595 = vmatprep.subr.bf16.mxu0 0
      %2596 = vmatpush2.bf16.msra.mxu0 0
      %2597 = vmatprep.subr.bf16.mxu0 0
      %2598 = vmatpush2.bf16.msra.mxu0 0
      %2599 = vmatprep.subr.bf16.mxu0 0
      %2600 = vmatpush2.bf16.msra.mxu0 0
      %2601 = vmatprep.subr.bf16.mxu0 0
      %2602 = vmatpush2.bf16.msra.mxu0 0
      %2603 = vmatprep.subr.bf16.mxu0 0
      %2604 = vmatpush2.bf16.msra.mxu0 0
      %2605 = vmatprep.subr.bf16.mxu0 0
      %2606 = vmatpush2.bf16.msra.mxu0 0
      %2607 = vmatprep.subr.bf16.mxu0 0
      %2608 = vmatpush2.bf16.msra.mxu0 0
      %2609 = vmatprep.subr.bf16.mxu0 0
      %2610 = vmatpush2.bf16.msra.mxu0 0
      %2611 = vmatprep.mubr.bf16.mxu0 0
      %2612 = vmatmul.mubr.bf16.gmra.mxu0 %v996
      %v2613 = vpop.f32.mrf.mxu0
      %v2614 = vadd.f32 0.0, %v2613
      %v2615 = vpop.f32.mrf.mxu0
      %v2616 = vpop.f32.mrf.mxu0
      %v2617 = vadd.f32 0.0, %v2616
      %v2618 = vpop.f32.mrf.mxu0
      %2619 = vmatprep.mubr.bf16.mxu0 0
      %2620 = vmatmul.mubr.bf16.gmra.mxu0 %v997
      %v2621 = vpop.f32.mrf.mxu0
      %v2622 = vadd.f32 0.0, %v2621
      %v2623 = vpop.f32.mrf.mxu0
      %v2624 = vpop.f32.mrf.mxu0
      %v2625 = vadd.f32 0.0, %v2624
      %v2626 = vpop.f32.mrf.mxu0
      %2627 = vmatprep.mubr.bf16.mxu0 0
      %2628 = vmatmul.mubr.bf16.gmra.mxu0 %v998
      %v2629 = vpop.f32.mrf.mxu0
      %v2630 = vadd.f32 0.0, %v2629
      %v2631 = vpop.f32.mrf.mxu0
      %v2632 = vpop.f32.mrf.mxu0
      %v2633 = vadd.f32 0.0, %v2632
      %v2634 = vpop.f32.mrf.mxu0
      %2635 = vmatprep.mubr.bf16.mxu0 0
      %2636 = vmatmul.mubr.bf16.gmra.mxu0 %v999
      %v2637 = vpop.f32.mrf.mxu0
      %v2638 = vadd.f32 0.0, %v2637
      %v2639 = vpop.f32.mrf.mxu0
      %v2640 = vpop.f32.mrf.mxu0
      %v2641 = vadd.f32 0.0, %v2640
      %v2642 = vpop.f32.mrf.mxu0
      %2643 = vmatprep.mubr.bf16.mxu0 0
      %2644 = vmatmul.mubr.bf16.gmra.mxu0 %v1000
      %v2645 = vpop.f32.mrf.mxu0
      %v2646 = vadd.f32 0.0, %v2645
      %v2647 = vpop.f32.mrf.mxu0
      %v2648 = vpop.f32.mrf.mxu0
      %v2649 = vadd.f32 0.0, %v2648
      %v2650 = vpop.f32.mrf.mxu0
      %2651 = vmatprep.mubr.bf16.mxu0 0
      %2652 = vmatmul.mubr.bf16.gmra.mxu0 %v1001
      %v2653 = vpop.f32.mrf.mxu0
      %v2654 = vadd.f32 0.0, %v2653
      %v2655 = vpop.f32.mrf.mxu0
      %v2656 = vpop.f32.mrf.mxu0
      %v2657 = vadd.f32 0.0, %v2656
      %v2658 = vpop.f32.mrf.mxu0
      %2659 = vmatprep.mubr.bf16.mxu0 0
      %2660 = vmatmul.mubr.bf16.gmra.mxu0 %v1002
      %v2661 = vpop.f32.mrf.mxu0
      %v2662 = vadd.f32 0.0, %v2661
      %v2663 = vpop.f32.mrf.mxu0
      %v2664 = vpop.f32.mrf.mxu0
      %v2665 = vadd.f32 0.0, %v2664
      %v2666 = vpop.f32.mrf.mxu0
      %2667 = vmatprep.mubr.bf16.mxu0 0
      %2668 = vmatmul.mubr.bf16.gmra.mxu0 %v1003
      %v2669 = vpop.f32.mrf.mxu0
      %v2670 = vadd.f32 0.0, %v2669
      %v2671 = vpop.f32.mrf.mxu0
      %v2672 = vpop.f32.mrf.mxu0
      %v2673 = vadd.f32 0.0, %v2672
      %v2674 = vpop.f32.mrf.mxu0
      %2675 = vmatprep.mubr.bf16.mxu0 0
      %2676 = vmatmul.mubr.bf16.gmra.mxu0 %v1004
      %v2677 = vpop.f32.mrf.mxu0
      %v2678 = vadd.f32 0.0, %v2677
      %v2679 = vpop.f32.mrf.mxu0
      %v2680 = vpop.f32.mrf.mxu0
      %v2681 = vadd.f32 0.0, %v2680
      %v2682 = vpop.f32.mrf.mxu0
      %2683 = vmatprep.mubr.bf16.mxu0 0
      %2684 = vmatmul.mubr.bf16.gmra.mxu0 %v1005
      %v2685 = vpop.f32.mrf.mxu0
      %v2686 = vadd.f32 0.0, %v2685
      %v2687 = vpop.f32.mrf.mxu0
      %v2688 = vpop.f32.mrf.mxu0
      %v2689 = vadd.f32 0.0, %v2688
      %v2690 = vpop.f32.mrf.mxu0
      %2691 = vmatprep.mubr.bf16.mxu0 0
      %2692 = vmatmul.mubr.bf16.gmra.mxu0 %v1006
      %v2693 = vpop.f32.mrf.mxu0
      %v2694 = vadd.f32 0.0, %v2693
      %v2695 = vpop.f32.mrf.mxu0
      %v2696 = vpop.f32.mrf.mxu0
      %v2697 = vadd.f32 0.0, %v2696
      %v2698 = vpop.f32.mrf.mxu0
      %2699 = vmatprep.mubr.bf16.mxu0 0
      %2700 = vmatmul.mubr.bf16.gmra.mxu0 %v1007
      %v2701 = vpop.f32.mrf.mxu0
      %v2702 = vadd.f32 0.0, %v2701
      %v2703 = vpop.f32.mrf.mxu0
      %v2704 = vpop.f32.mrf.mxu0
      %v2705 = vadd.f32 0.0, %v2704
      %v2706 = vpop.f32.mrf.mxu0
      %2707 = vmatprep.mubr.bf16.mxu0 0
      %2708 = vmatmul.mubr.bf16.gmra.mxu0 %v1008
      %v2709 = vpop.f32.mrf.mxu0
      %v2710 = vadd.f32 0.0, %v2709
      %v2711 = vpop.f32.mrf.mxu0
      %v2712 = vpop.f32.mrf.mxu0
      %v2713 = vadd.f32 0.0, %v2712
      %v2714 = vpop.f32.mrf.mxu0
      %2715 = vmatprep.mubr.bf16.mxu0 0
      %2716 = vmatmul.mubr.bf16.gmra.mxu0 %v1009
      %v2717 = vpop.f32.mrf.mxu0
      %v2718 = vadd.f32 0.0, %v2717
      %v2719 = vpop.f32.mrf.mxu0
      %v2720 = vpop.f32.mrf.mxu0
      %v2721 = vadd.f32 0.0, %v2720
      %v2722 = vpop.f32.mrf.mxu0
      %2723 = vmatprep.mubr.bf16.mxu0 0
      %2724 = vmatmul.mubr.bf16.gmra.mxu0 %v1709
      %v2725 = vpop.f32.mrf.mxu0
      %v2726 = vadd.f32 0.0, %v2725
      %v2727 = vpop.f32.mrf.mxu0
      %v2728 = vpop.f32.mrf.mxu0
      %v2729 = vadd.f32 0.0, %v2728
      %v2730 = vpop.f32.mrf.mxu0
      %2731 = vmatprep.mubr.bf16.mxu0 0
      %2732 = vmatmul.mubr.bf16.gmra.mxu0 %v2529
      %v2733 = vpop.f32.mrf.mxu0
      %v2734 = vadd.f32 0.0, %v2733
      %v2735 = vpop.f32.mrf.mxu0
      %v2736 = vpop.f32.mrf.mxu0
      %v2737 = vadd.f32 0.0, %v2736
      %v2738 = vpop.f32.mrf.mxu0
      %2739 = vdwg.mxu0
      %v2740 = vadd.f32 %v2476, %v2614
      %v2741 = vadd.f32 %v2477, %v2617
      %v2742 = vadd.f32 %v2478, %v2622
      %v2743 = vadd.f32 %v2479, %v2625
      %v2744 = vadd.f32 %v2480, %v2630
      %v2745 = vadd.f32 %v2481, %v2633
      %v2746 = vadd.f32 %v2482, %v2638
      %v2747 = vadd.f32 %v2483, %v2641
      %v2748 = vadd.f32 %v2484, %v2646
      %v2749 = vadd.f32 %v2485, %v2649
      %v2750 = vadd.f32 %v2486, %v2654
      %v2751 = vadd.f32 %v2487, %v2657
      %v2752 = vadd.f32 %v2488, %v2662
      %v2753 = vadd.f32 %v2489, %v2665
      %v2754 = vadd.f32 %v2490, %v2670
      %v2755 = vadd.f32 %v2491, %v2673
      %v2756 = vadd.f32 %v2492, %v2678
      %v2757 = vadd.f32 %v2493, %v2681
      %v2758 = vadd.f32 %v2494, %v2686
      %v2759 = vadd.f32 %v2495, %v2689
      %v2760 = vadd.f32 %v2496, %v2694
      %v2761 = vadd.f32 %v2497, %v2697
      %v2762 = vadd.f32 %v2498, %v2702
      %v2763 = vadd.f32 %v2499, %v2705
      %v2764 = vadd.f32 %v2500, %v2710
      %v2765 = vadd.f32 %v2501, %v2713
      %v2766 = vadd.f32 %v2502, %v2718
      %v2767 = vadd.f32 %v2503, %v2721
      %v2768 = vadd.f32 %v2504, %v2726
      %v2769 = vadd.f32 %v2505, %v2729
      %v2770 = vadd.f32 %v2506, %v2734
      %v2771 = vadd.f32 %v2507, %v2737
      %v2773 = vshrl.u32 %v234, 16
      %v2775 = vrot.slane %v2773, 4
      %v2776 = vshll.u32 %v234, 16
      %v2778 = vrot.slane %v2776, 5
      %v2779 = vor.u32 %v2775, %v2778
      %v2780 = vrot.slane %v2779, 4
      %v2782 = vshll.u32 %v235, 16
      %v2784 = vrot.slane %v2782, 5
      %v2785 = vsel %vm255, %v2780, %v2784
      %v2786 = vshrl.u32 %v235, 16
      %v2788 = vrot.slane %v2786, 4
      %v2789 = vor.u32 %v2788, %v2784
      %v2790 = vrot.slane %v2789, 4
      %v2792 = vshll.u32 %v236, 16
      %v2794 = vrot.slane %v2792, 5
      %v2795 = vsel %vm255, %v2790, %v2794
      %s2796 = scalar_lea.vmem %s1, 448
      %v2797 = vld [vmem:[%s2796] sm:$0xf]
      %v2798 = vld [vmem:[%s2796 + $0x4] sm:$0xf]
      %v2799 = vld [vmem:[%s2796 + $0x8] sm:$0xf]
      %v2800 = vld [vmem:[%s2796 + $0xc] sm:$0xf]
      %v2801 = vld [vmem:[%s2796 + $0x10] sm:$0xf]
      %v2802 = vld [vmem:[%s2796 + $0x14] sm:$0xf]
      %v2803 = vld [vmem:[%s2796 + $0x18] sm:$0xf]
      %v2804 = vld [vmem:[%s2796 + $0x1c] sm:$0xf]
      %v2805 = vld [vmem:[%s2796 + $0x20] sm:$0xf]
      %v2806 = vld [vmem:[%s2796 + $0x24] sm:$0xf]
      %v2807 = vld [vmem:[%s2796 + $0x28] sm:$0xf]
      %v2808 = vld [vmem:[%s2796 + $0x2c] sm:$0xf]
      %v2809 = vld [vmem:[%s2796 + $0x30] sm:$0xf]
      %v2810 = vld [vmem:[%s2796 + $0x34] sm:$0xf]
      %v2811 = vld [vmem:[%s2796 + $0x38] sm:$0xf]
      %v2812 = vld [vmem:[%s2796 + $0x3c] sm:$0xf]
      %v2813 = vunpack.c.l.b16 %v2785
      %v2814 = vunpack.c.l.b16 %v2795
      %v2815 = vpack.c.b16 %v2814, %v2813
      %v2833 = vunpack.c.l.b16 %v2797
      %v2834 = vunpack.c.l.b16 %v2798
      %v2835 = vunpack.c.l.b16 %v2799
      %v2836 = vunpack.c.l.b16 %v2800
      %v2837 = vunpack.c.l.b16 %v2801
      %v2838 = vunpack.c.l.b16 %v2802
      %v2839 = vunpack.c.l.b16 %v2803
      %v2840 = vunpack.c.l.b16 %v2804
      %v2841 = vunpack.c.l.b16 %v2805
      %v2842 = vunpack.c.l.b16 %v2806
      %v2843 = vunpack.c.l.b16 %v2807
      %v2844 = vunpack.c.l.b16 %v2808
      %v2845 = vunpack.c.l.b16 %v2809
      %v2846 = vunpack.c.l.b16 %v2810
      %v2847 = vunpack.c.l.b16 %v2811
      %v2848 = vunpack.c.l.b16 %v2812
      %v2849 = vpack.c.b16 %v2834, %v2833
      %v2850 = vpack.c.b16 %v2836, %v2835
      %v2851 = vpack.c.b16 %v2838, %v2837
      %v2852 = vpack.c.b16 %v2840, %v2839
      %v2853 = vpack.c.b16 %v2842, %v2841
      %v2854 = vpack.c.b16 %v2844, %v2843
      %v2855 = vpack.c.b16 %v2846, %v2845
      %v2856 = vpack.c.b16 %v2848, %v2847
      %2865 = vmatprep.subr.bf16.mxu0 0
      %2866 = vmatpush1.bf16.msra.mxu0 %v2856
      %2867 = vmatprep.subr.bf16.mxu0 0
      %2868 = vmatpush1.bf16.msra.mxu0 %v2855
      %2869 = vmatprep.subr.bf16.mxu0 0
      %2870 = vmatpush1.bf16.msra.mxu0 %v2854
      %2871 = vmatprep.subr.bf16.mxu0 0
      %2872 = vmatpush1.bf16.msra.mxu0 %v2853
      %2873 = vmatprep.subr.bf16.mxu0 0
      %2874 = vmatpush1.bf16.msra.mxu0 %v2852
      %2875 = vmatprep.subr.bf16.mxu0 0
      %2876 = vmatpush1.bf16.msra.mxu0 %v2851
      %2877 = vmatprep.subr.bf16.mxu0 0
      %2878 = vmatpush1.bf16.msra.mxu0 %v2850
      %2879 = vmatprep.subr.bf16.mxu0 0
      %2880 = vmatpush1.bf16.msra.mxu0 %v2849
      %2881 = vmatprep.subr.bf16.mxu0 0
      %2882 = vmatpush2.bf16.msra.mxu0 0
      %2883 = vmatprep.subr.bf16.mxu0 0
      %2884 = vmatpush2.bf16.msra.mxu0 0
      %2885 = vmatprep.subr.bf16.mxu0 0
      %2886 = vmatpush2.bf16.msra.mxu0 0
      %2887 = vmatprep.subr.bf16.mxu0 0
      %2888 = vmatpush2.bf16.msra.mxu0 0
      %2889 = vmatprep.subr.bf16.mxu0 0
      %2890 = vmatpush2.bf16.msra.mxu0 0
      %2891 = vmatprep.subr.bf16.mxu0 0
      %2892 = vmatpush2.bf16.msra.mxu0 0
      %2893 = vmatprep.subr.bf16.mxu0 0
      %2894 = vmatpush2.bf16.msra.mxu0 0
      %2895 = vmatprep.subr.bf16.mxu0 0
      %2896 = vmatpush2.bf16.msra.mxu0 0
      %2897 = vmatprep.mubr.bf16.mxu0 0
      %2898 = vmatmul.mubr.bf16.gmra.mxu0 %v691
      %v2899 = vpop.f32.mrf.mxu0
      %v2900 = vadd.f32 0.0, %v2899
      %v2901 = vpop.f32.mrf.mxu0
      %v2902 = vpop.f32.mrf.mxu0
      %v2903 = vadd.f32 0.0, %v2902
      %v2904 = vpop.f32.mrf.mxu0
      %2905 = vmatprep.mubr.bf16.mxu0 0
      %2906 = vmatmul.mubr.bf16.gmra.mxu0 %v692
      %v2907 = vpop.f32.mrf.mxu0
      %v2908 = vadd.f32 0.0, %v2907
      %v2909 = vpop.f32.mrf.mxu0
      %v2910 = vpop.f32.mrf.mxu0
      %v2911 = vadd.f32 0.0, %v2910
      %v2912 = vpop.f32.mrf.mxu0
      %2913 = vmatprep.mubr.bf16.mxu0 0
      %2914 = vmatmul.mubr.bf16.gmra.mxu0 %v693
      %v2915 = vpop.f32.mrf.mxu0
      %v2916 = vadd.f32 0.0, %v2915
      %v2917 = vpop.f32.mrf.mxu0
      %v2918 = vpop.f32.mrf.mxu0
      %v2919 = vadd.f32 0.0, %v2918
      %v2920 = vpop.f32.mrf.mxu0
      %2921 = vmatprep.mubr.bf16.mxu0 0
      %2922 = vmatmul.mubr.bf16.gmra.mxu0 %v694
      %v2923 = vpop.f32.mrf.mxu0
      %v2924 = vadd.f32 0.0, %v2923
      %v2925 = vpop.f32.mrf.mxu0
      %v2926 = vpop.f32.mrf.mxu0
      %v2927 = vadd.f32 0.0, %v2926
      %v2928 = vpop.f32.mrf.mxu0
      %2929 = vmatprep.mubr.bf16.mxu0 0
      %2930 = vmatmul.mubr.bf16.gmra.mxu0 %v695
      %v2931 = vpop.f32.mrf.mxu0
      %v2932 = vadd.f32 0.0, %v2931
      %v2933 = vpop.f32.mrf.mxu0
      %v2934 = vpop.f32.mrf.mxu0
      %v2935 = vadd.f32 0.0, %v2934
      %v2936 = vpop.f32.mrf.mxu0
      %2937 = vmatprep.mubr.bf16.mxu0 0
      %2938 = vmatmul.mubr.bf16.gmra.mxu0 %v696
      %v2939 = vpop.f32.mrf.mxu0
      %v2940 = vadd.f32 0.0, %v2939
      %v2941 = vpop.f32.mrf.mxu0
      %v2942 = vpop.f32.mrf.mxu0
      %v2943 = vadd.f32 0.0, %v2942
      %v2944 = vpop.f32.mrf.mxu0
      %2945 = vmatprep.mubr.bf16.mxu0 0
      %2946 = vmatmul.mubr.bf16.gmra.mxu0 %v697
      %v2947 = vpop.f32.mrf.mxu0
      %v2948 = vadd.f32 0.0, %v2947
      %v2949 = vpop.f32.mrf.mxu0
      %v2950 = vpop.f32.mrf.mxu0
      %v2951 = vadd.f32 0.0, %v2950
      %v2952 = vpop.f32.mrf.mxu0
      %2953 = vmatprep.mubr.bf16.mxu0 0
      %2954 = vmatmul.mubr.bf16.gmra.mxu0 %v698
      %v2955 = vpop.f32.mrf.mxu0
      %v2956 = vadd.f32 0.0, %v2955
      %v2957 = vpop.f32.mrf.mxu0
      %v2958 = vpop.f32.mrf.mxu0
      %v2959 = vadd.f32 0.0, %v2958
      %v2960 = vpop.f32.mrf.mxu0
      %2961 = vmatprep.mubr.bf16.mxu0 0
      %2962 = vmatmul.mubr.bf16.gmra.mxu0 %v699
      %v2963 = vpop.f32.mrf.mxu0
      %v2964 = vadd.f32 0.0, %v2963
      %v2965 = vpop.f32.mrf.mxu0
      %v2966 = vpop.f32.mrf.mxu0
      %v2967 = vadd.f32 0.0, %v2966
      %v2968 = vpop.f32.mrf.mxu0
      %2969 = vmatprep.mubr.bf16.mxu0 0
      %2970 = vmatmul.mubr.bf16.gmra.mxu0 %v700
      %v2971 = vpop.f32.mrf.mxu0
      %v2972 = vadd.f32 0.0, %v2971
      %v2973 = vpop.f32.mrf.mxu0
      %v2974 = vpop.f32.mrf.mxu0
      %v2975 = vadd.f32 0.0, %v2974
      %v2976 = vpop.f32.mrf.mxu0
      %2977 = vmatprep.mubr.bf16.mxu0 0
      %2978 = vmatmul.mubr.bf16.gmra.mxu0 %v701
      %v2979 = vpop.f32.mrf.mxu0
      %v2980 = vadd.f32 0.0, %v2979
      %v2981 = vpop.f32.mrf.mxu0
      %v2982 = vpop.f32.mrf.mxu0
      %v2983 = vadd.f32 0.0, %v2982
      %v2984 = vpop.f32.mrf.mxu0
      %2985 = vmatprep.mubr.bf16.mxu0 0
      %2986 = vmatmul.mubr.bf16.gmra.mxu0 %v702
      %v2987 = vpop.f32.mrf.mxu0
      %v2988 = vadd.f32 0.0, %v2987
      %v2989 = vpop.f32.mrf.mxu0
      %v2990 = vpop.f32.mrf.mxu0
      %v2991 = vadd.f32 0.0, %v2990
      %v2992 = vpop.f32.mrf.mxu0
      %2993 = vmatprep.mubr.bf16.mxu0 0
      %2994 = vmatmul.mubr.bf16.gmra.mxu0 %v703
      %v2995 = vpop.f32.mrf.mxu0
      %v2996 = vadd.f32 0.0, %v2995
      %v2997 = vpop.f32.mrf.mxu0
      %v2998 = vpop.f32.mrf.mxu0
      %v2999 = vadd.f32 0.0, %v2998
      %v3000 = vpop.f32.mrf.mxu0
      %3001 = vmatprep.mubr.bf16.mxu0 0
      %3002 = vmatmul.mubr.bf16.gmra.mxu0 %v704
      %v3003 = vpop.f32.mrf.mxu0
      %v3004 = vadd.f32 0.0, %v3003
      %v3005 = vpop.f32.mrf.mxu0
      %v3006 = vpop.f32.mrf.mxu0
      %v3007 = vadd.f32 0.0, %v3006
      %v3008 = vpop.f32.mrf.mxu0
      %3009 = vmatprep.mubr.bf16.mxu0 0
      %3010 = vmatmul.mubr.bf16.gmra.mxu0 %v1995
      %v3011 = vpop.f32.mrf.mxu0
      %v3012 = vadd.f32 0.0, %v3011
      %v3013 = vpop.f32.mrf.mxu0
      %v3014 = vpop.f32.mrf.mxu0
      %v3015 = vadd.f32 0.0, %v3014
      %v3016 = vpop.f32.mrf.mxu0
      %3017 = vmatprep.mubr.bf16.mxu0 0
      %3018 = vmatmul.mubr.bf16.gmra.mxu0 %v2815
      %v3019 = vpop.f32.mrf.mxu0
      %v3020 = vadd.f32 0.0, %v3019
      %v3021 = vpop.f32.mrf.mxu0
      %v3022 = vpop.f32.mrf.mxu0
      %v3023 = vadd.f32 0.0, %v3022
      %v3024 = vpop.f32.mrf.mxu0
      %3025 = vdwg.mxu0
      %v3026 = vadd.f32 %v2740, %v2900
      %v3027 = vadd.f32 %v2741, %v2903
      %v3028 = vadd.f32 %v2742, %v2908
      %v3029 = vadd.f32 %v2743, %v2911
      %v3030 = vadd.f32 %v2744, %v2916
      %v3031 = vadd.f32 %v2745, %v2919
      %v3032 = vadd.f32 %v2746, %v2924
      %v3033 = vadd.f32 %v2747, %v2927
      %v3034 = vadd.f32 %v2748, %v2932
      %v3035 = vadd.f32 %v2749, %v2935
      %v3036 = vadd.f32 %v2750, %v2940
      %v3037 = vadd.f32 %v2751, %v2943
      %v3038 = vadd.f32 %v2752, %v2948
      %v3039 = vadd.f32 %v2753, %v2951
      %v3040 = vadd.f32 %v2754, %v2956
      %v3041 = vadd.f32 %v2755, %v2959
      %v3042 = vadd.f32 %v2756, %v2964
      %v3043 = vadd.f32 %v2757, %v2967
      %v3044 = vadd.f32 %v2758, %v2972
      %v3045 = vadd.f32 %v2759, %v2975
      %v3046 = vadd.f32 %v2760, %v2980
      %v3047 = vadd.f32 %v2761, %v2983
      %v3048 = vadd.f32 %v2762, %v2988
      %v3049 = vadd.f32 %v2763, %v2991
      %v3050 = vadd.f32 %v2764, %v2996
      %v3051 = vadd.f32 %v2765, %v2999
      %v3052 = vadd.f32 %v2766, %v3004
      %v3053 = vadd.f32 %v2767, %v3007
      %v3054 = vadd.f32 %v2768, %v3012
      %v3055 = vadd.f32 %v2769, %v3015
      %v3056 = vadd.f32 %v2770, %v3020
      %v3057 = vadd.f32 %v2771, %v3023
      %v3059 = vrot.slane %v234, 5
      %v3060 = vrot.slane %v3059, 4
      %v3061 = vrot.slane %v235, 5
      %v3062 = vsel %vm1253, %v3060, %v3061
      %v3063 = vrot.slane %v3061, 4
      %v3064 = vrot.slane %v236, 5
      %v3065 = vsel %vm1253, %v3063, %v3064
      %s3066 = scalar_lea.vmem %s1, 512
      %v3067 = vld [vmem:[%s3066] sm:$0xf]
      %v3068 = vld [vmem:[%s3066 + $0x4] sm:$0xf]
      %v3069 = vld [vmem:[%s3066 + $0x8] sm:$0xf]
      %v3070 = vld [vmem:[%s3066 + $0xc] sm:$0xf]
      %v3071 = vld [vmem:[%s3066 + $0x10] sm:$0xf]
      %v3072 = vld [vmem:[%s3066 + $0x14] sm:$0xf]
      %v3073 = vld [vmem:[%s3066 + $0x18] sm:$0xf]
      %v3074 = vld [vmem:[%s3066 + $0x1c] sm:$0xf]
      %v3075 = vld [vmem:[%s3066 + $0x20] sm:$0xf]
      %v3076 = vld [vmem:[%s3066 + $0x24] sm:$0xf]
      %v3077 = vld [vmem:[%s3066 + $0x28] sm:$0xf]
      %v3078 = vld [vmem:[%s3066 + $0x2c] sm:$0xf]
      %v3079 = vld [vmem:[%s3066 + $0x30] sm:$0xf]
      %v3080 = vld [vmem:[%s3066 + $0x34] sm:$0xf]
      %v3081 = vld [vmem:[%s3066 + $0x38] sm:$0xf]
      %v3082 = vld [vmem:[%s3066 + $0x3c] sm:$0xf]
      %v3083 = vunpack.c.l.b16 %v3062
      %v3084 = vunpack.c.l.b16 %v3065
      %v3085 = vpack.c.b16 %v3084, %v3083
      %v3103 = vunpack.c.l.b16 %v3067
      %v3104 = vunpack.c.l.b16 %v3068
      %v3105 = vunpack.c.l.b16 %v3069
      %v3106 = vunpack.c.l.b16 %v3070
      %v3107 = vunpack.c.l.b16 %v3071
      %v3108 = vunpack.c.l.b16 %v3072
      %v3109 = vunpack.c.l.b16 %v3073
      %v3110 = vunpack.c.l.b16 %v3074
      %v3111 = vunpack.c.l.b16 %v3075
      %v3112 = vunpack.c.l.b16 %v3076
      %v3113 = vunpack.c.l.b16 %v3077
      %v3114 = vunpack.c.l.b16 %v3078
      %v3115 = vunpack.c.l.b16 %v3079
      %v3116 = vunpack.c.l.b16 %v3080
      %v3117 = vunpack.c.l.b16 %v3081
      %v3118 = vunpack.c.l.b16 %v3082
      %v3119 = vpack.c.b16 %v3104, %v3103
      %v3120 = vpack.c.b16 %v3106, %v3105
      %v3121 = vpack.c.b16 %v3108, %v3107
      %v3122 = vpack.c.b16 %v3110, %v3109
      %v3123 = vpack.c.b16 %v3112, %v3111
      %v3124 = vpack.c.b16 %v3114, %v3113
      %v3125 = vpack.c.b16 %v3116, %v3115
      %v3126 = vpack.c.b16 %v3118, %v3117
      %3135 = vmatprep.subr.bf16.mxu0 0
      %3136 = vmatpush1.bf16.msra.mxu0 %v3126
      %3137 = vmatprep.subr.bf16.mxu0 0
      %3138 = vmatpush1.bf16.msra.mxu0 %v3125
      %3139 = vmatprep.subr.bf16.mxu0 0
      %3140 = vmatpush1.bf16.msra.mxu0 %v3124
      %3141 = vmatprep.subr.bf16.mxu0 0
      %3142 = vmatpush1.bf16.msra.mxu0 %v3123
      %3143 = vmatprep.subr.bf16.mxu0 0
      %3144 = vmatpush1.bf16.msra.mxu0 %v3122
      %3145 = vmatprep.subr.bf16.mxu0 0
      %3146 = vmatpush1.bf16.msra.mxu0 %v3121
      %3147 = vmatprep.subr.bf16.mxu0 0
      %3148 = vmatpush1.bf16.msra.mxu0 %v3120
      %3149 = vmatprep.subr.bf16.mxu0 0
      %3150 = vmatpush1.bf16.msra.mxu0 %v3119
      %3151 = vmatprep.subr.bf16.mxu0 0
      %3152 = vmatpush2.bf16.msra.mxu0 0
      %3153 = vmatprep.subr.bf16.mxu0 0
      %3154 = vmatpush2.bf16.msra.mxu0 0
      %3155 = vmatprep.subr.bf16.mxu0 0
      %3156 = vmatpush2.bf16.msra.mxu0 0
      %3157 = vmatprep.subr.bf16.mxu0 0
      %3158 = vmatpush2.bf16.msra.mxu0 0
      %3159 = vmatprep.subr.bf16.mxu0 0
      %3160 = vmatpush2.bf16.msra.mxu0 0
      %3161 = vmatprep.subr.bf16.mxu0 0
      %3162 = vmatpush2.bf16.msra.mxu0 0
      %3163 = vmatprep.subr.bf16.mxu0 0
      %3164 = vmatpush2.bf16.msra.mxu0 0
      %3165 = vmatprep.subr.bf16.mxu0 0
      %3166 = vmatpush2.bf16.msra.mxu0 0
      %3167 = vmatprep.mubr.bf16.mxu0 0
      %3168 = vmatmul.mubr.bf16.gmra.mxu0 %v1417
      %v3169 = vpop.f32.mrf.mxu0
      %v3170 = vadd.f32 0.0, %v3169
      %v3171 = vpop.f32.mrf.mxu0
      %v3172 = vpop.f32.mrf.mxu0
      %v3173 = vadd.f32 0.0, %v3172
      %v3174 = vpop.f32.mrf.mxu0
      %3175 = vmatprep.mubr.bf16.mxu0 0
      %3176 = vmatmul.mubr.bf16.gmra.mxu0 %v1418
      %v3177 = vpop.f32.mrf.mxu0
      %v3178 = vadd.f32 0.0, %v3177
      %v3179 = vpop.f32.mrf.mxu0
      %v3180 = vpop.f32.mrf.mxu0
      %v3181 = vadd.f32 0.0, %v3180
      %v3182 = vpop.f32.mrf.mxu0
      %3183 = vmatprep.mubr.bf16.mxu0 0
      %3184 = vmatmul.mubr.bf16.gmra.mxu0 %v1419
      %v3185 = vpop.f32.mrf.mxu0
      %v3186 = vadd.f32 0.0, %v3185
      %v3187 = vpop.f32.mrf.mxu0
      %v3188 = vpop.f32.mrf.mxu0
      %v3189 = vadd.f32 0.0, %v3188
      %v3190 = vpop.f32.mrf.mxu0
      %3191 = vmatprep.mubr.bf16.mxu0 0
      %3192 = vmatmul.mubr.bf16.gmra.mxu0 %v1420
      %v3193 = vpop.f32.mrf.mxu0
      %v3194 = vadd.f32 0.0, %v3193
      %v3195 = vpop.f32.mrf.mxu0
      %v3196 = vpop.f32.mrf.mxu0
      %v3197 = vadd.f32 0.0, %v3196
      %v3198 = vpop.f32.mrf.mxu0
      %3199 = vmatprep.mubr.bf16.mxu0 0
      %3200 = vmatmul.mubr.bf16.gmra.mxu0 %v1421
      %v3201 = vpop.f32.mrf.mxu0
      %v3202 = vadd.f32 0.0, %v3201
      %v3203 = vpop.f32.mrf.mxu0
      %v3204 = vpop.f32.mrf.mxu0
      %v3205 = vadd.f32 0.0, %v3204
      %v3206 = vpop.f32.mrf.mxu0
      %3207 = vmatprep.mubr.bf16.mxu0 0
      %3208 = vmatmul.mubr.bf16.gmra.mxu0 %v1422
      %v3209 = vpop.f32.mrf.mxu0
      %v3210 = vadd.f32 0.0, %v3209
      %v3211 = vpop.f32.mrf.mxu0
      %v3212 = vpop.f32.mrf.mxu0
      %v3213 = vadd.f32 0.0, %v3212
      %v3214 = vpop.f32.mrf.mxu0
      %3215 = vmatprep.mubr.bf16.mxu0 0
      %3216 = vmatmul.mubr.bf16.gmra.mxu0 %v1423
      %v3217 = vpop.f32.mrf.mxu0
      %v3218 = vadd.f32 0.0, %v3217
      %v3219 = vpop.f32.mrf.mxu0
      %v3220 = vpop.f32.mrf.mxu0
      %v3221 = vadd.f32 0.0, %v3220
      %v3222 = vpop.f32.mrf.mxu0
      %3223 = vmatprep.mubr.bf16.mxu0 0
      %3224 = vmatmul.mubr.bf16.gmra.mxu0 %v1424
      %v3225 = vpop.f32.mrf.mxu0
      %v3226 = vadd.f32 0.0, %v3225
      %v3227 = vpop.f32.mrf.mxu0
      %v3228 = vpop.f32.mrf.mxu0
      %v3229 = vadd.f32 0.0, %v3228
      %v3230 = vpop.f32.mrf.mxu0
      %3231 = vmatprep.mubr.bf16.mxu0 0
      %3232 = vmatmul.mubr.bf16.gmra.mxu0 %v1425
      %v3233 = vpop.f32.mrf.mxu0
      %v3234 = vadd.f32 0.0, %v3233
      %v3235 = vpop.f32.mrf.mxu0
      %v3236 = vpop.f32.mrf.mxu0
      %v3237 = vadd.f32 0.0, %v3236
      %v3238 = vpop.f32.mrf.mxu0
      %3239 = vmatprep.mubr.bf16.mxu0 0
      %3240 = vmatmul.mubr.bf16.gmra.mxu0 %v1426
      %v3241 = vpop.f32.mrf.mxu0
      %v3242 = vadd.f32 0.0, %v3241
      %v3243 = vpop.f32.mrf.mxu0
      %v3244 = vpop.f32.mrf.mxu0
      %v3245 = vadd.f32 0.0, %v3244
      %v3246 = vpop.f32.mrf.mxu0
      %3247 = vmatprep.mubr.bf16.mxu0 0
      %3248 = vmatmul.mubr.bf16.gmra.mxu0 %v1427
      %v3249 = vpop.f32.mrf.mxu0
      %v3250 = vadd.f32 0.0, %v3249
      %v3251 = vpop.f32.mrf.mxu0
      %v3252 = vpop.f32.mrf.mxu0
      %v3253 = vadd.f32 0.0, %v3252
      %v3254 = vpop.f32.mrf.mxu0
      %3255 = vmatprep.mubr.bf16.mxu0 0
      %3256 = vmatmul.mubr.bf16.gmra.mxu0 %v1428
      %v3257 = vpop.f32.mrf.mxu0
      %v3258 = vadd.f32 0.0, %v3257
      %v3259 = vpop.f32.mrf.mxu0
      %v3260 = vpop.f32.mrf.mxu0
      %v3261 = vadd.f32 0.0, %v3260
      %v3262 = vpop.f32.mrf.mxu0
      %3263 = vmatprep.mubr.bf16.mxu0 0
      %3264 = vmatmul.mubr.bf16.gmra.mxu0 %v1429
      %v3265 = vpop.f32.mrf.mxu0
      %v3266 = vadd.f32 0.0, %v3265
      %v3267 = vpop.f32.mrf.mxu0
      %v3268 = vpop.f32.mrf.mxu0
      %v3269 = vadd.f32 0.0, %v3268
      %v3270 = vpop.f32.mrf.mxu0
      %3271 = vmatprep.mubr.bf16.mxu0 0
      %3272 = vmatmul.mubr.bf16.gmra.mxu0 %v1430
      %v3273 = vpop.f32.mrf.mxu0
      %v3274 = vadd.f32 0.0, %v3273
      %v3275 = vpop.f32.mrf.mxu0
      %v3276 = vpop.f32.mrf.mxu0
      %v3277 = vadd.f32 0.0, %v3276
      %v3278 = vpop.f32.mrf.mxu0
      %3279 = vmatprep.mubr.bf16.mxu0 0
      %3280 = vmatmul.mubr.bf16.gmra.mxu0 %v2265
      %v3281 = vpop.f32.mrf.mxu0
      %v3282 = vadd.f32 0.0, %v3281
      %v3283 = vpop.f32.mrf.mxu0
      %v3284 = vpop.f32.mrf.mxu0
      %v3285 = vadd.f32 0.0, %v3284
      %v3286 = vpop.f32.mrf.mxu0
      %3287 = vmatprep.mubr.bf16.mxu0 0
      %3288 = vmatmul.mubr.bf16.gmra.mxu0 %v3085
      %v3289 = vpop.f32.mrf.mxu0
      %v3290 = vadd.f32 0.0, %v3289
      %v3291 = vpop.f32.mrf.mxu0
      %v3292 = vpop.f32.mrf.mxu0
      %v3293 = vadd.f32 0.0, %v3292
      %v3294 = vpop.f32.mrf.mxu0
      %3295 = vdwg.mxu0
      %v3296 = vadd.f32 %v3026, %v3170
      %v3297 = vadd.f32 %v3027, %v3173
      %v3298 = vadd.f32 %v3028, %v3178
      %v3299 = vadd.f32 %v3029, %v3181
      %v3300 = vadd.f32 %v3030, %v3186
      %v3301 = vadd.f32 %v3031, %v3189
      %v3302 = vadd.f32 %v3032, %v3194
      %v3303 = vadd.f32 %v3033, %v3197
      %v3304 = vadd.f32 %v3034, %v3202
      %v3305 = vadd.f32 %v3035, %v3205
      %v3306 = vadd.f32 %v3036, %v3210
      %v3307 = vadd.f32 %v3037, %v3213
      %v3308 = vadd.f32 %v3038, %v3218
      %v3309 = vadd.f32 %v3039, %v3221
      %v3310 = vadd.f32 %v3040, %v3226
      %v3311 = vadd.f32 %v3041, %v3229
      %v3312 = vadd.f32 %v3042, %v3234
      %v3313 = vadd.f32 %v3043, %v3237
      %v3314 = vadd.f32 %v3044, %v3242
      %v3315 = vadd.f32 %v3045, %v3245
      %v3316 = vadd.f32 %v3046, %v3250
      %v3317 = vadd.f32 %v3047, %v3253
      %v3318 = vadd.f32 %v3048, %v3258
      %v3319 = vadd.f32 %v3049, %v3261
      %v3320 = vadd.f32 %v3050, %v3266
      %v3321 = vadd.f32 %v3051, %v3269
      %v3322 = vadd.f32 %v3052, %v3274
      %v3323 = vadd.f32 %v3053, %v3277
      %v3324 = vadd.f32 %v3054, %v3282
      %v3325 = vadd.f32 %v3055, %v3285
      %v3326 = vadd.f32 %v3056, %v3290
      %v3327 = vadd.f32 %v3057, %v3293
      %v3328 = vpack.c.bf16 %v3297, %v3296
      %v3329 = vpack.c.bf16 %v3299, %v3298
      %v3330 = vpack.c.bf16 %v3301, %v3300
      %v3331 = vpack.c.bf16 %v3303, %v3302
      %v3332 = vpack.c.bf16 %v3305, %v3304
      %v3333 = vpack.c.bf16 %v3307, %v3306
      %v3334 = vpack.c.bf16 %v3309, %v3308
      %v3335 = vpack.c.bf16 %v3311, %v3310
      %v3336 = vpack.c.bf16 %v3313, %v3312
      %v3337 = vpack.c.bf16 %v3315, %v3314
      %v3338 = vpack.c.bf16 %v3317, %v3316
      %v3339 = vpack.c.bf16 %v3319, %v3318
      %v3340 = vpack.c.bf16 %v3321, %v3320
      %v3341 = vpack.c.bf16 %v3323, %v3322
      %v3342 = vpack.c.bf16 %v3325, %v3324
      %v3343 = vpack.c.bf16 %v3327, %v3326
      %v3360 = vunpack.c.l.b16 %v3328
      %v3361 = vunpack.c.h.b16 %v3328
      %v3362 = vunpack.c.l.b16 %v3329
      %v3363 = vunpack.c.h.b16 %v3329
      %v3364 = vunpack.c.l.b16 %v3330
      %v3365 = vunpack.c.h.b16 %v3330
      %v3366 = vunpack.c.l.b16 %v3331
      %v3367 = vunpack.c.h.b16 %v3331
      %v3368 = vunpack.c.l.b16 %v3332
      %v3369 = vunpack.c.h.b16 %v3332
      %v3370 = vunpack.c.l.b16 %v3333
      %v3371 = vunpack.c.h.b16 %v3333
      %v3372 = vunpack.c.l.b16 %v3334
      %v3373 = vunpack.c.h.b16 %v3334
      %v3374 = vunpack.c.l.b16 %v3335
      %v3375 = vunpack.c.h.b16 %v3335
      %v3376 = vunpack.c.l.b16 %v3336
      %v3377 = vunpack.c.h.b16 %v3336
      %v3378 = vunpack.c.l.b16 %v3337
      %v3379 = vunpack.c.h.b16 %v3337
      %v3380 = vunpack.c.l.b16 %v3338
      %v3381 = vunpack.c.h.b16 %v3338
      %v3382 = vunpack.c.l.b16 %v3339
      %v3383 = vunpack.c.h.b16 %v3339
      %v3384 = vunpack.c.l.b16 %v3340
      %v3385 = vunpack.c.h.b16 %v3340
      %v3386 = vunpack.c.l.b16 %v3341
      %v3387 = vunpack.c.h.b16 %v3341
      %v3388 = vunpack.c.l.b16 %v3342
      %v3389 = vunpack.c.h.b16 %v3342
      %v3390 = vunpack.c.l.b16 %v3343
      %v3391 = vunpack.c.h.b16 %v3343
      %v3392 = vpack.c.b16 %v3360, %v3360
      %v3393 = vpack.c.b16 %v3361, %v3361
      %v3394 = vpack.c.b16 %v3362, %v3362
      %v3395 = vpack.c.b16 %v3363, %v3363
      %v3396 = vpack.c.b16 %v3364, %v3364
      %v3397 = vpack.c.b16 %v3365, %v3365
      %v3398 = vpack.c.b16 %v3366, %v3366
      %v3399 = vpack.c.b16 %v3367, %v3367
      %v3400 = vpack.c.b16 %v3368, %v3368
      %v3401 = vpack.c.b16 %v3369, %v3369
      %v3402 = vpack.c.b16 %v3370, %v3370
      %v3403 = vpack.c.b16 %v3371, %v3371
      %v3404 = vpack.c.b16 %v3372, %v3372
      %v3405 = vpack.c.b16 %v3373, %v3373
      %v3406 = vpack.c.b16 %v3374, %v3374
      %v3407 = vpack.c.b16 %v3375, %v3375
      %v3408 = vpack.c.b16 %v3376, %v3376
      %v3409 = vpack.c.b16 %v3377, %v3377
      %v3410 = vpack.c.b16 %v3378, %v3378
      %v3411 = vpack.c.b16 %v3379, %v3379
      %v3412 = vpack.c.b16 %v3380, %v3380
      %v3413 = vpack.c.b16 %v3381, %v3381
      %v3414 = vpack.c.b16 %v3382, %v3382
      %v3415 = vpack.c.b16 %v3383, %v3383
      %v3416 = vpack.c.b16 %v3384, %v3384
      %v3417 = vpack.c.b16 %v3385, %v3385
      %v3418 = vpack.c.b16 %v3386, %v3386
      %v3419 = vpack.c.b16 %v3387, %v3387
      %v3420 = vpack.c.b16 %v3388, %v3388
      %v3421 = vpack.c.b16 %v3389, %v3389
      %v3422 = vpack.c.b16 %v3390, %v3390
      %v3423 = vpack.c.b16 %v3391, %v3391
      %3456 = vst [vmem:[%s177] sm:$0xf] %v3392
      %3457 = vst [vmem:[%s177 + $0x4] sm:$0xf] %v3393
      %3458 = vst [vmem:[%s177 + $0x8] sm:$0xf] %v3394
      %3459 = vst [vmem:[%s177 + $0xc] sm:$0xf] %v3395
      %3460 = vst [vmem:[%s177 + $0x10] sm:$0xf] %v3396
      %3461 = vst [vmem:[%s177 + $0x14] sm:$0xf] %v3397
      %3462 = vst [vmem:[%s177 + $0x18] sm:$0xf] %v3398
      %3463 = vst [vmem:[%s177 + $0x1c] sm:$0xf] %v3399
      %3464 = vst [vmem:[%s177 + $0x20] sm:$0xf] %v3400
      %3465 = vst [vmem:[%s177 + $0x24] sm:$0xf] %v3401
      %3466 = vst [vmem:[%s177 + $0x28] sm:$0xf] %v3402
      %3467 = vst [vmem:[%s177 + $0x2c] sm:$0xf] %v3403
      %3468 = vst [vmem:[%s177 + $0x30] sm:$0xf] %v3404
      %3469 = vst [vmem:[%s177 + $0x34] sm:$0xf] %v3405
      %3470 = vst [vmem:[%s177 + $0x38] sm:$0xf] %v3406
      %3471 = vst [vmem:[%s177 + $0x3c] sm:$0xf] %v3407
      %3472 = vst [vmem:[%s177 + $0x40] sm:$0xf] %v3408
      %3473 = vst [vmem:[%s177 + $0x44] sm:$0xf] %v3409
      %3474 = vst [vmem:[%s177 + $0x48] sm:$0xf] %v3410
      %3475 = vst [vmem:[%s177 + $0x4c] sm:$0xf] %v3411
      %3476 = vst [vmem:[%s177 + $0x50] sm:$0xf] %v3412
      %3477 = vst [vmem:[%s177 + $0x54] sm:$0xf] %v3413
      %3478 = vst [vmem:[%s177 + $0x58] sm:$0xf] %v3414
      %3479 = vst [vmem:[%s177 + $0x5c] sm:$0xf] %v3415
      %3480 = vst [vmem:[%s177 + $0x60] sm:$0xf] %v3416
      %3481 = vst [vmem:[%s177 + $0x64] sm:$0xf] %v3417
      %3482 = vst [vmem:[%s177 + $0x68] sm:$0xf] %v3418
      %3483 = vst [vmem:[%s177 + $0x6c] sm:$0xf] %v3419
      %3484 = vst [vmem:[%s177 + $0x70] sm:$0xf] %v3420
      %3485 = vst [vmem:[%s177 + $0x74] sm:$0xf] %v3421
      %3486 = vst [vmem:[%s177 + $0x78] sm:$0xf] %v3422
      %3487 = vst [vmem:[%s177 + $0x7c] sm:$0xf] %v3423
      %v3488 = vadd.f32 %v3296, %v3297
      %v3489 = vadd.f32 %v3488, %v3298
      %v3490 = vadd.f32 %v3489, %v3299
      %v3491 = vadd.f32 %v3490, %v3300
      %v3492 = vadd.f32 %v3491, %v3301
      %v3493 = vadd.f32 %v3492, %v3302
      %v3494 = vadd.f32 %v3493, %v3303
      %v3495 = vadd.f32 %v3494, %v3304
      %v3496 = vadd.f32 %v3495, %v3305
      %v3497 = vadd.f32 %v3496, %v3306
      %v3498 = vadd.f32 %v3497, %v3307
      %v3499 = vadd.f32 %v3498, %v3308
      %v3500 = vadd.f32 %v3499, %v3309
      %v3501 = vadd.f32 %v3500, %v3310
      %v3502 = vadd.f32 %v3501, %v3311
      %v3503 = vadd.f32 %v3502, %v3312
      %v3504 = vadd.f32 %v3503, %v3313
      %v3505 = vadd.f32 %v3504, %v3314
      %v3506 = vadd.f32 %v3505, %v3315
      %v3507 = vadd.f32 %v3506, %v3316
      %v3508 = vadd.f32 %v3507, %v3317
      %v3509 = vadd.f32 %v3508, %v3318
      %v3510 = vadd.f32 %v3509, %v3319
      %v3511 = vadd.f32 %v3510, %v3320
      %v3512 = vadd.f32 %v3511, %v3321
      %v3513 = vadd.f32 %v3512, %v3322
      %v3514 = vadd.f32 %v3513, %v3323
      %v3515 = vadd.f32 %v3514, %v3324
      %v3516 = vadd.f32 %v3515, %v3325
      %v3517 = vadd.f32 %v3516, %v3326
      %v3518 = vadd.f32 %v3517, %v3327
      %v3519 = vrot.slane %v3518, 4
      %v3520 = vadd.f32 %v3518, %v3519
      %v3521 = vrot.slane %v3520, 2
      %v3522 = vadd.f32 %v3520, %v3521
      %v3523 = vrot.slane %v3522, 1
      %v3524 = vadd.f32 %v3522, %v3523
      %v3525 = vmul.f32 %v3296, %v3296
      %v3526 = vmul.f32 %v3297, %v3297
      %v3527 = vmul.f32 %v3298, %v3298
      %v3528 = vmul.f32 %v3299, %v3299
      %v3529 = vmul.f32 %v3300, %v3300
      %v3530 = vmul.f32 %v3301, %v3301
      %v3531 = vmul.f32 %v3302, %v3302
      %v3532 = vmul.f32 %v3303, %v3303
      %v3533 = vmul.f32 %v3304, %v3304
      %v3534 = vmul.f32 %v3305, %v3305
      %v3535 = vmul.f32 %v3306, %v3306
      %v3536 = vmul.f32 %v3307, %v3307
      %v3537 = vmul.f32 %v3308, %v3308
      %v3538 = vmul.f32 %v3309, %v3309
      %v3539 = vmul.f32 %v3310, %v3310
      %v3540 = vmul.f32 %v3311, %v3311
      %v3541 = vmul.f32 %v3312, %v3312
      %v3542 = vmul.f32 %v3313, %v3313
      %v3543 = vmul.f32 %v3314, %v3314
      %v3544 = vmul.f32 %v3315, %v3315
      %v3545 = vmul.f32 %v3316, %v3316
      %v3546 = vmul.f32 %v3317, %v3317
      %v3547 = vmul.f32 %v3318, %v3318
      %v3548 = vmul.f32 %v3319, %v3319
      %v3549 = vmul.f32 %v3320, %v3320
      %v3550 = vmul.f32 %v3321, %v3321
      %v3551 = vmul.f32 %v3322, %v3322
      %v3552 = vmul.f32 %v3323, %v3323
      %v3553 = vmul.f32 %v3324, %v3324
      %v3554 = vmul.f32 %v3325, %v3325
      %v3555 = vmul.f32 %v3326, %v3326
      %v3556 = vmul.f32 %v3327, %v3327
      %v3557 = vadd.f32 %v3525, %v3526
      %v3558 = vadd.f32 %v3557, %v3527
      %v3559 = vadd.f32 %v3558, %v3528
      %v3560 = vadd.f32 %v3559, %v3529
      %v3561 = vadd.f32 %v3560, %v3530
      %v3562 = vadd.f32 %v3561, %v3531
      %v3563 = vadd.f32 %v3562, %v3532
      %v3564 = vadd.f32 %v3563, %v3533
      %v3565 = vadd.f32 %v3564, %v3534
      %v3566 = vadd.f32 %v3565, %v3535
      %v3567 = vadd.f32 %v3566, %v3536
      %v3568 = vadd.f32 %v3567, %v3537
      %v3569 = vadd.f32 %v3568, %v3538
      %v3570 = vadd.f32 %v3569, %v3539
      %v3571 = vadd.f32 %v3570, %v3540
      %v3572 = vadd.f32 %v3571, %v3541
      %v3573 = vadd.f32 %v3572, %v3542
      %v3574 = vadd.f32 %v3573, %v3543
      %v3575 = vadd.f32 %v3574, %v3544
      %v3576 = vadd.f32 %v3575, %v3545
      %v3577 = vadd.f32 %v3576, %v3546
      %v3578 = vadd.f32 %v3577, %v3547
      %v3579 = vadd.f32 %v3578, %v3548
      %v3580 = vadd.f32 %v3579, %v3549
      %v3581 = vadd.f32 %v3580, %v3550
      %v3582 = vadd.f32 %v3581, %v3551
      %v3583 = vadd.f32 %v3582, %v3552
      %v3584 = vadd.f32 %v3583, %v3553
      %v3585 = vadd.f32 %v3584, %v3554
      %v3586 = vadd.f32 %v3585, %v3555
      %v3587 = vadd.f32 %v3586, %v3556
      %v3588 = vrot.slane %v3587, 4
      %v3589 = vadd.f32 %v3587, %v3588
      %v3590 = vrot.slane %v3589, 2
      %v3591 = vadd.f32 %v3589, %v3590
      %v3592 = vrot.slane %v3591, 1
      %v3593 = vadd.f32 %v3591, %v3592
      %vm3594 = vcmask 1040384
      %v3595 = vsel %vm3594, %v3524, %v3593
      %3596 = vst [vmem:[%s181] sm:$0x3] %v3595
      %p3597 = scmp.lt.s32.totalorder %s15, 1
      %s3598 = scalar_select %p3597, %s15, 1
      %s3599 = smul.addr %s3598, 32
      %s3600 = smul.addr %s3599, 4
      %s3601 = scalar_lea.vmem %s2, %s3600
      %p3602 = scmp.lt.s32.totalorder %s15, 1
      %s3603 = scalar_select %p3602, %s15, 1
      %s3604 = smul.addr %s3603, 2
      %s3605 = scalar_lea.vmem %s3, %s3604
      // Predicated region
      $region29: #{residual_block.3} parent=27 // pred_check
        %p3606 = pneg %p80
      $region30: #{residual_block.3} parent=27 // pred_check_branch
        %3608 = sbr.rel (%p3606) target = $region32
      $region31: #{residual_block.3} parent=27 // pred_region
        _
      $region32: #{residual_block.3} parent=27 // pred_fallthru
        _
      // Predicated region
      $region33: #{residual_block.3} parent=27 // pred_check
        %p3609 = pneg %p106
      $region34: #{residual_block.3} parent=27 // pred_check_branch
        %3611 = sbr.rel (%p3609) target = $region36
      $region35: #{residual_block.3} parent=27 // pred_region
        _
      $region36: #{residual_block.3} parent=27 // pred_fallthru
        _
    $region28: #{residual_block.3} parent=5 // pred_fallthru
      _
    %p3612 = scmp.le.s32.totalorder 2, %s10
    // Predicated region
    $region37: #{residual_block.3} parent=5 // pred_check
      %p3613 = pneg %p3612
    $region38: #{residual_block.3} parent=5 // pred_check_branch
      %3615 = sbr.rel (%p3613) target = $region40
    $region39: #{residual_block.3} parent=5 // pred_region
      %s3616 = ssub.s32 %s10, 2
      // Predicated region
      $region41: #{residual_block.3} parent=39 // pred_check
        %p3617 = pneg %p86
      $region42: #{residual_block.3} parent=39 // pred_check_branch
        %3619 = sbr.rel (%p3617) target = $region44
      $region43: #{residual_block.3} parent=39 // pred_region
        %p3620 = scmp.lt.s32.totalorder %s16, 1
        %s3621 = scalar_select %p3620, %s16, 1
        %s3622 = smul.addr %s3621, 32
        %s3623 = smul.addr %s3622, 4
        %s3624 = scalar_lea.vmem %s2, %s3623
      $region44: #{residual_block.3} parent=39 // pred_fallthru
        _
      // Predicated region
      $region45: #{residual_block.3} parent=39 // pred_check
        %p3625 = pneg %p112
      $region46: #{residual_block.3} parent=39 // pred_check_branch
        %3627 = sbr.rel (%p3625) target = $region48
      $region47: #{residual_block.3} parent=39 // pred_region
        %p3628 = scmp.lt.s32.totalorder %s16, 1
        %s3629 = scalar_select %p3628, %s16, 1
        %s3630 = smul.addr %s3629, 2
        %s3631 = scalar_lea.vmem %s3, %s3630
      $region48: #{residual_block.3} parent=39 // pred_fallthru
        _
    $region40: #{residual_block.3} parent=5 // pred_fallthru
      _
  $region6: #{residual_block.3} parent=0 // loop_footer
    %s14 = sadd.s32 1, %s10
  $region7: #{residual_block.3} parent=0 // loop_footer_branch
    %9 = sbr.rel target = $region3
  $region8: #{residual_block.3} parent=0 // loop_exit
    _

</llo_original>
